<compile_context>
chip_gen: v6e
topology: v6e:2x2x1
jax: 0.10.0
libtpu: 0.0.40
codegen_flags: <defaults>
</compile_context>

<pallas_src>
import math

import jax
import jax.numpy as jnp
from jax import lax
from jax.experimental import pallas as pl
from jax.experimental.pallas import tpu as pltpu

NEG = -1.0e30  # effectively -inf for padded CRF tags (finite -> NaN-safe)


def em_bilstm_crf_kernel(
    ids_ref,        # (T*B, 1) int32, t-major token ids
    table_ref,      # (Vp, 16*Hd) fused embedding+input-projection table
    bias_ref,       # (1, 8*Hd)   fused LSTM bias (both directions)
    whh_ref,        # (2*Hd, 8*Hd) block-diagonal recurrent weight
    wem_f_ref,      # (Hd, 2*n)   folded linear+heads, forward half
    wem_b_ref,      # (Hd, 2*n)   folded linear+heads, backward half
    bem_ref,        # (1, 2*n)
    transT_ref,     # (KB, n, n)  transT[k, j, i] = trans_k[i, j] (NEG padded)
    start_ref,      # (KB, n)
    end_ref,        # (KB, n)
    tags_div_ref,   # out (B, T) int32
    tags_ch_ref,    # out (B, T) int32
    hsf_ref,        # scratch (T*B, Hd) f32   forward hidden states (t-major)
    hsb_ref,        # scratch (T*B, Hd) f32   backward hidden states (t-major)
    emkb_ref,       # scratch (T*KB, n) f32   emissions in Viterbi-batch layout
    hist_ref,       # scratch (T*KB, n) int32 Viterbi backpointers
):
    B, T = tags_div_ref.shape
    TB = T * B
    Hd2 = whh_ref.shape[0]
    Hd = Hd2 // 2
    G = 8 * Hd
    Vp = table_ref.shape[0]
    KB, n = start_ref.shape  # KB == 2 * B

    # ---- embedding + LSTM input projection: one one-hot MXU matmul --------
    ids = ids_ref[...]                                             # (TB, 1)
    onehot = (lax.broadcasted_iota(jnp.int32, (TB, Vp), 1) == ids
              ).astype(jnp.float32)                                # (TB, Vp)
    xproj = jnp.dot(onehot, table_ref[...],
                    preferred_element_type=jnp.float32)            # (TB, 16*Hd)
    xproj_f = xproj[:, 0:G] + bias_ref[...]   # fwd slots populated + all biases
    xproj_b = xproj[:, G:2 * G]               # bwd slots populated

    whh = whh_ref[...]

    # ---- fused fwd+bwd recurrence: ONE matmul / sigmoid / tanh per step ---
    # gate columns: [i_f i_b | f_f f_b | o_f o_b | g_f g_b]  (8*Hd = 128)
    h_cat = jnp.zeros((B, Hd2), jnp.float32)  # [h_f | h_b]
    c_cat = jnp.zeros((B, Hd2), jnp.float32)  # [c_f | c_b]
    for s in range(T):                        # unrolled: T small & static
        tb = T - 1 - s                        # backward direction's time index
        x_step = (xproj_f[s * B:(s + 1) * B, :]
                  + xproj_b[tb * B:(tb + 1) * B, :])
        gates = x_step + jnp.dot(h_cat, whh, preferred_element_type=jnp.float32)
        sig = jax.nn.sigmoid(gates[:, 0:6 * Hd])       # [i | f | o], both dirs
        g = jnp.tanh(gates[:, 6 * Hd:8 * Hd])          # [g_f | g_b]
        i_g = sig[:, 0:2 * Hd]
        f_g = sig[:, 2 * Hd:4 * Hd]
        o_g = sig[:, 4 * Hd:6 * Hd]
        c_cat = f_g * c_cat + i_g * g
        h_cat = o_g * jnp.tanh(c_cat)
        hsf_ref[s * B:(s + 1) * B, :] = h_cat[:, 0:Hd]      # h_fwd at time s
        hsb_ref[tb * B:(tb + 1) * B, :] = h_cat[:, Hd:Hd2]  # h_bwd at time tb

    # ---- folded linear + both tag heads: two time-batched matmuls ---------
    em_all = (jnp.dot(hsf_ref[...], wem_f_ref[...],
                      preferred_element_type=jnp.float32)
              + jnp.dot(hsb_ref[...], wem_b_ref[...],
                        preferred_element_type=jnp.float32)
              + bem_ref[...])                                   # (TB, 2*n)

    # hoisted emission re-layout -> (T*KB, n): per time step, head1 rows (B)
    # followed by head2 rows (B).  Done once, outside the serial Viterbi loop.
    for t in range(T):
        blk = em_all[t * B:(t + 1) * B, :]
        emkb_ref[t * KB:t * KB + B, :] = blk[:, 0:n]
        emkb_ref[t * KB + B:(t + 1) * KB, :] = blk[:, n:2 * n]

    # ---- fused Viterbi decode for both CRFs over the (KB, n) batch --------
    transT = transT_ref[...]
    start = start_ref[...]
    end = end_ref[...]

    iota3 = lax.broadcasted_iota(jnp.int32, (KB, n, n), 2)
    iota2 = lax.broadcasted_iota(jnp.int32, (KB, n), 1)
    fill = jnp.int32(n)

    score = start + emkb_ref[0:KB, :]                      # (KB, n)
    for t in range(1, T):
        # vals[kb, j, i] = score[kb, i] + trans_k[i, j]
        vals = score[:, None, :] + transT                  # (KB, n_next, n_prev)
        m = jnp.max(vals, axis=-1, keepdims=True)
        # first-index argmax over previous tags
        bp = jnp.min(jnp.where(vals == m, iota3, fill), axis=-1)
        hist_ref[t * KB:(t + 1) * KB, :] = bp
        score = jnp.max(vals, axis=-1) + emkb_ref[t * KB:(t + 1) * KB, :]

    score = score + end
    m_fin = jnp.max(score, axis=-1, keepdims=True)
    cur = jnp.min(jnp.where(score == m_fin, iota2, fill),
                  axis=-1, keepdims=True)                  # (KB, 1) best last tag

    cols = [None] * T
    cols[T - 1] = cur
    for t in range(T - 2, -1, -1):
        bp = hist_ref[(t + 1) * KB:(t + 2) * KB, :]
        cur = jnp.max(jnp.where(iota2 == cur, bp, jnp.int32(0)),
                      axis=-1, keepdims=True)
        cols[t] = cur

    tags = jnp.concatenate(cols, axis=-1)                  # (KB, T) int32
    tags_div_ref[...] = tags[0:B, :]
    tags_ch_ref[...] = tags[B:KB, :]


# ------------------------------ parameters ---------------------------------

def _reorder_gates(w, Hd):
    """Reorder PyTorch LSTM gate blocks (i, f, g, o) -> (i, f, o, g) on dim 0."""
    return jnp.concatenate(
        [w[0:Hd], w[Hd:2 * Hd], w[3 * Hd:4 * Hd], w[2 * Hd:3 * Hd]], axis=0)


def init_params(key, words_size, embedding_dim, hidden_dim, feature_dim, n1, n2):
    Hd = hidden_dim // 2
    ks = jax.random.split(key, 24)

    def u(k, shape, scale):
        return jax.random.uniform(k, shape, jnp.float32, -scale, scale)

    s_lstm = 1.0 / math.sqrt(Hd)
    s_lin = 1.0 / math.sqrt(hidden_dim)
    s_tag = 1.0 / math.sqrt(feature_dim)
    return dict(
        emb=jax.random.normal(ks[0], (words_size, embedding_dim), jnp.float32),
        wih_f=u(ks[1], (4 * Hd, embedding_dim), s_lstm),
        whh_f=u(ks[2], (4 * Hd, Hd), s_lstm),
        bih_f=u(ks[3], (4 * Hd,), s_lstm),
        bhh_f=u(ks[4], (4 * Hd,), s_lstm),
        wih_b=u(ks[5], (4 * Hd, embedding_dim), s_lstm),
        whh_b=u(ks[6], (4 * Hd, Hd), s_lstm),
        bih_b=u(ks[7], (4 * Hd,), s_lstm),
        bhh_b=u(ks[8], (4 * Hd,), s_lstm),
        wlin=u(ks[9], (feature_dim, hidden_dim), s_lin),
        blin=u(ks[10], (feature_dim,), s_lin),
        w1=u(ks[11], (n1, feature_dim), s_tag),
        b1=u(ks[12], (n1,), s_tag),
        w2=u(ks[13], (n2, feature_dim), s_tag),
        b2=u(ks[14], (n2,), s_tag),
        trans1=u(ks[15], (n1, n1), 0.1),
        start1=u(ks[16], (n1,), 0.1),
        end1=u(ks[17], (n1,), 0.1),
        trans2=u(ks[18], (n2, n2), 0.1),
        start2=u(ks[19], (n2,), 0.1),
        end2=u(ks[20], (n2,), 0.1),
    )


def prepare_params(params, batch_size, n1, n2):
    """One-time layout prep: embedding folded into the input projection,
    fwd/bwd gates packed into a block-diagonal fused layout, linear+heads
    folded into one affine, CRF tensors padded to a sublane-aligned tag dim."""
    B = batch_size
    Hd = params["whh_f"].shape[1]
    V = params["emb"].shape[0]
    F = params["wlin"].shape[0]
    n = ((max(n1, n2) + 7) // 8) * 8            # pad tagset to sublane multiple
    f32 = jnp.float32
    hp = lax.Precision.HIGHEST

    wih_f = _reorder_gates(params["wih_f"], Hd)               # (4Hd, E)
    wih_b = _reorder_gates(params["wih_b"], Hd)
    whh_f = _reorder_gates(params["whh_f"], Hd)               # (4Hd, Hd)
    whh_b = _reorder_gates(params["whh_b"], Hd)
    bias_f = _reorder_gates(params["bih_f"] + params["bhh_f"], Hd)
    bias_b = _reorder_gates(params["bih_b"] + params["bhh_b"], Hd)

    # Embedding folded into the input projection (driven by one-hot in-kernel).
    proj_f = jnp.dot(params["emb"].astype(f32), wih_f.T, precision=hp)  # (V, 4Hd)
    proj_b = jnp.dot(params["emb"].astype(f32), wih_b.T, precision=hp)

    Vp = ((V + 7) // 8) * 8
    table_f = jnp.zeros((Vp, 8 * Hd), f32)
    table_b = jnp.zeros((Vp, 8 * Hd), f32)
    whh_fused = jnp.zeros((2 * Hd, 8 * Hd), f32)
    bias_fused = jnp.zeros((8 * Hd,), f32)
    # fused gate column layout: [i_f i_b | f_f f_b | o_f o_b | g_f g_b]
    for gi in range(4):
        fs = slice(gi * 2 * Hd, gi * 2 * Hd + Hd)             # fwd slot of gate gi
        bs = slice(gi * 2 * Hd + Hd, (gi + 1) * 2 * Hd)       # bwd slot of gate gi
        gsl = slice(gi * Hd, (gi + 1) * Hd)                   # per-dir gate block
        table_f = table_f.at[0:V, fs].set(proj_f[:, gsl])
        table_b = table_b.at[0:V, bs].set(proj_b[:, gsl])
        whh_fused = whh_fused.at[0:Hd, fs].set(whh_f[gsl, :].T)
        whh_fused = whh_fused.at[Hd:2 * Hd, bs].set(whh_b[gsl, :].T)
        bias_fused = bias_fused.at[fs].set(bias_f[gsl])
        bias_fused = bias_fused.at[bs].set(bias_b[gsl])
    table_fb = jnp.concatenate([table_f, table_b], axis=1)    # (Vp, 16Hd)
    bias_fused = bias_fused.reshape(1, -1)

    # Linear + both tag heads folded into one affine on (h_f, h_b).
    wlin = params["wlin"]                                     # (F, 2Hd)
    w1p = jnp.zeros((F, n), f32).at[:, 0:n1].set(params["w1"].T)
    w2p = jnp.zeros((F, n), f32).at[:, 0:n2].set(params["w2"].T)
    wheads = jnp.concatenate([w1p, w2p], axis=1)              # (F, 2n)
    b1p = jnp.zeros((n,), f32).at[0:n1].set(params["b1"])
    b2p = jnp.zeros((n,), f32).at[0:n2].set(params["b2"])
    bheads = jnp.concatenate([b1p, b2p], axis=0)              # (2n,)
    wem_f = jnp.dot(wlin[:, 0:Hd].T, wheads, precision=hp)    # (Hd, 2n)
    wem_b = jnp.dot(wlin[:, Hd:2 * Hd].T, wheads, precision=hp)
    bem = (jnp.dot(params["blin"], wheads, precision=hp) + bheads).reshape(1, -1)

    # CRF tensors, padded to n tags and tiled over the fused (2B, n) batch.
    def pad_trans_T(trans, nk):
        tp = jnp.full((n, n), NEG, f32).at[0:nk, 0:nk].set(trans)
        return tp.T                                           # transT[j, i] = trans[i, j]

    def pad_vec(v, nk, fill):
        return jnp.full((n,), fill, f32).at[0:nk].set(v)

    transT_kb = jnp.concatenate(
        [jnp.tile(pad_trans_T(params["trans1"], n1)[None], (B, 1, 1)),
         jnp.tile(pad_trans_T(params["trans2"], n2)[None], (B, 1, 1))], axis=0)
    start_kb = jnp.concatenate(
        [jnp.tile(pad_vec(params["start1"], n1, NEG)[None], (B, 1)),
         jnp.tile(pad_vec(params["start2"], n2, NEG)[None], (B, 1))], axis=0)
    end_kb = jnp.concatenate(
        [jnp.tile(pad_vec(params["end1"], n1, 0.0)[None], (B, 1)),
         jnp.tile(pad_vec(params["end2"], n2, 0.0)[None], (B, 1))], axis=0)

    return (table_fb, bias_fused, whh_fused, wem_f, wem_b, bem,
            transT_kb, start_kb, end_kb)


@jax.jit
def em_bilstm_crf_forward(sentences, prepped):
    """sentences: (B, T) int32 ids. Returns (tags_div, tags_ch), (B, T) int32."""
    B, T = sentences.shape
    (table_fb, bias_fused, whh_fused, wem_f, wem_b, bem,
     transT_kb, start_kb, end_kb) = prepped
    Hd = whh_fused.shape[0] // 2
    KB, n = start_kb.shape

    ids_tmajor = sentences.T.reshape(T * B, 1).astype(jnp.int32)

    vmem = pl.BlockSpec(memory_space=pltpu.MemorySpace.VMEM)
    tags_div, tags_ch = pl.pallas_call(
        em_bilstm_crf_kernel,
        out_shape=(jax.ShapeDtypeStruct((B, T), jnp.int32),
                   jax.ShapeDtypeStruct((B, T), jnp.int32)),
        in_specs=[vmem] * (1 + len(prepped)),
        out_specs=(vmem, vmem),
        scratch_shapes=[
            pltpu.VMEM((T * B, Hd), jnp.float32),   # forward hidden states
            pltpu.VMEM((T * B, Hd), jnp.float32),   # backward hidden states
            pltpu.VMEM((T * KB, n), jnp.float32),   # emissions, Viterbi layout
            pltpu.VMEM((T * KB, n), jnp.int32),     # backpointers
        ],
    )(ids_tmajor, *prepped)
    return tags_div, tags_ch


if __name__ == "__main__":
    words_size = 50
    embedding_dim = 32
    hidden_dim = 32
    feature_dim = 128
    divs_size = 5      # tagset_size1
    chs_size = 7       # tagset_size2
    B, T = 2, 8

    key = jax.random.PRNGKey(0)
    pkey, skey = jax.random.split(key)
    params = init_params(pkey, words_size, embedding_dim, hidden_dim,
                         feature_dim, divs_size, chs_size)
    sentences = jax.random.randint(skey, (B, T), 0, words_size, dtype=jnp.int32)

    prepped = prepare_params(params, B, divs_size, chs_size)

    tags_div, tags_ch = em_bilstm_crf_forward(sentences, prepped)
    jax.block_until_ready((tags_div, tags_ch))

    assert tags_div.shape == (B, T) and tags_ch.shape == (B, T)
    assert tags_div.dtype == jnp.int32 and tags_ch.dtype == jnp.int32
    assert int(tags_div.min()) >= 0 and int(tags_div.max()) < divs_size
    assert int(tags_ch.min()) >= 0 and int(tags_ch.max()) < chs_size
    print("KERNEL_OK")
</pallas_src>

<mosaic_0001>
module attributes {stable_mosaic.version = 11 : i64} {
  func.func @em_bilstm_crf_kernel(%arg0: memref<16x1xi32, #tpu.memory_space<vmem>>, %arg1: memref<56x256xf32, #tpu.memory_space<vmem>>, %arg2: memref<1x128xf32, #tpu.memory_space<vmem>>, %arg3: memref<32x128xf32, #tpu.memory_space<vmem>>, %arg4: memref<16x16xf32, #tpu.memory_space<vmem>>, %arg5: memref<16x16xf32, #tpu.memory_space<vmem>>, %arg6: memref<1x16xf32, #tpu.memory_space<vmem>>, %arg7: memref<4x8x8xf32, #tpu.memory_space<vmem>>, %arg8: memref<4x8xf32, #tpu.memory_space<vmem>>, %arg9: memref<4x8xf32, #tpu.memory_space<vmem>>, %arg10: memref<2x8xi32, #tpu.memory_space<vmem>>, %arg11: memref<2x8xi32, #tpu.memory_space<vmem>>, %arg12: memref<16x16xf32, #tpu.memory_space<vmem>>, %arg13: memref<16x16xf32, #tpu.memory_space<vmem>>, %arg14: memref<32x8xf32, #tpu.memory_space<vmem>>, %arg15: memref<32x8xi32, #tpu.memory_space<vmem>>) attributes {dimension_semantics = [], scalar_prefetch = 0 : i64, scratch_operands = 4 : i64, tpu.core_type = #tpu.core_type<tc>} {
    %c0 = arith.constant 0 : index
    %c0_0 = arith.constant 0 : index
    %0 = vector.load %arg0[%c0, %c0_0] : memref<16x1xi32, #tpu.memory_space<vmem>>, vector<16x1xi32>
    %1 = tpu.iota {dimensions = array<i32: 1>} : vector<16x56xi32>
    %2 = vector.broadcast %0 : vector<16x1xi32> to vector<16x56xi32>
    %3 = arith.cmpi eq, %1, %2 : vector<16x56xi32>
    %4 = arith.extui %3 : vector<16x56xi1> to vector<16x56xi32>
    %5 = arith.sitofp %4 : vector<16x56xi32> to vector<16x56xf32>
    %c0_1 = arith.constant 0 : index
    %c0_2 = arith.constant 0 : index
    %6 = vector.load %arg1[%c0_1, %c0_2] : memref<56x256xf32, #tpu.memory_space<vmem>>, vector<56x256xf32>
    %cst = arith.constant dense<0.000000e+00> : vector<16x256xf32>
    %7 = tpu.matmul %5, %6, %cst {dimension_numbers = #tpu.dot_dimension_numbers<[1], [0], [0], [1], [0, 0, 1, 1], [], []>} : vector<16x56xf32>, vector<56x256xf32>, vector<16x256xf32> -> vector<16x256xf32>
    %8 = vector.extract_strided_slice %7 {offsets = [0, 0], sizes = [16, 128], strides = [1, 1]} : vector<16x256xf32> to vector<16x128xf32>
    %c0_3 = arith.constant 0 : index
    %c0_4 = arith.constant 0 : index
    %9 = vector.load %arg2[%c0_3, %c0_4] : memref<1x128xf32, #tpu.memory_space<vmem>>, vector<1x128xf32>
    %10 = vector.broadcast %9 : vector<1x128xf32> to vector<16x128xf32>
    %11 = arith.addf %8, %10 : vector<16x128xf32>
    %12 = vector.extract_strided_slice %7 {offsets = [0, 128], sizes = [16, 128], strides = [1, 1]} : vector<16x256xf32> to vector<16x128xf32>
    %c0_5 = arith.constant 0 : index
    %c0_6 = arith.constant 0 : index
    %13 = vector.load %arg3[%c0_5, %c0_6] : memref<32x128xf32, #tpu.memory_space<vmem>>, vector<32x128xf32>
    %cst_7 = arith.constant 0.000000e+00 : f32
    %14 = vector.broadcast %cst_7 : f32 to vector<2x32xf32>
    %cst_8 = arith.constant 0.000000e+00 : f32
    %15 = vector.broadcast %cst_8 : f32 to vector<2x32xf32>
    %16 = vector.extract_strided_slice %11 {offsets = [0, 0], sizes = [2, 128], strides = [1, 1]} : vector<16x128xf32> to vector<2x128xf32>
    %17 = vector.extract_strided_slice %12 {offsets = [14, 0], sizes = [2, 128], strides = [1, 1]} : vector<16x128xf32> to vector<2x128xf32>
    %18 = arith.addf %16, %17 : vector<2x128xf32>
    %cst_9 = arith.constant dense<0.000000e+00> : vector<2x128xf32>
    %19 = tpu.matmul %14, %13, %cst_9 {dimension_numbers = #tpu.dot_dimension_numbers<[1], [0], [0], [1], [0, 0, 1, 1], [], []>} : vector<2x32xf32>, vector<32x128xf32>, vector<2x128xf32> -> vector<2x128xf32>
    %20 = arith.addf %18, %19 : vector<2x128xf32>
    %21 = vector.extract_strided_slice %20 {offsets = [0, 0], sizes = [2, 96], strides = [1, 1]} : vector<2x128xf32> to vector<2x96xf32>
    %22 = arith.negf %21 : vector<2x96xf32>
    %23 = math.exp %22 : vector<2x96xf32>
    %cst_10 = arith.constant 1.000000e+00 : f32
    %24 = vector.broadcast %cst_10 : f32 to vector<2x96xf32>
    %25 = arith.addf %24, %23 : vector<2x96xf32>
    %26 = arith.divf %24, %25 : vector<2x96xf32>
    %27 = vector.extract_strided_slice %20 {offsets = [0, 96], sizes = [2, 32], strides = [1, 1]} : vector<2x128xf32> to vector<2x32xf32>
    %28 = math.tanh %27 : vector<2x32xf32>
    %29 = vector.extract_strided_slice %26 {offsets = [0, 0], sizes = [2, 32], strides = [1, 1]} : vector<2x96xf32> to vector<2x32xf32>
    %30 = vector.extract_strided_slice %26 {offsets = [0, 32], sizes = [2, 32], strides = [1, 1]} : vector<2x96xf32> to vector<2x32xf32>
    %31 = vector.extract_strided_slice %26 {offsets = [0, 64], sizes = [2, 32], strides = [1, 1]} : vector<2x96xf32> to vector<2x32xf32>
    %32 = arith.mulf %30, %15 : vector<2x32xf32>
    %33 = arith.mulf %29, %28 : vector<2x32xf32>
    %34 = arith.addf %32, %33 : vector<2x32xf32>
    %35 = math.tanh %34 : vector<2x32xf32>
    %36 = arith.mulf %31, %35 : vector<2x32xf32>
    %37 = vector.extract_strided_slice %36 {offsets = [0, 0], sizes = [2, 16], strides = [1, 1]} : vector<2x32xf32> to vector<2x16xf32>
    %c0_11 = arith.constant 0 : index
    %c0_12 = arith.constant 0 : index
    %38 = vector.load %arg12[%c0_11, %c0_12] : memref<16x16xf32, #tpu.memory_space<vmem>>, vector<2x16xf32>
    tpu.vector_store %arg12[%c0_11, %c0_12], %37 {strides = array<i32>} : memref<16x16xf32, #tpu.memory_space<vmem>>, vector<2x16xf32>,
    %39 = vector.extract_strided_slice %36 {offsets = [0, 16], sizes = [2, 16], strides = [1, 1]} : vector<2x32xf32> to vector<2x16xf32>
    %c14 = arith.constant 14 : index
    %c0_13 = arith.constant 0 : index
    %40 = vector.load %arg13[%c14, %c0_13] : memref<16x16xf32, #tpu.memory_space<vmem>>, vector<2x16xf32>
    tpu.vector_store %arg13[%c14, %c0_13], %39 {strides = array<i32>} : memref<16x16xf32, #tpu.memory_space<vmem>>, vector<2x16xf32>,
    %41 = vector.extract_strided_slice %11 {offsets = [2, 0], sizes = [2, 128], strides = [1, 1]} : vector<16x128xf32> to vector<2x128xf32>
    %42 = vector.extract_strided_slice %12 {offsets = [12, 0], sizes = [2, 128], strides = [1, 1]} : vector<16x128xf32> to vector<2x128xf32>
    %43 = arith.addf %41, %42 : vector<2x128xf32>
    %cst_14 = arith.constant dense<0.000000e+00> : vector<2x128xf32>
    %44 = tpu.matmul %36, %13, %cst_14 {dimension_numbers = #tpu.dot_dimension_numbers<[1], [0], [0], [1], [0, 0, 1, 1], [], []>} : vector<2x32xf32>, vector<32x128xf32>, vector<2x128xf32> -> vector<2x128xf32>
    %45 = arith.addf %43, %44 : vector<2x128xf32>
    %46 = vector.extract_strided_slice %45 {offsets = [0, 0], sizes = [2, 96], strides = [1, 1]} : vector<2x128xf32> to vector<2x96xf32>
    %47 = arith.negf %46 : vector<2x96xf32>
    %48 = math.exp %47 : vector<2x96xf32>
    %cst_15 = arith.constant 1.000000e+00 : f32
    %49 = vector.broadcast %cst_15 : f32 to vector<2x96xf32>
    %50 = arith.addf %49, %48 : vector<2x96xf32>
    %51 = arith.divf %49, %50 : vector<2x96xf32>
    %52 = vector.extract_strided_slice %45 {offsets = [0, 96], sizes = [2, 32], strides = [1, 1]} : vector<2x128xf32> to vector<2x32xf32>
    %53 = math.tanh %52 : vector<2x32xf32>
    %54 = vector.extract_strided_slice %51 {offsets = [0, 0], sizes = [2, 32], strides = [1, 1]} : vector<2x96xf32> to vector<2x32xf32>
    %55 = vector.extract_strided_slice %51 {offsets = [0, 32], sizes = [2, 32], strides = [1, 1]} : vector<2x96xf32> to vector<2x32xf32>
    %56 = vector.extract_strided_slice %51 {offsets = [0, 64], sizes = [2, 32], strides = [1, 1]} : vector<2x96xf32> to vector<2x32xf32>
    %57 = arith.mulf %55, %34 : vector<2x32xf32>
    %58 = arith.mulf %54, %53 : vector<2x32xf32>
    %59 = arith.addf %57, %58 : vector<2x32xf32>
    %60 = math.tanh %59 : vector<2x32xf32>
    %61 = arith.mulf %56, %60 : vector<2x32xf32>
    %62 = vector.extract_strided_slice %61 {offsets = [0, 0], sizes = [2, 16], strides = [1, 1]} : vector<2x32xf32> to vector<2x16xf32>
    %c2 = arith.constant 2 : index
    %c0_16 = arith.constant 0 : index
    %63 = vector.load %arg12[%c2, %c0_16] : memref<16x16xf32, #tpu.memory_space<vmem>>, vector<2x16xf32>
    tpu.vector_store %arg12[%c2, %c0_16], %62 {strides = array<i32>} : memref<16x16xf32, #tpu.memory_space<vmem>>, vector<2x16xf32>,
    %64 = vector.extract_strided_slice %61 {offsets = [0, 16], sizes = [2, 16], strides = [1, 1]} : vector<2x32xf32> to vector<2x16xf32>
    %c12 = arith.constant 12 : index
    %c0_17 = arith.constant 0 : index
    %65 = vector.load %arg13[%c12, %c0_17] : memref<16x16xf32, #tpu.memory_space<vmem>>, vector<2x16xf32>
    tpu.vector_store %arg13[%c12, %c0_17], %64 {strides = array<i32>} : memref<16x16xf32, #tpu.memory_space<vmem>>, vector<2x16xf32>,
    %66 = vector.extract_strided_slice %11 {offsets = [4, 0], sizes = [2, 128], strides = [1, 1]} : vector<16x128xf32> to vector<2x128xf32>
    %67 = vector.extract_strided_slice %12 {offsets = [10, 0], sizes = [2, 128], strides = [1, 1]} : vector<16x128xf32> to vector<2x128xf32>
    %68 = arith.addf %66, %67 : vector<2x128xf32>
    %cst_18 = arith.constant dense<0.000000e+00> : vector<2x128xf32>
    %69 = tpu.matmul %61, %13, %cst_18 {dimension_numbers = #tpu.dot_dimension_numbers<[1], [0], [0], [1], [0, 0, 1, 1], [], []>} : vector<2x32xf32>, vector<32x128xf32>, vector<2x128xf32> -> vector<2x128xf32>
    %70 = arith.addf %68, %69 : vector<2x128xf32>
    %71 = vector.extract_strided_slice %70 {offsets = [0, 0], sizes = [2, 96], strides = [1, 1]} : vector<2x128xf32> to vector<2x96xf32>
    %72 = arith.negf %71 : vector<2x96xf32>
    %73 = math.exp %72 : vector<2x96xf32>
    %cst_19 = arith.constant 1.000000e+00 : f32
    %74 = vector.broadcast %cst_19 : f32 to vector<2x96xf32>
    %75 = arith.addf %74, %73 : vector<2x96xf32>
    %76 = arith.divf %74, %75 : vector<2x96xf32>
    %77 = vector.extract_strided_slice %70 {offsets = [0, 96], sizes = [2, 32], strides = [1, 1]} : vector<2x128xf32> to vector<2x32xf32>
    %78 = math.tanh %77 : vector<2x32xf32>
    %79 = vector.extract_strided_slice %76 {offsets = [0, 0], sizes = [2, 32], strides = [1, 1]} : vector<2x96xf32> to vector<2x32xf32>
    %80 = vector.extract_strided_slice %76 {offsets = [0, 32], sizes = [2, 32], strides = [1, 1]} : vector<2x96xf32> to vector<2x32xf32>
    %81 = vector.extract_strided_slice %76 {offsets = [0, 64], sizes = [2, 32], strides = [1, 1]} : vector<2x96xf32> to vector<2x32xf32>
    %82 = arith.mulf %80, %59 : vector<2x32xf32>
    %83 = arith.mulf %79, %78 : vector<2x32xf32>
    %84 = arith.addf %82, %83 : vector<2x32xf32>
    %85 = math.tanh %84 : vector<2x32xf32>
    %86 = arith.mulf %81, %85 : vector<2x32xf32>
    %87 = vector.extract_strided_slice %86 {offsets = [0, 0], sizes = [2, 16], strides = [1, 1]} : vector<2x32xf32> to vector<2x16xf32>
    %c4 = arith.constant 4 : index
    %c0_20 = arith.constant 0 : index
    %88 = vector.load %arg12[%c4, %c0_20] : memref<16x16xf32, #tpu.memory_space<vmem>>, vector<2x16xf32>
    tpu.vector_store %arg12[%c4, %c0_20], %87 {strides = array<i32>} : memref<16x16xf32, #tpu.memory_space<vmem>>, vector<2x16xf32>,
    %89 = vector.extract_strided_slice %86 {offsets = [0, 16], sizes = [2, 16], strides = [1, 1]} : vector<2x32xf32> to vector<2x16xf32>
    %c10 = arith.constant 10 : index
    %c0_21 = arith.constant 0 : index
    %90 = vector.load %arg13[%c10, %c0_21] : memref<16x16xf32, #tpu.memory_space<vmem>>, vector<2x16xf32>
    tpu.vector_store %arg13[%c10, %c0_21], %89 {strides = array<i32>} : memref<16x16xf32, #tpu.memory_space<vmem>>, vector<2x16xf32>,
    %91 = vector.extract_strided_slice %11 {offsets = [6, 0], sizes = [2, 128], strides = [1, 1]} : vector<16x128xf32> to vector<2x128xf32>
    %92 = vector.extract_strided_slice %12 {offsets = [8, 0], sizes = [2, 128], strides = [1, 1]} : vector<16x128xf32> to vector<2x128xf32>
    %93 = arith.addf %91, %92 : vector<2x128xf32>
    %cst_22 = arith.constant dense<0.000000e+00> : vector<2x128xf32>
    %94 = tpu.matmul %86, %13, %cst_22 {dimension_numbers = #tpu.dot_dimension_numbers<[1], [0], [0], [1], [0, 0, 1, 1], [], []>} : vector<2x32xf32>, vector<32x128xf32>, vector<2x128xf32> -> vector<2x128xf32>
    %95 = arith.addf %93, %94 : vector<2x128xf32>
    %96 = vector.extract_strided_slice %95 {offsets = [0, 0], sizes = [2, 96], strides = [1, 1]} : vector<2x128xf32> to vector<2x96xf32>
    %97 = arith.negf %96 : vector<2x96xf32>
    %98 = math.exp %97 : vector<2x96xf32>
    %cst_23 = arith.constant 1.000000e+00 : f32
    %99 = vector.broadcast %cst_23 : f32 to vector<2x96xf32>
    %100 = arith.addf %99, %98 : vector<2x96xf32>
    %101 = arith.divf %99, %100 : vector<2x96xf32>
    %102 = vector.extract_strided_slice %95 {offsets = [0, 96], sizes = [2, 32], strides = [1, 1]} : vector<2x128xf32> to vector<2x32xf32>
    %103 = math.tanh %102 : vector<2x32xf32>
    %104 = vector.extract_strided_slice %101 {offsets = [0, 0], sizes = [2, 32], strides = [1, 1]} : vector<2x96xf32> to vector<2x32xf32>
    %105 = vector.extract_strided_slice %101 {offsets = [0, 32], sizes = [2, 32], strides = [1, 1]} : vector<2x96xf32> to vector<2x32xf32>
    %106 = vector.extract_strided_slice %101 {offsets = [0, 64], sizes = [2, 32], strides = [1, 1]} : vector<2x96xf32> to vector<2x32xf32>
    %107 = arith.mulf %105, %84 : vector<2x32xf32>
    %108 = arith.mulf %104, %103 : vector<2x32xf32>
    %109 = arith.addf %107, %108 : vector<2x32xf32>
    %110 = math.tanh %109 : vector<2x32xf32>
    %111 = arith.mulf %106, %110 : vector<2x32xf32>
    %112 = vector.extract_strided_slice %111 {offsets = [0, 0], sizes = [2, 16], strides = [1, 1]} : vector<2x32xf32> to vector<2x16xf32>
    %c6 = arith.constant 6 : index
    %c0_24 = arith.constant 0 : index
    %113 = vector.load %arg12[%c6, %c0_24] : memref<16x16xf32, #tpu.memory_space<vmem>>, vector<2x16xf32>
    tpu.vector_store %arg12[%c6, %c0_24], %112 {strides = array<i32>} : memref<16x16xf32, #tpu.memory_space<vmem>>, vector<2x16xf32>,
    %114 = vector.extract_strided_slice %111 {offsets = [0, 16], sizes = [2, 16], strides = [1, 1]} : vector<2x32xf32> to vector<2x16xf32>
    %c8 = arith.constant 8 : index
    %c0_25 = arith.constant 0 : index
    %115 = vector.load %arg13[%c8, %c0_25] : memref<16x16xf32, #tpu.memory_space<vmem>>, vector<2x16xf32>
    tpu.vector_store %arg13[%c8, %c0_25], %114 {strides = array<i32>} : memref<16x16xf32, #tpu.memory_space<vmem>>, vector<2x16xf32>,
    %116 = vector.extract_strided_slice %11 {offsets = [8, 0], sizes = [2, 128], strides = [1, 1]} : vector<16x128xf32> to vector<2x128xf32>
    %117 = vector.extract_strided_slice %12 {offsets = [6, 0], sizes = [2, 128], strides = [1, 1]} : vector<16x128xf32> to vector<2x128xf32>
    %118 = arith.addf %116, %117 : vector<2x128xf32>
    %cst_26 = arith.constant dense<0.000000e+00> : vector<2x128xf32>
    %119 = tpu.matmul %111, %13, %cst_26 {dimension_numbers = #tpu.dot_dimension_numbers<[1], [0], [0], [1], [0, 0, 1, 1], [], []>} : vector<2x32xf32>, vector<32x128xf32>, vector<2x128xf32> -> vector<2x128xf32>
    %120 = arith.addf %118, %119 : vector<2x128xf32>
    %121 = vector.extract_strided_slice %120 {offsets = [0, 0], sizes = [2, 96], strides = [1, 1]} : vector<2x128xf32> to vector<2x96xf32>
    %122 = arith.negf %121 : vector<2x96xf32>
    %123 = math.exp %122 : vector<2x96xf32>
    %cst_27 = arith.constant 1.000000e+00 : f32
    %124 = vector.broadcast %cst_27 : f32 to vector<2x96xf32>
    %125 = arith.addf %124, %123 : vector<2x96xf32>
    %126 = arith.divf %124, %125 : vector<2x96xf32>
    %127 = vector.extract_strided_slice %120 {offsets = [0, 96], sizes = [2, 32], strides = [1, 1]} : vector<2x128xf32> to vector<2x32xf32>
    %128 = math.tanh %127 : vector<2x32xf32>
    %129 = vector.extract_strided_slice %126 {offsets = [0, 0], sizes = [2, 32], strides = [1, 1]} : vector<2x96xf32> to vector<2x32xf32>
    %130 = vector.extract_strided_slice %126 {offsets = [0, 32], sizes = [2, 32], strides = [1, 1]} : vector<2x96xf32> to vector<2x32xf32>
    %131 = vector.extract_strided_slice %126 {offsets = [0, 64], sizes = [2, 32], strides = [1, 1]} : vector<2x96xf32> to vector<2x32xf32>
    %132 = arith.mulf %130, %109 : vector<2x32xf32>
    %133 = arith.mulf %129, %128 : vector<2x32xf32>
    %134 = arith.addf %132, %133 : vector<2x32xf32>
    %135 = math.tanh %134 : vector<2x32xf32>
    %136 = arith.mulf %131, %135 : vector<2x32xf32>
    %137 = vector.extract_strided_slice %136 {offsets = [0, 0], sizes = [2, 16], strides = [1, 1]} : vector<2x32xf32> to vector<2x16xf32>
    %c8_28 = arith.constant 8 : index
    %c0_29 = arith.constant 0 : index
    %138 = vector.load %arg12[%c8_28, %c0_29] : memref<16x16xf32, #tpu.memory_space<vmem>>, vector<2x16xf32>
    tpu.vector_store %arg12[%c8_28, %c0_29], %137 {strides = array<i32>} : memref<16x16xf32, #tpu.memory_space<vmem>>, vector<2x16xf32>,
    %139 = vector.extract_strided_slice %136 {offsets = [0, 16], sizes = [2, 16], strides = [1, 1]} : vector<2x32xf32> to vector<2x16xf32>
    %c6_30 = arith.constant 6 : index
    %c0_31 = arith.constant 0 : index
    %140 = vector.load %arg13[%c6_30, %c0_31] : memref<16x16xf32, #tpu.memory_space<vmem>>, vector<2x16xf32>
    tpu.vector_store %arg13[%c6_30, %c0_31], %139 {strides = array<i32>} : memref<16x16xf32, #tpu.memory_space<vmem>>, vector<2x16xf32>,
    %141 = vector.extract_strided_slice %11 {offsets = [10, 0], sizes = [2, 128], strides = [1, 1]} : vector<16x128xf32> to vector<2x128xf32>
    %142 = vector.extract_strided_slice %12 {offsets = [4, 0], sizes = [2, 128], strides = [1, 1]} : vector<16x128xf32> to vector<2x128xf32>
    %143 = arith.addf %141, %142 : vector<2x128xf32>
    %cst_32 = arith.constant dense<0.000000e+00> : vector<2x128xf32>
    %144 = tpu.matmul %136, %13, %cst_32 {dimension_numbers = #tpu.dot_dimension_numbers<[1], [0], [0], [1], [0, 0, 1, 1], [], []>} : vector<2x32xf32>, vector<32x128xf32>, vector<2x128xf32> -> vector<2x128xf32>
    %145 = arith.addf %143, %144 : vector<2x128xf32>
    %146 = vector.extract_strided_slice %145 {offsets = [0, 0], sizes = [2, 96], strides = [1, 1]} : vector<2x128xf32> to vector<2x96xf32>
    %147 = arith.negf %146 : vector<2x96xf32>
    %148 = math.exp %147 : vector<2x96xf32>
    %cst_33 = arith.constant 1.000000e+00 : f32
    %149 = vector.broadcast %cst_33 : f32 to vector<2x96xf32>
    %150 = arith.addf %149, %148 : vector<2x96xf32>
    %151 = arith.divf %149, %150 : vector<2x96xf32>
    %152 = vector.extract_strided_slice %145 {offsets = [0, 96], sizes = [2, 32], strides = [1, 1]} : vector<2x128xf32> to vector<2x32xf32>
    %153 = math.tanh %152 : vector<2x32xf32>
    %154 = vector.extract_strided_slice %151 {offsets = [0, 0], sizes = [2, 32], strides = [1, 1]} : vector<2x96xf32> to vector<2x32xf32>
    %155 = vector.extract_strided_slice %151 {offsets = [0, 32], sizes = [2, 32], strides = [1, 1]} : vector<2x96xf32> to vector<2x32xf32>
    %156 = vector.extract_strided_slice %151 {offsets = [0, 64], sizes = [2, 32], strides = [1, 1]} : vector<2x96xf32> to vector<2x32xf32>
    %157 = arith.mulf %155, %134 : vector<2x32xf32>
    %158 = arith.mulf %154, %153 : vector<2x32xf32>
    %159 = arith.addf %157, %158 : vector<2x32xf32>
    %160 = math.tanh %159 : vector<2x32xf32>
    %161 = arith.mulf %156, %160 : vector<2x32xf32>
    %162 = vector.extract_strided_slice %161 {offsets = [0, 0], sizes = [2, 16], strides = [1, 1]} : vector<2x32xf32> to vector<2x16xf32>
    %c10_34 = arith.constant 10 : index
    %c0_35 = arith.constant 0 : index
    %163 = vector.load %arg12[%c10_34, %c0_35] : memref<16x16xf32, #tpu.memory_space<vmem>>, vector<2x16xf32>
    tpu.vector_store %arg12[%c10_34, %c0_35], %162 {strides = array<i32>} : memref<16x16xf32, #tpu.memory_space<vmem>>, vector<2x16xf32>,
    %164 = vector.extract_strided_slice %161 {offsets = [0, 16], sizes = [2, 16], strides = [1, 1]} : vector<2x32xf32> to vector<2x16xf32>
    %c4_36 = arith.constant 4 : index
    %c0_37 = arith.constant 0 : index
    %165 = vector.load %arg13[%c4_36, %c0_37] : memref<16x16xf32, #tpu.memory_space<vmem>>, vector<2x16xf32>
    tpu.vector_store %arg13[%c4_36, %c0_37], %164 {strides = array<i32>} : memref<16x16xf32, #tpu.memory_space<vmem>>, vector<2x16xf32>,
    %166 = vector.extract_strided_slice %11 {offsets = [12, 0], sizes = [2, 128], strides = [1, 1]} : vector<16x128xf32> to vector<2x128xf32>
    %167 = vector.extract_strided_slice %12 {offsets = [2, 0], sizes = [2, 128], strides = [1, 1]} : vector<16x128xf32> to vector<2x128xf32>
    %168 = arith.addf %166, %167 : vector<2x128xf32>
    %cst_38 = arith.constant dense<0.000000e+00> : vector<2x128xf32>
    %169 = tpu.matmul %161, %13, %cst_38 {dimension_numbers = #tpu.dot_dimension_numbers<[1], [0], [0], [1], [0, 0, 1, 1], [], []>} : vector<2x32xf32>, vector<32x128xf32>, vector<2x128xf32> -> vector<2x128xf32>
    %170 = arith.addf %168, %169 : vector<2x128xf32>
    %171 = vector.extract_strided_slice %170 {offsets = [0, 0], sizes = [2, 96], strides = [1, 1]} : vector<2x128xf32> to vector<2x96xf32>
    %172 = arith.negf %171 : vector<2x96xf32>
    %173 = math.exp %172 : vector<2x96xf32>
    %cst_39 = arith.constant 1.000000e+00 : f32
    %174 = vector.broadcast %cst_39 : f32 to vector<2x96xf32>
    %175 = arith.addf %174, %173 : vector<2x96xf32>
    %176 = arith.divf %174, %175 : vector<2x96xf32>
    %177 = vector.extract_strided_slice %170 {offsets = [0, 96], sizes = [2, 32], strides = [1, 1]} : vector<2x128xf32> to vector<2x32xf32>
    %178 = math.tanh %177 : vector<2x32xf32>
    %179 = vector.extract_strided_slice %176 {offsets = [0, 0], sizes = [2, 32], strides = [1, 1]} : vector<2x96xf32> to vector<2x32xf32>
    %180 = vector.extract_strided_slice %176 {offsets = [0, 32], sizes = [2, 32], strides = [1, 1]} : vector<2x96xf32> to vector<2x32xf32>
    %181 = vector.extract_strided_slice %176 {offsets = [0, 64], sizes = [2, 32], strides = [1, 1]} : vector<2x96xf32> to vector<2x32xf32>
    %182 = arith.mulf %180, %159 : vector<2x32xf32>
    %183 = arith.mulf %179, %178 : vector<2x32xf32>
    %184 = arith.addf %182, %183 : vector<2x32xf32>
    %185 = math.tanh %184 : vector<2x32xf32>
    %186 = arith.mulf %181, %185 : vector<2x32xf32>
    %187 = vector.extract_strided_slice %186 {offsets = [0, 0], sizes = [2, 16], strides = [1, 1]} : vector<2x32xf32> to vector<2x16xf32>
    %c12_40 = arith.constant 12 : index
    %c0_41 = arith.constant 0 : index
    %188 = vector.load %arg12[%c12_40, %c0_41] : memref<16x16xf32, #tpu.memory_space<vmem>>, vector<2x16xf32>
    tpu.vector_store %arg12[%c12_40, %c0_41], %187 {strides = array<i32>} : memref<16x16xf32, #tpu.memory_space<vmem>>, vector<2x16xf32>,
    %189 = vector.extract_strided_slice %186 {offsets = [0, 16], sizes = [2, 16], strides = [1, 1]} : vector<2x32xf32> to vector<2x16xf32>
    %c2_42 = arith.constant 2 : index
    %c0_43 = arith.constant 0 : index
    %190 = vector.load %arg13[%c2_42, %c0_43] : memref<16x16xf32, #tpu.memory_space<vmem>>, vector<2x16xf32>
    tpu.vector_store %arg13[%c2_42, %c0_43], %189 {strides = array<i32>} : memref<16x16xf32, #tpu.memory_space<vmem>>, vector<2x16xf32>,
    %191 = vector.extract_strided_slice %11 {offsets = [14, 0], sizes = [2, 128], strides = [1, 1]} : vector<16x128xf32> to vector<2x128xf32>
    %192 = vector.extract_strided_slice %12 {offsets = [0, 0], sizes = [2, 128], strides = [1, 1]} : vector<16x128xf32> to vector<2x128xf32>
    %193 = arith.addf %191, %192 : vector<2x128xf32>
    %cst_44 = arith.constant dense<0.000000e+00> : vector<2x128xf32>
    %194 = tpu.matmul %186, %13, %cst_44 {dimension_numbers = #tpu.dot_dimension_numbers<[1], [0], [0], [1], [0, 0, 1, 1], [], []>} : vector<2x32xf32>, vector<32x128xf32>, vector<2x128xf32> -> vector<2x128xf32>
    %195 = arith.addf %193, %194 : vector<2x128xf32>
    %196 = vector.extract_strided_slice %195 {offsets = [0, 0], sizes = [2, 96], strides = [1, 1]} : vector<2x128xf32> to vector<2x96xf32>
    %197 = arith.negf %196 : vector<2x96xf32>
    %198 = math.exp %197 : vector<2x96xf32>
    %cst_45 = arith.constant 1.000000e+00 : f32
    %199 = vector.broadcast %cst_45 : f32 to vector<2x96xf32>
    %200 = arith.addf %199, %198 : vector<2x96xf32>
    %201 = arith.divf %199, %200 : vector<2x96xf32>
    %202 = vector.extract_strided_slice %195 {offsets = [0, 96], sizes = [2, 32], strides = [1, 1]} : vector<2x128xf32> to vector<2x32xf32>
    %203 = math.tanh %202 : vector<2x32xf32>
    %204 = vector.extract_strided_slice %201 {offsets = [0, 0], sizes = [2, 32], strides = [1, 1]} : vector<2x96xf32> to vector<2x32xf32>
    %205 = vector.extract_strided_slice %201 {offsets = [0, 32], sizes = [2, 32], strides = [1, 1]} : vector<2x96xf32> to vector<2x32xf32>
    %206 = vector.extract_strided_slice %201 {offsets = [0, 64], sizes = [2, 32], strides = [1, 1]} : vector<2x96xf32> to vector<2x32xf32>
    %207 = arith.mulf %205, %184 : vector<2x32xf32>
    %208 = arith.mulf %204, %203 : vector<2x32xf32>
    %209 = arith.addf %207, %208 : vector<2x32xf32>
    %210 = math.tanh %209 : vector<2x32xf32>
    %211 = arith.mulf %206, %210 : vector<2x32xf32>
    %212 = vector.extract_strided_slice %211 {offsets = [0, 0], sizes = [2, 16], strides = [1, 1]} : vector<2x32xf32> to vector<2x16xf32>
    %c14_46 = arith.constant 14 : index
    %c0_47 = arith.constant 0 : index
    %213 = vector.load %arg12[%c14_46, %c0_47] : memref<16x16xf32, #tpu.memory_space<vmem>>, vector<2x16xf32>
    tpu.vector_store %arg12[%c14_46, %c0_47], %212 {strides = array<i32>} : memref<16x16xf32, #tpu.memory_space<vmem>>, vector<2x16xf32>,
    %214 = vector.extract_strided_slice %211 {offsets = [0, 16], sizes = [2, 16], strides = [1, 1]} : vector<2x32xf32> to vector<2x16xf32>
    %c0_48 = arith.constant 0 : index
    %c0_49 = arith.constant 0 : index
    %215 = vector.load %arg13[%c0_48, %c0_49] : memref<16x16xf32, #tpu.memory_space<vmem>>, vector<2x16xf32>
    tpu.vector_store %arg13[%c0_48, %c0_49], %214 {strides = array<i32>} : memref<16x16xf32, #tpu.memory_space<vmem>>, vector<2x16xf32>,
    %c0_50 = arith.constant 0 : index
    %c0_51 = arith.constant 0 : index
    %216 = vector.load %arg12[%c0_50, %c0_51] : memref<16x16xf32, #tpu.memory_space<vmem>>, vector<16x16xf32>
    %c0_52 = arith.constant 0 : index
    %c0_53 = arith.constant 0 : index
    %217 = vector.load %arg4[%c0_52, %c0_53] : memref<16x16xf32, #tpu.memory_space<vmem>>, vector<16x16xf32>
    %cst_54 = arith.constant dense<0.000000e+00> : vector<16x16xf32>
    %218 = tpu.matmul %216, %217, %cst_54 {dimension_numbers = #tpu.dot_dimension_numbers<[1], [0], [0], [1], [0, 0, 1, 1], [], []>} : vector<16x16xf32>, vector<16x16xf32>, vector<16x16xf32> -> vector<16x16xf32>
    %c0_55 = arith.constant 0 : index
    %c0_56 = arith.constant 0 : index
    %219 = vector.load %arg13[%c0_55, %c0_56] : memref<16x16xf32, #tpu.memory_space<vmem>>, vector<16x16xf32>
    %c0_57 = arith.constant 0 : index
    %c0_58 = arith.constant 0 : index
    %220 = vector.load %arg5[%c0_57, %c0_58] : memref<16x16xf32, #tpu.memory_space<vmem>>, vector<16x16xf32>
    %cst_59 = arith.constant dense<0.000000e+00> : vector<16x16xf32>
    %221 = tpu.matmul %219, %220, %cst_59 {dimension_numbers = #tpu.dot_dimension_numbers<[1], [0], [0], [1], [0, 0, 1, 1], [], []>} : vector<16x16xf32>, vector<16x16xf32>, vector<16x16xf32> -> vector<16x16xf32>
    %222 = arith.addf %218, %221 : vector<16x16xf32>
    %c0_60 = arith.constant 0 : index
    %c0_61 = arith.constant 0 : index
    %223 = vector.load %arg6[%c0_60, %c0_61] : memref<1x16xf32, #tpu.memory_space<vmem>>, vector<1x16xf32>
    %224 = vector.broadcast %223 : vector<1x16xf32> to vector<16x16xf32>
    %225 = arith.addf %222, %224 : vector<16x16xf32>
    %226 = vector.extract_strided_slice %225 {offsets = [0, 0], sizes = [2, 16], strides = [1, 1]} : vector<16x16xf32> to vector<2x16xf32>
    %227 = vector.extract_strided_slice %226 {offsets = [0, 0], sizes = [2, 8], strides = [1, 1]} : vector<2x16xf32> to vector<2x8xf32>
    %c0_62 = arith.constant 0 : index
    %c0_63 = arith.constant 0 : index
    %228 = vector.load %arg14[%c0_62, %c0_63] : memref<32x8xf32, #tpu.memory_space<vmem>>, vector<2x8xf32>
    tpu.vector_store %arg14[%c0_62, %c0_63], %227 {strides = array<i32>} : memref<32x8xf32, #tpu.memory_space<vmem>>, vector<2x8xf32>,
    %229 = vector.extract_strided_slice %226 {offsets = [0, 8], sizes = [2, 8], strides = [1, 1]} : vector<2x16xf32> to vector<2x8xf32>
    %c2_64 = arith.constant 2 : index
    %c0_65 = arith.constant 0 : index
    %230 = vector.load %arg14[%c2_64, %c0_65] : memref<32x8xf32, #tpu.memory_space<vmem>>, vector<2x8xf32>
    tpu.vector_store %arg14[%c2_64, %c0_65], %229 {strides = array<i32>} : memref<32x8xf32, #tpu.memory_space<vmem>>, vector<2x8xf32>,
    %231 = vector.extract_strided_slice %225 {offsets = [2, 0], sizes = [2, 16], strides = [1, 1]} : vector<16x16xf32> to vector<2x16xf32>
    %232 = vector.extract_strided_slice %231 {offsets = [0, 0], sizes = [2, 8], strides = [1, 1]} : vector<2x16xf32> to vector<2x8xf32>
    %c4_66 = arith.constant 4 : index
    %c0_67 = arith.constant 0 : index
    %233 = vector.load %arg14[%c4_66, %c0_67] : memref<32x8xf32, #tpu.memory_space<vmem>>, vector<2x8xf32>
    tpu.vector_store %arg14[%c4_66, %c0_67], %232 {strides = array<i32>} : memref<32x8xf32, #tpu.memory_space<vmem>>, vector<2x8xf32>,
    %234 = vector.extract_strided_slice %231 {offsets = [0, 8], sizes = [2, 8], strides = [1, 1]} : vector<2x16xf32> to vector<2x8xf32>
    %c6_68 = arith.constant 6 : index
    %c0_69 = arith.constant 0 : index
    %235 = vector.load %arg14[%c6_68, %c0_69] : memref<32x8xf32, #tpu.memory_space<vmem>>, vector<2x8xf32>
    tpu.vector_store %arg14[%c6_68, %c0_69], %234 {strides = array<i32>} : memref<32x8xf32, #tpu.memory_space<vmem>>, vector<2x8xf32>,
    %236 = vector.extract_strided_slice %225 {offsets = [4, 0], sizes = [2, 16], strides = [1, 1]} : vector<16x16xf32> to vector<2x16xf32>
    %237 = vector.extract_strided_slice %236 {offsets = [0, 0], sizes = [2, 8], strides = [1, 1]} : vector<2x16xf32> to vector<2x8xf32>
    %c8_70 = arith.constant 8 : index
    %c0_71 = arith.constant 0 : index
    %238 = vector.load %arg14[%c8_70, %c0_71] : memref<32x8xf32, #tpu.memory_space<vmem>>, vector<2x8xf32>
    tpu.vector_store %arg14[%c8_70, %c0_71], %237 {strides = array<i32>} : memref<32x8xf32, #tpu.memory_space<vmem>>, vector<2x8xf32>,
    %239 = vector.extract_strided_slice %236 {offsets = [0, 8], sizes = [2, 8], strides = [1, 1]} : vector<2x16xf32> to vector<2x8xf32>
    %c10_72 = arith.constant 10 : index
    %c0_73 = arith.constant 0 : index
    %240 = vector.load %arg14[%c10_72, %c0_73] : memref<32x8xf32, #tpu.memory_space<vmem>>, vector<2x8xf32>
    tpu.vector_store %arg14[%c10_72, %c0_73], %239 {strides = array<i32>} : memref<32x8xf32, #tpu.memory_space<vmem>>, vector<2x8xf32>,
    %241 = vector.extract_strided_slice %225 {offsets = [6, 0], sizes = [2, 16], strides = [1, 1]} : vector<16x16xf32> to vector<2x16xf32>
    %242 = vector.extract_strided_slice %241 {offsets = [0, 0], sizes = [2, 8], strides = [1, 1]} : vector<2x16xf32> to vector<2x8xf32>
    %c12_74 = arith.constant 12 : index
    %c0_75 = arith.constant 0 : index
    %243 = vector.load %arg14[%c12_74, %c0_75] : memref<32x8xf32, #tpu.memory_space<vmem>>, vector<2x8xf32>
    tpu.vector_store %arg14[%c12_74, %c0_75], %242 {strides = array<i32>} : memref<32x8xf32, #tpu.memory_space<vmem>>, vector<2x8xf32>,
    %244 = vector.extract_strided_slice %241 {offsets = [0, 8], sizes = [2, 8], strides = [1, 1]} : vector<2x16xf32> to vector<2x8xf32>
    %c14_76 = arith.constant 14 : index
    %c0_77 = arith.constant 0 : index
    %245 = vector.load %arg14[%c14_76, %c0_77] : memref<32x8xf32, #tpu.memory_space<vmem>>, vector<2x8xf32>
    tpu.vector_store %arg14[%c14_76, %c0_77], %244 {strides = array<i32>} : memref<32x8xf32, #tpu.memory_space<vmem>>, vector<2x8xf32>,
    %246 = vector.extract_strided_slice %225 {offsets = [8, 0], sizes = [2, 16], strides = [1, 1]} : vector<16x16xf32> to vector<2x16xf32>
    %247 = vector.extract_strided_slice %246 {offsets = [0, 0], sizes = [2, 8], strides = [1, 1]} : vector<2x16xf32> to vector<2x8xf32>
    %c16 = arith.constant 16 : index
    %c0_78 = arith.constant 0 : index
    %248 = vector.load %arg14[%c16, %c0_78] : memref<32x8xf32, #tpu.memory_space<vmem>>, vector<2x8xf32>
    tpu.vector_store %arg14[%c16, %c0_78], %247 {strides = array<i32>} : memref<32x8xf32, #tpu.memory_space<vmem>>, vector<2x8xf32>,
    %249 = vector.extract_strided_slice %246 {offsets = [0, 8], sizes = [2, 8], strides = [1, 1]} : vector<2x16xf32> to vector<2x8xf32>
    %c18 = arith.constant 18 : index
    %c0_79 = arith.constant 0 : index
    %250 = vector.load %arg14[%c18, %c0_79] : memref<32x8xf32, #tpu.memory_space<vmem>>, vector<2x8xf32>
    tpu.vector_store %arg14[%c18, %c0_79], %249 {strides = array<i32>} : memref<32x8xf32, #tpu.memory_space<vmem>>, vector<2x8xf32>,
    %251 = vector.extract_strided_slice %225 {offsets = [10, 0], sizes = [2, 16], strides = [1, 1]} : vector<16x16xf32> to vector<2x16xf32>
    %252 = vector.extract_strided_slice %251 {offsets = [0, 0], sizes = [2, 8], strides = [1, 1]} : vector<2x16xf32> to vector<2x8xf32>
    %c20 = arith.constant 20 : index
    %c0_80 = arith.constant 0 : index
    %253 = vector.load %arg14[%c20, %c0_80] : memref<32x8xf32, #tpu.memory_space<vmem>>, vector<2x8xf32>
    tpu.vector_store %arg14[%c20, %c0_80], %252 {strides = array<i32>} : memref<32x8xf32, #tpu.memory_space<vmem>>, vector<2x8xf32>,
    %254 = vector.extract_strided_slice %251 {offsets = [0, 8], sizes = [2, 8], strides = [1, 1]} : vector<2x16xf32> to vector<2x8xf32>
    %c22 = arith.constant 22 : index
    %c0_81 = arith.constant 0 : index
    %255 = vector.load %arg14[%c22, %c0_81] : memref<32x8xf32, #tpu.memory_space<vmem>>, vector<2x8xf32>
    tpu.vector_store %arg14[%c22, %c0_81], %254 {strides = array<i32>} : memref<32x8xf32, #tpu.memory_space<vmem>>, vector<2x8xf32>,
    %256 = vector.extract_strided_slice %225 {offsets = [12, 0], sizes = [2, 16], strides = [1, 1]} : vector<16x16xf32> to vector<2x16xf32>
    %257 = vector.extract_strided_slice %256 {offsets = [0, 0], sizes = [2, 8], strides = [1, 1]} : vector<2x16xf32> to vector<2x8xf32>
    %c24 = arith.constant 24 : index
    %c0_82 = arith.constant 0 : index
    %258 = vector.load %arg14[%c24, %c0_82] : memref<32x8xf32, #tpu.memory_space<vmem>>, vector<2x8xf32>
    tpu.vector_store %arg14[%c24, %c0_82], %257 {strides = array<i32>} : memref<32x8xf32, #tpu.memory_space<vmem>>, vector<2x8xf32>,
    %259 = vector.extract_strided_slice %256 {offsets = [0, 8], sizes = [2, 8], strides = [1, 1]} : vector<2x16xf32> to vector<2x8xf32>
    %c26 = arith.constant 26 : index
    %c0_83 = arith.constant 0 : index
    %260 = vector.load %arg14[%c26, %c0_83] : memref<32x8xf32, #tpu.memory_space<vmem>>, vector<2x8xf32>
    tpu.vector_store %arg14[%c26, %c0_83], %259 {strides = array<i32>} : memref<32x8xf32, #tpu.memory_space<vmem>>, vector<2x8xf32>,
    %261 = vector.extract_strided_slice %225 {offsets = [14, 0], sizes = [2, 16], strides = [1, 1]} : vector<16x16xf32> to vector<2x16xf32>
    %262 = vector.extract_strided_slice %261 {offsets = [0, 0], sizes = [2, 8], strides = [1, 1]} : vector<2x16xf32> to vector<2x8xf32>
    %c28 = arith.constant 28 : index
    %c0_84 = arith.constant 0 : index
    %263 = vector.load %arg14[%c28, %c0_84] : memref<32x8xf32, #tpu.memory_space<vmem>>, vector<2x8xf32>
    tpu.vector_store %arg14[%c28, %c0_84], %262 {strides = array<i32>} : memref<32x8xf32, #tpu.memory_space<vmem>>, vector<2x8xf32>,
    %264 = vector.extract_strided_slice %261 {offsets = [0, 8], sizes = [2, 8], strides = [1, 1]} : vector<2x16xf32> to vector<2x8xf32>
    %c30 = arith.constant 30 : index
    %c0_85 = arith.constant 0 : index
    %265 = vector.load %arg14[%c30, %c0_85] : memref<32x8xf32, #tpu.memory_space<vmem>>, vector<2x8xf32>
    tpu.vector_store %arg14[%c30, %c0_85], %264 {strides = array<i32>} : memref<32x8xf32, #tpu.memory_space<vmem>>, vector<2x8xf32>,
    %c0_86 = arith.constant 0 : index
    %c0_87 = arith.constant 0 : index
    %c0_88 = arith.constant 0 : index
    %266 = vector.load %arg7[%c0_86, %c0_87, %c0_88] : memref<4x8x8xf32, #tpu.memory_space<vmem>>, vector<4x8x8xf32>
    %c0_89 = arith.constant 0 : index
    %c0_90 = arith.constant 0 : index
    %267 = vector.load %arg8[%c0_89, %c0_90] : memref<4x8xf32, #tpu.memory_space<vmem>>, vector<4x8xf32>
    %c0_91 = arith.constant 0 : index
    %c0_92 = arith.constant 0 : index
    %268 = vector.load %arg9[%c0_91, %c0_92] : memref<4x8xf32, #tpu.memory_space<vmem>>, vector<4x8xf32>
    %269 = tpu.iota {dimensions = array<i32: 2>} : vector<4x8x8xi32>
    %270 = tpu.iota {dimensions = array<i32: 1>} : vector<4x8xi32>
    %c0_93 = arith.constant 0 : index
    %c0_94 = arith.constant 0 : index
    %271 = vector.load %arg14[%c0_93, %c0_94] : memref<32x8xf32, #tpu.memory_space<vmem>>, vector<4x8xf32>
    %272 = arith.addf %267, %271 : vector<4x8xf32>
    %273 = vector.shape_cast %272 : vector<4x8xf32> to vector<4x1x8xf32>
    %274 = vector.broadcast %273 : vector<4x1x8xf32> to vector<4x8x8xf32>
    %275 = arith.addf %274, %266 : vector<4x8x8xf32>
    %cst_95 = arith.constant dense<0xFF800000> : vector<4x8xf32>
    %276 = vector.multi_reduction <maximumf>, %275, %cst_95 [2] : vector<4x8x8xf32> to vector<4x8xf32>
    %277 = vector.shape_cast %276 : vector<4x8xf32> to vector<4x8x1xf32>
    %278 = vector.broadcast %277 : vector<4x8x1xf32> to vector<4x8x8xf32>
    %279 = arith.cmpf oeq, %275, %278 : vector<4x8x8xf32>
    %c8_i32 = arith.constant 8 : i32
    %280 = vector.broadcast %c8_i32 : i32 to vector<4x8x8xi32>
    %281 = arith.select %279, %269, %280 : vector<4x8x8xi1>, vector<4x8x8xi32>
    %cst_96 = arith.constant dense<2147483647> : vector<4x8xi32>
    %282 = vector.multi_reduction <minsi>, %281, %cst_96 [2] : vector<4x8x8xi32> to vector<4x8xi32>
    %c4_97 = arith.constant 4 : index
    %c0_98 = arith.constant 0 : index
    %283 = vector.load %arg15[%c4_97, %c0_98] : memref<32x8xi32, #tpu.memory_space<vmem>>, vector<4x8xi32>
    tpu.vector_store %arg15[%c4_97, %c0_98], %282 {strides = array<i32>} : memref<32x8xi32, #tpu.memory_space<vmem>>, vector<4x8xi32>,
    %cst_99 = arith.constant dense<0xFF800000> : vector<4x8xf32>
    %284 = vector.multi_reduction <maximumf>, %275, %cst_99 [2] : vector<4x8x8xf32> to vector<4x8xf32>
    %c4_100 = arith.constant 4 : index
    %c0_101 = arith.constant 0 : index
    %285 = vector.load %arg14[%c4_100, %c0_101] : memref<32x8xf32, #tpu.memory_space<vmem>>, vector<4x8xf32>
    %286 = arith.addf %284, %285 : vector<4x8xf32>
    %287 = vector.shape_cast %286 : vector<4x8xf32> to vector<4x1x8xf32>
    %288 = vector.broadcast %287 : vector<4x1x8xf32> to vector<4x8x8xf32>
    %289 = arith.addf %288, %266 : vector<4x8x8xf32>
    %cst_102 = arith.constant dense<0xFF800000> : vector<4x8xf32>
    %290 = vector.multi_reduction <maximumf>, %289, %cst_102 [2] : vector<4x8x8xf32> to vector<4x8xf32>
    %291 = vector.shape_cast %290 : vector<4x8xf32> to vector<4x8x1xf32>
    %292 = vector.broadcast %291 : vector<4x8x1xf32> to vector<4x8x8xf32>
    %293 = arith.cmpf oeq, %289, %292 : vector<4x8x8xf32>
    %c8_i32_103 = arith.constant 8 : i32
    %294 = vector.broadcast %c8_i32_103 : i32 to vector<4x8x8xi32>
    %295 = arith.select %293, %269, %294 : vector<4x8x8xi1>, vector<4x8x8xi32>
    %cst_104 = arith.constant dense<2147483647> : vector<4x8xi32>
    %296 = vector.multi_reduction <minsi>, %295, %cst_104 [2] : vector<4x8x8xi32> to vector<4x8xi32>
    %c8_105 = arith.constant 8 : index
    %c0_106 = arith.constant 0 : index
    %297 = vector.load %arg15[%c8_105, %c0_106] : memref<32x8xi32, #tpu.memory_space<vmem>>, vector<4x8xi32>
    tpu.vector_store %arg15[%c8_105, %c0_106], %296 {strides = array<i32>} : memref<32x8xi32, #tpu.memory_space<vmem>>, vector<4x8xi32>,
    %cst_107 = arith.constant dense<0xFF800000> : vector<4x8xf32>
    %298 = vector.multi_reduction <maximumf>, %289, %cst_107 [2] : vector<4x8x8xf32> to vector<4x8xf32>
    %c8_108 = arith.constant 8 : index
    %c0_109 = arith.constant 0 : index
    %299 = vector.load %arg14[%c8_108, %c0_109] : memref<32x8xf32, #tpu.memory_space<vmem>>, vector<4x8xf32>
    %300 = arith.addf %298, %299 : vector<4x8xf32>
    %301 = vector.shape_cast %300 : vector<4x8xf32> to vector<4x1x8xf32>
    %302 = vector.broadcast %301 : vector<4x1x8xf32> to vector<4x8x8xf32>
    %303 = arith.addf %302, %266 : vector<4x8x8xf32>
    %cst_110 = arith.constant dense<0xFF800000> : vector<4x8xf32>
    %304 = vector.multi_reduction <maximumf>, %303, %cst_110 [2] : vector<4x8x8xf32> to vector<4x8xf32>
    %305 = vector.shape_cast %304 : vector<4x8xf32> to vector<4x8x1xf32>
    %306 = vector.broadcast %305 : vector<4x8x1xf32> to vector<4x8x8xf32>
    %307 = arith.cmpf oeq, %303, %306 : vector<4x8x8xf32>
    %c8_i32_111 = arith.constant 8 : i32
    %308 = vector.broadcast %c8_i32_111 : i32 to vector<4x8x8xi32>
    %309 = arith.select %307, %269, %308 : vector<4x8x8xi1>, vector<4x8x8xi32>
    %cst_112 = arith.constant dense<2147483647> : vector<4x8xi32>
    %310 = vector.multi_reduction <minsi>, %309, %cst_112 [2] : vector<4x8x8xi32> to vector<4x8xi32>
    %c12_113 = arith.constant 12 : index
    %c0_114 = arith.constant 0 : index
    %311 = vector.load %arg15[%c12_113, %c0_114] : memref<32x8xi32, #tpu.memory_space<vmem>>, vector<4x8xi32>
    tpu.vector_store %arg15[%c12_113, %c0_114], %310 {strides = array<i32>} : memref<32x8xi32, #tpu.memory_space<vmem>>, vector<4x8xi32>,
    %cst_115 = arith.constant dense<0xFF800000> : vector<4x8xf32>
    %312 = vector.multi_reduction <maximumf>, %303, %cst_115 [2] : vector<4x8x8xf32> to vector<4x8xf32>
    %c12_116 = arith.constant 12 : index
    %c0_117 = arith.constant 0 : index
    %313 = vector.load %arg14[%c12_116, %c0_117] : memref<32x8xf32, #tpu.memory_space<vmem>>, vector<4x8xf32>
    %314 = arith.addf %312, %313 : vector<4x8xf32>
    %315 = vector.shape_cast %314 : vector<4x8xf32> to vector<4x1x8xf32>
    %316 = vector.broadcast %315 : vector<4x1x8xf32> to vector<4x8x8xf32>
    %317 = arith.addf %316, %266 : vector<4x8x8xf32>
    %cst_118 = arith.constant dense<0xFF800000> : vector<4x8xf32>
    %318 = vector.multi_reduction <maximumf>, %317, %cst_118 [2] : vector<4x8x8xf32> to vector<4x8xf32>
    %319 = vector.shape_cast %318 : vector<4x8xf32> to vector<4x8x1xf32>
    %320 = vector.broadcast %319 : vector<4x8x1xf32> to vector<4x8x8xf32>
    %321 = arith.cmpf oeq, %317, %320 : vector<4x8x8xf32>
    %c8_i32_119 = arith.constant 8 : i32
    %322 = vector.broadcast %c8_i32_119 : i32 to vector<4x8x8xi32>
    %323 = arith.select %321, %269, %322 : vector<4x8x8xi1>, vector<4x8x8xi32>
    %cst_120 = arith.constant dense<2147483647> : vector<4x8xi32>
    %324 = vector.multi_reduction <minsi>, %323, %cst_120 [2] : vector<4x8x8xi32> to vector<4x8xi32>
    %c16_121 = arith.constant 16 : index
    %c0_122 = arith.constant 0 : index
    %325 = vector.load %arg15[%c16_121, %c0_122] : memref<32x8xi32, #tpu.memory_space<vmem>>, vector<4x8xi32>
    tpu.vector_store %arg15[%c16_121, %c0_122], %324 {strides = array<i32>} : memref<32x8xi32, #tpu.memory_space<vmem>>, vector<4x8xi32>,
    %cst_123 = arith.constant dense<0xFF800000> : vector<4x8xf32>
    %326 = vector.multi_reduction <maximumf>, %317, %cst_123 [2] : vector<4x8x8xf32> to vector<4x8xf32>
    %c16_124 = arith.constant 16 : index
    %c0_125 = arith.constant 0 : index
    %327 = vector.load %arg14[%c16_124, %c0_125] : memref<32x8xf32, #tpu.memory_space<vmem>>, vector<4x8xf32>
    %328 = arith.addf %326, %327 : vector<4x8xf32>
    %329 = vector.shape_cast %328 : vector<4x8xf32> to vector<4x1x8xf32>
    %330 = vector.broadcast %329 : vector<4x1x8xf32> to vector<4x8x8xf32>
    %331 = arith.addf %330, %266 : vector<4x8x8xf32>
    %cst_126 = arith.constant dense<0xFF800000> : vector<4x8xf32>
    %332 = vector.multi_reduction <maximumf>, %331, %cst_126 [2] : vector<4x8x8xf32> to vector<4x8xf32>
    %333 = vector.shape_cast %332 : vector<4x8xf32> to vector<4x8x1xf32>
    %334 = vector.broadcast %333 : vector<4x8x1xf32> to vector<4x8x8xf32>
    %335 = arith.cmpf oeq, %331, %334 : vector<4x8x8xf32>
    %c8_i32_127 = arith.constant 8 : i32
    %336 = vector.broadcast %c8_i32_127 : i32 to vector<4x8x8xi32>
    %337 = arith.select %335, %269, %336 : vector<4x8x8xi1>, vector<4x8x8xi32>
    %cst_128 = arith.constant dense<2147483647> : vector<4x8xi32>
    %338 = vector.multi_reduction <minsi>, %337, %cst_128 [2] : vector<4x8x8xi32> to vector<4x8xi32>
    %c20_129 = arith.constant 20 : index
    %c0_130 = arith.constant 0 : index
    %339 = vector.load %arg15[%c20_129, %c0_130] : memref<32x8xi32, #tpu.memory_space<vmem>>, vector<4x8xi32>
    tpu.vector_store %arg15[%c20_129, %c0_130], %338 {strides = array<i32>} : memref<32x8xi32, #tpu.memory_space<vmem>>, vector<4x8xi32>,
    %cst_131 = arith.constant dense<0xFF800000> : vector<4x8xf32>
    %340 = vector.multi_reduction <maximumf>, %331, %cst_131 [2] : vector<4x8x8xf32> to vector<4x8xf32>
    %c20_132 = arith.constant 20 : index
    %c0_133 = arith.constant 0 : index
    %341 = vector.load %arg14[%c20_132, %c0_133] : memref<32x8xf32, #tpu.memory_space<vmem>>, vector<4x8xf32>
    %342 = arith.addf %340, %341 : vector<4x8xf32>
    %343 = vector.shape_cast %342 : vector<4x8xf32> to vector<4x1x8xf32>
    %344 = vector.broadcast %343 : vector<4x1x8xf32> to vector<4x8x8xf32>
    %345 = arith.addf %344, %266 : vector<4x8x8xf32>
    %cst_134 = arith.constant dense<0xFF800000> : vector<4x8xf32>
    %346 = vector.multi_reduction <maximumf>, %345, %cst_134 [2] : vector<4x8x8xf32> to vector<4x8xf32>
    %347 = vector.shape_cast %346 : vector<4x8xf32> to vector<4x8x1xf32>
    %348 = vector.broadcast %347 : vector<4x8x1xf32> to vector<4x8x8xf32>
    %349 = arith.cmpf oeq, %345, %348 : vector<4x8x8xf32>
    %c8_i32_135 = arith.constant 8 : i32
    %350 = vector.broadcast %c8_i32_135 : i32 to vector<4x8x8xi32>
    %351 = arith.select %349, %269, %350 : vector<4x8x8xi1>, vector<4x8x8xi32>
    %cst_136 = arith.constant dense<2147483647> : vector<4x8xi32>
    %352 = vector.multi_reduction <minsi>, %351, %cst_136 [2] : vector<4x8x8xi32> to vector<4x8xi32>
    %c24_137 = arith.constant 24 : index
    %c0_138 = arith.constant 0 : index
    %353 = vector.load %arg15[%c24_137, %c0_138] : memref<32x8xi32, #tpu.memory_space<vmem>>, vector<4x8xi32>
    tpu.vector_store %arg15[%c24_137, %c0_138], %352 {strides = array<i32>} : memref<32x8xi32, #tpu.memory_space<vmem>>, vector<4x8xi32>,
    %cst_139 = arith.constant dense<0xFF800000> : vector<4x8xf32>
    %354 = vector.multi_reduction <maximumf>, %345, %cst_139 [2] : vector<4x8x8xf32> to vector<4x8xf32>
    %c24_140 = arith.constant 24 : index
    %c0_141 = arith.constant 0 : index
    %355 = vector.load %arg14[%c24_140, %c0_141] : memref<32x8xf32, #tpu.memory_space<vmem>>, vector<4x8xf32>
    %356 = arith.addf %354, %355 : vector<4x8xf32>
    %357 = vector.shape_cast %356 : vector<4x8xf32> to vector<4x1x8xf32>
    %358 = vector.broadcast %357 : vector<4x1x8xf32> to vector<4x8x8xf32>
    %359 = arith.addf %358, %266 : vector<4x8x8xf32>
    %cst_142 = arith.constant dense<0xFF800000> : vector<4x8xf32>
    %360 = vector.multi_reduction <maximumf>, %359, %cst_142 [2] : vector<4x8x8xf32> to vector<4x8xf32>
    %361 = vector.shape_cast %360 : vector<4x8xf32> to vector<4x8x1xf32>
    %362 = vector.broadcast %361 : vector<4x8x1xf32> to vector<4x8x8xf32>
    %363 = arith.cmpf oeq, %359, %362 : vector<4x8x8xf32>
    %c8_i32_143 = arith.constant 8 : i32
    %364 = vector.broadcast %c8_i32_143 : i32 to vector<4x8x8xi32>
    %365 = arith.select %363, %269, %364 : vector<4x8x8xi1>, vector<4x8x8xi32>
    %cst_144 = arith.constant dense<2147483647> : vector<4x8xi32>
    %366 = vector.multi_reduction <minsi>, %365, %cst_144 [2] : vector<4x8x8xi32> to vector<4x8xi32>
    %c28_145 = arith.constant 28 : index
    %c0_146 = arith.constant 0 : index
    %367 = vector.load %arg15[%c28_145, %c0_146] : memref<32x8xi32, #tpu.memory_space<vmem>>, vector<4x8xi32>
    tpu.vector_store %arg15[%c28_145, %c0_146], %366 {strides = array<i32>} : memref<32x8xi32, #tpu.memory_space<vmem>>, vector<4x8xi32>,
    %cst_147 = arith.constant dense<0xFF800000> : vector<4x8xf32>
    %368 = vector.multi_reduction <maximumf>, %359, %cst_147 [2] : vector<4x8x8xf32> to vector<4x8xf32>
    %c28_148 = arith.constant 28 : index
    %c0_149 = arith.constant 0 : index
    %369 = vector.load %arg14[%c28_148, %c0_149] : memref<32x8xf32, #tpu.memory_space<vmem>>, vector<4x8xf32>
    %370 = arith.addf %368, %369 : vector<4x8xf32>
    %371 = arith.addf %370, %268 : vector<4x8xf32>
    %cst_150 = arith.constant dense<0xFF800000> : vector<4xf32>
    %372 = vector.multi_reduction <maximumf>, %371, %cst_150 [1] : vector<4x8xf32> to vector<4xf32>
    %373 = vector.shape_cast %372 : vector<4xf32> to vector<4x1xf32>
    %374 = vector.broadcast %373 : vector<4x1xf32> to vector<4x8xf32>
    %375 = arith.cmpf oeq, %371, %374 : vector<4x8xf32>
    %c8_i32_151 = arith.constant 8 : i32
    %376 = vector.broadcast %c8_i32_151 : i32 to vector<4x8xi32>
    %377 = arith.select %375, %270, %376 : vector<4x8xi1>, vector<4x8xi32>
    %cst_152 = arith.constant dense<2147483647> : vector<4xi32>
    %378 = vector.multi_reduction <minsi>, %377, %cst_152 [1] : vector<4x8xi32> to vector<4xi32>
    %379 = vector.shape_cast %378 : vector<4xi32> to vector<4x1xi32>
    %c28_153 = arith.constant 28 : index
    %c0_154 = arith.constant 0 : index
    %380 = vector.load %arg15[%c28_153, %c0_154] : memref<32x8xi32, #tpu.memory_space<vmem>>, vector<4x8xi32>
    %381 = vector.broadcast %379 : vector<4x1xi32> to vector<4x8xi32>
    %382 = arith.cmpi eq, %270, %381 : vector<4x8xi32>
    %c0_i32 = arith.constant 0 : i32
    %383 = vector.broadcast %c0_i32 : i32 to vector<4x8xi32>
    %384 = arith.select %382, %380, %383 : vector<4x8xi1>, vector<4x8xi32>
    %cst_155 = arith.constant dense<-2147483648> : vector<4xi32>
    %385 = vector.multi_reduction <maxsi>, %384, %cst_155 [1] : vector<4x8xi32> to vector<4xi32>
    %386 = vector.shape_cast %385 : vector<4xi32> to vector<4x1xi32>
    %c24_156 = arith.constant 24 : index
    %c0_157 = arith.constant 0 : index
    %387 = vector.load %arg15[%c24_156, %c0_157] : memref<32x8xi32, #tpu.memory_space<vmem>>, vector<4x8xi32>
    %388 = vector.broadcast %386 : vector<4x1xi32> to vector<4x8xi32>
    %389 = arith.cmpi eq, %270, %388 : vector<4x8xi32>
    %c0_i32_158 = arith.constant 0 : i32
    %390 = vector.broadcast %c0_i32_158 : i32 to vector<4x8xi32>
    %391 = arith.select %389, %387, %390 : vector<4x8xi1>, vector<4x8xi32>
    %cst_159 = arith.constant dense<-2147483648> : vector<4xi32>
    %392 = vector.multi_reduction <maxsi>, %391, %cst_159 [1] : vector<4x8xi32> to vector<4xi32>
    %393 = vector.shape_cast %392 : vector<4xi32> to vector<4x1xi32>
    %c20_160 = arith.constant 20 : index
    %c0_161 = arith.constant 0 : index
    %394 = vector.load %arg15[%c20_160, %c0_161] : memref<32x8xi32, #tpu.memory_space<vmem>>, vector<4x8xi32>
    %395 = vector.broadcast %393 : vector<4x1xi32> to vector<4x8xi32>
    %396 = arith.cmpi eq, %270, %395 : vector<4x8xi32>
    %c0_i32_162 = arith.constant 0 : i32
    %397 = vector.broadcast %c0_i32_162 : i32 to vector<4x8xi32>
    %398 = arith.select %396, %394, %397 : vector<4x8xi1>, vector<4x8xi32>
    %cst_163 = arith.constant dense<-2147483648> : vector<4xi32>
    %399 = vector.multi_reduction <maxsi>, %398, %cst_163 [1] : vector<4x8xi32> to vector<4xi32>
    %400 = vector.shape_cast %399 : vector<4xi32> to vector<4x1xi32>
    %c16_164 = arith.constant 16 : index
    %c0_165 = arith.constant 0 : index
    %401 = vector.load %arg15[%c16_164, %c0_165] : memref<32x8xi32, #tpu.memory_space<vmem>>, vector<4x8xi32>
    %402 = vector.broadcast %400 : vector<4x1xi32> to vector<4x8xi32>
    %403 = arith.cmpi eq, %270, %402 : vector<4x8xi32>
    %c0_i32_166 = arith.constant 0 : i32
    %404 = vector.broadcast %c0_i32_166 : i32 to vector<4x8xi32>
    %405 = arith.select %403, %401, %404 : vector<4x8xi1>, vector<4x8xi32>
    %cst_167 = arith.constant dense<-2147483648> : vector<4xi32>
    %406 = vector.multi_reduction <maxsi>, %405, %cst_167 [1] : vector<4x8xi32> to vector<4xi32>
    %407 = vector.shape_cast %406 : vector<4xi32> to vector<4x1xi32>
    %c12_168 = arith.constant 12 : index
    %c0_169 = arith.constant 0 : index
    %408 = vector.load %arg15[%c12_168, %c0_169] : memref<32x8xi32, #tpu.memory_space<vmem>>, vector<4x8xi32>
    %409 = vector.broadcast %407 : vector<4x1xi32> to vector<4x8xi32>
    %410 = arith.cmpi eq, %270, %409 : vector<4x8xi32>
    %c0_i32_170 = arith.constant 0 : i32
    %411 = vector.broadcast %c0_i32_170 : i32 to vector<4x8xi32>
    %412 = arith.select %410, %408, %411 : vector<4x8xi1>, vector<4x8xi32>
    %cst_171 = arith.constant dense<-2147483648> : vector<4xi32>
    %413 = vector.multi_reduction <maxsi>, %412, %cst_171 [1] : vector<4x8xi32> to vector<4xi32>
    %414 = vector.shape_cast %413 : vector<4xi32> to vector<4x1xi32>
    %c8_172 = arith.constant 8 : index
    %c0_173 = arith.constant 0 : index
    %415 = vector.load %arg15[%c8_172, %c0_173] : memref<32x8xi32, #tpu.memory_space<vmem>>, vector<4x8xi32>
    %416 = vector.broadcast %414 : vector<4x1xi32> to vector<4x8xi32>
    %417 = arith.cmpi eq, %270, %416 : vector<4x8xi32>
    %c0_i32_174 = arith.constant 0 : i32
    %418 = vector.broadcast %c0_i32_174 : i32 to vector<4x8xi32>
    %419 = arith.select %417, %415, %418 : vector<4x8xi1>, vector<4x8xi32>
    %cst_175 = arith.constant dense<-2147483648> : vector<4xi32>
    %420 = vector.multi_reduction <maxsi>, %419, %cst_175 [1] : vector<4x8xi32> to vector<4xi32>
    %421 = vector.shape_cast %420 : vector<4xi32> to vector<4x1xi32>
    %c4_176 = arith.constant 4 : index
    %c0_177 = arith.constant 0 : index
    %422 = vector.load %arg15[%c4_176, %c0_177] : memref<32x8xi32, #tpu.memory_space<vmem>>, vector<4x8xi32>
    %423 = vector.broadcast %421 : vector<4x1xi32> to vector<4x8xi32>
    %424 = arith.cmpi eq, %270, %423 : vector<4x8xi32>
    %c0_i32_178 = arith.constant 0 : i32
    %425 = vector.broadcast %c0_i32_178 : i32 to vector<4x8xi32>
    %426 = arith.select %424, %422, %425 : vector<4x8xi1>, vector<4x8xi32>
    %cst_179 = arith.constant dense<-2147483648> : vector<4xi32>
    %427 = vector.multi_reduction <maxsi>, %426, %cst_179 [1] : vector<4x8xi32> to vector<4xi32>
    %428 = vector.shape_cast %427 : vector<4xi32> to vector<4x1xi32>
    %429 = tpu.concatenate %428, %421, %414, %407, %400, %393, %386, %379 in 1 : vector<4x1xi32>, vector<4x1xi32>, vector<4x1xi32>, vector<4x1xi32>, vector<4x1xi32>, vector<4x1xi32>, vector<4x1xi32>, vector<4x1xi32> -> vector<4x8xi32>
    %430 = vector.extract_strided_slice %429 {offsets = [0, 0], sizes = [2, 8], strides = [1, 1]} : vector<4x8xi32> to vector<2x8xi32>
    %c0_180 = arith.constant 0 : index
    %c0_181 = arith.constant 0 : index
    %431 = vector.load %arg10[%c0_180, %c0_181] : memref<2x8xi32, #tpu.memory_space<vmem>>, vector<2x8xi32>
    tpu.vector_store %arg10[%c0_180, %c0_181], %430 {strides = array<i32>} : memref<2x8xi32, #tpu.memory_space<vmem>>, vector<2x8xi32>,
    %432 = vector.extract_strided_slice %429 {offsets = [2, 0], sizes = [2, 8], strides = [1, 1]} : vector<4x8xi32> to vector<2x8xi32>
    %c0_182 = arith.constant 0 : index
    %c0_183 = arith.constant 0 : index
    %433 = vector.load %arg11[%c0_182, %c0_183] : memref<2x8xi32, #tpu.memory_space<vmem>>, vector<2x8xi32>
    tpu.vector_store %arg11[%c0_182, %c0_183], %432 {strides = array<i32>} : memref<2x8xi32, #tpu.memory_space<vmem>>, vector<2x8xi32>,
    return
  }
}

</mosaic_0001>

<llo_original>
// kernel: em_bilstm_crf_forward.1
$region0: #{em_bilstm_crf_forward.1}
  #allocation0 [shape = 'u32[]', space=smem, size = 0x4, offset = 0x4, fixed_abs, tag = 'smem constant byte address 0x4 - core index']
  #allocation1 [shape = 'u32[144,128]{1,0:T(1,128)}', space=vmem, size = 0x12000, scoped, tag = 'internal scratch']
  #allocation2 [shape = 'f32[16,16]{1,0:T(8,128)}', space=vmem, size = 0x2000, scoped, tag = 'scratch operand']
  #allocation3 [shape = 'f32[16,16]{1,0:T(8,128)}', space=vmem, size = 0x2000, scoped, tag = 'scratch operand']
  #allocation4 [shape = 'f32[32,8]{1,0:T(8,128)}', space=vmem, size = 0x4000, scoped, tag = 'scratch operand']
  #allocation5 [shape = 's32[32,8]{1,0:T(8,128)}', space=vmem, size = 0x4000, scoped, tag = 'scratch operand']
  %s0 = inlined_call_operand.vmem [shape: s32[16,1], index: 0, kind: input, shape index: {}]
  %s1 = inlined_call_operand.hbm [shape: f32[56,256], index: 1, kind: input, shape index: {}]
  %s2 = inlined_call_operand.vmem [shape: f32[1,128], index: 2, kind: input, shape index: {}]
  %s3 = inlined_call_operand.vmem [shape: f32[32,128], index: 3, kind: input, shape index: {}]
  %s4 = inlined_call_operand.hbm [shape: f32[16,16], index: 4, kind: input, shape index: {}]
  %s5 = inlined_call_operand.hbm [shape: f32[16,16], index: 5, kind: input, shape index: {}]
  %s6 = inlined_call_operand.vmem [shape: f32[1,16], index: 6, kind: input, shape index: {}]
  %s7 = inlined_call_operand.hbm [shape: f32[4,8,8], index: 7, kind: input, shape index: {}]
  %s8 = inlined_call_operand.vmem [shape: f32[4,8], index: 8, kind: input, shape index: {}]
  %s9 = inlined_call_operand.vmem [shape: f32[4,8], index: 9, kind: input, shape index: {}]
  %s10 = inlined_call_operand.hbm [shape: s32[2,8], index: 10, kind: output, shape index: {0}]
  %s11 = inlined_call_operand.hbm [shape: s32[2,8], index: 11, kind: output, shape index: {1}]
  %12 = xla_tuple %s10, %s11
  %s13 = sld [smem:[#allocation0]]
  $region74: #{em_bilstm_crf_forward.1} parent=0
    _
  %s15 = ssub.s32 1, %s13
  %s16 = scalar_select 0, %s15, %s13
  $region1: #{em_bilstm_crf_forward.1} parent=0
    #allocation6 [shape = 'u8[57344]{0}', space=vmem, size = 0xe000, scoped, tag = 'input window, operand 1, single buffered']
    #allocation7 [shape = 's32[1]{0}', space=sflag, size = 0x4, scoped, tag = 'scoped memory for em_bilstm_crf_forward.1']
    #allocation8 [shape = 's32[1]{0}', space=sflag, size = 0x4, scoped, tag = 'scoped memory for em_bilstm_crf_forward.1']
    #allocation9 [shape = 'u8[8192]{0}', space=vmem, size = 0x2000, scoped, tag = 'input window, operand 4, single buffered']
    #allocation10 [shape = 's32[1]{0}', space=sflag, size = 0x4, scoped, tag = 'scoped memory for em_bilstm_crf_forward.1']
    #allocation11 [shape = 'u8[8192]{0}', space=vmem, size = 0x2000, scoped, tag = 'input window, operand 5, single buffered']
    #allocation12 [shape = 'u8[16384]{0}', space=vmem, size = 0x4000, scoped, tag = 'input window, operand 7, single buffered']
    #allocation13 [shape = 's32[1]{0}', space=sflag, size = 0x4, scoped, tag = 'scoped memory for em_bilstm_crf_forward.1']
    #allocation14 [shape = 'u8[1024]{0}', space=vmem, size = 0x400, scoped, tag = 'output window, operand 0, single buffered']
    #allocation15 [shape = 'u8[1024]{0}', space=vmem, size = 0x400, scoped, tag = 'output window, operand 1, single buffered']
    #allocation16 [shape = 's32[1]{0}', space=sflag, size = 0x4, scoped, tag = 'scoped memory for em_bilstm_crf_forward.1']
    %17 = vsyncpa [#allocation7], 0
    %18 = vsyncpa [#allocation10], 0
    %19 = vsyncpa [#allocation13], 0
    %20 = vsyncpa [#allocation8], 0
    %21 = vsyncpa [#allocation16], 0
    // Predicated region
    $region2: #{em_bilstm_crf_forward.1} parent=1 // pred_check
      _
    $region3: #{em_bilstm_crf_forward.1} parent=1 // pred_check_branch
      %23 = sbr.rel (0) target = $region5
    $region4: #{em_bilstm_crf_forward.1} parent=1 // pred_region
      _
    $region5: #{em_bilstm_crf_forward.1} parent=1 // pred_fallthru
      _
    // Predicated region
    $region6: #{em_bilstm_crf_forward.1} parent=1 // pred_check
      _
    $region7: #{em_bilstm_crf_forward.1} parent=1 // pred_check_branch
      %25 = sbr.rel (0) target = $region9
    $region8: #{em_bilstm_crf_forward.1} parent=1 // pred_region
      %s27 = ssub.s32 1792, 1792
      %28 = vsyncadd [#allocation7], %s27
      %s29 = sshll.u32 [#allocation6], 4
      %s30 = int_to_ptr.vmem [resolvable:$true] %s29
      %35 = dma.hbm_to_vmem [thread:$0]  %s1, 1792, %s30, [#allocation7], 256, 256, 16
    $region9: #{em_bilstm_crf_forward.1} parent=1 // pred_fallthru
      _
    // Predicated region
    $region10: #{em_bilstm_crf_forward.1} parent=1 // pred_check
      _
    $region11: #{em_bilstm_crf_forward.1} parent=1 // pred_check_branch
      %37 = sbr.rel (0) target = $region13
    $region12: #{em_bilstm_crf_forward.1} parent=1 // pred_region
      _
    $region13: #{em_bilstm_crf_forward.1} parent=1 // pred_fallthru
      _
    // Predicated region
    $region14: #{em_bilstm_crf_forward.1} parent=1 // pred_check
      _
    $region15: #{em_bilstm_crf_forward.1} parent=1 // pred_check_branch
      %39 = sbr.rel (0) target = $region17
    $region16: #{em_bilstm_crf_forward.1} parent=1 // pred_region
      _
    $region17: #{em_bilstm_crf_forward.1} parent=1 // pred_fallthru
      _
    // Predicated region
    $region18: #{em_bilstm_crf_forward.1} parent=1 // pred_check
      _
    $region19: #{em_bilstm_crf_forward.1} parent=1 // pred_check_branch
      %41 = sbr.rel (0) target = $region21
    $region20: #{em_bilstm_crf_forward.1} parent=1 // pred_region
      %s43 = ssub.s32 256, 256
      %44 = vsyncadd [#allocation10], %s43
      %s45 = sshll.u32 [#allocation9], 4
      %s46 = int_to_ptr.vmem [resolvable:$true] %s45
      %51 = dma.hbm_to_vmem [thread:$0]  %s4, 256, %s46, [#allocation10], 128, 128, 8
    $region21: #{em_bilstm_crf_forward.1} parent=1 // pred_fallthru
      _
    // Predicated region
    $region22: #{em_bilstm_crf_forward.1} parent=1 // pred_check
      _
    $region23: #{em_bilstm_crf_forward.1} parent=1 // pred_check_branch
      %53 = sbr.rel (0) target = $region25
    $region24: #{em_bilstm_crf_forward.1} parent=1 // pred_region
      %s55 = ssub.s32 256, 256
      %56 = vsyncadd [#allocation10], %s55
      %s57 = sshll.u32 [#allocation11], 4
      %s58 = int_to_ptr.vmem [resolvable:$true] %s57
      %63 = dma.hbm_to_vmem [thread:$0]  %s5, 256, %s58, [#allocation10], 128, 128, 8
    $region25: #{em_bilstm_crf_forward.1} parent=1 // pred_fallthru
      _
    // Predicated region
    $region26: #{em_bilstm_crf_forward.1} parent=1 // pred_check
      _
    $region27: #{em_bilstm_crf_forward.1} parent=1 // pred_check_branch
      %65 = sbr.rel (0) target = $region29
    $region28: #{em_bilstm_crf_forward.1} parent=1 // pred_region
      _
    $region29: #{em_bilstm_crf_forward.1} parent=1 // pred_fallthru
      _
    // Predicated region
    $region30: #{em_bilstm_crf_forward.1} parent=1 // pred_check
      _
    $region31: #{em_bilstm_crf_forward.1} parent=1 // pred_check_branch
      %67 = sbr.rel (0) target = $region33
    $region32: #{em_bilstm_crf_forward.1} parent=1 // pred_region
      %s69 = ssub.s32 512, 512
      %70 = vsyncadd [#allocation13], %s69
      %s71 = sshll.u32 [#allocation12], 4
      %s72 = int_to_ptr.vmem [resolvable:$true] %s71
      %77 = dma.hbm_to_vmem [thread:$0]  %s7, 512, %s72, [#allocation13], 128, 128, 8
    $region33: #{em_bilstm_crf_forward.1} parent=1 // pred_fallthru
      _
    // Predicated region
    $region34: #{em_bilstm_crf_forward.1} parent=1 // pred_check
      _
    $region35: #{em_bilstm_crf_forward.1} parent=1 // pred_check_branch
      %79 = sbr.rel (0) target = $region37
    $region36: #{em_bilstm_crf_forward.1} parent=1 // pred_region
      _
    $region37: #{em_bilstm_crf_forward.1} parent=1 // pred_fallthru
      _
    // Predicated region
    $region38: #{em_bilstm_crf_forward.1} parent=1 // pred_check
      _
    $region39: #{em_bilstm_crf_forward.1} parent=1 // pred_check_branch
      %81 = sbr.rel (0) target = $region41
    $region40: #{em_bilstm_crf_forward.1} parent=1 // pred_region
      _
    $region41: #{em_bilstm_crf_forward.1} parent=1 // pred_fallthru
      _
    // Predicated region
    $region42: #{em_bilstm_crf_forward.1} parent=1 // pred_check
      _
    $region43: #{em_bilstm_crf_forward.1} parent=1 // pred_check_branch
      %83 = sbr.rel (0) target = $region45
    $region44: #{em_bilstm_crf_forward.1} parent=1 // pred_region
      %84 = dma.done [#allocation7], 1792
    $region45: #{em_bilstm_crf_forward.1} parent=1 // pred_fallthru
      _
    // Predicated region
    $region46: #{em_bilstm_crf_forward.1} parent=1 // pred_check
      _
    $region47: #{em_bilstm_crf_forward.1} parent=1 // pred_check_branch
      %86 = sbr.rel (0) target = $region49
    $region48: #{em_bilstm_crf_forward.1} parent=1 // pred_region
      %87 = dma.done [#allocation10], 256
    $region49: #{em_bilstm_crf_forward.1} parent=1 // pred_fallthru
      _
    // Predicated region
    $region50: #{em_bilstm_crf_forward.1} parent=1 // pred_check
      _
    $region51: #{em_bilstm_crf_forward.1} parent=1 // pred_check_branch
      %89 = sbr.rel (0) target = $region53
    $region52: #{em_bilstm_crf_forward.1} parent=1 // pred_region
      %90 = dma.done [#allocation10], 256
    $region53: #{em_bilstm_crf_forward.1} parent=1 // pred_fallthru
      _
    // Predicated region
    $region54: #{em_bilstm_crf_forward.1} parent=1 // pred_check
      _
    $region55: #{em_bilstm_crf_forward.1} parent=1 // pred_check_branch
      %92 = sbr.rel (0) target = $region57
    $region56: #{em_bilstm_crf_forward.1} parent=1 // pred_region
      %93 = dma.done [#allocation13], 512
    $region57: #{em_bilstm_crf_forward.1} parent=1 // pred_fallthru
      _
    %v94 = vld [vmem:[%s0] sm:$0xff]
    %v95 = vld [vmem:[%s0 + $0x8] sm:$0xff]
    %v96 = vlaneseq
    %v97 = vand.u32 %v96, 127
    %98 = vset.pattern.permute.xlu0 0
    %99 = vperm.xlu0 %98, %v94
    %v100 = vpop.permute.xlu0 %99
    %101 = vset.pattern.permute.xlu0 0
    %102 = vperm.xlu0 %101, %v95
    %v103 = vpop.permute.xlu0 %102
    %vm104 = vcmp.eq.s32.totalorder %v97, %v100
    %vm105 = vcmp.eq.s32.totalorder %v97, %v103
    %v106 = vsel %vm104, 1, 0
    %v107 = vsel %vm105, 1, 0
    %v108 = vcvt.s32.f32 %v106
    %v109 = vcvt.s32.f32 %v107
    %v110 = vld [vmem:[#allocation6] sm:$0xff]
    %v111 = vld [vmem:[#allocation6 + $0x8] sm:$0xff]
    %v112 = vld [vmem:[#allocation6 + $0x10] sm:$0xff]
    %v113 = vld [vmem:[#allocation6 + $0x18] sm:$0xff]
    %v114 = vld [vmem:[#allocation6 + $0x20] sm:$0xff]
    %v115 = vld [vmem:[#allocation6 + $0x28] sm:$0xff]
    %v116 = vld [vmem:[#allocation6 + $0x30] sm:$0xff]
    %v117 = vld [vmem:[#allocation6 + $0x38] sm:$0xff]
    %v118 = vld [vmem:[#allocation6 + $0x40] sm:$0xff]
    %v119 = vld [vmem:[#allocation6 + $0x48] sm:$0xff]
    %v120 = vld [vmem:[#allocation6 + $0x50] sm:$0xff]
    %v121 = vld [vmem:[#allocation6 + $0x58] sm:$0xff]
    %v122 = vld [vmem:[#allocation6 + $0x60] sm:$0xff]
    %v123 = vld [vmem:[#allocation6 + $0x68] sm:$0xff]
    %vm124 = vcmask 457728
    %v126 = vsel %vm124, %v108, 0
    %v129 = vsel %vm124, %v109, 0
    %131 = vmatprep.subr.mxu0 0.0
    %132 = vmatpush1.msra.mxu0 0.0
    %133 = vmatprep.subr.mxu0 0.0
    %134 = vmatpush1.msra.mxu0 0.0
    %135 = vmatprep.subr.mxu0 0.0
    %136 = vmatpush1.msra.mxu0 0.0
    %137 = vmatprep.subr.mxu0 0.0
    %138 = vmatpush1.msra.mxu0 0.0
    %139 = vmatprep.subr.mxu0 0.0
    %140 = vmatpush1.msra.mxu0 0.0
    %141 = vmatprep.subr.mxu0 0.0
    %142 = vmatpush1.msra.mxu0 0.0
    %143 = vmatprep.subr.mxu0 0.0
    %144 = vmatpush1.msra.mxu0 0.0
    %145 = vmatprep.subr.mxu0 0.0
    %146 = vmatpush1.msra.mxu0 0.0
    %147 = vmatprep.subr.mxu0 0.0
    %148 = vmatpush1.msra.mxu0 0.0
    %149 = vmatprep.subr.mxu0 %v123
    %150 = vmatpush1.msra.mxu0 %v122
    %151 = vmatprep.subr.mxu0 %v121
    %152 = vmatpush1.msra.mxu0 %v120
    %153 = vmatprep.subr.mxu0 %v119
    %154 = vmatpush1.msra.mxu0 %v118
    %155 = vmatprep.subr.mxu0 %v117
    %156 = vmatpush1.msra.mxu0 %v116
    %157 = vmatprep.subr.mxu0 %v115
    %158 = vmatpush1.msra.mxu0 %v114
    %159 = vmatprep.subr.mxu0 %v113
    %160 = vmatpush1.msra.mxu0 %v112
    %161 = vmatprep.subr.mxu0 %v111
    %162 = vmatpush1.msra.mxu0 %v110
    %163 = vmatprep.subr.mxu0 0.0
    %164 = vmatpush2.msra.mxu0 0.0
    %165 = vmatprep.subr.mxu0 0.0
    %166 = vmatpush2.msra.mxu0 0.0
    %167 = vmatprep.subr.mxu0 0.0
    %168 = vmatpush2.msra.mxu0 0.0
    %169 = vmatprep.subr.mxu0 0.0
    %170 = vmatpush2.msra.mxu0 0.0
    %171 = vmatprep.subr.mxu0 0.0
    %172 = vmatpush2.msra.mxu0 0.0
    %173 = vmatprep.subr.mxu0 0.0
    %174 = vmatpush2.msra.mxu0 0.0
    %175 = vmatprep.subr.mxu0 0.0
    %176 = vmatpush2.msra.mxu0 0.0
    %177 = vmatprep.subr.mxu0 0.0
    %178 = vmatpush2.msra.mxu0 0.0
    %179 = vmatprep.subr.mxu0 0.0
    %180 = vmatpush2.msra.mxu0 0.0
    %181 = vmatprep.subr.mxu0 0.0
    %182 = vmatpush2.msra.mxu0 0.0
    %183 = vmatprep.subr.mxu0 0.0
    %184 = vmatpush2.msra.mxu0 0.0
    %185 = vmatprep.subr.mxu0 0.0
    %186 = vmatpush2.msra.mxu0 0.0
    %187 = vmatprep.subr.mxu0 0.0
    %188 = vmatpush2.msra.mxu0 0.0
    %189 = vmatprep.subr.mxu0 0.0
    %190 = vmatpush2.msra.mxu0 0.0
    %191 = vmatprep.subr.mxu0 0.0
    %192 = vmatpush2.msra.mxu0 0.0
    %193 = vmatprep.subr.mxu0 0.0
    %194 = vmatpush2.msra.mxu0 0.0
    %195 = vmatprep.mubr.f32.mxu0 0.0
    %196 = vmatmul.mubr.f32.gmra.mxu0 %v126
    %v197 = vpop.f32.mrf.mxu0
    %v198 = vadd.f32 0.0, %v197
    %v199 = vpop.f32.mrf.mxu0
    %v200 = vadd.f32 0.0, %v199
    %201 = vmatprep.mubr.f32.mxu0 0.0
    %202 = vmatmul.mubr.f32.gmra.mxu0 %v129
    %v203 = vpop.f32.mrf.mxu0
    %v204 = vadd.f32 0.0, %v203
    %v205 = vpop.f32.mrf.mxu0
    %v206 = vadd.f32 0.0, %v205
    %207 = vdwg.mxu0
    %v208 = vld [vmem:[%s2] sm:$0x1]
    %v210 = vlaneseq
    %v211 = vshrl.u32 %v210, 7
    %v212 = vsub.s32 0, %v211
    %v213 = vrot.slane %v208, %v212
    %v215 = vadd.f32 %v198, %v213
    %v216 = vadd.f32 %v204, %v213
    %v217 = vld [vmem:[%s3] sm:$0xff]
    %v218 = vld [vmem:[%s3 + $0x8] sm:$0xff]
    %v219 = vld [vmem:[%s3 + $0x10] sm:$0xff]
    %v220 = vld [vmem:[%s3 + $0x18] sm:$0xff]
    %v222 = vrot.slane %v206, 6
    %v224 = vadd.f32 %v215, %v222
    %vm225 = vcmask 261120
    %v227 = vsel %vm225, 0.0, 0
    %229 = vmatprep.subr.mxu0 0.0
    %230 = vmatpush1.msra.mxu0 0.0
    %231 = vmatprep.subr.mxu0 0.0
    %232 = vmatpush1.msra.mxu0 0.0
    %233 = vmatprep.subr.mxu0 0.0
    %234 = vmatpush1.msra.mxu0 0.0
    %235 = vmatprep.subr.mxu0 0.0
    %236 = vmatpush1.msra.mxu0 0.0
    %237 = vmatprep.subr.mxu0 0.0
    %238 = vmatpush1.msra.mxu0 0.0
    %239 = vmatprep.subr.mxu0 0.0
    %240 = vmatpush1.msra.mxu0 0.0
    %241 = vmatprep.subr.mxu0 0.0
    %242 = vmatpush1.msra.mxu0 0.0
    %243 = vmatprep.subr.mxu0 0.0
    %244 = vmatpush1.msra.mxu0 0.0
    %245 = vmatprep.subr.mxu0 0.0
    %246 = vmatpush1.msra.mxu0 0.0
    %247 = vmatprep.subr.mxu0 0.0
    %248 = vmatpush1.msra.mxu0 0.0
    %249 = vmatprep.subr.mxu0 0.0
    %250 = vmatpush1.msra.mxu0 0.0
    %251 = vmatprep.subr.mxu0 0.0
    %252 = vmatpush1.msra.mxu0 0.0
    %253 = vmatprep.subr.mxu0 0.0
    %254 = vmatpush1.msra.mxu0 %v220
    %255 = vmatprep.subr.mxu0 0.0
    %256 = vmatpush1.msra.mxu0 %v219
    %257 = vmatprep.subr.mxu0 0.0
    %258 = vmatpush1.msra.mxu0 %v218
    %259 = vmatprep.subr.mxu0 0.0
    %260 = vmatpush1.msra.mxu0 %v217
    %261 = vmatprep.subr.mxu0 0.0
    %262 = vmatpush2.msra.mxu0 0.0
    %263 = vmatprep.subr.mxu0 0.0
    %264 = vmatpush2.msra.mxu0 0.0
    %265 = vmatprep.subr.mxu0 0.0
    %266 = vmatpush2.msra.mxu0 0.0
    %267 = vmatprep.subr.mxu0 0.0
    %268 = vmatpush2.msra.mxu0 0.0
    %269 = vmatprep.subr.mxu0 0.0
    %270 = vmatpush2.msra.mxu0 0.0
    %271 = vmatprep.subr.mxu0 0.0
    %272 = vmatpush2.msra.mxu0 0.0
    %273 = vmatprep.subr.mxu0 0.0
    %274 = vmatpush2.msra.mxu0 0.0
    %275 = vmatprep.subr.mxu0 0.0
    %276 = vmatpush2.msra.mxu0 0.0
    %277 = vmatprep.subr.mxu0 0.0
    %278 = vmatpush2.msra.mxu0 0.0
    %279 = vmatprep.subr.mxu0 0.0
    %280 = vmatpush2.msra.mxu0 0.0
    %281 = vmatprep.subr.mxu0 0.0
    %282 = vmatpush2.msra.mxu0 0.0
    %283 = vmatprep.subr.mxu0 0.0
    %284 = vmatpush2.msra.mxu0 0.0
    %285 = vmatprep.subr.mxu0 0.0
    %286 = vmatpush2.msra.mxu0 0.0
    %287 = vmatprep.subr.mxu0 0.0
    %288 = vmatpush2.msra.mxu0 0.0
    %289 = vmatprep.subr.mxu0 0.0
    %290 = vmatpush2.msra.mxu0 0.0
    %291 = vmatprep.subr.mxu0 0.0
    %292 = vmatpush2.msra.mxu0 0.0
    %293 = vmatprep.mubr.f32.mxu0 0.0
    %294 = vmatmul.mubr.f32.gmra.mxu0 %v227
    %v295 = vpop.f32.mrf.mxu0
    %v296 = vadd.f32 0.0, %v295
    %v297 = vpop.f32.mrf.mxu0
    %298 = vdwg.mxu0
    %v299 = vadd.f32 %v224, %v296
    %v300 = vxor.u32 %v299, 2147483648
    %v301 = vmul.f32 %v300, 1.442695
    %v302 = vpow.pop %v301
    %v303 = vadd.f32 %v302, 1.0
    %v304 = vrcp.pop %v303
    %v305 = vmul.f32 1.0, %v304
    %v306 = vtanh.pop %v299
    %v307 = vmul.f32 %v305, 0.0
    %309 = vrot.lane.b32.xlu0 %v306, 32
    %v310 = vpop.permute.xlu0 %309
    %v312 = vmul.f32 %v305, %v310
    %314 = vrot.lane.b32.xlu0 %v312, 32
    %v315 = vpop.permute.xlu0 %314
    %v317 = vadd.f32 %v307, %v315
    %v318 = vtanh.pop %v317
    %320 = vrot.lane.b32.xlu0 %v318, 32
    %v321 = vpop.permute.xlu0 %320
    %v323 = vmul.f32 %v305, %v321
    %325 = vrot.lane.b32.xlu0 %v323, 64
    %v326 = vpop.permute.xlu0 %325
    %vm328 = vcmask 123904
    %329 = vst.msk [vmem:[#allocation2] sm:$0x3] %vm328, %v326
    %330 = vrot.lane.b32.xlu0 %v323, 48
    %v331 = vpop.permute.xlu0 %330
    %333 = vst.msk [vmem:[#allocation3 + $0xe] sm:$0x3] %vm328, %v331
    %v334 = vrot.slane %v206, 2
    %v336 = vadd.f32 %v215, %v334
    %v337 = vsel %vm225, %v326, 0
    %339 = vmatprep.subr.mxu0 0.0
    %340 = vmatpush1.msra.mxu0 0.0
    %341 = vmatprep.subr.mxu0 0.0
    %342 = vmatpush1.msra.mxu0 0.0
    %343 = vmatprep.subr.mxu0 0.0
    %344 = vmatpush1.msra.mxu0 0.0
    %345 = vmatprep.subr.mxu0 0.0
    %346 = vmatpush1.msra.mxu0 0.0
    %347 = vmatprep.subr.mxu0 0.0
    %348 = vmatpush1.msra.mxu0 0.0
    %349 = vmatprep.subr.mxu0 0.0
    %350 = vmatpush1.msra.mxu0 0.0
    %351 = vmatprep.subr.mxu0 0.0
    %352 = vmatpush1.msra.mxu0 0.0
    %353 = vmatprep.subr.mxu0 0.0
    %354 = vmatpush1.msra.mxu0 0.0
    %355 = vmatprep.subr.mxu0 0.0
    %356 = vmatpush1.msra.mxu0 0.0
    %357 = vmatprep.subr.mxu0 0.0
    %358 = vmatpush1.msra.mxu0 0.0
    %359 = vmatprep.subr.mxu0 0.0
    %360 = vmatpush1.msra.mxu0 0.0
    %361 = vmatprep.subr.mxu0 0.0
    %362 = vmatpush1.msra.mxu0 0.0
    %363 = vmatprep.subr.mxu0 0.0
    %364 = vmatpush1.msra.mxu0 %v220
    %365 = vmatprep.subr.mxu0 0.0
    %366 = vmatpush1.msra.mxu0 %v219
    %367 = vmatprep.subr.mxu0 0.0
    %368 = vmatpush1.msra.mxu0 %v218
    %369 = vmatprep.subr.mxu0 0.0
    %370 = vmatpush1.msra.mxu0 %v217
    %371 = vmatprep.subr.mxu0 0.0
    %372 = vmatpush2.msra.mxu0 0.0
    %373 = vmatprep.subr.mxu0 0.0
    %374 = vmatpush2.msra.mxu0 0.0
    %375 = vmatprep.subr.mxu0 0.0
    %376 = vmatpush2.msra.mxu0 0.0
    %377 = vmatprep.subr.mxu0 0.0
    %378 = vmatpush2.msra.mxu0 0.0
    %379 = vmatprep.subr.mxu0 0.0
    %380 = vmatpush2.msra.mxu0 0.0
    %381 = vmatprep.subr.mxu0 0.0
    %382 = vmatpush2.msra.mxu0 0.0
    %383 = vmatprep.subr.mxu0 0.0
    %384 = vmatpush2.msra.mxu0 0.0
    %385 = vmatprep.subr.mxu0 0.0
    %386 = vmatpush2.msra.mxu0 0.0
    %387 = vmatprep.subr.mxu0 0.0
    %388 = vmatpush2.msra.mxu0 0.0
    %389 = vmatprep.subr.mxu0 0.0
    %390 = vmatpush2.msra.mxu0 0.0
    %391 = vmatprep.subr.mxu0 0.0
    %392 = vmatpush2.msra.mxu0 0.0
    %393 = vmatprep.subr.mxu0 0.0
    %394 = vmatpush2.msra.mxu0 0.0
    %395 = vmatprep.subr.mxu0 0.0
    %396 = vmatpush2.msra.mxu0 0.0
    %397 = vmatprep.subr.mxu0 0.0
    %398 = vmatpush2.msra.mxu0 0.0
    %399 = vmatprep.subr.mxu0 0.0
    %400 = vmatpush2.msra.mxu0 0.0
    %401 = vmatprep.subr.mxu0 0.0
    %402 = vmatpush2.msra.mxu0 0.0
    %403 = vmatprep.mubr.f32.mxu0 0.0
    %404 = vmatmul.mubr.f32.gmra.mxu0 %v337
    %v405 = vpop.f32.mrf.mxu0
    %v406 = vadd.f32 0.0, %v405
    %v407 = vpop.f32.mrf.mxu0
    %408 = vdwg.mxu0
    %v410 = vrot.slane %v406, 6
    %v412 = vadd.f32 %v336, %v410
    %v413 = vxor.u32 %v412, 2147483648
    %v414 = vmul.f32 %v413, 1.442695
    %v415 = vpow.pop %v414
    %v416 = vadd.f32 %v415, 1.0
    %v417 = vrcp.pop %v416
    %v418 = vmul.f32 1.0, %v417
    %v419 = vtanh.pop %v412
    %v421 = vrot.slane %v317, 6
    %v423 = vmul.f32 %v418, %v421
    %425 = vrot.lane.b32.xlu0 %v419, 32
    %v426 = vpop.permute.xlu0 %425
    %v428 = vmul.f32 %v418, %v426
    %430 = vrot.lane.b32.xlu0 %v428, 32
    %v431 = vpop.permute.xlu0 %430
    %v433 = vadd.f32 %v423, %v431
    %v434 = vtanh.pop %v433
    %436 = vrot.lane.b32.xlu0 %v434, 32
    %v437 = vpop.permute.xlu0 %436
    %v439 = vmul.f32 %v418, %v437
    %441 = vrot.lane.b32.xlu0 %v439, 64
    %v442 = vpop.permute.xlu0 %441
    %vm444 = vcmask 125954
    %445 = vst.msk [vmem:[#allocation2] sm:$0xc] %vm444, %v442
    %446 = vrot.lane.b32.xlu0 %v439, 48
    %v447 = vpop.permute.xlu0 %446
    %449 = vst.msk [vmem:[#allocation3 + $0xa] sm:$0xc] %vm444, %v447
    %v450 = vrot.slane %v439, 2
    %451 = vrot.lane.b32.xlu0 %v450, 64
    %v452 = vpop.permute.xlu0 %451
    %v453 = vsel %vm225, %v452, 0
    %455 = vmatprep.subr.mxu0 0.0
    %456 = vmatpush1.msra.mxu0 0.0
    %457 = vmatprep.subr.mxu0 0.0
    %458 = vmatpush1.msra.mxu0 0.0
    %459 = vmatprep.subr.mxu0 0.0
    %460 = vmatpush1.msra.mxu0 0.0
    %461 = vmatprep.subr.mxu0 0.0
    %462 = vmatpush1.msra.mxu0 0.0
    %463 = vmatprep.subr.mxu0 0.0
    %464 = vmatpush1.msra.mxu0 0.0
    %465 = vmatprep.subr.mxu0 0.0
    %466 = vmatpush1.msra.mxu0 0.0
    %467 = vmatprep.subr.mxu0 0.0
    %468 = vmatpush1.msra.mxu0 0.0
    %469 = vmatprep.subr.mxu0 0.0
    %470 = vmatpush1.msra.mxu0 0.0
    %471 = vmatprep.subr.mxu0 0.0
    %472 = vmatpush1.msra.mxu0 0.0
    %473 = vmatprep.subr.mxu0 0.0
    %474 = vmatpush1.msra.mxu0 0.0
    %475 = vmatprep.subr.mxu0 0.0
    %476 = vmatpush1.msra.mxu0 0.0
    %477 = vmatprep.subr.mxu0 0.0
    %478 = vmatpush1.msra.mxu0 0.0
    %479 = vmatprep.subr.mxu0 0.0
    %480 = vmatpush1.msra.mxu0 %v220
    %481 = vmatprep.subr.mxu0 0.0
    %482 = vmatpush1.msra.mxu0 %v219
    %483 = vmatprep.subr.mxu0 0.0
    %484 = vmatpush1.msra.mxu0 %v218
    %485 = vmatprep.subr.mxu0 0.0
    %486 = vmatpush1.msra.mxu0 %v217
    %487 = vmatprep.subr.mxu0 0.0
    %488 = vmatpush2.msra.mxu0 0.0
    %489 = vmatprep.subr.mxu0 0.0
    %490 = vmatpush2.msra.mxu0 0.0
    %491 = vmatprep.subr.mxu0 0.0
    %492 = vmatpush2.msra.mxu0 0.0
    %493 = vmatprep.subr.mxu0 0.0
    %494 = vmatpush2.msra.mxu0 0.0
    %495 = vmatprep.subr.mxu0 0.0
    %496 = vmatpush2.msra.mxu0 0.0
    %497 = vmatprep.subr.mxu0 0.0
    %498 = vmatpush2.msra.mxu0 0.0
    %499 = vmatprep.subr.mxu0 0.0
    %500 = vmatpush2.msra.mxu0 0.0
    %501 = vmatprep.subr.mxu0 0.0
    %502 = vmatpush2.msra.mxu0 0.0
    %503 = vmatprep.subr.mxu0 0.0
    %504 = vmatpush2.msra.mxu0 0.0
    %505 = vmatprep.subr.mxu0 0.0
    %506 = vmatpush2.msra.mxu0 0.0
    %507 = vmatprep.subr.mxu0 0.0
    %508 = vmatpush2.msra.mxu0 0.0
    %509 = vmatprep.subr.mxu0 0.0
    %510 = vmatpush2.msra.mxu0 0.0
    %511 = vmatprep.subr.mxu0 0.0
    %512 = vmatpush2.msra.mxu0 0.0
    %513 = vmatprep.subr.mxu0 0.0
    %514 = vmatpush2.msra.mxu0 0.0
    %515 = vmatprep.subr.mxu0 0.0
    %516 = vmatpush2.msra.mxu0 0.0
    %517 = vmatprep.subr.mxu0 0.0
    %518 = vmatpush2.msra.mxu0 0.0
    %519 = vmatprep.mubr.f32.mxu0 0.0
    %520 = vmatmul.mubr.f32.gmra.mxu0 %v453
    %v521 = vpop.f32.mrf.mxu0
    %v522 = vadd.f32 0.0, %v521
    %v523 = vpop.f32.mrf.mxu0
    %524 = vdwg.mxu0
    %v526 = vrot.slane %v522, 4
    %v528 = vadd.f32 %v224, %v526
    %v529 = vxor.u32 %v528, 2147483648
    %v530 = vmul.f32 %v529, 1.442695
    %v531 = vpow.pop %v530
    %v532 = vadd.f32 %v531, 1.0
    %v533 = vrcp.pop %v532
    %v534 = vmul.f32 1.0, %v533
    %v535 = vtanh.pop %v528
    %v537 = vrot.slane %v433, 6
    %v539 = vmul.f32 %v534, %v537
    %541 = vrot.lane.b32.xlu0 %v535, 32
    %v542 = vpop.permute.xlu0 %541
    %v544 = vmul.f32 %v534, %v542
    %546 = vrot.lane.b32.xlu0 %v544, 32
    %v547 = vpop.permute.xlu0 %546
    %v549 = vadd.f32 %v539, %v547
    %v550 = vtanh.pop %v549
    %552 = vrot.lane.b32.xlu0 %v550, 32
    %v553 = vpop.permute.xlu0 %552
    %v555 = vmul.f32 %v534, %v553
    %557 = vrot.lane.b32.xlu0 %v555, 64
    %v558 = vpop.permute.xlu0 %557
    %vm560 = vcmask 128004
    %561 = vst.msk [vmem:[#allocation2] sm:$0x30] %vm560, %v558
    %562 = vrot.lane.b32.xlu0 %v555, 48
    %v563 = vpop.permute.xlu0 %562
    %565 = vst.msk [vmem:[#allocation3 + $0x6] sm:$0x30] %vm560, %v563
    %v566 = vrot.slane %v555, 4
    %567 = vrot.lane.b32.xlu0 %v566, 64
    %v568 = vpop.permute.xlu0 %567
    %v569 = vsel %vm225, %v568, 0
    %571 = vmatprep.subr.mxu0 0.0
    %572 = vmatpush1.msra.mxu0 0.0
    %573 = vmatprep.subr.mxu0 0.0
    %574 = vmatpush1.msra.mxu0 0.0
    %575 = vmatprep.subr.mxu0 0.0
    %576 = vmatpush1.msra.mxu0 0.0
    %577 = vmatprep.subr.mxu0 0.0
    %578 = vmatpush1.msra.mxu0 0.0
    %579 = vmatprep.subr.mxu0 0.0
    %580 = vmatpush1.msra.mxu0 0.0
    %581 = vmatprep.subr.mxu0 0.0
    %582 = vmatpush1.msra.mxu0 0.0
    %583 = vmatprep.subr.mxu0 0.0
    %584 = vmatpush1.msra.mxu0 0.0
    %585 = vmatprep.subr.mxu0 0.0
    %586 = vmatpush1.msra.mxu0 0.0
    %587 = vmatprep.subr.mxu0 0.0
    %588 = vmatpush1.msra.mxu0 0.0
    %589 = vmatprep.subr.mxu0 0.0
    %590 = vmatpush1.msra.mxu0 0.0
    %591 = vmatprep.subr.mxu0 0.0
    %592 = vmatpush1.msra.mxu0 0.0
    %593 = vmatprep.subr.mxu0 0.0
    %594 = vmatpush1.msra.mxu0 0.0
    %595 = vmatprep.subr.mxu0 0.0
    %596 = vmatpush1.msra.mxu0 %v220
    %597 = vmatprep.subr.mxu0 0.0
    %598 = vmatpush1.msra.mxu0 %v219
    %599 = vmatprep.subr.mxu0 0.0
    %600 = vmatpush1.msra.mxu0 %v218
    %601 = vmatprep.subr.mxu0 0.0
    %602 = vmatpush1.msra.mxu0 %v217
    %603 = vmatprep.subr.mxu0 0.0
    %604 = vmatpush2.msra.mxu0 0.0
    %605 = vmatprep.subr.mxu0 0.0
    %606 = vmatpush2.msra.mxu0 0.0
    %607 = vmatprep.subr.mxu0 0.0
    %608 = vmatpush2.msra.mxu0 0.0
    %609 = vmatprep.subr.mxu0 0.0
    %610 = vmatpush2.msra.mxu0 0.0
    %611 = vmatprep.subr.mxu0 0.0
    %612 = vmatpush2.msra.mxu0 0.0
    %613 = vmatprep.subr.mxu0 0.0
    %614 = vmatpush2.msra.mxu0 0.0
    %615 = vmatprep.subr.mxu0 0.0
    %616 = vmatpush2.msra.mxu0 0.0
    %617 = vmatprep.subr.mxu0 0.0
    %618 = vmatpush2.msra.mxu0 0.0
    %619 = vmatprep.subr.mxu0 0.0
    %620 = vmatpush2.msra.mxu0 0.0
    %621 = vmatprep.subr.mxu0 0.0
    %622 = vmatpush2.msra.mxu0 0.0
    %623 = vmatprep.subr.mxu0 0.0
    %624 = vmatpush2.msra.mxu0 0.0
    %625 = vmatprep.subr.mxu0 0.0
    %626 = vmatpush2.msra.mxu0 0.0
    %627 = vmatprep.subr.mxu0 0.0
    %628 = vmatpush2.msra.mxu0 0.0
    %629 = vmatprep.subr.mxu0 0.0
    %630 = vmatpush2.msra.mxu0 0.0
    %631 = vmatprep.subr.mxu0 0.0
    %632 = vmatpush2.msra.mxu0 0.0
    %633 = vmatprep.subr.mxu0 0.0
    %634 = vmatpush2.msra.mxu0 0.0
    %635 = vmatprep.mubr.f32.mxu0 0.0
    %636 = vmatmul.mubr.f32.gmra.mxu0 %v569
    %v637 = vpop.f32.mrf.mxu0
    %v638 = vadd.f32 0.0, %v637
    %v639 = vpop.f32.mrf.mxu0
    %640 = vdwg.mxu0
    %v642 = vrot.slane %v638, 2
    %v644 = vadd.f32 %v336, %v642
    %v645 = vxor.u32 %v644, 2147483648
    %v646 = vmul.f32 %v645, 1.442695
    %v647 = vpow.pop %v646
    %v648 = vadd.f32 %v647, 1.0
    %v649 = vrcp.pop %v648
    %v650 = vmul.f32 1.0, %v649
    %v651 = vtanh.pop %v644
    %v653 = vrot.slane %v549, 6
    %v655 = vmul.f32 %v650, %v653
    %657 = vrot.lane.b32.xlu0 %v651, 32
    %v658 = vpop.permute.xlu0 %657
    %v660 = vmul.f32 %v650, %v658
    %662 = vrot.lane.b32.xlu0 %v660, 32
    %v663 = vpop.permute.xlu0 %662
    %v665 = vadd.f32 %v655, %v663
    %v666 = vtanh.pop %v665
    %668 = vrot.lane.b32.xlu0 %v666, 32
    %v669 = vpop.permute.xlu0 %668
    %v671 = vmul.f32 %v650, %v669
    %673 = vrot.lane.b32.xlu0 %v671, 64
    %v674 = vpop.permute.xlu0 %673
    %vm676 = vcmask 130054
    %677 = vst.msk [vmem:[#allocation2] sm:$0xc0] %vm676, %v674
    %678 = vrot.lane.b32.xlu0 %v671, 48
    %v679 = vpop.permute.xlu0 %678
    %681 = vst.msk [vmem:[#allocation3 + $0x2] sm:$0xc0] %vm676, %v679
    %v683 = vrot.slane %v200, 6
    %v685 = vadd.f32 %v216, %v683
    %v686 = vrot.slane %v671, 6
    %687 = vrot.lane.b32.xlu0 %v686, 64
    %v688 = vpop.permute.xlu0 %687
    %v689 = vsel %vm225, %v688, 0
    %691 = vmatprep.subr.mxu0 0.0
    %692 = vmatpush1.msra.mxu0 0.0
    %693 = vmatprep.subr.mxu0 0.0
    %694 = vmatpush1.msra.mxu0 0.0
    %695 = vmatprep.subr.mxu0 0.0
    %696 = vmatpush1.msra.mxu0 0.0
    %697 = vmatprep.subr.mxu0 0.0
    %698 = vmatpush1.msra.mxu0 0.0
    %699 = vmatprep.subr.mxu0 0.0
    %700 = vmatpush1.msra.mxu0 0.0
    %701 = vmatprep.subr.mxu0 0.0
    %702 = vmatpush1.msra.mxu0 0.0
    %703 = vmatprep.subr.mxu0 0.0
    %704 = vmatpush1.msra.mxu0 0.0
    %705 = vmatprep.subr.mxu0 0.0
    %706 = vmatpush1.msra.mxu0 0.0
    %707 = vmatprep.subr.mxu0 0.0
    %708 = vmatpush1.msra.mxu0 0.0
    %709 = vmatprep.subr.mxu0 0.0
    %710 = vmatpush1.msra.mxu0 0.0
    %711 = vmatprep.subr.mxu0 0.0
    %712 = vmatpush1.msra.mxu0 0.0
    %713 = vmatprep.subr.mxu0 0.0
    %714 = vmatpush1.msra.mxu0 0.0
    %715 = vmatprep.subr.mxu0 0.0
    %716 = vmatpush1.msra.mxu0 %v220
    %717 = vmatprep.subr.mxu0 0.0
    %718 = vmatpush1.msra.mxu0 %v219
    %719 = vmatprep.subr.mxu0 0.0
    %720 = vmatpush1.msra.mxu0 %v218
    %721 = vmatprep.subr.mxu0 0.0
    %722 = vmatpush1.msra.mxu0 %v217
    %723 = vmatprep.subr.mxu0 0.0
    %724 = vmatpush2.msra.mxu0 0.0
    %725 = vmatprep.subr.mxu0 0.0
    %726 = vmatpush2.msra.mxu0 0.0
    %727 = vmatprep.subr.mxu0 0.0
    %728 = vmatpush2.msra.mxu0 0.0
    %729 = vmatprep.subr.mxu0 0.0
    %730 = vmatpush2.msra.mxu0 0.0
    %731 = vmatprep.subr.mxu0 0.0
    %732 = vmatpush2.msra.mxu0 0.0
    %733 = vmatprep.subr.mxu0 0.0
    %734 = vmatpush2.msra.mxu0 0.0
    %735 = vmatprep.subr.mxu0 0.0
    %736 = vmatpush2.msra.mxu0 0.0
    %737 = vmatprep.subr.mxu0 0.0
    %738 = vmatpush2.msra.mxu0 0.0
    %739 = vmatprep.subr.mxu0 0.0
    %740 = vmatpush2.msra.mxu0 0.0
    %741 = vmatprep.subr.mxu0 0.0
    %742 = vmatpush2.msra.mxu0 0.0
    %743 = vmatprep.subr.mxu0 0.0
    %744 = vmatpush2.msra.mxu0 0.0
    %745 = vmatprep.subr.mxu0 0.0
    %746 = vmatpush2.msra.mxu0 0.0
    %747 = vmatprep.subr.mxu0 0.0
    %748 = vmatpush2.msra.mxu0 0.0
    %749 = vmatprep.subr.mxu0 0.0
    %750 = vmatpush2.msra.mxu0 0.0
    %751 = vmatprep.subr.mxu0 0.0
    %752 = vmatpush2.msra.mxu0 0.0
    %753 = vmatprep.subr.mxu0 0.0
    %754 = vmatpush2.msra.mxu0 0.0
    %755 = vmatprep.mubr.f32.mxu0 0.0
    %756 = vmatmul.mubr.f32.gmra.mxu0 %v689
    %v757 = vpop.f32.mrf.mxu0
    %v758 = vadd.f32 0.0, %v757
    %v759 = vpop.f32.mrf.mxu0
    %760 = vdwg.mxu0
    %v761 = vadd.f32 %v685, %v758
    %v762 = vxor.u32 %v761, 2147483648
    %v763 = vmul.f32 %v762, 1.442695
    %v764 = vpow.pop %v763
    %v765 = vadd.f32 %v764, 1.0
    %v766 = vrcp.pop %v765
    %v767 = vmul.f32 1.0, %v766
    %v768 = vtanh.pop %v761
    %v770 = vrot.slane %v665, 6
    %v772 = vmul.f32 %v767, %v770
    %774 = vrot.lane.b32.xlu0 %v768, 32
    %v775 = vpop.permute.xlu0 %774
    %v777 = vmul.f32 %v767, %v775
    %779 = vrot.lane.b32.xlu0 %v777, 32
    %v780 = vpop.permute.xlu0 %779
    %v782 = vadd.f32 %v772, %v780
    %v783 = vtanh.pop %v782
    %785 = vrot.lane.b32.xlu0 %v783, 32
    %v786 = vpop.permute.xlu0 %785
    %v788 = vmul.f32 %v767, %v786
    %790 = vrot.lane.b32.xlu0 %v788, 64
    %v791 = vpop.permute.xlu0 %790
    %793 = vst.msk [vmem:[#allocation2 + $0x8] sm:$0x3] %vm328, %v791
    %794 = vrot.lane.b32.xlu0 %v788, 48
    %v795 = vpop.permute.xlu0 %794
    %797 = vst.msk [vmem:[#allocation3 + $0x6] sm:$0x3] %vm328, %v795
    %v798 = vrot.slane %v200, 2
    %v800 = vadd.f32 %v216, %v798
    %v801 = vsel %vm225, %v791, 0
    %803 = vmatprep.subr.mxu0 0.0
    %804 = vmatpush1.msra.mxu0 0.0
    %805 = vmatprep.subr.mxu0 0.0
    %806 = vmatpush1.msra.mxu0 0.0
    %807 = vmatprep.subr.mxu0 0.0
    %808 = vmatpush1.msra.mxu0 0.0
    %809 = vmatprep.subr.mxu0 0.0
    %810 = vmatpush1.msra.mxu0 0.0
    %811 = vmatprep.subr.mxu0 0.0
    %812 = vmatpush1.msra.mxu0 0.0
    %813 = vmatprep.subr.mxu0 0.0
    %814 = vmatpush1.msra.mxu0 0.0
    %815 = vmatprep.subr.mxu0 0.0
    %816 = vmatpush1.msra.mxu0 0.0
    %817 = vmatprep.subr.mxu0 0.0
    %818 = vmatpush1.msra.mxu0 0.0
    %819 = vmatprep.subr.mxu0 0.0
    %820 = vmatpush1.msra.mxu0 0.0
    %821 = vmatprep.subr.mxu0 0.0
    %822 = vmatpush1.msra.mxu0 0.0
    %823 = vmatprep.subr.mxu0 0.0
    %824 = vmatpush1.msra.mxu0 0.0
    %825 = vmatprep.subr.mxu0 0.0
    %826 = vmatpush1.msra.mxu0 0.0
    %827 = vmatprep.subr.mxu0 0.0
    %828 = vmatpush1.msra.mxu0 %v220
    %829 = vmatprep.subr.mxu0 0.0
    %830 = vmatpush1.msra.mxu0 %v219
    %831 = vmatprep.subr.mxu0 0.0
    %832 = vmatpush1.msra.mxu0 %v218
    %833 = vmatprep.subr.mxu0 0.0
    %834 = vmatpush1.msra.mxu0 %v217
    %835 = vmatprep.subr.mxu0 0.0
    %836 = vmatpush2.msra.mxu0 0.0
    %837 = vmatprep.subr.mxu0 0.0
    %838 = vmatpush2.msra.mxu0 0.0
    %839 = vmatprep.subr.mxu0 0.0
    %840 = vmatpush2.msra.mxu0 0.0
    %841 = vmatprep.subr.mxu0 0.0
    %842 = vmatpush2.msra.mxu0 0.0
    %843 = vmatprep.subr.mxu0 0.0
    %844 = vmatpush2.msra.mxu0 0.0
    %845 = vmatprep.subr.mxu0 0.0
    %846 = vmatpush2.msra.mxu0 0.0
    %847 = vmatprep.subr.mxu0 0.0
    %848 = vmatpush2.msra.mxu0 0.0
    %849 = vmatprep.subr.mxu0 0.0
    %850 = vmatpush2.msra.mxu0 0.0
    %851 = vmatprep.subr.mxu0 0.0
    %852 = vmatpush2.msra.mxu0 0.0
    %853 = vmatprep.subr.mxu0 0.0
    %854 = vmatpush2.msra.mxu0 0.0
    %855 = vmatprep.subr.mxu0 0.0
    %856 = vmatpush2.msra.mxu0 0.0
    %857 = vmatprep.subr.mxu0 0.0
    %858 = vmatpush2.msra.mxu0 0.0
    %859 = vmatprep.subr.mxu0 0.0
    %860 = vmatpush2.msra.mxu0 0.0
    %861 = vmatprep.subr.mxu0 0.0
    %862 = vmatpush2.msra.mxu0 0.0
    %863 = vmatprep.subr.mxu0 0.0
    %864 = vmatpush2.msra.mxu0 0.0
    %865 = vmatprep.subr.mxu0 0.0
    %866 = vmatpush2.msra.mxu0 0.0
    %867 = vmatprep.mubr.f32.mxu0 0.0
    %868 = vmatmul.mubr.f32.gmra.mxu0 %v801
    %v869 = vpop.f32.mrf.mxu0
    %v870 = vadd.f32 0.0, %v869
    %v871 = vpop.f32.mrf.mxu0
    %872 = vdwg.mxu0
    %v874 = vrot.slane %v870, 6
    %v876 = vadd.f32 %v800, %v874
    %v877 = vxor.u32 %v876, 2147483648
    %v878 = vmul.f32 %v877, 1.442695
    %v879 = vpow.pop %v878
    %v880 = vadd.f32 %v879, 1.0
    %v881 = vrcp.pop %v880
    %v882 = vmul.f32 1.0, %v881
    %v883 = vtanh.pop %v876
    %v885 = vrot.slane %v782, 6
    %v887 = vmul.f32 %v882, %v885
    %889 = vrot.lane.b32.xlu0 %v883, 32
    %v890 = vpop.permute.xlu0 %889
    %v892 = vmul.f32 %v882, %v890
    %894 = vrot.lane.b32.xlu0 %v892, 32
    %v895 = vpop.permute.xlu0 %894
    %v897 = vadd.f32 %v887, %v895
    %v898 = vtanh.pop %v897
    %900 = vrot.lane.b32.xlu0 %v898, 32
    %v901 = vpop.permute.xlu0 %900
    %v903 = vmul.f32 %v882, %v901
    %905 = vrot.lane.b32.xlu0 %v903, 64
    %v906 = vpop.permute.xlu0 %905
    %908 = vst.msk [vmem:[#allocation2 + $0x8] sm:$0xc] %vm444, %v906
    %909 = vrot.lane.b32.xlu0 %v903, 48
    %v910 = vpop.permute.xlu0 %909
    %912 = vst.msk [vmem:[#allocation3 + $0x2] sm:$0xc] %vm444, %v910
    %v913 = vrot.slane %v903, 2
    %914 = vrot.lane.b32.xlu0 %v913, 64
    %v915 = vpop.permute.xlu0 %914
    %v916 = vsel %vm225, %v915, 0
    %918 = vmatprep.subr.mxu0 0.0
    %919 = vmatpush1.msra.mxu0 0.0
    %920 = vmatprep.subr.mxu0 0.0
    %921 = vmatpush1.msra.mxu0 0.0
    %922 = vmatprep.subr.mxu0 0.0
    %923 = vmatpush1.msra.mxu0 0.0
    %924 = vmatprep.subr.mxu0 0.0
    %925 = vmatpush1.msra.mxu0 0.0
    %926 = vmatprep.subr.mxu0 0.0
    %927 = vmatpush1.msra.mxu0 0.0
    %928 = vmatprep.subr.mxu0 0.0
    %929 = vmatpush1.msra.mxu0 0.0
    %930 = vmatprep.subr.mxu0 0.0
    %931 = vmatpush1.msra.mxu0 0.0
    %932 = vmatprep.subr.mxu0 0.0
    %933 = vmatpush1.msra.mxu0 0.0
    %934 = vmatprep.subr.mxu0 0.0
    %935 = vmatpush1.msra.mxu0 0.0
    %936 = vmatprep.subr.mxu0 0.0
    %937 = vmatpush1.msra.mxu0 0.0
    %938 = vmatprep.subr.mxu0 0.0
    %939 = vmatpush1.msra.mxu0 0.0
    %940 = vmatprep.subr.mxu0 0.0
    %941 = vmatpush1.msra.mxu0 0.0
    %942 = vmatprep.subr.mxu0 0.0
    %943 = vmatpush1.msra.mxu0 %v220
    %944 = vmatprep.subr.mxu0 0.0
    %945 = vmatpush1.msra.mxu0 %v219
    %946 = vmatprep.subr.mxu0 0.0
    %947 = vmatpush1.msra.mxu0 %v218
    %948 = vmatprep.subr.mxu0 0.0
    %949 = vmatpush1.msra.mxu0 %v217
    %950 = vmatprep.subr.mxu0 0.0
    %951 = vmatpush2.msra.mxu0 0.0
    %952 = vmatprep.subr.mxu0 0.0
    %953 = vmatpush2.msra.mxu0 0.0
    %954 = vmatprep.subr.mxu0 0.0
    %955 = vmatpush2.msra.mxu0 0.0
    %956 = vmatprep.subr.mxu0 0.0
    %957 = vmatpush2.msra.mxu0 0.0
    %958 = vmatprep.subr.mxu0 0.0
    %959 = vmatpush2.msra.mxu0 0.0
    %960 = vmatprep.subr.mxu0 0.0
    %961 = vmatpush2.msra.mxu0 0.0
    %962 = vmatprep.subr.mxu0 0.0
    %963 = vmatpush2.msra.mxu0 0.0
    %964 = vmatprep.subr.mxu0 0.0
    %965 = vmatpush2.msra.mxu0 0.0
    %966 = vmatprep.subr.mxu0 0.0
    %967 = vmatpush2.msra.mxu0 0.0
    %968 = vmatprep.subr.mxu0 0.0
    %969 = vmatpush2.msra.mxu0 0.0
    %970 = vmatprep.subr.mxu0 0.0
    %971 = vmatpush2.msra.mxu0 0.0
    %972 = vmatprep.subr.mxu0 0.0
    %973 = vmatpush2.msra.mxu0 0.0
    %974 = vmatprep.subr.mxu0 0.0
    %975 = vmatpush2.msra.mxu0 0.0
    %976 = vmatprep.subr.mxu0 0.0
    %977 = vmatpush2.msra.mxu0 0.0
    %978 = vmatprep.subr.mxu0 0.0
    %979 = vmatpush2.msra.mxu0 0.0
    %980 = vmatprep.subr.mxu0 0.0
    %981 = vmatpush2.msra.mxu0 0.0
    %982 = vmatprep.mubr.f32.mxu0 0.0
    %983 = vmatmul.mubr.f32.gmra.mxu0 %v916
    %v984 = vpop.f32.mrf.mxu0
    %v985 = vadd.f32 0.0, %v984
    %v986 = vpop.f32.mrf.mxu0
    %987 = vdwg.mxu0
    %v989 = vrot.slane %v985, 4
    %v991 = vadd.f32 %v685, %v989
    %v992 = vxor.u32 %v991, 2147483648
    %v993 = vmul.f32 %v992, 1.442695
    %v994 = vpow.pop %v993
    %v995 = vadd.f32 %v994, 1.0
    %v996 = vrcp.pop %v995
    %v997 = vmul.f32 1.0, %v996
    %v998 = vtanh.pop %v991
    %v1000 = vrot.slane %v897, 6
    %v1002 = vmul.f32 %v997, %v1000
    %1004 = vrot.lane.b32.xlu0 %v998, 32
    %v1005 = vpop.permute.xlu0 %1004
    %v1007 = vmul.f32 %v997, %v1005
    %1009 = vrot.lane.b32.xlu0 %v1007, 32
    %v1010 = vpop.permute.xlu0 %1009
    %v1012 = vadd.f32 %v1002, %v1010
    %v1013 = vtanh.pop %v1012
    %1015 = vrot.lane.b32.xlu0 %v1013, 32
    %v1016 = vpop.permute.xlu0 %1015
    %v1018 = vmul.f32 %v997, %v1016
    %1020 = vrot.lane.b32.xlu0 %v1018, 64
    %v1021 = vpop.permute.xlu0 %1020
    %1023 = vst.msk [vmem:[#allocation2 + $0x8] sm:$0x30] %vm560, %v1021
    %1024 = vrot.lane.b32.xlu0 %v1018, 48
    %v1025 = vpop.permute.xlu0 %1024
    %1027 = vst.msk [vmem:[#allocation3 - $0x2] sm:$0x30] %vm560, %v1025
    %v1028 = vrot.slane %v1018, 4
    %1029 = vrot.lane.b32.xlu0 %v1028, 64
    %v1030 = vpop.permute.xlu0 %1029
    %v1031 = vsel %vm225, %v1030, 0
    %1033 = vmatprep.subr.mxu0 0.0
    %1034 = vmatpush1.msra.mxu0 0.0
    %1035 = vmatprep.subr.mxu0 0.0
    %1036 = vmatpush1.msra.mxu0 0.0
    %1037 = vmatprep.subr.mxu0 0.0
    %1038 = vmatpush1.msra.mxu0 0.0
    %1039 = vmatprep.subr.mxu0 0.0
    %1040 = vmatpush1.msra.mxu0 0.0
    %1041 = vmatprep.subr.mxu0 0.0
    %1042 = vmatpush1.msra.mxu0 0.0
    %1043 = vmatprep.subr.mxu0 0.0
    %1044 = vmatpush1.msra.mxu0 0.0
    %1045 = vmatprep.subr.mxu0 0.0
    %1046 = vmatpush1.msra.mxu0 0.0
    %1047 = vmatprep.subr.mxu0 0.0
    %1048 = vmatpush1.msra.mxu0 0.0
    %1049 = vmatprep.subr.mxu0 0.0
    %1050 = vmatpush1.msra.mxu0 0.0
    %1051 = vmatprep.subr.mxu0 0.0
    %1052 = vmatpush1.msra.mxu0 0.0
    %1053 = vmatprep.subr.mxu0 0.0
    %1054 = vmatpush1.msra.mxu0 0.0
    %1055 = vmatprep.subr.mxu0 0.0
    %1056 = vmatpush1.msra.mxu0 0.0
    %1057 = vmatprep.subr.mxu0 0.0
    %1058 = vmatpush1.msra.mxu0 %v220
    %1059 = vmatprep.subr.mxu0 0.0
    %1060 = vmatpush1.msra.mxu0 %v219
    %1061 = vmatprep.subr.mxu0 0.0
    %1062 = vmatpush1.msra.mxu0 %v218
    %1063 = vmatprep.subr.mxu0 0.0
    %1064 = vmatpush1.msra.mxu0 %v217
    %1065 = vmatprep.subr.mxu0 0.0
    %1066 = vmatpush2.msra.mxu0 0.0
    %1067 = vmatprep.subr.mxu0 0.0
    %1068 = vmatpush2.msra.mxu0 0.0
    %1069 = vmatprep.subr.mxu0 0.0
    %1070 = vmatpush2.msra.mxu0 0.0
    %1071 = vmatprep.subr.mxu0 0.0
    %1072 = vmatpush2.msra.mxu0 0.0
    %1073 = vmatprep.subr.mxu0 0.0
    %1074 = vmatpush2.msra.mxu0 0.0
    %1075 = vmatprep.subr.mxu0 0.0
    %1076 = vmatpush2.msra.mxu0 0.0
    %1077 = vmatprep.subr.mxu0 0.0
    %1078 = vmatpush2.msra.mxu0 0.0
    %1079 = vmatprep.subr.mxu0 0.0
    %1080 = vmatpush2.msra.mxu0 0.0
    %1081 = vmatprep.subr.mxu0 0.0
    %1082 = vmatpush2.msra.mxu0 0.0
    %1083 = vmatprep.subr.mxu0 0.0
    %1084 = vmatpush2.msra.mxu0 0.0
    %1085 = vmatprep.subr.mxu0 0.0
    %1086 = vmatpush2.msra.mxu0 0.0
    %1087 = vmatprep.subr.mxu0 0.0
    %1088 = vmatpush2.msra.mxu0 0.0
    %1089 = vmatprep.subr.mxu0 0.0
    %1090 = vmatpush2.msra.mxu0 0.0
    %1091 = vmatprep.subr.mxu0 0.0
    %1092 = vmatpush2.msra.mxu0 0.0
    %1093 = vmatprep.subr.mxu0 0.0
    %1094 = vmatpush2.msra.mxu0 0.0
    %1095 = vmatprep.subr.mxu0 0.0
    %1096 = vmatpush2.msra.mxu0 0.0
    %1097 = vmatprep.mubr.f32.mxu0 0.0
    %1098 = vmatmul.mubr.f32.gmra.mxu0 %v1031
    %v1099 = vpop.f32.mrf.mxu0
    %v1100 = vadd.f32 0.0, %v1099
    %v1101 = vpop.f32.mrf.mxu0
    %1102 = vdwg.mxu0
    %v1104 = vrot.slane %v1100, 2
    %v1106 = vadd.f32 %v800, %v1104
    %v1107 = vxor.u32 %v1106, 2147483648
    %v1108 = vmul.f32 %v1107, 1.442695
    %v1109 = vpow.pop %v1108
    %v1110 = vadd.f32 %v1109, 1.0
    %v1111 = vrcp.pop %v1110
    %v1112 = vmul.f32 1.0, %v1111
    %v1113 = vtanh.pop %v1106
    %v1115 = vrot.slane %v1012, 6
    %v1117 = vmul.f32 %v1112, %v1115
    %1119 = vrot.lane.b32.xlu0 %v1113, 32
    %v1120 = vpop.permute.xlu0 %1119
    %v1122 = vmul.f32 %v1112, %v1120
    %1124 = vrot.lane.b32.xlu0 %v1122, 32
    %v1125 = vpop.permute.xlu0 %1124
    %v1127 = vadd.f32 %v1117, %v1125
    %v1128 = vtanh.pop %v1127
    %1130 = vrot.lane.b32.xlu0 %v1128, 32
    %v1131 = vpop.permute.xlu0 %1130
    %v1133 = vmul.f32 %v1112, %v1131
    %1135 = vrot.lane.b32.xlu0 %v1133, 64
    %v1136 = vpop.permute.xlu0 %1135
    %1138 = vst.msk [vmem:[#allocation2 + $0x8] sm:$0xc0] %vm676, %v1136
    %1139 = vrot.lane.b32.xlu0 %v1133, 48
    %v1140 = vpop.permute.xlu0 %1139
    %1142 = vst.msk [vmem:[#allocation3 - $0x6] sm:$0xc0] %vm676, %v1140
    %v1143 = vld [vmem:[#allocation2] sm:$0xff]
    %v1144 = vld [vmem:[#allocation2 + $0x8] sm:$0xff]
    %v1145 = vld [vmem:[#allocation9] sm:$0xff]
    %v1146 = vld [vmem:[#allocation9 + $0x8] sm:$0xff]
    %v1147 = vld [vmem:[#allocation3] sm:$0xff]
    %v1148 = vld [vmem:[#allocation3 + $0x8] sm:$0xff]
    %v1149 = vld [vmem:[#allocation11] sm:$0xff]
    %v1150 = vld [vmem:[#allocation11 + $0x8] sm:$0xff]
    %vm1151 = vcmask 130048
    %v1153 = vsel %vm1151, %v1147, 0
    %v1156 = vsel %vm1151, %v1148, 0
    %1158 = vmatprep.subr.mxu0 0.0
    %1159 = vmatpush1.msra.mxu0 0.0
    %1160 = vmatprep.subr.mxu0 0.0
    %1161 = vmatpush1.msra.mxu0 0.0
    %1162 = vmatprep.subr.mxu0 0.0
    %1163 = vmatpush1.msra.mxu0 0.0
    %1164 = vmatprep.subr.mxu0 0.0
    %1165 = vmatpush1.msra.mxu0 0.0
    %1166 = vmatprep.subr.mxu0 0.0
    %1167 = vmatpush1.msra.mxu0 0.0
    %1168 = vmatprep.subr.mxu0 0.0
    %1169 = vmatpush1.msra.mxu0 0.0
    %1170 = vmatprep.subr.mxu0 0.0
    %1171 = vmatpush1.msra.mxu0 0.0
    %1172 = vmatprep.subr.mxu0 0.0
    %1173 = vmatpush1.msra.mxu0 0.0
    %1174 = vmatprep.subr.mxu0 0.0
    %1175 = vmatpush1.msra.mxu0 0.0
    %1176 = vmatprep.subr.mxu0 0.0
    %1177 = vmatpush1.msra.mxu0 0.0
    %1178 = vmatprep.subr.mxu0 0.0
    %1179 = vmatpush1.msra.mxu0 0.0
    %1180 = vmatprep.subr.mxu0 0.0
    %1181 = vmatpush1.msra.mxu0 0.0
    %1182 = vmatprep.subr.mxu0 0.0
    %1183 = vmatpush1.msra.mxu0 0.0
    %1184 = vmatprep.subr.mxu0 0.0
    %1185 = vmatpush1.msra.mxu0 0.0
    %1186 = vmatprep.subr.mxu0 0.0
    %1187 = vmatpush1.msra.mxu0 %v1150
    %1188 = vmatprep.subr.mxu0 0.0
    %1189 = vmatpush1.msra.mxu0 %v1149
    %1190 = vmatprep.subr.mxu0 0.0
    %1191 = vmatpush2.msra.mxu0 0.0
    %1192 = vmatprep.subr.mxu0 0.0
    %1193 = vmatpush2.msra.mxu0 0.0
    %1194 = vmatprep.subr.mxu0 0.0
    %1195 = vmatpush2.msra.mxu0 0.0
    %1196 = vmatprep.subr.mxu0 0.0
    %1197 = vmatpush2.msra.mxu0 0.0
    %1198 = vmatprep.subr.mxu0 0.0
    %1199 = vmatpush2.msra.mxu0 0.0
    %1200 = vmatprep.subr.mxu0 0.0
    %1201 = vmatpush2.msra.mxu0 0.0
    %1202 = vmatprep.subr.mxu0 0.0
    %1203 = vmatpush2.msra.mxu0 0.0
    %1204 = vmatprep.subr.mxu0 0.0
    %1205 = vmatpush2.msra.mxu0 0.0
    %1206 = vmatprep.subr.mxu0 0.0
    %1207 = vmatpush2.msra.mxu0 0.0
    %1208 = vmatprep.subr.mxu0 0.0
    %1209 = vmatpush2.msra.mxu0 0.0
    %1210 = vmatprep.subr.mxu0 0.0
    %1211 = vmatpush2.msra.mxu0 0.0
    %1212 = vmatprep.subr.mxu0 0.0
    %1213 = vmatpush2.msra.mxu0 0.0
    %1214 = vmatprep.subr.mxu0 0.0
    %1215 = vmatpush2.msra.mxu0 0.0
    %1216 = vmatprep.subr.mxu0 0.0
    %1217 = vmatpush2.msra.mxu0 0.0
    %1218 = vmatprep.subr.mxu0 0.0
    %1219 = vmatpush2.msra.mxu0 0.0
    %1220 = vmatprep.subr.mxu0 0.0
    %1221 = vmatpush2.msra.mxu0 0.0
    %1222 = vmatprep.mubr.f32.mxu0 0.0
    %1223 = vmatmul.mubr.f32.gmra.mxu0 %v1153
    %v1224 = vpop.f32.mrf.mxu0
    %v1225 = vadd.f32 0.0, %v1224
    %v1226 = vpop.f32.mrf.mxu0
    %1227 = vmatprep.mubr.f32.mxu0 0.0
    %1228 = vmatmul.mubr.f32.gmra.mxu0 %v1156
    %v1229 = vpop.f32.mrf.mxu0
    %v1230 = vadd.f32 0.0, %v1229
    %v1231 = vpop.f32.mrf.mxu0
    %1232 = vdwg.mxu0
    %v1234 = vsel %vm1151, %v1143, 0
    %v1237 = vsel %vm1151, %v1144, 0
    %1239 = vmatprep.subr.mxu0 0.0
    %1240 = vmatpush1.msra.mxu0 0.0
    %1241 = vmatprep.subr.mxu0 0.0
    %1242 = vmatpush1.msra.mxu0 0.0
    %1243 = vmatprep.subr.mxu0 0.0
    %1244 = vmatpush1.msra.mxu0 0.0
    %1245 = vmatprep.subr.mxu0 0.0
    %1246 = vmatpush1.msra.mxu0 0.0
    %1247 = vmatprep.subr.mxu0 0.0
    %1248 = vmatpush1.msra.mxu0 0.0
    %1249 = vmatprep.subr.mxu0 0.0
    %1250 = vmatpush1.msra.mxu0 0.0
    %1251 = vmatprep.subr.mxu0 0.0
    %1252 = vmatpush1.msra.mxu0 0.0
    %1253 = vmatprep.subr.mxu0 0.0
    %1254 = vmatpush1.msra.mxu0 0.0
    %1255 = vmatprep.subr.mxu0 0.0
    %1256 = vmatpush1.msra.mxu0 0.0
    %1257 = vmatprep.subr.mxu0 0.0
    %1258 = vmatpush1.msra.mxu0 0.0
    %1259 = vmatprep.subr.mxu0 0.0
    %1260 = vmatpush1.msra.mxu0 0.0
    %1261 = vmatprep.subr.mxu0 0.0
    %1262 = vmatpush1.msra.mxu0 0.0
    %1263 = vmatprep.subr.mxu0 0.0
    %1264 = vmatpush1.msra.mxu0 0.0
    %1265 = vmatprep.subr.mxu0 0.0
    %1266 = vmatpush1.msra.mxu0 0.0
    %1267 = vmatprep.subr.mxu0 0.0
    %1268 = vmatpush1.msra.mxu0 %v1146
    %1269 = vmatprep.subr.mxu0 0.0
    %1270 = vmatpush1.msra.mxu0 %v1145
    %1271 = vmatprep.subr.mxu0 0.0
    %1272 = vmatpush2.msra.mxu0 0.0
    %1273 = vmatprep.subr.mxu0 0.0
    %1274 = vmatpush2.msra.mxu0 0.0
    %1275 = vmatprep.subr.mxu0 0.0
    %1276 = vmatpush2.msra.mxu0 0.0
    %1277 = vmatprep.subr.mxu0 0.0
    %1278 = vmatpush2.msra.mxu0 0.0
    %1279 = vmatprep.subr.mxu0 0.0
    %1280 = vmatpush2.msra.mxu0 0.0
    %1281 = vmatprep.subr.mxu0 0.0
    %1282 = vmatpush2.msra.mxu0 0.0
    %1283 = vmatprep.subr.mxu0 0.0
    %1284 = vmatpush2.msra.mxu0 0.0
    %1285 = vmatprep.subr.mxu0 0.0
    %1286 = vmatpush2.msra.mxu0 0.0
    %1287 = vmatprep.subr.mxu0 0.0
    %1288 = vmatpush2.msra.mxu0 0.0
    %1289 = vmatprep.subr.mxu0 0.0
    %1290 = vmatpush2.msra.mxu0 0.0
    %1291 = vmatprep.subr.mxu0 0.0
    %1292 = vmatpush2.msra.mxu0 0.0
    %1293 = vmatprep.subr.mxu0 0.0
    %1294 = vmatpush2.msra.mxu0 0.0
    %1295 = vmatprep.subr.mxu0 0.0
    %1296 = vmatpush2.msra.mxu0 0.0
    %1297 = vmatprep.subr.mxu0 0.0
    %1298 = vmatpush2.msra.mxu0 0.0
    %1299 = vmatprep.subr.mxu0 0.0
    %1300 = vmatpush2.msra.mxu0 0.0
    %1301 = vmatprep.subr.mxu0 0.0
    %1302 = vmatpush2.msra.mxu0 0.0
    %1303 = vmatprep.mubr.f32.mxu0 0.0
    %1304 = vmatmul.mubr.f32.gmra.mxu0 %v1234
    %v1305 = vpop.f32.mrf.mxu0
    %v1306 = vadd.f32 %v1225, %v1305
    %v1307 = vpop.f32.mrf.mxu0
    %1308 = vmatprep.mubr.f32.mxu0 0.0
    %1309 = vmatmul.mubr.f32.gmra.mxu0 %v1237
    %v1310 = vpop.f32.mrf.mxu0
    %v1311 = vadd.f32 %v1230, %v1310
    %v1312 = vpop.f32.mrf.mxu0
    %1313 = vdwg.mxu0
    %v1314 = vld [vmem:[%s6] sm:$0x1]
    %v1316 = vlaneseq
    %v1317 = vshrl.u32 %v1316, 7
    %v1318 = vsub.s32 0, %v1317
    %v1319 = vrot.slane %v1314, %v1318
    %v1321 = vadd.f32 %v1306, %v1319
    %v1322 = vadd.f32 %v1311, %v1319
    %vm1323 = vcmask 58368
    %1324 = vst.msk [vmem:[#allocation4] sm:$0x3] %vm1323, %v1321
    %1326 = vrot.lane.b32.xlu0 %v1321, 120
    %v1327 = vpop.permute.xlu0 %1326
    %1329 = vst.msk [vmem:[#allocation4 + $0x2] sm:$0x3] %vm1323, %v1327
    %vm1330 = vcmask 60418
    %1331 = vst.msk [vmem:[#allocation4 + $0x2] sm:$0xc] %vm1330, %v1321
    %1332 = vst.msk [vmem:[#allocation4 + $0x4] sm:$0xc] %vm1330, %v1327
    %vm1333 = vcmask 62468
    %1334 = vst.msk [vmem:[#allocation4 + $0x4] sm:$0x30] %vm1333, %v1321
    %1335 = vst.msk [vmem:[#allocation4 + $0x6] sm:$0x30] %vm1333, %v1327
    %vm1336 = vcmask 64518
    %1337 = vst.msk [vmem:[#allocation4 + $0x6] sm:$0xc0] %vm1336, %v1321
    %1338 = vst.msk [vmem:[#allocation4 + $0x8] sm:$0xc0] %vm1336, %v1327
    %1339 = vst.msk [vmem:[#allocation4 + $0x10] sm:$0x3] %vm1323, %v1322
    %1341 = vrot.lane.b32.xlu0 %v1322, 120
    %v1342 = vpop.permute.xlu0 %1341
    %1344 = vst.msk [vmem:[#allocation4 + $0x12] sm:$0x3] %vm1323, %v1342
    %1345 = vst.msk [vmem:[#allocation4 + $0x12] sm:$0xc] %vm1330, %v1322
    %1346 = vst.msk [vmem:[#allocation4 + $0x14] sm:$0xc] %vm1330, %v1342
    %1347 = vst.msk [vmem:[#allocation4 + $0x14] sm:$0x30] %vm1333, %v1322
    %1348 = vst.msk [vmem:[#allocation4 + $0x16] sm:$0x30] %vm1333, %v1342
    %1349 = vst.msk [vmem:[#allocation4 + $0x16] sm:$0xc0] %vm1336, %v1322
    %1350 = vst.msk [vmem:[#allocation4 + $0x18] sm:$0xc0] %vm1336, %v1342
    %v1351 = vld [vmem:[#allocation12] sm:$0xff]
    %v1352 = vld [vmem:[#allocation12 + $0x8] sm:$0xff]
    %v1353 = vld [vmem:[#allocation12 + $0x10] sm:$0xff]
    %v1354 = vld [vmem:[#allocation12 + $0x18] sm:$0xff]
    %v1355 = vld [vmem:[%s8] sm:$0xf]
    %v1356 = vld [vmem:[%s9] sm:$0xf]
    %v1357 = vld [vmem:[#allocation4] sm:$0xf]
    %v1358 = vadd.f32 %v1355, %v1357
    %v1361 = vunpack.c.l.s4 1966171168
    %v1362 = vunpack.c.0.s8 %v1361
    %v1363 = vlaneseq
    %v1364 = vshrl.u32 %v1363, 7
    %v1365 = vsub.s32 %v1362, %v1364
    %v1366 = vrot.slane %v1358, %v1365
    %v1367 = vcombine.high %v1366, %v1366
    %v1369 = vunpack.c.l.s4 1966171168
    %v1370 = vunpack.c.0.s8 %v1369
    %v1371 = vlaneseq
    %v1372 = vshrl.u32 %v1371, 7
    %v1373 = vsub.s32 %v1370, %v1372
    %v1374 = vrot.slane %v1366, %v1373
    %v1376 = vunpack.c.l.s4 1966171168
    %v1377 = vunpack.c.0.s8 %v1376
    %v1378 = vlaneseq
    %v1379 = vshrl.u32 %v1378, 7
    %v1380 = vsub.s32 %v1377, %v1379
    %v1381 = vrot.slane %v1367, %v1380
    %v1382 = vcombine.high %v1374, %v1374
    %v1383 = vcombine.high %v1381, %v1381
    %v1384 = vlaneseq
    %v1385 = vshrl.u32 %v1384, 7
    %v1386 = vsub.s32 0, %v1385
    %v1387 = vrot.slane %v1374, %v1386
    %v1388 = vlaneseq
    %v1389 = vshrl.u32 %v1388, 7
    %v1390 = vsub.s32 0, %v1389
    %v1391 = vrot.slane %v1381, %v1390
    %v1392 = vlaneseq
    %v1393 = vshrl.u32 %v1392, 7
    %v1394 = vsub.s32 0, %v1393
    %v1395 = vrot.slane %v1382, %v1394
    %v1396 = vlaneseq
    %v1397 = vshrl.u32 %v1396, 7
    %v1398 = vsub.s32 0, %v1397
    %v1399 = vrot.slane %v1383, %v1398
    %v1404 = vadd.f32 %v1387, %v1351
    %v1405 = vadd.f32 %v1391, %v1352
    %v1406 = vadd.f32 %v1395, %v1353
    %v1407 = vadd.f32 %v1399, %v1354
    %vm1408 = vcmask 64512
    %v1409 = vsel %vm1408, %v1404, -inf
    %1410 = vmax.xlane.f32.xlu0 %v1409
    %v1411 = vpop.xlane.xlu0 %1410
    %v1412 = vsel %vm1408, %v1405, -inf
    %1413 = vmax.xlane.f32.xlu0 %v1412
    %v1414 = vpop.xlane.xlu0 %1413
    %v1415 = vsel %vm1408, %v1406, -inf
    %1416 = vmax.xlane.f32.xlu0 %v1415
    %v1417 = vpop.xlane.xlu0 %1416
    %v1418 = vsel %vm1408, %v1407, -inf
    %1419 = vmax.xlane.f32.xlu0 %v1418
    %v1420 = vpop.xlane.xlu0 %1419
    %vm1421 = vcmp.eq.f32.partialorder %v1404, %v1411
    %vm1422 = vcmp.eq.f32.partialorder %v1405, %v1414
    %vm1423 = vcmp.eq.f32.partialorder %v1406, %v1417
    %vm1424 = vcmp.eq.f32.partialorder %v1407, %v1420
    %v1425 = vsel %vm1421, %v97, 8
    %v1426 = vsel %vm1422, %v97, 8
    %v1427 = vsel %vm1423, %v97, 8
    %v1428 = vsel %vm1424, %v97, 8
    %v1429 = vsel %vm1408, %v1425, 2147483647
    %v1430 = vand.u32 %v1429, 65535
    %v1431 = vshra.s32 %v1429, 16
    %v1432 = vcvt.s32.f32 %v1430
    %v1433 = vcvt.s32.f32 %v1431
    %1434 = vmin.xlane.f32.xlu0 %v1433
    %v1435 = vpop.xlane.xlu0 %1434
    %vm1436 = vcmp.eq.f32.partialorder %v1433, %v1435
    %v1437 = vsel %vm1436, %v1432, inf
    %1438 = vmin.xlane.f32.xlu0 %v1437
    %v1439 = vpop.xlane.xlu0 %1438
    %v1440 = vcvt.f32.s32 %v1439
    %v1441 = vcvt.f32.s32 %v1435
    %v1442 = vshll.u32 %v1441, 16
    %v1443 = vadd.s32 %v1442, %v1440
    %v1444 = vsel %vm1408, %v1426, 2147483647
    %v1445 = vand.u32 %v1444, 65535
    %v1446 = vshra.s32 %v1444, 16
    %v1447 = vcvt.s32.f32 %v1445
    %v1448 = vcvt.s32.f32 %v1446
    %1449 = vmin.xlane.f32.xlu0 %v1448
    %v1450 = vpop.xlane.xlu0 %1449
    %vm1451 = vcmp.eq.f32.partialorder %v1448, %v1450
    %v1452 = vsel %vm1451, %v1447, inf
    %1453 = vmin.xlane.f32.xlu0 %v1452
    %v1454 = vpop.xlane.xlu0 %1453
    %v1455 = vcvt.f32.s32 %v1454
    %v1456 = vcvt.f32.s32 %v1450
    %v1457 = vshll.u32 %v1456, 16
    %v1458 = vadd.s32 %v1457, %v1455
    %v1459 = vsel %vm1408, %v1427, 2147483647
    %v1460 = vand.u32 %v1459, 65535
    %v1461 = vshra.s32 %v1459, 16
    %v1462 = vcvt.s32.f32 %v1460
    %v1463 = vcvt.s32.f32 %v1461
    %1464 = vmin.xlane.f32.xlu0 %v1463
    %v1465 = vpop.xlane.xlu0 %1464
    %vm1466 = vcmp.eq.f32.partialorder %v1463, %v1465
    %v1467 = vsel %vm1466, %v1462, inf
    %1468 = vmin.xlane.f32.xlu0 %v1467
    %v1469 = vpop.xlane.xlu0 %1468
    %v1470 = vcvt.f32.s32 %v1469
    %v1471 = vcvt.f32.s32 %v1465
    %v1472 = vshll.u32 %v1471, 16
    %v1473 = vadd.s32 %v1472, %v1470
    %v1474 = vsel %vm1408, %v1428, 2147483647
    %v1475 = vand.u32 %v1474, 65535
    %v1476 = vshra.s32 %v1474, 16
    %v1477 = vcvt.s32.f32 %v1475
    %v1478 = vcvt.s32.f32 %v1476
    %1479 = vmin.xlane.f32.xlu0 %v1478
    %v1480 = vpop.xlane.xlu0 %1479
    %vm1481 = vcmp.eq.f32.partialorder %v1478, %v1480
    %v1482 = vsel %vm1481, %v1477, inf
    %1483 = vmin.xlane.f32.xlu0 %v1482
    %v1484 = vpop.xlane.xlu0 %1483
    %v1485 = vcvt.f32.s32 %v1484
    %v1486 = vcvt.f32.s32 %v1480
    %v1487 = vshll.u32 %v1486, 16
    %v1488 = vadd.s32 %v1487, %v1485
    %v1489 = vlaneseq
    %v1490 = vshrl.u32 %v1489, 7
    %v1491 = vsub.s32 %v97, %v1490
    %v1492 = vrot.slane %v1443, %v1491
    %v1493 = vlaneseq
    %v1494 = vshrl.u32 %v1493, 7
    %v1495 = vsub.s32 %v97, %v1494
    %v1496 = vrot.slane %v1458, %v1495
    %v1497 = vlaneseq
    %v1498 = vshrl.u32 %v1497, 7
    %v1499 = vsub.s32 %v97, %v1498
    %v1500 = vrot.slane %v1473, %v1499
    %v1501 = vlaneseq
    %v1502 = vshrl.u32 %v1501, 7
    %v1503 = vsub.s32 %v97, %v1502
    %v1504 = vrot.slane %v1488, %v1503
    %vm1505 = vcmask 1041409
    %v1506 = vsel %vm1505, %v1496, %v1492
    %vm1507 = vcmask 1042434
    %v1508 = vsel %vm1507, %v1500, %v1506
    %vm1509 = vcmask 1043459
    %v1510 = vsel %vm1509, %v1504, %v1508
    %vm1511 = vcmask 60416
    %1512 = vst.msk [vmem:[#allocation5 + $0x4] sm:$0xf] %vm1511, %v1510
    %v1513 = vld [vmem:[#allocation4 + $0x4] sm:$0xf]
    %v1515 = vlaneseq
    %v1516 = vshrl.u32 %v1515, 7
    %v1517 = vsub.s32 0, %v1516
    %v1518 = vrot.slane %v1513, %v1517
    %1520 = vbcast.lane.b32.xlu0 %v1518, 256
    %v1521 = vpop.permute.xlu0 %1520
    %v1522 = vlaneseq
    %v1523 = vshrl.u32 %v1522, 7
    %v1524 = vsub.s32 1, %v1523
    %v1525 = vrot.slane %v1513, %v1524
    %1527 = vbcast.lane.b32.xlu0 %v1525, 256
    %v1528 = vpop.permute.xlu0 %1527
    %v1529 = vlaneseq
    %v1530 = vshrl.u32 %v1529, 7
    %v1531 = vsub.s32 2, %v1530
    %v1532 = vrot.slane %v1513, %v1531
    %1534 = vbcast.lane.b32.xlu0 %v1532, 256
    %v1535 = vpop.permute.xlu0 %1534
    %v1536 = vlaneseq
    %v1537 = vshrl.u32 %v1536, 7
    %v1538 = vsub.s32 3, %v1537
    %v1539 = vrot.slane %v1513, %v1538
    %1541 = vbcast.lane.b32.xlu0 %v1539, 256
    %v1542 = vpop.permute.xlu0 %1541
    %v1547 = vadd.f32 %v1411, %v1521
    %v1548 = vadd.f32 %v1414, %v1528
    %v1549 = vadd.f32 %v1417, %v1535
    %v1550 = vadd.f32 %v1420, %v1542
    %v1555 = vlaneseq
    %v1556 = vshrl.u32 %v1555, 7
    %v1557 = vsub.s32 0, %v1556
    %v1558 = vrot.slane %v1351, %v1557
    %1560 = vbcast.lane.b32.xlu0 %v1558, 256
    %v1561 = vpop.permute.xlu0 %1560
    %v1562 = vlaneseq
    %v1563 = vshrl.u32 %v1562, 7
    %v1564 = vsub.s32 1, %v1563
    %v1565 = vrot.slane %v1351, %v1564
    %1567 = vbcast.lane.b32.xlu0 %v1565, 256
    %v1568 = vpop.permute.xlu0 %1567
    %v1569 = vlaneseq
    %v1570 = vshrl.u32 %v1569, 7
    %v1571 = vsub.s32 2, %v1570
    %v1572 = vrot.slane %v1351, %v1571
    %1574 = vbcast.lane.b32.xlu0 %v1572, 256
    %v1575 = vpop.permute.xlu0 %1574
    %v1576 = vlaneseq
    %v1577 = vshrl.u32 %v1576, 7
    %v1578 = vsub.s32 3, %v1577
    %v1579 = vrot.slane %v1351, %v1578
    %1581 = vbcast.lane.b32.xlu0 %v1579, 256
    %v1582 = vpop.permute.xlu0 %1581
    %v1583 = vlaneseq
    %v1584 = vshrl.u32 %v1583, 7
    %v1585 = vsub.s32 4, %v1584
    %v1586 = vrot.slane %v1351, %v1585
    %1588 = vbcast.lane.b32.xlu0 %v1586, 256
    %v1589 = vpop.permute.xlu0 %1588
    %v1590 = vlaneseq
    %v1591 = vshrl.u32 %v1590, 7
    %v1592 = vsub.s32 5, %v1591
    %v1593 = vrot.slane %v1351, %v1592
    %1595 = vbcast.lane.b32.xlu0 %v1593, 256
    %v1596 = vpop.permute.xlu0 %1595
    %v1597 = vlaneseq
    %v1598 = vshrl.u32 %v1597, 7
    %v1599 = vsub.s32 6, %v1598
    %v1600 = vrot.slane %v1351, %v1599
    %1602 = vbcast.lane.b32.xlu0 %v1600, 256
    %v1603 = vpop.permute.xlu0 %1602
    %v1604 = vlaneseq
    %v1605 = vshrl.u32 %v1604, 7
    %v1606 = vsub.s32 7, %v1605
    %v1607 = vrot.slane %v1351, %v1606
    %1609 = vbcast.lane.b32.xlu0 %v1607, 256
    %v1610 = vpop.permute.xlu0 %1609
    %v1611 = vlaneseq
    %v1612 = vshrl.u32 %v1611, 7
    %v1613 = vsub.s32 0, %v1612
    %v1614 = vrot.slane %v1352, %v1613
    %1616 = vbcast.lane.b32.xlu0 %v1614, 256
    %v1617 = vpop.permute.xlu0 %1616
    %v1618 = vlaneseq
    %v1619 = vshrl.u32 %v1618, 7
    %v1620 = vsub.s32 1, %v1619
    %v1621 = vrot.slane %v1352, %v1620
    %1623 = vbcast.lane.b32.xlu0 %v1621, 256
    %v1624 = vpop.permute.xlu0 %1623
    %v1625 = vlaneseq
    %v1626 = vshrl.u32 %v1625, 7
    %v1627 = vsub.s32 2, %v1626
    %v1628 = vrot.slane %v1352, %v1627
    %1630 = vbcast.lane.b32.xlu0 %v1628, 256
    %v1631 = vpop.permute.xlu0 %1630
    %v1632 = vlaneseq
    %v1633 = vshrl.u32 %v1632, 7
    %v1634 = vsub.s32 3, %v1633
    %v1635 = vrot.slane %v1352, %v1634
    %1637 = vbcast.lane.b32.xlu0 %v1635, 256
    %v1638 = vpop.permute.xlu0 %1637
    %v1639 = vlaneseq
    %v1640 = vshrl.u32 %v1639, 7
    %v1641 = vsub.s32 4, %v1640
    %v1642 = vrot.slane %v1352, %v1641
    %1644 = vbcast.lane.b32.xlu0 %v1642, 256
    %v1645 = vpop.permute.xlu0 %1644
    %v1646 = vlaneseq
    %v1647 = vshrl.u32 %v1646, 7
    %v1648 = vsub.s32 5, %v1647
    %v1649 = vrot.slane %v1352, %v1648
    %1651 = vbcast.lane.b32.xlu0 %v1649, 256
    %v1652 = vpop.permute.xlu0 %1651
    %v1653 = vlaneseq
    %v1654 = vshrl.u32 %v1653, 7
    %v1655 = vsub.s32 6, %v1654
    %v1656 = vrot.slane %v1352, %v1655
    %1658 = vbcast.lane.b32.xlu0 %v1656, 256
    %v1659 = vpop.permute.xlu0 %1658
    %v1660 = vlaneseq
    %v1661 = vshrl.u32 %v1660, 7
    %v1662 = vsub.s32 7, %v1661
    %v1663 = vrot.slane %v1352, %v1662
    %1665 = vbcast.lane.b32.xlu0 %v1663, 256
    %v1666 = vpop.permute.xlu0 %1665
    %v1667 = vlaneseq
    %v1668 = vshrl.u32 %v1667, 7
    %v1669 = vsub.s32 0, %v1668
    %v1670 = vrot.slane %v1353, %v1669
    %1672 = vbcast.lane.b32.xlu0 %v1670, 256
    %v1673 = vpop.permute.xlu0 %1672
    %v1674 = vlaneseq
    %v1675 = vshrl.u32 %v1674, 7
    %v1676 = vsub.s32 1, %v1675
    %v1677 = vrot.slane %v1353, %v1676
    %1679 = vbcast.lane.b32.xlu0 %v1677, 256
    %v1680 = vpop.permute.xlu0 %1679
    %v1681 = vlaneseq
    %v1682 = vshrl.u32 %v1681, 7
    %v1683 = vsub.s32 2, %v1682
    %v1684 = vrot.slane %v1353, %v1683
    %1686 = vbcast.lane.b32.xlu0 %v1684, 256
    %v1687 = vpop.permute.xlu0 %1686
    %v1688 = vlaneseq
    %v1689 = vshrl.u32 %v1688, 7
    %v1690 = vsub.s32 3, %v1689
    %v1691 = vrot.slane %v1353, %v1690
    %1693 = vbcast.lane.b32.xlu0 %v1691, 256
    %v1694 = vpop.permute.xlu0 %1693
    %v1695 = vlaneseq
    %v1696 = vshrl.u32 %v1695, 7
    %v1697 = vsub.s32 4, %v1696
    %v1698 = vrot.slane %v1353, %v1697
    %1700 = vbcast.lane.b32.xlu0 %v1698, 256
    %v1701 = vpop.permute.xlu0 %1700
    %v1702 = vlaneseq
    %v1703 = vshrl.u32 %v1702, 7
    %v1704 = vsub.s32 5, %v1703
    %v1705 = vrot.slane %v1353, %v1704
    %1707 = vbcast.lane.b32.xlu0 %v1705, 256
    %v1708 = vpop.permute.xlu0 %1707
    %v1709 = vlaneseq
    %v1710 = vshrl.u32 %v1709, 7
    %v1711 = vsub.s32 6, %v1710
    %v1712 = vrot.slane %v1353, %v1711
    %1714 = vbcast.lane.b32.xlu0 %v1712, 256
    %v1715 = vpop.permute.xlu0 %1714
    %v1716 = vlaneseq
    %v1717 = vshrl.u32 %v1716, 7
    %v1718 = vsub.s32 7, %v1717
    %v1719 = vrot.slane %v1353, %v1718
    %1721 = vbcast.lane.b32.xlu0 %v1719, 256
    %v1722 = vpop.permute.xlu0 %1721
    %v1723 = vlaneseq
    %v1724 = vshrl.u32 %v1723, 7
    %v1725 = vsub.s32 0, %v1724
    %v1726 = vrot.slane %v1354, %v1725
    %1728 = vbcast.lane.b32.xlu0 %v1726, 256
    %v1729 = vpop.permute.xlu0 %1728
    %v1730 = vlaneseq
    %v1731 = vshrl.u32 %v1730, 7
    %v1732 = vsub.s32 1, %v1731
    %v1733 = vrot.slane %v1354, %v1732
    %1735 = vbcast.lane.b32.xlu0 %v1733, 256
    %v1736 = vpop.permute.xlu0 %1735
    %v1737 = vlaneseq
    %v1738 = vshrl.u32 %v1737, 7
    %v1739 = vsub.s32 2, %v1738
    %v1740 = vrot.slane %v1354, %v1739
    %1742 = vbcast.lane.b32.xlu0 %v1740, 256
    %v1743 = vpop.permute.xlu0 %1742
    %v1744 = vlaneseq
    %v1745 = vshrl.u32 %v1744, 7
    %v1746 = vsub.s32 3, %v1745
    %v1747 = vrot.slane %v1354, %v1746
    %1749 = vbcast.lane.b32.xlu0 %v1747, 256
    %v1750 = vpop.permute.xlu0 %1749
    %v1751 = vlaneseq
    %v1752 = vshrl.u32 %v1751, 7
    %v1753 = vsub.s32 4, %v1752
    %v1754 = vrot.slane %v1354, %v1753
    %1756 = vbcast.lane.b32.xlu0 %v1754, 256
    %v1757 = vpop.permute.xlu0 %1756
    %v1758 = vlaneseq
    %v1759 = vshrl.u32 %v1758, 7
    %v1760 = vsub.s32 5, %v1759
    %v1761 = vrot.slane %v1354, %v1760
    %1763 = vbcast.lane.b32.xlu0 %v1761, 256
    %v1764 = vpop.permute.xlu0 %1763
    %v1765 = vlaneseq
    %v1766 = vshrl.u32 %v1765, 7
    %v1767 = vsub.s32 6, %v1766
    %v1768 = vrot.slane %v1354, %v1767
    %1770 = vbcast.lane.b32.xlu0 %v1768, 256
    %v1771 = vpop.permute.xlu0 %1770
    %v1772 = vlaneseq
    %v1773 = vshrl.u32 %v1772, 7
    %v1774 = vsub.s32 7, %v1773
    %v1775 = vrot.slane %v1354, %v1774
    %1777 = vbcast.lane.b32.xlu0 %v1775, 256
    %v1778 = vpop.permute.xlu0 %1777
    %v1811 = vadd.f32 %v1547, %v1561
    %v1812 = vadd.f32 %v1547, %v1568
    %v1813 = vadd.f32 %v1547, %v1575
    %v1814 = vadd.f32 %v1547, %v1582
    %v1815 = vadd.f32 %v1547, %v1589
    %v1816 = vadd.f32 %v1547, %v1596
    %v1817 = vadd.f32 %v1547, %v1603
    %v1818 = vadd.f32 %v1547, %v1610
    %v1819 = vadd.f32 %v1548, %v1617
    %v1820 = vadd.f32 %v1548, %v1624
    %v1821 = vadd.f32 %v1548, %v1631
    %v1822 = vadd.f32 %v1548, %v1638
    %v1823 = vadd.f32 %v1548, %v1645
    %v1824 = vadd.f32 %v1548, %v1652
    %v1825 = vadd.f32 %v1548, %v1659
    %v1826 = vadd.f32 %v1548, %v1666
    %v1827 = vadd.f32 %v1549, %v1673
    %v1828 = vadd.f32 %v1549, %v1680
    %v1829 = vadd.f32 %v1549, %v1687
    %v1830 = vadd.f32 %v1549, %v1694
    %v1831 = vadd.f32 %v1549, %v1701
    %v1832 = vadd.f32 %v1549, %v1708
    %v1833 = vadd.f32 %v1549, %v1715
    %v1834 = vadd.f32 %v1549, %v1722
    %v1835 = vadd.f32 %v1550, %v1729
    %v1836 = vadd.f32 %v1550, %v1736
    %v1837 = vadd.f32 %v1550, %v1743
    %v1838 = vadd.f32 %v1550, %v1750
    %v1839 = vadd.f32 %v1550, %v1757
    %v1840 = vadd.f32 %v1550, %v1764
    %v1841 = vadd.f32 %v1550, %v1771
    %v1842 = vadd.f32 %v1550, %v1778
    %1875 = vset.pattern.permute.xlu0 0
    %1876 = vperm.xlu0 %1875, %v1811
    %v1877 = vpop.permute.xlu0 %1876
    %1878 = vset.pattern.permute.xlu0 0
    %1879 = vperm.xlu0 %1878, %v1812
    %v1880 = vpop.permute.xlu0 %1879
    %1881 = vset.pattern.permute.xlu0 0
    %1882 = vperm.xlu0 %1881, %v1813
    %v1883 = vpop.permute.xlu0 %1882
    %1884 = vset.pattern.permute.xlu0 0
    %1885 = vperm.xlu0 %1884, %v1814
    %v1886 = vpop.permute.xlu0 %1885
    %1887 = vset.pattern.permute.xlu0 0
    %1888 = vperm.xlu0 %1887, %v1815
    %v1889 = vpop.permute.xlu0 %1888
    %1890 = vset.pattern.permute.xlu0 0
    %1891 = vperm.xlu0 %1890, %v1816
    %v1892 = vpop.permute.xlu0 %1891
    %1893 = vset.pattern.permute.xlu0 0
    %1894 = vperm.xlu0 %1893, %v1817
    %v1895 = vpop.permute.xlu0 %1894
    %1896 = vset.pattern.permute.xlu0 0
    %1897 = vperm.xlu0 %1896, %v1818
    %v1898 = vpop.permute.xlu0 %1897
    %1899 = vset.pattern.permute.xlu0 0
    %1900 = vperm.xlu0 %1899, %v1819
    %v1901 = vpop.permute.xlu0 %1900
    %1902 = vset.pattern.permute.xlu0 0
    %1903 = vperm.xlu0 %1902, %v1820
    %v1904 = vpop.permute.xlu0 %1903
    %1905 = vset.pattern.permute.xlu0 0
    %1906 = vperm.xlu0 %1905, %v1821
    %v1907 = vpop.permute.xlu0 %1906
    %1908 = vset.pattern.permute.xlu0 0
    %1909 = vperm.xlu0 %1908, %v1822
    %v1910 = vpop.permute.xlu0 %1909
    %1911 = vset.pattern.permute.xlu0 0
    %1912 = vperm.xlu0 %1911, %v1823
    %v1913 = vpop.permute.xlu0 %1912
    %1914 = vset.pattern.permute.xlu0 0
    %1915 = vperm.xlu0 %1914, %v1824
    %v1916 = vpop.permute.xlu0 %1915
    %1917 = vset.pattern.permute.xlu0 0
    %1918 = vperm.xlu0 %1917, %v1825
    %v1919 = vpop.permute.xlu0 %1918
    %1920 = vset.pattern.permute.xlu0 0
    %1921 = vperm.xlu0 %1920, %v1826
    %v1922 = vpop.permute.xlu0 %1921
    %1923 = vset.pattern.permute.xlu0 0
    %1924 = vperm.xlu0 %1923, %v1827
    %v1925 = vpop.permute.xlu0 %1924
    %1926 = vset.pattern.permute.xlu0 0
    %1927 = vperm.xlu0 %1926, %v1828
    %v1928 = vpop.permute.xlu0 %1927
    %1929 = vset.pattern.permute.xlu0 0
    %1930 = vperm.xlu0 %1929, %v1829
    %v1931 = vpop.permute.xlu0 %1930
    %1932 = vset.pattern.permute.xlu0 0
    %1933 = vperm.xlu0 %1932, %v1830
    %v1934 = vpop.permute.xlu0 %1933
    %1935 = vset.pattern.permute.xlu0 0
    %1936 = vperm.xlu0 %1935, %v1831
    %v1937 = vpop.permute.xlu0 %1936
    %1938 = vset.pattern.permute.xlu0 0
    %1939 = vperm.xlu0 %1938, %v1832
    %v1940 = vpop.permute.xlu0 %1939
    %1941 = vset.pattern.permute.xlu0 0
    %1942 = vperm.xlu0 %1941, %v1833
    %v1943 = vpop.permute.xlu0 %1942
    %1944 = vset.pattern.permute.xlu0 0
    %1945 = vperm.xlu0 %1944, %v1834
    %v1946 = vpop.permute.xlu0 %1945
    %1947 = vset.pattern.permute.xlu0 0
    %1948 = vperm.xlu0 %1947, %v1835
    %v1949 = vpop.permute.xlu0 %1948
    %1950 = vset.pattern.permute.xlu0 0
    %1951 = vperm.xlu0 %1950, %v1836
    %v1952 = vpop.permute.xlu0 %1951
    %1953 = vset.pattern.permute.xlu0 0
    %1954 = vperm.xlu0 %1953, %v1837
    %v1955 = vpop.permute.xlu0 %1954
    %1956 = vset.pattern.permute.xlu0 0
    %1957 = vperm.xlu0 %1956, %v1838
    %v1958 = vpop.permute.xlu0 %1957
    %1959 = vset.pattern.permute.xlu0 0
    %1960 = vperm.xlu0 %1959, %v1839
    %v1961 = vpop.permute.xlu0 %1960
    %1962 = vset.pattern.permute.xlu0 0
    %1963 = vperm.xlu0 %1962, %v1840
    %v1964 = vpop.permute.xlu0 %1963
    %1965 = vset.pattern.permute.xlu0 0
    %1966 = vperm.xlu0 %1965, %v1841
    %v1967 = vpop.permute.xlu0 %1966
    %1968 = vset.pattern.permute.xlu0 0
    %1969 = vperm.xlu0 %1968, %v1842
    %v1970 = vpop.permute.xlu0 %1969
    %v1971 = vlaneseq
    %v1972 = vshrl.u32 %v1971, 7
    %v1973 = vsub.s32 %v97, %v1972
    %v1974 = vrot.slane %v1877, %v1973
    %v1975 = vlaneseq
    %v1976 = vshrl.u32 %v1975, 7
    %v1977 = vsub.s32 %v97, %v1976
    %v1978 = vrot.slane %v1880, %v1977
    %v1979 = vlaneseq
    %v1980 = vshrl.u32 %v1979, 7
    %v1981 = vsub.s32 %v97, %v1980
    %v1982 = vrot.slane %v1883, %v1981
    %v1983 = vlaneseq
    %v1984 = vshrl.u32 %v1983, 7
    %v1985 = vsub.s32 %v97, %v1984
    %v1986 = vrot.slane %v1886, %v1985
    %v1987 = vlaneseq
    %v1988 = vshrl.u32 %v1987, 7
    %v1989 = vsub.s32 %v97, %v1988
    %v1990 = vrot.slane %v1889, %v1989
    %v1991 = vlaneseq
    %v1992 = vshrl.u32 %v1991, 7
    %v1993 = vsub.s32 %v97, %v1992
    %v1994 = vrot.slane %v1892, %v1993
    %v1995 = vlaneseq
    %v1996 = vshrl.u32 %v1995, 7
    %v1997 = vsub.s32 %v97, %v1996
    %v1998 = vrot.slane %v1895, %v1997
    %v1999 = vlaneseq
    %v2000 = vshrl.u32 %v1999, 7
    %v2001 = vsub.s32 %v97, %v2000
    %v2002 = vrot.slane %v1898, %v2001
    %v2003 = vlaneseq
    %v2004 = vshrl.u32 %v2003, 7
    %v2005 = vsub.s32 %v97, %v2004
    %v2006 = vrot.slane %v1901, %v2005
    %v2007 = vlaneseq
    %v2008 = vshrl.u32 %v2007, 7
    %v2009 = vsub.s32 %v97, %v2008
    %v2010 = vrot.slane %v1904, %v2009
    %v2011 = vlaneseq
    %v2012 = vshrl.u32 %v2011, 7
    %v2013 = vsub.s32 %v97, %v2012
    %v2014 = vrot.slane %v1907, %v2013
    %v2015 = vlaneseq
    %v2016 = vshrl.u32 %v2015, 7
    %v2017 = vsub.s32 %v97, %v2016
    %v2018 = vrot.slane %v1910, %v2017
    %v2019 = vlaneseq
    %v2020 = vshrl.u32 %v2019, 7
    %v2021 = vsub.s32 %v97, %v2020
    %v2022 = vrot.slane %v1913, %v2021
    %v2023 = vlaneseq
    %v2024 = vshrl.u32 %v2023, 7
    %v2025 = vsub.s32 %v97, %v2024
    %v2026 = vrot.slane %v1916, %v2025
    %v2027 = vlaneseq
    %v2028 = vshrl.u32 %v2027, 7
    %v2029 = vsub.s32 %v97, %v2028
    %v2030 = vrot.slane %v1919, %v2029
    %v2031 = vlaneseq
    %v2032 = vshrl.u32 %v2031, 7
    %v2033 = vsub.s32 %v97, %v2032
    %v2034 = vrot.slane %v1922, %v2033
    %v2035 = vlaneseq
    %v2036 = vshrl.u32 %v2035, 7
    %v2037 = vsub.s32 %v97, %v2036
    %v2038 = vrot.slane %v1925, %v2037
    %v2039 = vlaneseq
    %v2040 = vshrl.u32 %v2039, 7
    %v2041 = vsub.s32 %v97, %v2040
    %v2042 = vrot.slane %v1928, %v2041
    %v2043 = vlaneseq
    %v2044 = vshrl.u32 %v2043, 7
    %v2045 = vsub.s32 %v97, %v2044
    %v2046 = vrot.slane %v1931, %v2045
    %v2047 = vlaneseq
    %v2048 = vshrl.u32 %v2047, 7
    %v2049 = vsub.s32 %v97, %v2048
    %v2050 = vrot.slane %v1934, %v2049
    %v2051 = vlaneseq
    %v2052 = vshrl.u32 %v2051, 7
    %v2053 = vsub.s32 %v97, %v2052
    %v2054 = vrot.slane %v1937, %v2053
    %v2055 = vlaneseq
    %v2056 = vshrl.u32 %v2055, 7
    %v2057 = vsub.s32 %v97, %v2056
    %v2058 = vrot.slane %v1940, %v2057
    %v2059 = vlaneseq
    %v2060 = vshrl.u32 %v2059, 7
    %v2061 = vsub.s32 %v97, %v2060
    %v2062 = vrot.slane %v1943, %v2061
    %v2063 = vlaneseq
    %v2064 = vshrl.u32 %v2063, 7
    %v2065 = vsub.s32 %v97, %v2064
    %v2066 = vrot.slane %v1946, %v2065
    %v2067 = vlaneseq
    %v2068 = vshrl.u32 %v2067, 7
    %v2069 = vsub.s32 %v97, %v2068
    %v2070 = vrot.slane %v1949, %v2069
    %v2071 = vlaneseq
    %v2072 = vshrl.u32 %v2071, 7
    %v2073 = vsub.s32 %v97, %v2072
    %v2074 = vrot.slane %v1952, %v2073
    %v2075 = vlaneseq
    %v2076 = vshrl.u32 %v2075, 7
    %v2077 = vsub.s32 %v97, %v2076
    %v2078 = vrot.slane %v1955, %v2077
    %v2079 = vlaneseq
    %v2080 = vshrl.u32 %v2079, 7
    %v2081 = vsub.s32 %v97, %v2080
    %v2082 = vrot.slane %v1958, %v2081
    %v2083 = vlaneseq
    %v2084 = vshrl.u32 %v2083, 7
    %v2085 = vsub.s32 %v97, %v2084
    %v2086 = vrot.slane %v1961, %v2085
    %v2087 = vlaneseq
    %v2088 = vshrl.u32 %v2087, 7
    %v2089 = vsub.s32 %v97, %v2088
    %v2090 = vrot.slane %v1964, %v2089
    %v2091 = vlaneseq
    %v2092 = vshrl.u32 %v2091, 7
    %v2093 = vsub.s32 %v97, %v2092
    %v2094 = vrot.slane %v1967, %v2093
    %v2095 = vlaneseq
    %v2096 = vshrl.u32 %v2095, 7
    %v2097 = vsub.s32 %v97, %v2096
    %v2098 = vrot.slane %v1970, %v2097
    %v2099 = vsel %vm1505, %v1978, %v1974
    %v2100 = vsel %vm1507, %v1982, %v2099
    %v2101 = vsel %vm1509, %v1986, %v2100
    %vm2102 = vcmask 1044484
    %v2103 = vsel %vm2102, %v1990, %v2101
    %vm2104 = vcmask 1045509
    %v2105 = vsel %vm2104, %v1994, %v2103
    %vm2106 = vcmask 1046534
    %v2107 = vsel %vm2106, %v1998, %v2105
    %vm2108 = vcmask 1047559
    %v2109 = vsel %vm2108, %v2002, %v2107
    %v2110 = vsel %vm1505, %v2010, %v2006
    %v2111 = vsel %vm1507, %v2014, %v2110
    %v2112 = vsel %vm1509, %v2018, %v2111
    %v2113 = vsel %vm2102, %v2022, %v2112
    %v2114 = vsel %vm2104, %v2026, %v2113
    %v2115 = vsel %vm2106, %v2030, %v2114
    %v2116 = vsel %vm2108, %v2034, %v2115
    %v2117 = vsel %vm1505, %v2042, %v2038
    %v2118 = vsel %vm1507, %v2046, %v2117
    %v2119 = vsel %vm1509, %v2050, %v2118
    %v2120 = vsel %vm2102, %v2054, %v2119
    %v2121 = vsel %vm2104, %v2058, %v2120
    %v2122 = vsel %vm2106, %v2062, %v2121
    %v2123 = vsel %vm2108, %v2066, %v2122
    %v2124 = vsel %vm1505, %v2074, %v2070
    %v2125 = vsel %vm1507, %v2078, %v2124
    %v2126 = vsel %vm1509, %v2082, %v2125
    %v2127 = vsel %vm2102, %v2086, %v2126
    %v2128 = vsel %vm2104, %v2090, %v2127
    %v2129 = vsel %vm2106, %v2094, %v2128
    %v2130 = vsel %vm2108, %v2098, %v2129
    %v2135 = vsel %vm1408, %v2109, -inf
    %2136 = vmax.xlane.f32.xlu0 %v2135
    %v2137 = vpop.xlane.xlu0 %2136
    %v2138 = vsel %vm1408, %v2116, -inf
    %2139 = vmax.xlane.f32.xlu0 %v2138
    %v2140 = vpop.xlane.xlu0 %2139
    %v2141 = vsel %vm1408, %v2123, -inf
    %2142 = vmax.xlane.f32.xlu0 %v2141
    %v2143 = vpop.xlane.xlu0 %2142
    %v2144 = vsel %vm1408, %v2130, -inf
    %2145 = vmax.xlane.f32.xlu0 %v2144
    %v2146 = vpop.xlane.xlu0 %2145
    %v2151 = vlaneseq
    %v2152 = vshrl.u32 %v2151, 7
    %v2153 = vsub.s32 0, %v2152
    %v2154 = vrot.slane %v2137, %v2153
    %v2155 = vlaneseq
    %v2156 = vshrl.u32 %v2155, 7
    %v2157 = vsub.s32 1, %v2156
    %v2158 = vrot.slane %v2137, %v2157
    %v2159 = vlaneseq
    %v2160 = vshrl.u32 %v2159, 7
    %v2161 = vsub.s32 2, %v2160
    %v2162 = vrot.slane %v2137, %v2161
    %v2163 = vlaneseq
    %v2164 = vshrl.u32 %v2163, 7
    %v2165 = vsub.s32 3, %v2164
    %v2166 = vrot.slane %v2137, %v2165
    %v2167 = vlaneseq
    %v2168 = vshrl.u32 %v2167, 7
    %v2169 = vsub.s32 4, %v2168
    %v2170 = vrot.slane %v2137, %v2169
    %v2171 = vlaneseq
    %v2172 = vshrl.u32 %v2171, 7
    %v2173 = vsub.s32 5, %v2172
    %v2174 = vrot.slane %v2137, %v2173
    %v2175 = vlaneseq
    %v2176 = vshrl.u32 %v2175, 7
    %v2177 = vsub.s32 6, %v2176
    %v2178 = vrot.slane %v2137, %v2177
    %v2179 = vlaneseq
    %v2180 = vshrl.u32 %v2179, 7
    %v2181 = vsub.s32 7, %v2180
    %v2182 = vrot.slane %v2137, %v2181
    %v2183 = vlaneseq
    %v2184 = vshrl.u32 %v2183, 7
    %v2185 = vsub.s32 0, %v2184
    %v2186 = vrot.slane %v2140, %v2185
    %v2187 = vlaneseq
    %v2188 = vshrl.u32 %v2187, 7
    %v2189 = vsub.s32 1, %v2188
    %v2190 = vrot.slane %v2140, %v2189
    %v2191 = vlaneseq
    %v2192 = vshrl.u32 %v2191, 7
    %v2193 = vsub.s32 2, %v2192
    %v2194 = vrot.slane %v2140, %v2193
    %v2195 = vlaneseq
    %v2196 = vshrl.u32 %v2195, 7
    %v2197 = vsub.s32 3, %v2196
    %v2198 = vrot.slane %v2140, %v2197
    %v2199 = vlaneseq
    %v2200 = vshrl.u32 %v2199, 7
    %v2201 = vsub.s32 4, %v2200
    %v2202 = vrot.slane %v2140, %v2201
    %v2203 = vlaneseq
    %v2204 = vshrl.u32 %v2203, 7
    %v2205 = vsub.s32 5, %v2204
    %v2206 = vrot.slane %v2140, %v2205
    %v2207 = vlaneseq
    %v2208 = vshrl.u32 %v2207, 7
    %v2209 = vsub.s32 6, %v2208
    %v2210 = vrot.slane %v2140, %v2209
    %v2211 = vlaneseq
    %v2212 = vshrl.u32 %v2211, 7
    %v2213 = vsub.s32 7, %v2212
    %v2214 = vrot.slane %v2140, %v2213
    %v2215 = vlaneseq
    %v2216 = vshrl.u32 %v2215, 7
    %v2217 = vsub.s32 0, %v2216
    %v2218 = vrot.slane %v2143, %v2217
    %v2219 = vlaneseq
    %v2220 = vshrl.u32 %v2219, 7
    %v2221 = vsub.s32 1, %v2220
    %v2222 = vrot.slane %v2143, %v2221
    %v2223 = vlaneseq
    %v2224 = vshrl.u32 %v2223, 7
    %v2225 = vsub.s32 2, %v2224
    %v2226 = vrot.slane %v2143, %v2225
    %v2227 = vlaneseq
    %v2228 = vshrl.u32 %v2227, 7
    %v2229 = vsub.s32 3, %v2228
    %v2230 = vrot.slane %v2143, %v2229
    %v2231 = vlaneseq
    %v2232 = vshrl.u32 %v2231, 7
    %v2233 = vsub.s32 4, %v2232
    %v2234 = vrot.slane %v2143, %v2233
    %v2235 = vlaneseq
    %v2236 = vshrl.u32 %v2235, 7
    %v2237 = vsub.s32 5, %v2236
    %v2238 = vrot.slane %v2143, %v2237
    %v2239 = vlaneseq
    %v2240 = vshrl.u32 %v2239, 7
    %v2241 = vsub.s32 6, %v2240
    %v2242 = vrot.slane %v2143, %v2241
    %v2243 = vlaneseq
    %v2244 = vshrl.u32 %v2243, 7
    %v2245 = vsub.s32 7, %v2244
    %v2246 = vrot.slane %v2143, %v2245
    %v2247 = vlaneseq
    %v2248 = vshrl.u32 %v2247, 7
    %v2249 = vsub.s32 0, %v2248
    %v2250 = vrot.slane %v2146, %v2249
    %v2251 = vlaneseq
    %v2252 = vshrl.u32 %v2251, 7
    %v2253 = vsub.s32 1, %v2252
    %v2254 = vrot.slane %v2146, %v2253
    %v2255 = vlaneseq
    %v2256 = vshrl.u32 %v2255, 7
    %v2257 = vsub.s32 2, %v2256
    %v2258 = vrot.slane %v2146, %v2257
    %v2259 = vlaneseq
    %v2260 = vshrl.u32 %v2259, 7
    %v2261 = vsub.s32 3, %v2260
    %v2262 = vrot.slane %v2146, %v2261
    %v2263 = vlaneseq
    %v2264 = vshrl.u32 %v2263, 7
    %v2265 = vsub.s32 4, %v2264
    %v2266 = vrot.slane %v2146, %v2265
    %v2267 = vlaneseq
    %v2268 = vshrl.u32 %v2267, 7
    %v2269 = vsub.s32 5, %v2268
    %v2270 = vrot.slane %v2146, %v2269
    %v2271 = vlaneseq
    %v2272 = vshrl.u32 %v2271, 7
    %v2273 = vsub.s32 6, %v2272
    %v2274 = vrot.slane %v2146, %v2273
    %v2275 = vlaneseq
    %v2276 = vshrl.u32 %v2275, 7
    %v2277 = vsub.s32 7, %v2276
    %v2278 = vrot.slane %v2146, %v2277
    %vm2311 = vcmp.eq.f32.partialorder %v1811, %v2154
    %vm2312 = vcmp.eq.f32.partialorder %v1812, %v2158
    %vm2313 = vcmp.eq.f32.partialorder %v1813, %v2162
    %vm2314 = vcmp.eq.f32.partialorder %v1814, %v2166
    %vm2315 = vcmp.eq.f32.partialorder %v1815, %v2170
    %vm2316 = vcmp.eq.f32.partialorder %v1816, %v2174
    %vm2317 = vcmp.eq.f32.partialorder %v1817, %v2178
    %vm2318 = vcmp.eq.f32.partialorder %v1818, %v2182
    %vm2319 = vcmp.eq.f32.partialorder %v1819, %v2186
    %vm2320 = vcmp.eq.f32.partialorder %v1820, %v2190
    %vm2321 = vcmp.eq.f32.partialorder %v1821, %v2194
    %vm2322 = vcmp.eq.f32.partialorder %v1822, %v2198
    %vm2323 = vcmp.eq.f32.partialorder %v1823, %v2202
    %vm2324 = vcmp.eq.f32.partialorder %v1824, %v2206
    %vm2325 = vcmp.eq.f32.partialorder %v1825, %v2210
    %vm2326 = vcmp.eq.f32.partialorder %v1826, %v2214
    %vm2327 = vcmp.eq.f32.partialorder %v1827, %v2218
    %vm2328 = vcmp.eq.f32.partialorder %v1828, %v2222
    %vm2329 = vcmp.eq.f32.partialorder %v1829, %v2226
    %vm2330 = vcmp.eq.f32.partialorder %v1830, %v2230
    %vm2331 = vcmp.eq.f32.partialorder %v1831, %v2234
    %vm2332 = vcmp.eq.f32.partialorder %v1832, %v2238
    %vm2333 = vcmp.eq.f32.partialorder %v1833, %v2242
    %vm2334 = vcmp.eq.f32.partialorder %v1834, %v2246
    %vm2335 = vcmp.eq.f32.partialorder %v1835, %v2250
    %vm2336 = vcmp.eq.f32.partialorder %v1836, %v2254
    %vm2337 = vcmp.eq.f32.partialorder %v1837, %v2258
    %vm2338 = vcmp.eq.f32.partialorder %v1838, %v2262
    %vm2339 = vcmp.eq.f32.partialorder %v1839, %v2266
    %vm2340 = vcmp.eq.f32.partialorder %v1840, %v2270
    %vm2341 = vcmp.eq.f32.partialorder %v1841, %v2274
    %vm2342 = vcmp.eq.f32.partialorder %v1842, %v2278
    %2344 = vbcast.lane.b32.xlu0 %v97, 256
    %v2345 = vpop.permute.xlu0 %2344
    %v2346 = vsel %vm2311, %v2345, 8
    %v2347 = vsel %vm2312, %v2345, 8
    %v2348 = vsel %vm2313, %v2345, 8
    %v2349 = vsel %vm2314, %v2345, 8
    %v2350 = vsel %vm2315, %v2345, 8
    %v2351 = vsel %vm2316, %v2345, 8
    %v2352 = vsel %vm2317, %v2345, 8
    %v2353 = vsel %vm2318, %v2345, 8
    %v2354 = vsel %vm2319, %v2345, 8
    %v2355 = vsel %vm2320, %v2345, 8
    %v2356 = vsel %vm2321, %v2345, 8
    %v2357 = vsel %vm2322, %v2345, 8
    %v2358 = vsel %vm2323, %v2345, 8
    %v2359 = vsel %vm2324, %v2345, 8
    %v2360 = vsel %vm2325, %v2345, 8
    %v2361 = vsel %vm2326, %v2345, 8
    %v2362 = vsel %vm2327, %v2345, 8
    %v2363 = vsel %vm2328, %v2345, 8
    %v2364 = vsel %vm2329, %v2345, 8
    %v2365 = vsel %vm2330, %v2345, 8
    %v2366 = vsel %vm2331, %v2345, 8
    %v2367 = vsel %vm2332, %v2345, 8
    %v2368 = vsel %vm2333, %v2345, 8
    %v2369 = vsel %vm2334, %v2345, 8
    %v2370 = vsel %vm2335, %v2345, 8
    %v2371 = vsel %vm2336, %v2345, 8
    %v2372 = vsel %vm2337, %v2345, 8
    %v2373 = vsel %vm2338, %v2345, 8
    %v2374 = vsel %vm2339, %v2345, 8
    %v2375 = vsel %vm2340, %v2345, 8
    %v2376 = vsel %vm2341, %v2345, 8
    %v2377 = vsel %vm2342, %v2345, 8
    %2378 = vset.pattern.permute.xlu0 0
    %2379 = vperm.xlu0 %2378, %v2346
    %v2380 = vpop.permute.xlu0 %2379
    %2381 = vset.pattern.permute.xlu0 0
    %2382 = vperm.xlu0 %2381, %v2347
    %v2383 = vpop.permute.xlu0 %2382
    %2384 = vset.pattern.permute.xlu0 0
    %2385 = vperm.xlu0 %2384, %v2348
    %v2386 = vpop.permute.xlu0 %2385
    %2387 = vset.pattern.permute.xlu0 0
    %2388 = vperm.xlu0 %2387, %v2349
    %v2389 = vpop.permute.xlu0 %2388
    %2390 = vset.pattern.permute.xlu0 0
    %2391 = vperm.xlu0 %2390, %v2350
    %v2392 = vpop.permute.xlu0 %2391
    %2393 = vset.pattern.permute.xlu0 0
    %2394 = vperm.xlu0 %2393, %v2351
    %v2395 = vpop.permute.xlu0 %2394
    %2396 = vset.pattern.permute.xlu0 0
    %2397 = vperm.xlu0 %2396, %v2352
    %v2398 = vpop.permute.xlu0 %2397
    %2399 = vset.pattern.permute.xlu0 0
    %2400 = vperm.xlu0 %2399, %v2353
    %v2401 = vpop.permute.xlu0 %2400
    %2402 = vset.pattern.permute.xlu0 0
    %2403 = vperm.xlu0 %2402, %v2354
    %v2404 = vpop.permute.xlu0 %2403
    %2405 = vset.pattern.permute.xlu0 0
    %2406 = vperm.xlu0 %2405, %v2355
    %v2407 = vpop.permute.xlu0 %2406
    %2408 = vset.pattern.permute.xlu0 0
    %2409 = vperm.xlu0 %2408, %v2356
    %v2410 = vpop.permute.xlu0 %2409
    %2411 = vset.pattern.permute.xlu0 0
    %2412 = vperm.xlu0 %2411, %v2357
    %v2413 = vpop.permute.xlu0 %2412
    %2414 = vset.pattern.permute.xlu0 0
    %2415 = vperm.xlu0 %2414, %v2358
    %v2416 = vpop.permute.xlu0 %2415
    %2417 = vset.pattern.permute.xlu0 0
    %2418 = vperm.xlu0 %2417, %v2359
    %v2419 = vpop.permute.xlu0 %2418
    %2420 = vset.pattern.permute.xlu0 0
    %2421 = vperm.xlu0 %2420, %v2360
    %v2422 = vpop.permute.xlu0 %2421
    %2423 = vset.pattern.permute.xlu0 0
    %2424 = vperm.xlu0 %2423, %v2361
    %v2425 = vpop.permute.xlu0 %2424
    %2426 = vset.pattern.permute.xlu0 0
    %2427 = vperm.xlu0 %2426, %v2362
    %v2428 = vpop.permute.xlu0 %2427
    %2429 = vset.pattern.permute.xlu0 0
    %2430 = vperm.xlu0 %2429, %v2363
    %v2431 = vpop.permute.xlu0 %2430
    %2432 = vset.pattern.permute.xlu0 0
    %2433 = vperm.xlu0 %2432, %v2364
    %v2434 = vpop.permute.xlu0 %2433
    %2435 = vset.pattern.permute.xlu0 0
    %2436 = vperm.xlu0 %2435, %v2365
    %v2437 = vpop.permute.xlu0 %2436
    %2438 = vset.pattern.permute.xlu0 0
    %2439 = vperm.xlu0 %2438, %v2366
    %v2440 = vpop.permute.xlu0 %2439
    %2441 = vset.pattern.permute.xlu0 0
    %2442 = vperm.xlu0 %2441, %v2367
    %v2443 = vpop.permute.xlu0 %2442
    %2444 = vset.pattern.permute.xlu0 0
    %2445 = vperm.xlu0 %2444, %v2368
    %v2446 = vpop.permute.xlu0 %2445
    %2447 = vset.pattern.permute.xlu0 0
    %2448 = vperm.xlu0 %2447, %v2369
    %v2449 = vpop.permute.xlu0 %2448
    %2450 = vset.pattern.permute.xlu0 0
    %2451 = vperm.xlu0 %2450, %v2370
    %v2452 = vpop.permute.xlu0 %2451
    %2453 = vset.pattern.permute.xlu0 0
    %2454 = vperm.xlu0 %2453, %v2371
    %v2455 = vpop.permute.xlu0 %2454
    %2456 = vset.pattern.permute.xlu0 0
    %2457 = vperm.xlu0 %2456, %v2372
    %v2458 = vpop.permute.xlu0 %2457
    %2459 = vset.pattern.permute.xlu0 0
    %2460 = vperm.xlu0 %2459, %v2373
    %v2461 = vpop.permute.xlu0 %2460
    %2462 = vset.pattern.permute.xlu0 0
    %2463 = vperm.xlu0 %2462, %v2374
    %v2464 = vpop.permute.xlu0 %2463
    %2465 = vset.pattern.permute.xlu0 0
    %2466 = vperm.xlu0 %2465, %v2375
    %v2467 = vpop.permute.xlu0 %2466
    %2468 = vset.pattern.permute.xlu0 0
    %2469 = vperm.xlu0 %2468, %v2376
    %v2470 = vpop.permute.xlu0 %2469
    %2471 = vset.pattern.permute.xlu0 0
    %2472 = vperm.xlu0 %2471, %v2377
    %v2473 = vpop.permute.xlu0 %2472
    %v2474 = vlaneseq
    %v2475 = vshrl.u32 %v2474, 7
    %v2476 = vsub.s32 %v97, %v2475
    %v2477 = vrot.slane %v2380, %v2476
    %v2478 = vlaneseq
    %v2479 = vshrl.u32 %v2478, 7
    %v2480 = vsub.s32 %v97, %v2479
    %v2481 = vrot.slane %v2383, %v2480
    %v2482 = vlaneseq
    %v2483 = vshrl.u32 %v2482, 7
    %v2484 = vsub.s32 %v97, %v2483
    %v2485 = vrot.slane %v2386, %v2484
    %v2486 = vlaneseq
    %v2487 = vshrl.u32 %v2486, 7
    %v2488 = vsub.s32 %v97, %v2487
    %v2489 = vrot.slane %v2389, %v2488
    %v2490 = vlaneseq
    %v2491 = vshrl.u32 %v2490, 7
    %v2492 = vsub.s32 %v97, %v2491
    %v2493 = vrot.slane %v2392, %v2492
    %v2494 = vlaneseq
    %v2495 = vshrl.u32 %v2494, 7
    %v2496 = vsub.s32 %v97, %v2495
    %v2497 = vrot.slane %v2395, %v2496
    %v2498 = vlaneseq
    %v2499 = vshrl.u32 %v2498, 7
    %v2500 = vsub.s32 %v97, %v2499
    %v2501 = vrot.slane %v2398, %v2500
    %v2502 = vlaneseq
    %v2503 = vshrl.u32 %v2502, 7
    %v2504 = vsub.s32 %v97, %v2503
    %v2505 = vrot.slane %v2401, %v2504
    %v2506 = vlaneseq
    %v2507 = vshrl.u32 %v2506, 7
    %v2508 = vsub.s32 %v97, %v2507
    %v2509 = vrot.slane %v2404, %v2508
    %v2510 = vlaneseq
    %v2511 = vshrl.u32 %v2510, 7
    %v2512 = vsub.s32 %v97, %v2511
    %v2513 = vrot.slane %v2407, %v2512
    %v2514 = vlaneseq
    %v2515 = vshrl.u32 %v2514, 7
    %v2516 = vsub.s32 %v97, %v2515
    %v2517 = vrot.slane %v2410, %v2516
    %v2518 = vlaneseq
    %v2519 = vshrl.u32 %v2518, 7
    %v2520 = vsub.s32 %v97, %v2519
    %v2521 = vrot.slane %v2413, %v2520
    %v2522 = vlaneseq
    %v2523 = vshrl.u32 %v2522, 7
    %v2524 = vsub.s32 %v97, %v2523
    %v2525 = vrot.slane %v2416, %v2524
    %v2526 = vlaneseq
    %v2527 = vshrl.u32 %v2526, 7
    %v2528 = vsub.s32 %v97, %v2527
    %v2529 = vrot.slane %v2419, %v2528
    %v2530 = vlaneseq
    %v2531 = vshrl.u32 %v2530, 7
    %v2532 = vsub.s32 %v97, %v2531
    %v2533 = vrot.slane %v2422, %v2532
    %v2534 = vlaneseq
    %v2535 = vshrl.u32 %v2534, 7
    %v2536 = vsub.s32 %v97, %v2535
    %v2537 = vrot.slane %v2425, %v2536
    %v2538 = vlaneseq
    %v2539 = vshrl.u32 %v2538, 7
    %v2540 = vsub.s32 %v97, %v2539
    %v2541 = vrot.slane %v2428, %v2540
    %v2542 = vlaneseq
    %v2543 = vshrl.u32 %v2542, 7
    %v2544 = vsub.s32 %v97, %v2543
    %v2545 = vrot.slane %v2431, %v2544
    %v2546 = vlaneseq
    %v2547 = vshrl.u32 %v2546, 7
    %v2548 = vsub.s32 %v97, %v2547
    %v2549 = vrot.slane %v2434, %v2548
    %v2550 = vlaneseq
    %v2551 = vshrl.u32 %v2550, 7
    %v2552 = vsub.s32 %v97, %v2551
    %v2553 = vrot.slane %v2437, %v2552
    %v2554 = vlaneseq
    %v2555 = vshrl.u32 %v2554, 7
    %v2556 = vsub.s32 %v97, %v2555
    %v2557 = vrot.slane %v2440, %v2556
    %v2558 = vlaneseq
    %v2559 = vshrl.u32 %v2558, 7
    %v2560 = vsub.s32 %v97, %v2559
    %v2561 = vrot.slane %v2443, %v2560
    %v2562 = vlaneseq
    %v2563 = vshrl.u32 %v2562, 7
    %v2564 = vsub.s32 %v97, %v2563
    %v2565 = vrot.slane %v2446, %v2564
    %v2566 = vlaneseq
    %v2567 = vshrl.u32 %v2566, 7
    %v2568 = vsub.s32 %v97, %v2567
    %v2569 = vrot.slane %v2449, %v2568
    %v2570 = vlaneseq
    %v2571 = vshrl.u32 %v2570, 7
    %v2572 = vsub.s32 %v97, %v2571
    %v2573 = vrot.slane %v2452, %v2572
    %v2574 = vlaneseq
    %v2575 = vshrl.u32 %v2574, 7
    %v2576 = vsub.s32 %v97, %v2575
    %v2577 = vrot.slane %v2455, %v2576
    %v2578 = vlaneseq
    %v2579 = vshrl.u32 %v2578, 7
    %v2580 = vsub.s32 %v97, %v2579
    %v2581 = vrot.slane %v2458, %v2580
    %v2582 = vlaneseq
    %v2583 = vshrl.u32 %v2582, 7
    %v2584 = vsub.s32 %v97, %v2583
    %v2585 = vrot.slane %v2461, %v2584
    %v2586 = vlaneseq
    %v2587 = vshrl.u32 %v2586, 7
    %v2588 = vsub.s32 %v97, %v2587
    %v2589 = vrot.slane %v2464, %v2588
    %v2590 = vlaneseq
    %v2591 = vshrl.u32 %v2590, 7
    %v2592 = vsub.s32 %v97, %v2591
    %v2593 = vrot.slane %v2467, %v2592
    %v2594 = vlaneseq
    %v2595 = vshrl.u32 %v2594, 7
    %v2596 = vsub.s32 %v97, %v2595
    %v2597 = vrot.slane %v2470, %v2596
    %v2598 = vlaneseq
    %v2599 = vshrl.u32 %v2598, 7
    %v2600 = vsub.s32 %v97, %v2599
    %v2601 = vrot.slane %v2473, %v2600
    %v2602 = vsel %vm1505, %v2481, %v2477
    %v2603 = vsel %vm1507, %v2485, %v2602
    %v2604 = vsel %vm1509, %v2489, %v2603
    %v2605 = vsel %vm2102, %v2493, %v2604
    %v2606 = vsel %vm2104, %v2497, %v2605
    %v2607 = vsel %vm2106, %v2501, %v2606
    %v2608 = vsel %vm2108, %v2505, %v2607
    %v2609 = vsel %vm1505, %v2513, %v2509
    %v2610 = vsel %vm1507, %v2517, %v2609
    %v2611 = vsel %vm1509, %v2521, %v2610
    %v2612 = vsel %vm2102, %v2525, %v2611
    %v2613 = vsel %vm2104, %v2529, %v2612
    %v2614 = vsel %vm2106, %v2533, %v2613
    %v2615 = vsel %vm2108, %v2537, %v2614
    %v2616 = vsel %vm1505, %v2545, %v2541
    %v2617 = vsel %vm1507, %v2549, %v2616
    %v2618 = vsel %vm1509, %v2553, %v2617
    %v2619 = vsel %vm2102, %v2557, %v2618
    %v2620 = vsel %vm2104, %v2561, %v2619
    %v2621 = vsel %vm2106, %v2565, %v2620
    %v2622 = vsel %vm2108, %v2569, %v2621
    %v2623 = vsel %vm1505, %v2577, %v2573
    %v2624 = vsel %vm1507, %v2581, %v2623
    %v2625 = vsel %vm1509, %v2585, %v2624
    %v2626 = vsel %vm2102, %v2589, %v2625
    %v2627 = vsel %vm2104, %v2593, %v2626
    %v2628 = vsel %vm2106, %v2597, %v2627
    %v2629 = vsel %vm2108, %v2601, %v2628
    %v2630 = vsel %vm1408, %v2608, 2147483647
    %v2631 = vand.u32 %v2630, 65535
    %v2632 = vshra.s32 %v2630, 16
    %v2633 = vcvt.s32.f32 %v2631
    %v2634 = vcvt.s32.f32 %v2632
    %2635 = vmin.xlane.f32.xlu0 %v2634
    %v2636 = vpop.xlane.xlu0 %2635
    %vm2637 = vcmp.eq.f32.partialorder %v2634, %v2636
    %v2638 = vsel %vm2637, %v2633, inf
    %2639 = vmin.xlane.f32.xlu0 %v2638
    %v2640 = vpop.xlane.xlu0 %2639
    %v2641 = vcvt.f32.s32 %v2640
    %v2642 = vcvt.f32.s32 %v2636
    %v2643 = vshll.u32 %v2642, 16
    %v2644 = vadd.s32 %v2643, %v2641
    %v2645 = vsel %vm1408, %v2615, 2147483647
    %v2646 = vand.u32 %v2645, 65535
    %v2647 = vshra.s32 %v2645, 16
    %v2648 = vcvt.s32.f32 %v2646
    %v2649 = vcvt.s32.f32 %v2647
    %2650 = vmin.xlane.f32.xlu0 %v2649
    %v2651 = vpop.xlane.xlu0 %2650
    %vm2652 = vcmp.eq.f32.partialorder %v2649, %v2651
    %v2653 = vsel %vm2652, %v2648, inf
    %2654 = vmin.xlane.f32.xlu0 %v2653
    %v2655 = vpop.xlane.xlu0 %2654
    %v2656 = vcvt.f32.s32 %v2655
    %v2657 = vcvt.f32.s32 %v2651
    %v2658 = vshll.u32 %v2657, 16
    %v2659 = vadd.s32 %v2658, %v2656
    %v2660 = vsel %vm1408, %v2622, 2147483647
    %v2661 = vand.u32 %v2660, 65535
    %v2662 = vshra.s32 %v2660, 16
    %v2663 = vcvt.s32.f32 %v2661
    %v2664 = vcvt.s32.f32 %v2662
    %2665 = vmin.xlane.f32.xlu0 %v2664
    %v2666 = vpop.xlane.xlu0 %2665
    %vm2667 = vcmp.eq.f32.partialorder %v2664, %v2666
    %v2668 = vsel %vm2667, %v2663, inf
    %2669 = vmin.xlane.f32.xlu0 %v2668
    %v2670 = vpop.xlane.xlu0 %2669
    %v2671 = vcvt.f32.s32 %v2670
    %v2672 = vcvt.f32.s32 %v2666
    %v2673 = vshll.u32 %v2672, 16
    %v2674 = vadd.s32 %v2673, %v2671
    %v2675 = vsel %vm1408, %v2629, 2147483647
    %v2676 = vand.u32 %v2675, 65535
    %v2677 = vshra.s32 %v2675, 16
    %v2678 = vcvt.s32.f32 %v2676
    %v2679 = vcvt.s32.f32 %v2677
    %2680 = vmin.xlane.f32.xlu0 %v2679
    %v2681 = vpop.xlane.xlu0 %2680
    %vm2682 = vcmp.eq.f32.partialorder %v2679, %v2681
    %v2683 = vsel %vm2682, %v2678, inf
    %2684 = vmin.xlane.f32.xlu0 %v2683
    %v2685 = vpop.xlane.xlu0 %2684
    %v2686 = vcvt.f32.s32 %v2685
    %v2687 = vcvt.f32.s32 %v2681
    %v2688 = vshll.u32 %v2687, 16
    %v2689 = vadd.s32 %v2688, %v2686
    %v2690 = vlaneseq
    %v2691 = vshrl.u32 %v2690, 7
    %v2692 = vsub.s32 %v97, %v2691
    %v2693 = vrot.slane %v2644, %v2692
    %v2694 = vlaneseq
    %v2695 = vshrl.u32 %v2694, 7
    %v2696 = vsub.s32 %v97, %v2695
    %v2697 = vrot.slane %v2659, %v2696
    %v2698 = vlaneseq
    %v2699 = vshrl.u32 %v2698, 7
    %v2700 = vsub.s32 %v97, %v2699
    %v2701 = vrot.slane %v2674, %v2700
    %v2702 = vlaneseq
    %v2703 = vshrl.u32 %v2702, 7
    %v2704 = vsub.s32 %v97, %v2703
    %v2705 = vrot.slane %v2689, %v2704
    %v2706 = vsel %vm1505, %v2697, %v2693
    %v2707 = vsel %vm1507, %v2701, %v2706
    %v2708 = vsel %vm1509, %v2705, %v2707
    %2709 = vst.msk [vmem:[#allocation5 + $0x8] sm:$0xf] %vm1511, %v2708
    %v2710 = vld [vmem:[#allocation4 + $0x8] sm:$0xf]
    %v2712 = vlaneseq
    %v2713 = vshrl.u32 %v2712, 7
    %v2714 = vsub.s32 0, %v2713
    %v2715 = vrot.slane %v2710, %v2714
    %2717 = vbcast.lane.b32.xlu0 %v2715, 256
    %v2718 = vpop.permute.xlu0 %2717
    %v2719 = vlaneseq
    %v2720 = vshrl.u32 %v2719, 7
    %v2721 = vsub.s32 1, %v2720
    %v2722 = vrot.slane %v2710, %v2721
    %2724 = vbcast.lane.b32.xlu0 %v2722, 256
    %v2725 = vpop.permute.xlu0 %2724
    %v2726 = vlaneseq
    %v2727 = vshrl.u32 %v2726, 7
    %v2728 = vsub.s32 2, %v2727
    %v2729 = vrot.slane %v2710, %v2728
    %2731 = vbcast.lane.b32.xlu0 %v2729, 256
    %v2732 = vpop.permute.xlu0 %2731
    %v2733 = vlaneseq
    %v2734 = vshrl.u32 %v2733, 7
    %v2735 = vsub.s32 3, %v2734
    %v2736 = vrot.slane %v2710, %v2735
    %2738 = vbcast.lane.b32.xlu0 %v2736, 256
    %v2739 = vpop.permute.xlu0 %2738
    %v2744 = vadd.f32 %v2137, %v2718
    %v2745 = vadd.f32 %v2140, %v2725
    %v2746 = vadd.f32 %v2143, %v2732
    %v2747 = vadd.f32 %v2146, %v2739
    %v2748 = vadd.f32 %v2744, %v1561
    %v2749 = vadd.f32 %v2744, %v1568
    %v2750 = vadd.f32 %v2744, %v1575
    %v2751 = vadd.f32 %v2744, %v1582
    %v2752 = vadd.f32 %v2744, %v1589
    %v2753 = vadd.f32 %v2744, %v1596
    %v2754 = vadd.f32 %v2744, %v1603
    %v2755 = vadd.f32 %v2744, %v1610
    %v2756 = vadd.f32 %v2745, %v1617
    %v2757 = vadd.f32 %v2745, %v1624
    %v2758 = vadd.f32 %v2745, %v1631
    %v2759 = vadd.f32 %v2745, %v1638
    %v2760 = vadd.f32 %v2745, %v1645
    %v2761 = vadd.f32 %v2745, %v1652
    %v2762 = vadd.f32 %v2745, %v1659
    %v2763 = vadd.f32 %v2745, %v1666
    %v2764 = vadd.f32 %v2746, %v1673
    %v2765 = vadd.f32 %v2746, %v1680
    %v2766 = vadd.f32 %v2746, %v1687
    %v2767 = vadd.f32 %v2746, %v1694
    %v2768 = vadd.f32 %v2746, %v1701
    %v2769 = vadd.f32 %v2746, %v1708
    %v2770 = vadd.f32 %v2746, %v1715
    %v2771 = vadd.f32 %v2746, %v1722
    %v2772 = vadd.f32 %v2747, %v1729
    %v2773 = vadd.f32 %v2747, %v1736
    %v2774 = vadd.f32 %v2747, %v1743
    %v2775 = vadd.f32 %v2747, %v1750
    %v2776 = vadd.f32 %v2747, %v1757
    %v2777 = vadd.f32 %v2747, %v1764
    %v2778 = vadd.f32 %v2747, %v1771
    %v2779 = vadd.f32 %v2747, %v1778
    %2812 = vset.pattern.permute.xlu0 0
    %2813 = vperm.xlu0 %2812, %v2748
    %v2814 = vpop.permute.xlu0 %2813
    %2815 = vset.pattern.permute.xlu0 0
    %2816 = vperm.xlu0 %2815, %v2749
    %v2817 = vpop.permute.xlu0 %2816
    %2818 = vset.pattern.permute.xlu0 0
    %2819 = vperm.xlu0 %2818, %v2750
    %v2820 = vpop.permute.xlu0 %2819
    %2821 = vset.pattern.permute.xlu0 0
    %2822 = vperm.xlu0 %2821, %v2751
    %v2823 = vpop.permute.xlu0 %2822
    %2824 = vset.pattern.permute.xlu0 0
    %2825 = vperm.xlu0 %2824, %v2752
    %v2826 = vpop.permute.xlu0 %2825
    %2827 = vset.pattern.permute.xlu0 0
    %2828 = vperm.xlu0 %2827, %v2753
    %v2829 = vpop.permute.xlu0 %2828
    %2830 = vset.pattern.permute.xlu0 0
    %2831 = vperm.xlu0 %2830, %v2754
    %v2832 = vpop.permute.xlu0 %2831
    %2833 = vset.pattern.permute.xlu0 0
    %2834 = vperm.xlu0 %2833, %v2755
    %v2835 = vpop.permute.xlu0 %2834
    %2836 = vset.pattern.permute.xlu0 0
    %2837 = vperm.xlu0 %2836, %v2756
    %v2838 = vpop.permute.xlu0 %2837
    %2839 = vset.pattern.permute.xlu0 0
    %2840 = vperm.xlu0 %2839, %v2757
    %v2841 = vpop.permute.xlu0 %2840
    %2842 = vset.pattern.permute.xlu0 0
    %2843 = vperm.xlu0 %2842, %v2758
    %v2844 = vpop.permute.xlu0 %2843
    %2845 = vset.pattern.permute.xlu0 0
    %2846 = vperm.xlu0 %2845, %v2759
    %v2847 = vpop.permute.xlu0 %2846
    %2848 = vset.pattern.permute.xlu0 0
    %2849 = vperm.xlu0 %2848, %v2760
    %v2850 = vpop.permute.xlu0 %2849
    %2851 = vset.pattern.permute.xlu0 0
    %2852 = vperm.xlu0 %2851, %v2761
    %v2853 = vpop.permute.xlu0 %2852
    %2854 = vset.pattern.permute.xlu0 0
    %2855 = vperm.xlu0 %2854, %v2762
    %v2856 = vpop.permute.xlu0 %2855
    %2857 = vset.pattern.permute.xlu0 0
    %2858 = vperm.xlu0 %2857, %v2763
    %v2859 = vpop.permute.xlu0 %2858
    %2860 = vset.pattern.permute.xlu0 0
    %2861 = vperm.xlu0 %2860, %v2764
    %v2862 = vpop.permute.xlu0 %2861
    %2863 = vset.pattern.permute.xlu0 0
    %2864 = vperm.xlu0 %2863, %v2765
    %v2865 = vpop.permute.xlu0 %2864
    %2866 = vset.pattern.permute.xlu0 0
    %2867 = vperm.xlu0 %2866, %v2766
    %v2868 = vpop.permute.xlu0 %2867
    %2869 = vset.pattern.permute.xlu0 0
    %2870 = vperm.xlu0 %2869, %v2767
    %v2871 = vpop.permute.xlu0 %2870
    %2872 = vset.pattern.permute.xlu0 0
    %2873 = vperm.xlu0 %2872, %v2768
    %v2874 = vpop.permute.xlu0 %2873
    %2875 = vset.pattern.permute.xlu0 0
    %2876 = vperm.xlu0 %2875, %v2769
    %v2877 = vpop.permute.xlu0 %2876
    %2878 = vset.pattern.permute.xlu0 0
    %2879 = vperm.xlu0 %2878, %v2770
    %v2880 = vpop.permute.xlu0 %2879
    %2881 = vset.pattern.permute.xlu0 0
    %2882 = vperm.xlu0 %2881, %v2771
    %v2883 = vpop.permute.xlu0 %2882
    %2884 = vset.pattern.permute.xlu0 0
    %2885 = vperm.xlu0 %2884, %v2772
    %v2886 = vpop.permute.xlu0 %2885
    %2887 = vset.pattern.permute.xlu0 0
    %2888 = vperm.xlu0 %2887, %v2773
    %v2889 = vpop.permute.xlu0 %2888
    %2890 = vset.pattern.permute.xlu0 0
    %2891 = vperm.xlu0 %2890, %v2774
    %v2892 = vpop.permute.xlu0 %2891
    %2893 = vset.pattern.permute.xlu0 0
    %2894 = vperm.xlu0 %2893, %v2775
    %v2895 = vpop.permute.xlu0 %2894
    %2896 = vset.pattern.permute.xlu0 0
    %2897 = vperm.xlu0 %2896, %v2776
    %v2898 = vpop.permute.xlu0 %2897
    %2899 = vset.pattern.permute.xlu0 0
    %2900 = vperm.xlu0 %2899, %v2777
    %v2901 = vpop.permute.xlu0 %2900
    %2902 = vset.pattern.permute.xlu0 0
    %2903 = vperm.xlu0 %2902, %v2778
    %v2904 = vpop.permute.xlu0 %2903
    %2905 = vset.pattern.permute.xlu0 0
    %2906 = vperm.xlu0 %2905, %v2779
    %v2907 = vpop.permute.xlu0 %2906
    %v2908 = vlaneseq
    %v2909 = vshrl.u32 %v2908, 7
    %v2910 = vsub.s32 %v97, %v2909
    %v2911 = vrot.slane %v2814, %v2910
    %v2912 = vlaneseq
    %v2913 = vshrl.u32 %v2912, 7
    %v2914 = vsub.s32 %v97, %v2913
    %v2915 = vrot.slane %v2817, %v2914
    %v2916 = vlaneseq
    %v2917 = vshrl.u32 %v2916, 7
    %v2918 = vsub.s32 %v97, %v2917
    %v2919 = vrot.slane %v2820, %v2918
    %v2920 = vlaneseq
    %v2921 = vshrl.u32 %v2920, 7
    %v2922 = vsub.s32 %v97, %v2921
    %v2923 = vrot.slane %v2823, %v2922
    %v2924 = vlaneseq
    %v2925 = vshrl.u32 %v2924, 7
    %v2926 = vsub.s32 %v97, %v2925
    %v2927 = vrot.slane %v2826, %v2926
    %v2928 = vlaneseq
    %v2929 = vshrl.u32 %v2928, 7
    %v2930 = vsub.s32 %v97, %v2929
    %v2931 = vrot.slane %v2829, %v2930
    %v2932 = vlaneseq
    %v2933 = vshrl.u32 %v2932, 7
    %v2934 = vsub.s32 %v97, %v2933
    %v2935 = vrot.slane %v2832, %v2934
    %v2936 = vlaneseq
    %v2937 = vshrl.u32 %v2936, 7
    %v2938 = vsub.s32 %v97, %v2937
    %v2939 = vrot.slane %v2835, %v2938
    %v2940 = vlaneseq
    %v2941 = vshrl.u32 %v2940, 7
    %v2942 = vsub.s32 %v97, %v2941
    %v2943 = vrot.slane %v2838, %v2942
    %v2944 = vlaneseq
    %v2945 = vshrl.u32 %v2944, 7
    %v2946 = vsub.s32 %v97, %v2945
    %v2947 = vrot.slane %v2841, %v2946
    %v2948 = vlaneseq
    %v2949 = vshrl.u32 %v2948, 7
    %v2950 = vsub.s32 %v97, %v2949
    %v2951 = vrot.slane %v2844, %v2950
    %v2952 = vlaneseq
    %v2953 = vshrl.u32 %v2952, 7
    %v2954 = vsub.s32 %v97, %v2953
    %v2955 = vrot.slane %v2847, %v2954
    %v2956 = vlaneseq
    %v2957 = vshrl.u32 %v2956, 7
    %v2958 = vsub.s32 %v97, %v2957
    %v2959 = vrot.slane %v2850, %v2958
    %v2960 = vlaneseq
    %v2961 = vshrl.u32 %v2960, 7
    %v2962 = vsub.s32 %v97, %v2961
    %v2963 = vrot.slane %v2853, %v2962
    %v2964 = vlaneseq
    %v2965 = vshrl.u32 %v2964, 7
    %v2966 = vsub.s32 %v97, %v2965
    %v2967 = vrot.slane %v2856, %v2966
    %v2968 = vlaneseq
    %v2969 = vshrl.u32 %v2968, 7
    %v2970 = vsub.s32 %v97, %v2969
    %v2971 = vrot.slane %v2859, %v2970
    %v2972 = vlaneseq
    %v2973 = vshrl.u32 %v2972, 7
    %v2974 = vsub.s32 %v97, %v2973
    %v2975 = vrot.slane %v2862, %v2974
    %v2976 = vlaneseq
    %v2977 = vshrl.u32 %v2976, 7
    %v2978 = vsub.s32 %v97, %v2977
    %v2979 = vrot.slane %v2865, %v2978
    %v2980 = vlaneseq
    %v2981 = vshrl.u32 %v2980, 7
    %v2982 = vsub.s32 %v97, %v2981
    %v2983 = vrot.slane %v2868, %v2982
    %v2984 = vlaneseq
    %v2985 = vshrl.u32 %v2984, 7
    %v2986 = vsub.s32 %v97, %v2985
    %v2987 = vrot.slane %v2871, %v2986
    %v2988 = vlaneseq
    %v2989 = vshrl.u32 %v2988, 7
    %v2990 = vsub.s32 %v97, %v2989
    %v2991 = vrot.slane %v2874, %v2990
    %v2992 = vlaneseq
    %v2993 = vshrl.u32 %v2992, 7
    %v2994 = vsub.s32 %v97, %v2993
    %v2995 = vrot.slane %v2877, %v2994
    %v2996 = vlaneseq
    %v2997 = vshrl.u32 %v2996, 7
    %v2998 = vsub.s32 %v97, %v2997
    %v2999 = vrot.slane %v2880, %v2998
    %v3000 = vlaneseq
    %v3001 = vshrl.u32 %v3000, 7
    %v3002 = vsub.s32 %v97, %v3001
    %v3003 = vrot.slane %v2883, %v3002
    %v3004 = vlaneseq
    %v3005 = vshrl.u32 %v3004, 7
    %v3006 = vsub.s32 %v97, %v3005
    %v3007 = vrot.slane %v2886, %v3006
    %v3008 = vlaneseq
    %v3009 = vshrl.u32 %v3008, 7
    %v3010 = vsub.s32 %v97, %v3009
    %v3011 = vrot.slane %v2889, %v3010
    %v3012 = vlaneseq
    %v3013 = vshrl.u32 %v3012, 7
    %v3014 = vsub.s32 %v97, %v3013
    %v3015 = vrot.slane %v2892, %v3014
    %v3016 = vlaneseq
    %v3017 = vshrl.u32 %v3016, 7
    %v3018 = vsub.s32 %v97, %v3017
    %v3019 = vrot.slane %v2895, %v3018
    %v3020 = vlaneseq
    %v3021 = vshrl.u32 %v3020, 7
    %v3022 = vsub.s32 %v97, %v3021
    %v3023 = vrot.slane %v2898, %v3022
    %v3024 = vlaneseq
    %v3025 = vshrl.u32 %v3024, 7
    %v3026 = vsub.s32 %v97, %v3025
    %v3027 = vrot.slane %v2901, %v3026
    %v3028 = vlaneseq
    %v3029 = vshrl.u32 %v3028, 7
    %v3030 = vsub.s32 %v97, %v3029
    %v3031 = vrot.slane %v2904, %v3030
    %v3032 = vlaneseq
    %v3033 = vshrl.u32 %v3032, 7
    %v3034 = vsub.s32 %v97, %v3033
    %v3035 = vrot.slane %v2907, %v3034
    %v3036 = vsel %vm1505, %v2915, %v2911
    %v3037 = vsel %vm1507, %v2919, %v3036
    %v3038 = vsel %vm1509, %v2923, %v3037
    %v3039 = vsel %vm2102, %v2927, %v3038
    %v3040 = vsel %vm2104, %v2931, %v3039
    %v3041 = vsel %vm2106, %v2935, %v3040
    %v3042 = vsel %vm2108, %v2939, %v3041
    %v3043 = vsel %vm1505, %v2947, %v2943
    %v3044 = vsel %vm1507, %v2951, %v3043
    %v3045 = vsel %vm1509, %v2955, %v3044
    %v3046 = vsel %vm2102, %v2959, %v3045
    %v3047 = vsel %vm2104, %v2963, %v3046
    %v3048 = vsel %vm2106, %v2967, %v3047
    %v3049 = vsel %vm2108, %v2971, %v3048
    %v3050 = vsel %vm1505, %v2979, %v2975
    %v3051 = vsel %vm1507, %v2983, %v3050
    %v3052 = vsel %vm1509, %v2987, %v3051
    %v3053 = vsel %vm2102, %v2991, %v3052
    %v3054 = vsel %vm2104, %v2995, %v3053
    %v3055 = vsel %vm2106, %v2999, %v3054
    %v3056 = vsel %vm2108, %v3003, %v3055
    %v3057 = vsel %vm1505, %v3011, %v3007
    %v3058 = vsel %vm1507, %v3015, %v3057
    %v3059 = vsel %vm1509, %v3019, %v3058
    %v3060 = vsel %vm2102, %v3023, %v3059
    %v3061 = vsel %vm2104, %v3027, %v3060
    %v3062 = vsel %vm2106, %v3031, %v3061
    %v3063 = vsel %vm2108, %v3035, %v3062
    %v3068 = vsel %vm1408, %v3042, -inf
    %3069 = vmax.xlane.f32.xlu0 %v3068
    %v3070 = vpop.xlane.xlu0 %3069
    %v3071 = vsel %vm1408, %v3049, -inf
    %3072 = vmax.xlane.f32.xlu0 %v3071
    %v3073 = vpop.xlane.xlu0 %3072
    %v3074 = vsel %vm1408, %v3056, -inf
    %3075 = vmax.xlane.f32.xlu0 %v3074
    %v3076 = vpop.xlane.xlu0 %3075
    %v3077 = vsel %vm1408, %v3063, -inf
    %3078 = vmax.xlane.f32.xlu0 %v3077
    %v3079 = vpop.xlane.xlu0 %3078
    %v3084 = vlaneseq
    %v3085 = vshrl.u32 %v3084, 7
    %v3086 = vsub.s32 0, %v3085
    %v3087 = vrot.slane %v3070, %v3086
    %v3088 = vlaneseq
    %v3089 = vshrl.u32 %v3088, 7
    %v3090 = vsub.s32 1, %v3089
    %v3091 = vrot.slane %v3070, %v3090
    %v3092 = vlaneseq
    %v3093 = vshrl.u32 %v3092, 7
    %v3094 = vsub.s32 2, %v3093
    %v3095 = vrot.slane %v3070, %v3094
    %v3096 = vlaneseq
    %v3097 = vshrl.u32 %v3096, 7
    %v3098 = vsub.s32 3, %v3097
    %v3099 = vrot.slane %v3070, %v3098
    %v3100 = vlaneseq
    %v3101 = vshrl.u32 %v3100, 7
    %v3102 = vsub.s32 4, %v3101
    %v3103 = vrot.slane %v3070, %v3102
    %v3104 = vlaneseq
    %v3105 = vshrl.u32 %v3104, 7
    %v3106 = vsub.s32 5, %v3105
    %v3107 = vrot.slane %v3070, %v3106
    %v3108 = vlaneseq
    %v3109 = vshrl.u32 %v3108, 7
    %v3110 = vsub.s32 6, %v3109
    %v3111 = vrot.slane %v3070, %v3110
    %v3112 = vlaneseq
    %v3113 = vshrl.u32 %v3112, 7
    %v3114 = vsub.s32 7, %v3113
    %v3115 = vrot.slane %v3070, %v3114
    %v3116 = vlaneseq
    %v3117 = vshrl.u32 %v3116, 7
    %v3118 = vsub.s32 0, %v3117
    %v3119 = vrot.slane %v3073, %v3118
    %v3120 = vlaneseq
    %v3121 = vshrl.u32 %v3120, 7
    %v3122 = vsub.s32 1, %v3121
    %v3123 = vrot.slane %v3073, %v3122
    %v3124 = vlaneseq
    %v3125 = vshrl.u32 %v3124, 7
    %v3126 = vsub.s32 2, %v3125
    %v3127 = vrot.slane %v3073, %v3126
    %v3128 = vlaneseq
    %v3129 = vshrl.u32 %v3128, 7
    %v3130 = vsub.s32 3, %v3129
    %v3131 = vrot.slane %v3073, %v3130
    %v3132 = vlaneseq
    %v3133 = vshrl.u32 %v3132, 7
    %v3134 = vsub.s32 4, %v3133
    %v3135 = vrot.slane %v3073, %v3134
    %v3136 = vlaneseq
    %v3137 = vshrl.u32 %v3136, 7
    %v3138 = vsub.s32 5, %v3137
    %v3139 = vrot.slane %v3073, %v3138
    %v3140 = vlaneseq
    %v3141 = vshrl.u32 %v3140, 7
    %v3142 = vsub.s32 6, %v3141
    %v3143 = vrot.slane %v3073, %v3142
    %v3144 = vlaneseq
    %v3145 = vshrl.u32 %v3144, 7
    %v3146 = vsub.s32 7, %v3145
    %v3147 = vrot.slane %v3073, %v3146
    %v3148 = vlaneseq
    %v3149 = vshrl.u32 %v3148, 7
    %v3150 = vsub.s32 0, %v3149
    %v3151 = vrot.slane %v3076, %v3150
    %v3152 = vlaneseq
    %v3153 = vshrl.u32 %v3152, 7
    %v3154 = vsub.s32 1, %v3153
    %v3155 = vrot.slane %v3076, %v3154
    %v3156 = vlaneseq
    %v3157 = vshrl.u32 %v3156, 7
    %v3158 = vsub.s32 2, %v3157
    %v3159 = vrot.slane %v3076, %v3158
    %v3160 = vlaneseq
    %v3161 = vshrl.u32 %v3160, 7
    %v3162 = vsub.s32 3, %v3161
    %v3163 = vrot.slane %v3076, %v3162
    %v3164 = vlaneseq
    %v3165 = vshrl.u32 %v3164, 7
    %v3166 = vsub.s32 4, %v3165
    %v3167 = vrot.slane %v3076, %v3166
    %v3168 = vlaneseq
    %v3169 = vshrl.u32 %v3168, 7
    %v3170 = vsub.s32 5, %v3169
    %v3171 = vrot.slane %v3076, %v3170
    %v3172 = vlaneseq
    %v3173 = vshrl.u32 %v3172, 7
    %v3174 = vsub.s32 6, %v3173
    %v3175 = vrot.slane %v3076, %v3174
    %v3176 = vlaneseq
    %v3177 = vshrl.u32 %v3176, 7
    %v3178 = vsub.s32 7, %v3177
    %v3179 = vrot.slane %v3076, %v3178
    %v3180 = vlaneseq
    %v3181 = vshrl.u32 %v3180, 7
    %v3182 = vsub.s32 0, %v3181
    %v3183 = vrot.slane %v3079, %v3182
    %v3184 = vlaneseq
    %v3185 = vshrl.u32 %v3184, 7
    %v3186 = vsub.s32 1, %v3185
    %v3187 = vrot.slane %v3079, %v3186
    %v3188 = vlaneseq
    %v3189 = vshrl.u32 %v3188, 7
    %v3190 = vsub.s32 2, %v3189
    %v3191 = vrot.slane %v3079, %v3190
    %v3192 = vlaneseq
    %v3193 = vshrl.u32 %v3192, 7
    %v3194 = vsub.s32 3, %v3193
    %v3195 = vrot.slane %v3079, %v3194
    %v3196 = vlaneseq
    %v3197 = vshrl.u32 %v3196, 7
    %v3198 = vsub.s32 4, %v3197
    %v3199 = vrot.slane %v3079, %v3198
    %v3200 = vlaneseq
    %v3201 = vshrl.u32 %v3200, 7
    %v3202 = vsub.s32 5, %v3201
    %v3203 = vrot.slane %v3079, %v3202
    %v3204 = vlaneseq
    %v3205 = vshrl.u32 %v3204, 7
    %v3206 = vsub.s32 6, %v3205
    %v3207 = vrot.slane %v3079, %v3206
    %v3208 = vlaneseq
    %v3209 = vshrl.u32 %v3208, 7
    %v3210 = vsub.s32 7, %v3209
    %v3211 = vrot.slane %v3079, %v3210
    %vm3244 = vcmp.eq.f32.partialorder %v2748, %v3087
    %vm3245 = vcmp.eq.f32.partialorder %v2749, %v3091
    %vm3246 = vcmp.eq.f32.partialorder %v2750, %v3095
    %vm3247 = vcmp.eq.f32.partialorder %v2751, %v3099
    %vm3248 = vcmp.eq.f32.partialorder %v2752, %v3103
    %vm3249 = vcmp.eq.f32.partialorder %v2753, %v3107
    %vm3250 = vcmp.eq.f32.partialorder %v2754, %v3111
    %vm3251 = vcmp.eq.f32.partialorder %v2755, %v3115
    %vm3252 = vcmp.eq.f32.partialorder %v2756, %v3119
    %vm3253 = vcmp.eq.f32.partialorder %v2757, %v3123
    %vm3254 = vcmp.eq.f32.partialorder %v2758, %v3127
    %vm3255 = vcmp.eq.f32.partialorder %v2759, %v3131
    %vm3256 = vcmp.eq.f32.partialorder %v2760, %v3135
    %vm3257 = vcmp.eq.f32.partialorder %v2761, %v3139
    %vm3258 = vcmp.eq.f32.partialorder %v2762, %v3143
    %vm3259 = vcmp.eq.f32.partialorder %v2763, %v3147
    %vm3260 = vcmp.eq.f32.partialorder %v2764, %v3151
    %vm3261 = vcmp.eq.f32.partialorder %v2765, %v3155
    %vm3262 = vcmp.eq.f32.partialorder %v2766, %v3159
    %vm3263 = vcmp.eq.f32.partialorder %v2767, %v3163
    %vm3264 = vcmp.eq.f32.partialorder %v2768, %v3167
    %vm3265 = vcmp.eq.f32.partialorder %v2769, %v3171
    %vm3266 = vcmp.eq.f32.partialorder %v2770, %v3175
    %vm3267 = vcmp.eq.f32.partialorder %v2771, %v3179
    %vm3268 = vcmp.eq.f32.partialorder %v2772, %v3183
    %vm3269 = vcmp.eq.f32.partialorder %v2773, %v3187
    %vm3270 = vcmp.eq.f32.partialorder %v2774, %v3191
    %vm3271 = vcmp.eq.f32.partialorder %v2775, %v3195
    %vm3272 = vcmp.eq.f32.partialorder %v2776, %v3199
    %vm3273 = vcmp.eq.f32.partialorder %v2777, %v3203
    %vm3274 = vcmp.eq.f32.partialorder %v2778, %v3207
    %vm3275 = vcmp.eq.f32.partialorder %v2779, %v3211
    %v3276 = vsel %vm3244, %v2345, 8
    %v3277 = vsel %vm3245, %v2345, 8
    %v3278 = vsel %vm3246, %v2345, 8
    %v3279 = vsel %vm3247, %v2345, 8
    %v3280 = vsel %vm3248, %v2345, 8
    %v3281 = vsel %vm3249, %v2345, 8
    %v3282 = vsel %vm3250, %v2345, 8
    %v3283 = vsel %vm3251, %v2345, 8
    %v3284 = vsel %vm3252, %v2345, 8
    %v3285 = vsel %vm3253, %v2345, 8
    %v3286 = vsel %vm3254, %v2345, 8
    %v3287 = vsel %vm3255, %v2345, 8
    %v3288 = vsel %vm3256, %v2345, 8
    %v3289 = vsel %vm3257, %v2345, 8
    %v3290 = vsel %vm3258, %v2345, 8
    %v3291 = vsel %vm3259, %v2345, 8
    %v3292 = vsel %vm3260, %v2345, 8
    %v3293 = vsel %vm3261, %v2345, 8
    %v3294 = vsel %vm3262, %v2345, 8
    %v3295 = vsel %vm3263, %v2345, 8
    %v3296 = vsel %vm3264, %v2345, 8
    %v3297 = vsel %vm3265, %v2345, 8
    %v3298 = vsel %vm3266, %v2345, 8
    %v3299 = vsel %vm3267, %v2345, 8
    %v3300 = vsel %vm3268, %v2345, 8
    %v3301 = vsel %vm3269, %v2345, 8
    %v3302 = vsel %vm3270, %v2345, 8
    %v3303 = vsel %vm3271, %v2345, 8
    %v3304 = vsel %vm3272, %v2345, 8
    %v3305 = vsel %vm3273, %v2345, 8
    %v3306 = vsel %vm3274, %v2345, 8
    %v3307 = vsel %vm3275, %v2345, 8
    %3308 = vset.pattern.permute.xlu0 0
    %3309 = vperm.xlu0 %3308, %v3276
    %v3310 = vpop.permute.xlu0 %3309
    %3311 = vset.pattern.permute.xlu0 0
    %3312 = vperm.xlu0 %3311, %v3277
    %v3313 = vpop.permute.xlu0 %3312
    %3314 = vset.pattern.permute.xlu0 0
    %3315 = vperm.xlu0 %3314, %v3278
    %v3316 = vpop.permute.xlu0 %3315
    %3317 = vset.pattern.permute.xlu0 0
    %3318 = vperm.xlu0 %3317, %v3279
    %v3319 = vpop.permute.xlu0 %3318
    %3320 = vset.pattern.permute.xlu0 0
    %3321 = vperm.xlu0 %3320, %v3280
    %v3322 = vpop.permute.xlu0 %3321
    %3323 = vset.pattern.permute.xlu0 0
    %3324 = vperm.xlu0 %3323, %v3281
    %v3325 = vpop.permute.xlu0 %3324
    %3326 = vset.pattern.permute.xlu0 0
    %3327 = vperm.xlu0 %3326, %v3282
    %v3328 = vpop.permute.xlu0 %3327
    %3329 = vset.pattern.permute.xlu0 0
    %3330 = vperm.xlu0 %3329, %v3283
    %v3331 = vpop.permute.xlu0 %3330
    %3332 = vset.pattern.permute.xlu0 0
    %3333 = vperm.xlu0 %3332, %v3284
    %v3334 = vpop.permute.xlu0 %3333
    %3335 = vset.pattern.permute.xlu0 0
    %3336 = vperm.xlu0 %3335, %v3285
    %v3337 = vpop.permute.xlu0 %3336
    %3338 = vset.pattern.permute.xlu0 0
    %3339 = vperm.xlu0 %3338, %v3286
    %v3340 = vpop.permute.xlu0 %3339
    %3341 = vset.pattern.permute.xlu0 0
    %3342 = vperm.xlu0 %3341, %v3287
    %v3343 = vpop.permute.xlu0 %3342
    %3344 = vset.pattern.permute.xlu0 0
    %3345 = vperm.xlu0 %3344, %v3288
    %v3346 = vpop.permute.xlu0 %3345
    %3347 = vset.pattern.permute.xlu0 0
    %3348 = vperm.xlu0 %3347, %v3289
    %v3349 = vpop.permute.xlu0 %3348
    %3350 = vset.pattern.permute.xlu0 0
    %3351 = vperm.xlu0 %3350, %v3290
    %v3352 = vpop.permute.xlu0 %3351
    %3353 = vset.pattern.permute.xlu0 0
    %3354 = vperm.xlu0 %3353, %v3291
    %v3355 = vpop.permute.xlu0 %3354
    %3356 = vset.pattern.permute.xlu0 0
    %3357 = vperm.xlu0 %3356, %v3292
    %v3358 = vpop.permute.xlu0 %3357
    %3359 = vset.pattern.permute.xlu0 0
    %3360 = vperm.xlu0 %3359, %v3293
    %v3361 = vpop.permute.xlu0 %3360
    %3362 = vset.pattern.permute.xlu0 0
    %3363 = vperm.xlu0 %3362, %v3294
    %v3364 = vpop.permute.xlu0 %3363
    %3365 = vset.pattern.permute.xlu0 0
    %3366 = vperm.xlu0 %3365, %v3295
    %v3367 = vpop.permute.xlu0 %3366
    %3368 = vset.pattern.permute.xlu0 0
    %3369 = vperm.xlu0 %3368, %v3296
    %v3370 = vpop.permute.xlu0 %3369
    %3371 = vset.pattern.permute.xlu0 0
    %3372 = vperm.xlu0 %3371, %v3297
    %v3373 = vpop.permute.xlu0 %3372
    %3374 = vset.pattern.permute.xlu0 0
    %3375 = vperm.xlu0 %3374, %v3298
    %v3376 = vpop.permute.xlu0 %3375
    %3377 = vset.pattern.permute.xlu0 0
    %3378 = vperm.xlu0 %3377, %v3299
    %v3379 = vpop.permute.xlu0 %3378
    %3380 = vset.pattern.permute.xlu0 0
    %3381 = vperm.xlu0 %3380, %v3300
    %v3382 = vpop.permute.xlu0 %3381
    %3383 = vset.pattern.permute.xlu0 0
    %3384 = vperm.xlu0 %3383, %v3301
    %v3385 = vpop.permute.xlu0 %3384
    %3386 = vset.pattern.permute.xlu0 0
    %3387 = vperm.xlu0 %3386, %v3302
    %v3388 = vpop.permute.xlu0 %3387
    %3389 = vset.pattern.permute.xlu0 0
    %3390 = vperm.xlu0 %3389, %v3303
    %v3391 = vpop.permute.xlu0 %3390
    %3392 = vset.pattern.permute.xlu0 0
    %3393 = vperm.xlu0 %3392, %v3304
    %v3394 = vpop.permute.xlu0 %3393
    %3395 = vset.pattern.permute.xlu0 0
    %3396 = vperm.xlu0 %3395, %v3305
    %v3397 = vpop.permute.xlu0 %3396
    %3398 = vset.pattern.permute.xlu0 0
    %3399 = vperm.xlu0 %3398, %v3306
    %v3400 = vpop.permute.xlu0 %3399
    %3401 = vset.pattern.permute.xlu0 0
    %3402 = vperm.xlu0 %3401, %v3307
    %v3403 = vpop.permute.xlu0 %3402
    %v3404 = vlaneseq
    %v3405 = vshrl.u32 %v3404, 7
    %v3406 = vsub.s32 %v97, %v3405
    %v3407 = vrot.slane %v3310, %v3406
    %v3408 = vlaneseq
    %v3409 = vshrl.u32 %v3408, 7
    %v3410 = vsub.s32 %v97, %v3409
    %v3411 = vrot.slane %v3313, %v3410
    %v3412 = vlaneseq
    %v3413 = vshrl.u32 %v3412, 7
    %v3414 = vsub.s32 %v97, %v3413
    %v3415 = vrot.slane %v3316, %v3414
    %v3416 = vlaneseq
    %v3417 = vshrl.u32 %v3416, 7
    %v3418 = vsub.s32 %v97, %v3417
    %v3419 = vrot.slane %v3319, %v3418
    %v3420 = vlaneseq
    %v3421 = vshrl.u32 %v3420, 7
    %v3422 = vsub.s32 %v97, %v3421
    %v3423 = vrot.slane %v3322, %v3422
    %v3424 = vlaneseq
    %v3425 = vshrl.u32 %v3424, 7
    %v3426 = vsub.s32 %v97, %v3425
    %v3427 = vrot.slane %v3325, %v3426
    %v3428 = vlaneseq
    %v3429 = vshrl.u32 %v3428, 7
    %v3430 = vsub.s32 %v97, %v3429
    %v3431 = vrot.slane %v3328, %v3430
    %v3432 = vlaneseq
    %v3433 = vshrl.u32 %v3432, 7
    %v3434 = vsub.s32 %v97, %v3433
    %v3435 = vrot.slane %v3331, %v3434
    %v3436 = vlaneseq
    %v3437 = vshrl.u32 %v3436, 7
    %v3438 = vsub.s32 %v97, %v3437
    %v3439 = vrot.slane %v3334, %v3438
    %v3440 = vlaneseq
    %v3441 = vshrl.u32 %v3440, 7
    %v3442 = vsub.s32 %v97, %v3441
    %v3443 = vrot.slane %v3337, %v3442
    %v3444 = vlaneseq
    %v3445 = vshrl.u32 %v3444, 7
    %v3446 = vsub.s32 %v97, %v3445
    %v3447 = vrot.slane %v3340, %v3446
    %v3448 = vlaneseq
    %v3449 = vshrl.u32 %v3448, 7
    %v3450 = vsub.s32 %v97, %v3449
    %v3451 = vrot.slane %v3343, %v3450
    %v3452 = vlaneseq
    %v3453 = vshrl.u32 %v3452, 7
    %v3454 = vsub.s32 %v97, %v3453
    %v3455 = vrot.slane %v3346, %v3454
    %v3456 = vlaneseq
    %v3457 = vshrl.u32 %v3456, 7
    %v3458 = vsub.s32 %v97, %v3457
    %v3459 = vrot.slane %v3349, %v3458
    %v3460 = vlaneseq
    %v3461 = vshrl.u32 %v3460, 7
    %v3462 = vsub.s32 %v97, %v3461
    %v3463 = vrot.slane %v3352, %v3462
    %v3464 = vlaneseq
    %v3465 = vshrl.u32 %v3464, 7
    %v3466 = vsub.s32 %v97, %v3465
    %v3467 = vrot.slane %v3355, %v3466
    %v3468 = vlaneseq
    %v3469 = vshrl.u32 %v3468, 7
    %v3470 = vsub.s32 %v97, %v3469
    %v3471 = vrot.slane %v3358, %v3470
    %v3472 = vlaneseq
    %v3473 = vshrl.u32 %v3472, 7
    %v3474 = vsub.s32 %v97, %v3473
    %v3475 = vrot.slane %v3361, %v3474
    %v3476 = vlaneseq
    %v3477 = vshrl.u32 %v3476, 7
    %v3478 = vsub.s32 %v97, %v3477
    %v3479 = vrot.slane %v3364, %v3478
    %v3480 = vlaneseq
    %v3481 = vshrl.u32 %v3480, 7
    %v3482 = vsub.s32 %v97, %v3481
    %v3483 = vrot.slane %v3367, %v3482
    %v3484 = vlaneseq
    %v3485 = vshrl.u32 %v3484, 7
    %v3486 = vsub.s32 %v97, %v3485
    %v3487 = vrot.slane %v3370, %v3486
    %v3488 = vlaneseq
    %v3489 = vshrl.u32 %v3488, 7
    %v3490 = vsub.s32 %v97, %v3489
    %v3491 = vrot.slane %v3373, %v3490
    %v3492 = vlaneseq
    %v3493 = vshrl.u32 %v3492, 7
    %v3494 = vsub.s32 %v97, %v3493
    %v3495 = vrot.slane %v3376, %v3494
    %v3496 = vlaneseq
    %v3497 = vshrl.u32 %v3496, 7
    %v3498 = vsub.s32 %v97, %v3497
    %v3499 = vrot.slane %v3379, %v3498
    %v3500 = vlaneseq
    %v3501 = vshrl.u32 %v3500, 7
    %v3502 = vsub.s32 %v97, %v3501
    %v3503 = vrot.slane %v3382, %v3502
    %v3504 = vlaneseq
    %v3505 = vshrl.u32 %v3504, 7
    %v3506 = vsub.s32 %v97, %v3505
    %v3507 = vrot.slane %v3385, %v3506
    %v3508 = vlaneseq
    %v3509 = vshrl.u32 %v3508, 7
    %v3510 = vsub.s32 %v97, %v3509
    %v3511 = vrot.slane %v3388, %v3510
    %v3512 = vlaneseq
    %v3513 = vshrl.u32 %v3512, 7
    %v3514 = vsub.s32 %v97, %v3513
    %v3515 = vrot.slane %v3391, %v3514
    %v3516 = vlaneseq
    %v3517 = vshrl.u32 %v3516, 7
    %v3518 = vsub.s32 %v97, %v3517
    %v3519 = vrot.slane %v3394, %v3518
    %v3520 = vlaneseq
    %v3521 = vshrl.u32 %v3520, 7
    %v3522 = vsub.s32 %v97, %v3521
    %v3523 = vrot.slane %v3397, %v3522
    %v3524 = vlaneseq
    %v3525 = vshrl.u32 %v3524, 7
    %v3526 = vsub.s32 %v97, %v3525
    %v3527 = vrot.slane %v3400, %v3526
    %v3528 = vlaneseq
    %v3529 = vshrl.u32 %v3528, 7
    %v3530 = vsub.s32 %v97, %v3529
    %v3531 = vrot.slane %v3403, %v3530
    %v3532 = vsel %vm1505, %v3411, %v3407
    %v3533 = vsel %vm1507, %v3415, %v3532
    %v3534 = vsel %vm1509, %v3419, %v3533
    %v3535 = vsel %vm2102, %v3423, %v3534
    %v3536 = vsel %vm2104, %v3427, %v3535
    %v3537 = vsel %vm2106, %v3431, %v3536
    %v3538 = vsel %vm2108, %v3435, %v3537
    %v3539 = vsel %vm1505, %v3443, %v3439
    %v3540 = vsel %vm1507, %v3447, %v3539
    %v3541 = vsel %vm1509, %v3451, %v3540
    %v3542 = vsel %vm2102, %v3455, %v3541
    %v3543 = vsel %vm2104, %v3459, %v3542
    %v3544 = vsel %vm2106, %v3463, %v3543
    %v3545 = vsel %vm2108, %v3467, %v3544
    %v3546 = vsel %vm1505, %v3475, %v3471
    %v3547 = vsel %vm1507, %v3479, %v3546
    %v3548 = vsel %vm1509, %v3483, %v3547
    %v3549 = vsel %vm2102, %v3487, %v3548
    %v3550 = vsel %vm2104, %v3491, %v3549
    %v3551 = vsel %vm2106, %v3495, %v3550
    %v3552 = vsel %vm2108, %v3499, %v3551
    %v3553 = vsel %vm1505, %v3507, %v3503
    %v3554 = vsel %vm1507, %v3511, %v3553
    %v3555 = vsel %vm1509, %v3515, %v3554
    %v3556 = vsel %vm2102, %v3519, %v3555
    %v3557 = vsel %vm2104, %v3523, %v3556
    %v3558 = vsel %vm2106, %v3527, %v3557
    %v3559 = vsel %vm2108, %v3531, %v3558
    %v3560 = vsel %vm1408, %v3538, 2147483647
    %v3561 = vand.u32 %v3560, 65535
    %v3562 = vshra.s32 %v3560, 16
    %v3563 = vcvt.s32.f32 %v3561
    %v3564 = vcvt.s32.f32 %v3562
    %3565 = vmin.xlane.f32.xlu0 %v3564
    %v3566 = vpop.xlane.xlu0 %3565
    %vm3567 = vcmp.eq.f32.partialorder %v3564, %v3566
    %v3568 = vsel %vm3567, %v3563, inf
    %3569 = vmin.xlane.f32.xlu0 %v3568
    %v3570 = vpop.xlane.xlu0 %3569
    %v3571 = vcvt.f32.s32 %v3570
    %v3572 = vcvt.f32.s32 %v3566
    %v3573 = vshll.u32 %v3572, 16
    %v3574 = vadd.s32 %v3573, %v3571
    %v3575 = vsel %vm1408, %v3545, 2147483647
    %v3576 = vand.u32 %v3575, 65535
    %v3577 = vshra.s32 %v3575, 16
    %v3578 = vcvt.s32.f32 %v3576
    %v3579 = vcvt.s32.f32 %v3577
    %3580 = vmin.xlane.f32.xlu0 %v3579
    %v3581 = vpop.xlane.xlu0 %3580
    %vm3582 = vcmp.eq.f32.partialorder %v3579, %v3581
    %v3583 = vsel %vm3582, %v3578, inf
    %3584 = vmin.xlane.f32.xlu0 %v3583
    %v3585 = vpop.xlane.xlu0 %3584
    %v3586 = vcvt.f32.s32 %v3585
    %v3587 = vcvt.f32.s32 %v3581
    %v3588 = vshll.u32 %v3587, 16
    %v3589 = vadd.s32 %v3588, %v3586
    %v3590 = vsel %vm1408, %v3552, 2147483647
    %v3591 = vand.u32 %v3590, 65535
    %v3592 = vshra.s32 %v3590, 16
    %v3593 = vcvt.s32.f32 %v3591
    %v3594 = vcvt.s32.f32 %v3592
    %3595 = vmin.xlane.f32.xlu0 %v3594
    %v3596 = vpop.xlane.xlu0 %3595
    %vm3597 = vcmp.eq.f32.partialorder %v3594, %v3596
    %v3598 = vsel %vm3597, %v3593, inf
    %3599 = vmin.xlane.f32.xlu0 %v3598
    %v3600 = vpop.xlane.xlu0 %3599
    %v3601 = vcvt.f32.s32 %v3600
    %v3602 = vcvt.f32.s32 %v3596
    %v3603 = vshll.u32 %v3602, 16
    %v3604 = vadd.s32 %v3603, %v3601
    %v3605 = vsel %vm1408, %v3559, 2147483647
    %v3606 = vand.u32 %v3605, 65535
    %v3607 = vshra.s32 %v3605, 16
    %v3608 = vcvt.s32.f32 %v3606
    %v3609 = vcvt.s32.f32 %v3607
    %3610 = vmin.xlane.f32.xlu0 %v3609
    %v3611 = vpop.xlane.xlu0 %3610
    %vm3612 = vcmp.eq.f32.partialorder %v3609, %v3611
    %v3613 = vsel %vm3612, %v3608, inf
    %3614 = vmin.xlane.f32.xlu0 %v3613
    %v3615 = vpop.xlane.xlu0 %3614
    %v3616 = vcvt.f32.s32 %v3615
    %v3617 = vcvt.f32.s32 %v3611
    %v3618 = vshll.u32 %v3617, 16
    %v3619 = vadd.s32 %v3618, %v3616
    %v3620 = vlaneseq
    %v3621 = vshrl.u32 %v3620, 7
    %v3622 = vsub.s32 %v97, %v3621
    %v3623 = vrot.slane %v3574, %v3622
    %v3624 = vlaneseq
    %v3625 = vshrl.u32 %v3624, 7
    %v3626 = vsub.s32 %v97, %v3625
    %v3627 = vrot.slane %v3589, %v3626
    %v3628 = vlaneseq
    %v3629 = vshrl.u32 %v3628, 7
    %v3630 = vsub.s32 %v97, %v3629
    %v3631 = vrot.slane %v3604, %v3630
    %v3632 = vlaneseq
    %v3633 = vshrl.u32 %v3632, 7
    %v3634 = vsub.s32 %v97, %v3633
    %v3635 = vrot.slane %v3619, %v3634
    %v3636 = vsel %vm1505, %v3627, %v3623
    %v3637 = vsel %vm1507, %v3631, %v3636
    %v3638 = vsel %vm1509, %v3635, %v3637
    %3639 = vst.msk [vmem:[#allocation5 + $0xc] sm:$0xf] %vm1511, %v3638
    %v3640 = vld [vmem:[#allocation4 + $0xc] sm:$0xf]
    %v3642 = vlaneseq
    %v3643 = vshrl.u32 %v3642, 7
    %v3644 = vsub.s32 0, %v3643
    %v3645 = vrot.slane %v3640, %v3644
    %3647 = vbcast.lane.b32.xlu0 %v3645, 256
    %v3648 = vpop.permute.xlu0 %3647
    %v3649 = vlaneseq
    %v3650 = vshrl.u32 %v3649, 7
    %v3651 = vsub.s32 1, %v3650
    %v3652 = vrot.slane %v3640, %v3651
    %3654 = vbcast.lane.b32.xlu0 %v3652, 256
    %v3655 = vpop.permute.xlu0 %3654
    %v3656 = vlaneseq
    %v3657 = vshrl.u32 %v3656, 7
    %v3658 = vsub.s32 2, %v3657
    %v3659 = vrot.slane %v3640, %v3658
    %3661 = vbcast.lane.b32.xlu0 %v3659, 256
    %v3662 = vpop.permute.xlu0 %3661
    %v3663 = vlaneseq
    %v3664 = vshrl.u32 %v3663, 7
    %v3665 = vsub.s32 3, %v3664
    %v3666 = vrot.slane %v3640, %v3665
    %3668 = vbcast.lane.b32.xlu0 %v3666, 256
    %v3669 = vpop.permute.xlu0 %3668
    %v3674 = vadd.f32 %v3070, %v3648
    %v3675 = vadd.f32 %v3073, %v3655
    %v3676 = vadd.f32 %v3076, %v3662
    %v3677 = vadd.f32 %v3079, %v3669
    %v3678 = vadd.f32 %v3674, %v1561
    %v3679 = vadd.f32 %v3674, %v1568
    %v3680 = vadd.f32 %v3674, %v1575
    %v3681 = vadd.f32 %v3674, %v1582
    %v3682 = vadd.f32 %v3674, %v1589
    %v3683 = vadd.f32 %v3674, %v1596
    %v3684 = vadd.f32 %v3674, %v1603
    %v3685 = vadd.f32 %v3674, %v1610
    %v3686 = vadd.f32 %v3675, %v1617
    %v3687 = vadd.f32 %v3675, %v1624
    %v3688 = vadd.f32 %v3675, %v1631
    %v3689 = vadd.f32 %v3675, %v1638
    %v3690 = vadd.f32 %v3675, %v1645
    %v3691 = vadd.f32 %v3675, %v1652
    %v3692 = vadd.f32 %v3675, %v1659
    %v3693 = vadd.f32 %v3675, %v1666
    %v3694 = vadd.f32 %v3676, %v1673
    %v3695 = vadd.f32 %v3676, %v1680
    %v3696 = vadd.f32 %v3676, %v1687
    %v3697 = vadd.f32 %v3676, %v1694
    %v3698 = vadd.f32 %v3676, %v1701
    %v3699 = vadd.f32 %v3676, %v1708
    %v3700 = vadd.f32 %v3676, %v1715
    %v3701 = vadd.f32 %v3676, %v1722
    %v3702 = vadd.f32 %v3677, %v1729
    %v3703 = vadd.f32 %v3677, %v1736
    %v3704 = vadd.f32 %v3677, %v1743
    %v3705 = vadd.f32 %v3677, %v1750
    %v3706 = vadd.f32 %v3677, %v1757
    %v3707 = vadd.f32 %v3677, %v1764
    %v3708 = vadd.f32 %v3677, %v1771
    %v3709 = vadd.f32 %v3677, %v1778
    %3742 = vset.pattern.permute.xlu0 0
    %3743 = vperm.xlu0 %3742, %v3678
    %v3744 = vpop.permute.xlu0 %3743
    %3745 = vset.pattern.permute.xlu0 0
    %3746 = vperm.xlu0 %3745, %v3679
    %v3747 = vpop.permute.xlu0 %3746
    %3748 = vset.pattern.permute.xlu0 0
    %3749 = vperm.xlu0 %3748, %v3680
    %v3750 = vpop.permute.xlu0 %3749
    %3751 = vset.pattern.permute.xlu0 0
    %3752 = vperm.xlu0 %3751, %v3681
    %v3753 = vpop.permute.xlu0 %3752
    %3754 = vset.pattern.permute.xlu0 0
    %3755 = vperm.xlu0 %3754, %v3682
    %v3756 = vpop.permute.xlu0 %3755
    %3757 = vset.pattern.permute.xlu0 0
    %3758 = vperm.xlu0 %3757, %v3683
    %v3759 = vpop.permute.xlu0 %3758
    %3760 = vset.pattern.permute.xlu0 0
    %3761 = vperm.xlu0 %3760, %v3684
    %v3762 = vpop.permute.xlu0 %3761
    %3763 = vset.pattern.permute.xlu0 0
    %3764 = vperm.xlu0 %3763, %v3685
    %v3765 = vpop.permute.xlu0 %3764
    %3766 = vset.pattern.permute.xlu0 0
    %3767 = vperm.xlu0 %3766, %v3686
    %v3768 = vpop.permute.xlu0 %3767
    %3769 = vset.pattern.permute.xlu0 0
    %3770 = vperm.xlu0 %3769, %v3687
    %v3771 = vpop.permute.xlu0 %3770
    %3772 = vset.pattern.permute.xlu0 0
    %3773 = vperm.xlu0 %3772, %v3688
    %v3774 = vpop.permute.xlu0 %3773
    %3775 = vset.pattern.permute.xlu0 0
    %3776 = vperm.xlu0 %3775, %v3689
    %v3777 = vpop.permute.xlu0 %3776
    %3778 = vset.pattern.permute.xlu0 0
    %3779 = vperm.xlu0 %3778, %v3690
    %v3780 = vpop.permute.xlu0 %3779
    %3781 = vset.pattern.permute.xlu0 0
    %3782 = vperm.xlu0 %3781, %v3691
    %v3783 = vpop.permute.xlu0 %3782
    %3784 = vset.pattern.permute.xlu0 0
    %3785 = vperm.xlu0 %3784, %v3692
    %v3786 = vpop.permute.xlu0 %3785
    %3787 = vset.pattern.permute.xlu0 0
    %3788 = vperm.xlu0 %3787, %v3693
    %v3789 = vpop.permute.xlu0 %3788
    %3790 = vset.pattern.permute.xlu0 0
    %3791 = vperm.xlu0 %3790, %v3694
    %v3792 = vpop.permute.xlu0 %3791
    %3793 = vset.pattern.permute.xlu0 0
    %3794 = vperm.xlu0 %3793, %v3695
    %v3795 = vpop.permute.xlu0 %3794
    %3796 = vset.pattern.permute.xlu0 0
    %3797 = vperm.xlu0 %3796, %v3696
    %v3798 = vpop.permute.xlu0 %3797
    %3799 = vset.pattern.permute.xlu0 0
    %3800 = vperm.xlu0 %3799, %v3697
    %v3801 = vpop.permute.xlu0 %3800
    %3802 = vset.pattern.permute.xlu0 0
    %3803 = vperm.xlu0 %3802, %v3698
    %v3804 = vpop.permute.xlu0 %3803
    %3805 = vset.pattern.permute.xlu0 0
    %3806 = vperm.xlu0 %3805, %v3699
    %v3807 = vpop.permute.xlu0 %3806
    %3808 = vset.pattern.permute.xlu0 0
    %3809 = vperm.xlu0 %3808, %v3700
    %v3810 = vpop.permute.xlu0 %3809
    %3811 = vset.pattern.permute.xlu0 0
    %3812 = vperm.xlu0 %3811, %v3701
    %v3813 = vpop.permute.xlu0 %3812
    %3814 = vset.pattern.permute.xlu0 0
    %3815 = vperm.xlu0 %3814, %v3702
    %v3816 = vpop.permute.xlu0 %3815
    %3817 = vset.pattern.permute.xlu0 0
    %3818 = vperm.xlu0 %3817, %v3703
    %v3819 = vpop.permute.xlu0 %3818
    %3820 = vset.pattern.permute.xlu0 0
    %3821 = vperm.xlu0 %3820, %v3704
    %v3822 = vpop.permute.xlu0 %3821
    %3823 = vset.pattern.permute.xlu0 0
    %3824 = vperm.xlu0 %3823, %v3705
    %v3825 = vpop.permute.xlu0 %3824
    %3826 = vset.pattern.permute.xlu0 0
    %3827 = vperm.xlu0 %3826, %v3706
    %v3828 = vpop.permute.xlu0 %3827
    %3829 = vset.pattern.permute.xlu0 0
    %3830 = vperm.xlu0 %3829, %v3707
    %v3831 = vpop.permute.xlu0 %3830
    %3832 = vset.pattern.permute.xlu0 0
    %3833 = vperm.xlu0 %3832, %v3708
    %v3834 = vpop.permute.xlu0 %3833
    %3835 = vset.pattern.permute.xlu0 0
    %3836 = vperm.xlu0 %3835, %v3709
    %v3837 = vpop.permute.xlu0 %3836
    %v3838 = vlaneseq
    %v3839 = vshrl.u32 %v3838, 7
    %v3840 = vsub.s32 %v97, %v3839
    %v3841 = vrot.slane %v3744, %v3840
    %v3842 = vlaneseq
    %v3843 = vshrl.u32 %v3842, 7
    %v3844 = vsub.s32 %v97, %v3843
    %v3845 = vrot.slane %v3747, %v3844
    %v3846 = vlaneseq
    %v3847 = vshrl.u32 %v3846, 7
    %v3848 = vsub.s32 %v97, %v3847
    %v3849 = vrot.slane %v3750, %v3848
    %v3850 = vlaneseq
    %v3851 = vshrl.u32 %v3850, 7
    %v3852 = vsub.s32 %v97, %v3851
    %v3853 = vrot.slane %v3753, %v3852
    %v3854 = vlaneseq
    %v3855 = vshrl.u32 %v3854, 7
    %v3856 = vsub.s32 %v97, %v3855
    %v3857 = vrot.slane %v3756, %v3856
    %v3858 = vlaneseq
    %v3859 = vshrl.u32 %v3858, 7
    %v3860 = vsub.s32 %v97, %v3859
    %v3861 = vrot.slane %v3759, %v3860
    %v3862 = vlaneseq
    %v3863 = vshrl.u32 %v3862, 7
    %v3864 = vsub.s32 %v97, %v3863
    %v3865 = vrot.slane %v3762, %v3864
    %v3866 = vlaneseq
    %v3867 = vshrl.u32 %v3866, 7
    %v3868 = vsub.s32 %v97, %v3867
    %v3869 = vrot.slane %v3765, %v3868
    %v3870 = vlaneseq
    %v3871 = vshrl.u32 %v3870, 7
    %v3872 = vsub.s32 %v97, %v3871
    %v3873 = vrot.slane %v3768, %v3872
    %v3874 = vlaneseq
    %v3875 = vshrl.u32 %v3874, 7
    %v3876 = vsub.s32 %v97, %v3875
    %v3877 = vrot.slane %v3771, %v3876
    %v3878 = vlaneseq
    %v3879 = vshrl.u32 %v3878, 7
    %v3880 = vsub.s32 %v97, %v3879
    %v3881 = vrot.slane %v3774, %v3880
    %v3882 = vlaneseq
    %v3883 = vshrl.u32 %v3882, 7
    %v3884 = vsub.s32 %v97, %v3883
    %v3885 = vrot.slane %v3777, %v3884
    %v3886 = vlaneseq
    %v3887 = vshrl.u32 %v3886, 7
    %v3888 = vsub.s32 %v97, %v3887
    %v3889 = vrot.slane %v3780, %v3888
    %v3890 = vlaneseq
    %v3891 = vshrl.u32 %v3890, 7
    %v3892 = vsub.s32 %v97, %v3891
    %v3893 = vrot.slane %v3783, %v3892
    %v3894 = vlaneseq
    %v3895 = vshrl.u32 %v3894, 7
    %v3896 = vsub.s32 %v97, %v3895
    %v3897 = vrot.slane %v3786, %v3896
    %v3898 = vlaneseq
    %v3899 = vshrl.u32 %v3898, 7
    %v3900 = vsub.s32 %v97, %v3899
    %v3901 = vrot.slane %v3789, %v3900
    %v3902 = vlaneseq
    %v3903 = vshrl.u32 %v3902, 7
    %v3904 = vsub.s32 %v97, %v3903
    %v3905 = vrot.slane %v3792, %v3904
    %v3906 = vlaneseq
    %v3907 = vshrl.u32 %v3906, 7
    %v3908 = vsub.s32 %v97, %v3907
    %v3909 = vrot.slane %v3795, %v3908
    %v3910 = vlaneseq
    %v3911 = vshrl.u32 %v3910, 7
    %v3912 = vsub.s32 %v97, %v3911
    %v3913 = vrot.slane %v3798, %v3912
    %v3914 = vlaneseq
    %v3915 = vshrl.u32 %v3914, 7
    %v3916 = vsub.s32 %v97, %v3915
    %v3917 = vrot.slane %v3801, %v3916
    %v3918 = vlaneseq
    %v3919 = vshrl.u32 %v3918, 7
    %v3920 = vsub.s32 %v97, %v3919
    %v3921 = vrot.slane %v3804, %v3920
    %v3922 = vlaneseq
    %v3923 = vshrl.u32 %v3922, 7
    %v3924 = vsub.s32 %v97, %v3923
    %v3925 = vrot.slane %v3807, %v3924
    %v3926 = vlaneseq
    %v3927 = vshrl.u32 %v3926, 7
    %v3928 = vsub.s32 %v97, %v3927
    %v3929 = vrot.slane %v3810, %v3928
    %v3930 = vlaneseq
    %v3931 = vshrl.u32 %v3930, 7
    %v3932 = vsub.s32 %v97, %v3931
    %v3933 = vrot.slane %v3813, %v3932
    %v3934 = vlaneseq
    %v3935 = vshrl.u32 %v3934, 7
    %v3936 = vsub.s32 %v97, %v3935
    %v3937 = vrot.slane %v3816, %v3936
    %v3938 = vlaneseq
    %v3939 = vshrl.u32 %v3938, 7
    %v3940 = vsub.s32 %v97, %v3939
    %v3941 = vrot.slane %v3819, %v3940
    %v3942 = vlaneseq
    %v3943 = vshrl.u32 %v3942, 7
    %v3944 = vsub.s32 %v97, %v3943
    %v3945 = vrot.slane %v3822, %v3944
    %v3946 = vlaneseq
    %v3947 = vshrl.u32 %v3946, 7
    %v3948 = vsub.s32 %v97, %v3947
    %v3949 = vrot.slane %v3825, %v3948
    %v3950 = vlaneseq
    %v3951 = vshrl.u32 %v3950, 7
    %v3952 = vsub.s32 %v97, %v3951
    %v3953 = vrot.slane %v3828, %v3952
    %v3954 = vlaneseq
    %v3955 = vshrl.u32 %v3954, 7
    %v3956 = vsub.s32 %v97, %v3955
    %v3957 = vrot.slane %v3831, %v3956
    %v3958 = vlaneseq
    %v3959 = vshrl.u32 %v3958, 7
    %v3960 = vsub.s32 %v97, %v3959
    %v3961 = vrot.slane %v3834, %v3960
    %v3962 = vlaneseq
    %v3963 = vshrl.u32 %v3962, 7
    %v3964 = vsub.s32 %v97, %v3963
    %v3965 = vrot.slane %v3837, %v3964
    %v3966 = vsel %vm1505, %v3845, %v3841
    %v3967 = vsel %vm1507, %v3849, %v3966
    %v3968 = vsel %vm1509, %v3853, %v3967
    %v3969 = vsel %vm2102, %v3857, %v3968
    %v3970 = vsel %vm2104, %v3861, %v3969
    %v3971 = vsel %vm2106, %v3865, %v3970
    %v3972 = vsel %vm2108, %v3869, %v3971
    %v3973 = vsel %vm1505, %v3877, %v3873
    %v3974 = vsel %vm1507, %v3881, %v3973
    %v3975 = vsel %vm1509, %v3885, %v3974
    %v3976 = vsel %vm2102, %v3889, %v3975
    %v3977 = vsel %vm2104, %v3893, %v3976
    %v3978 = vsel %vm2106, %v3897, %v3977
    %v3979 = vsel %vm2108, %v3901, %v3978
    %v3980 = vsel %vm1505, %v3909, %v3905
    %v3981 = vsel %vm1507, %v3913, %v3980
    %v3982 = vsel %vm1509, %v3917, %v3981
    %v3983 = vsel %vm2102, %v3921, %v3982
    %v3984 = vsel %vm2104, %v3925, %v3983
    %v3985 = vsel %vm2106, %v3929, %v3984
    %v3986 = vsel %vm2108, %v3933, %v3985
    %v3987 = vsel %vm1505, %v3941, %v3937
    %v3988 = vsel %vm1507, %v3945, %v3987
    %v3989 = vsel %vm1509, %v3949, %v3988
    %v3990 = vsel %vm2102, %v3953, %v3989
    %v3991 = vsel %vm2104, %v3957, %v3990
    %v3992 = vsel %vm2106, %v3961, %v3991
    %v3993 = vsel %vm2108, %v3965, %v3992
    %v3998 = vsel %vm1408, %v3972, -inf
    %3999 = vmax.xlane.f32.xlu0 %v3998
    %v4000 = vpop.xlane.xlu0 %3999
    %v4001 = vsel %vm1408, %v3979, -inf
    %4002 = vmax.xlane.f32.xlu0 %v4001
    %v4003 = vpop.xlane.xlu0 %4002
    %v4004 = vsel %vm1408, %v3986, -inf
    %4005 = vmax.xlane.f32.xlu0 %v4004
    %v4006 = vpop.xlane.xlu0 %4005
    %v4007 = vsel %vm1408, %v3993, -inf
    %4008 = vmax.xlane.f32.xlu0 %v4007
    %v4009 = vpop.xlane.xlu0 %4008
    %v4014 = vlaneseq
    %v4015 = vshrl.u32 %v4014, 7
    %v4016 = vsub.s32 0, %v4015
    %v4017 = vrot.slane %v4000, %v4016
    %v4018 = vlaneseq
    %v4019 = vshrl.u32 %v4018, 7
    %v4020 = vsub.s32 1, %v4019
    %v4021 = vrot.slane %v4000, %v4020
    %v4022 = vlaneseq
    %v4023 = vshrl.u32 %v4022, 7
    %v4024 = vsub.s32 2, %v4023
    %v4025 = vrot.slane %v4000, %v4024
    %v4026 = vlaneseq
    %v4027 = vshrl.u32 %v4026, 7
    %v4028 = vsub.s32 3, %v4027
    %v4029 = vrot.slane %v4000, %v4028
    %v4030 = vlaneseq
    %v4031 = vshrl.u32 %v4030, 7
    %v4032 = vsub.s32 4, %v4031
    %v4033 = vrot.slane %v4000, %v4032
    %v4034 = vlaneseq
    %v4035 = vshrl.u32 %v4034, 7
    %v4036 = vsub.s32 5, %v4035
    %v4037 = vrot.slane %v4000, %v4036
    %v4038 = vlaneseq
    %v4039 = vshrl.u32 %v4038, 7
    %v4040 = vsub.s32 6, %v4039
    %v4041 = vrot.slane %v4000, %v4040
    %v4042 = vlaneseq
    %v4043 = vshrl.u32 %v4042, 7
    %v4044 = vsub.s32 7, %v4043
    %v4045 = vrot.slane %v4000, %v4044
    %v4046 = vlaneseq
    %v4047 = vshrl.u32 %v4046, 7
    %v4048 = vsub.s32 0, %v4047
    %v4049 = vrot.slane %v4003, %v4048
    %v4050 = vlaneseq
    %v4051 = vshrl.u32 %v4050, 7
    %v4052 = vsub.s32 1, %v4051
    %v4053 = vrot.slane %v4003, %v4052
    %v4054 = vlaneseq
    %v4055 = vshrl.u32 %v4054, 7
    %v4056 = vsub.s32 2, %v4055
    %v4057 = vrot.slane %v4003, %v4056
    %v4058 = vlaneseq
    %v4059 = vshrl.u32 %v4058, 7
    %v4060 = vsub.s32 3, %v4059
    %v4061 = vrot.slane %v4003, %v4060
    %v4062 = vlaneseq
    %v4063 = vshrl.u32 %v4062, 7
    %v4064 = vsub.s32 4, %v4063
    %v4065 = vrot.slane %v4003, %v4064
    %v4066 = vlaneseq
    %v4067 = vshrl.u32 %v4066, 7
    %v4068 = vsub.s32 5, %v4067
    %v4069 = vrot.slane %v4003, %v4068
    %v4070 = vlaneseq
    %v4071 = vshrl.u32 %v4070, 7
    %v4072 = vsub.s32 6, %v4071
    %v4073 = vrot.slane %v4003, %v4072
    %v4074 = vlaneseq
    %v4075 = vshrl.u32 %v4074, 7
    %v4076 = vsub.s32 7, %v4075
    %v4077 = vrot.slane %v4003, %v4076
    %v4078 = vlaneseq
    %v4079 = vshrl.u32 %v4078, 7
    %v4080 = vsub.s32 0, %v4079
    %v4081 = vrot.slane %v4006, %v4080
    %v4082 = vlaneseq
    %v4083 = vshrl.u32 %v4082, 7
    %v4084 = vsub.s32 1, %v4083
    %v4085 = vrot.slane %v4006, %v4084
    %v4086 = vlaneseq
    %v4087 = vshrl.u32 %v4086, 7
    %v4088 = vsub.s32 2, %v4087
    %v4089 = vrot.slane %v4006, %v4088
    %v4090 = vlaneseq
    %v4091 = vshrl.u32 %v4090, 7
    %v4092 = vsub.s32 3, %v4091
    %v4093 = vrot.slane %v4006, %v4092
    %v4094 = vlaneseq
    %v4095 = vshrl.u32 %v4094, 7
    %v4096 = vsub.s32 4, %v4095
    %v4097 = vrot.slane %v4006, %v4096
    %v4098 = vlaneseq
    %v4099 = vshrl.u32 %v4098, 7
    %v4100 = vsub.s32 5, %v4099
    %v4101 = vrot.slane %v4006, %v4100
    %v4102 = vlaneseq
    %v4103 = vshrl.u32 %v4102, 7
    %v4104 = vsub.s32 6, %v4103
    %v4105 = vrot.slane %v4006, %v4104
    %v4106 = vlaneseq
    %v4107 = vshrl.u32 %v4106, 7
    %v4108 = vsub.s32 7, %v4107
    %v4109 = vrot.slane %v4006, %v4108
    %v4110 = vlaneseq
    %v4111 = vshrl.u32 %v4110, 7
    %v4112 = vsub.s32 0, %v4111
    %v4113 = vrot.slane %v4009, %v4112
    %v4114 = vlaneseq
    %v4115 = vshrl.u32 %v4114, 7
    %v4116 = vsub.s32 1, %v4115
    %v4117 = vrot.slane %v4009, %v4116
    %v4118 = vlaneseq
    %v4119 = vshrl.u32 %v4118, 7
    %v4120 = vsub.s32 2, %v4119
    %v4121 = vrot.slane %v4009, %v4120
    %v4122 = vlaneseq
    %v4123 = vshrl.u32 %v4122, 7
    %v4124 = vsub.s32 3, %v4123
    %v4125 = vrot.slane %v4009, %v4124
    %v4126 = vlaneseq
    %v4127 = vshrl.u32 %v4126, 7
    %v4128 = vsub.s32 4, %v4127
    %v4129 = vrot.slane %v4009, %v4128
    %v4130 = vlaneseq
    %v4131 = vshrl.u32 %v4130, 7
    %v4132 = vsub.s32 5, %v4131
    %v4133 = vrot.slane %v4009, %v4132
    %v4134 = vlaneseq
    %v4135 = vshrl.u32 %v4134, 7
    %v4136 = vsub.s32 6, %v4135
    %v4137 = vrot.slane %v4009, %v4136
    %v4138 = vlaneseq
    %v4139 = vshrl.u32 %v4138, 7
    %v4140 = vsub.s32 7, %v4139
    %v4141 = vrot.slane %v4009, %v4140
    %vm4174 = vcmp.eq.f32.partialorder %v3678, %v4017
    %vm4175 = vcmp.eq.f32.partialorder %v3679, %v4021
    %vm4176 = vcmp.eq.f32.partialorder %v3680, %v4025
    %vm4177 = vcmp.eq.f32.partialorder %v3681, %v4029
    %vm4178 = vcmp.eq.f32.partialorder %v3682, %v4033
    %vm4179 = vcmp.eq.f32.partialorder %v3683, %v4037
    %vm4180 = vcmp.eq.f32.partialorder %v3684, %v4041
    %vm4181 = vcmp.eq.f32.partialorder %v3685, %v4045
    %vm4182 = vcmp.eq.f32.partialorder %v3686, %v4049
    %vm4183 = vcmp.eq.f32.partialorder %v3687, %v4053
    %vm4184 = vcmp.eq.f32.partialorder %v3688, %v4057
    %vm4185 = vcmp.eq.f32.partialorder %v3689, %v4061
    %vm4186 = vcmp.eq.f32.partialorder %v3690, %v4065
    %vm4187 = vcmp.eq.f32.partialorder %v3691, %v4069
    %vm4188 = vcmp.eq.f32.partialorder %v3692, %v4073
    %vm4189 = vcmp.eq.f32.partialorder %v3693, %v4077
    %vm4190 = vcmp.eq.f32.partialorder %v3694, %v4081
    %vm4191 = vcmp.eq.f32.partialorder %v3695, %v4085
    %vm4192 = vcmp.eq.f32.partialorder %v3696, %v4089
    %vm4193 = vcmp.eq.f32.partialorder %v3697, %v4093
    %vm4194 = vcmp.eq.f32.partialorder %v3698, %v4097
    %vm4195 = vcmp.eq.f32.partialorder %v3699, %v4101
    %vm4196 = vcmp.eq.f32.partialorder %v3700, %v4105
    %vm4197 = vcmp.eq.f32.partialorder %v3701, %v4109
    %vm4198 = vcmp.eq.f32.partialorder %v3702, %v4113
    %vm4199 = vcmp.eq.f32.partialorder %v3703, %v4117
    %vm4200 = vcmp.eq.f32.partialorder %v3704, %v4121
    %vm4201 = vcmp.eq.f32.partialorder %v3705, %v4125
    %vm4202 = vcmp.eq.f32.partialorder %v3706, %v4129
    %vm4203 = vcmp.eq.f32.partialorder %v3707, %v4133
    %vm4204 = vcmp.eq.f32.partialorder %v3708, %v4137
    %vm4205 = vcmp.eq.f32.partialorder %v3709, %v4141
    %v4206 = vsel %vm4174, %v2345, 8
    %v4207 = vsel %vm4175, %v2345, 8
    %v4208 = vsel %vm4176, %v2345, 8
    %v4209 = vsel %vm4177, %v2345, 8
    %v4210 = vsel %vm4178, %v2345, 8
    %v4211 = vsel %vm4179, %v2345, 8
    %v4212 = vsel %vm4180, %v2345, 8
    %v4213 = vsel %vm4181, %v2345, 8
    %v4214 = vsel %vm4182, %v2345, 8
    %v4215 = vsel %vm4183, %v2345, 8
    %v4216 = vsel %vm4184, %v2345, 8
    %v4217 = vsel %vm4185, %v2345, 8
    %v4218 = vsel %vm4186, %v2345, 8
    %v4219 = vsel %vm4187, %v2345, 8
    %v4220 = vsel %vm4188, %v2345, 8
    %v4221 = vsel %vm4189, %v2345, 8
    %v4222 = vsel %vm4190, %v2345, 8
    %v4223 = vsel %vm4191, %v2345, 8
    %v4224 = vsel %vm4192, %v2345, 8
    %v4225 = vsel %vm4193, %v2345, 8
    %v4226 = vsel %vm4194, %v2345, 8
    %v4227 = vsel %vm4195, %v2345, 8
    %v4228 = vsel %vm4196, %v2345, 8
    %v4229 = vsel %vm4197, %v2345, 8
    %v4230 = vsel %vm4198, %v2345, 8
    %v4231 = vsel %vm4199, %v2345, 8
    %v4232 = vsel %vm4200, %v2345, 8
    %v4233 = vsel %vm4201, %v2345, 8
    %v4234 = vsel %vm4202, %v2345, 8
    %v4235 = vsel %vm4203, %v2345, 8
    %v4236 = vsel %vm4204, %v2345, 8
    %v4237 = vsel %vm4205, %v2345, 8
    %4238 = vset.pattern.permute.xlu0 0
    %4239 = vperm.xlu0 %4238, %v4206
    %v4240 = vpop.permute.xlu0 %4239
    %4241 = vset.pattern.permute.xlu0 0
    %4242 = vperm.xlu0 %4241, %v4207
    %v4243 = vpop.permute.xlu0 %4242
    %4244 = vset.pattern.permute.xlu0 0
    %4245 = vperm.xlu0 %4244, %v4208
    %v4246 = vpop.permute.xlu0 %4245
    %4247 = vset.pattern.permute.xlu0 0
    %4248 = vperm.xlu0 %4247, %v4209
    %v4249 = vpop.permute.xlu0 %4248
    %4250 = vset.pattern.permute.xlu0 0
    %4251 = vperm.xlu0 %4250, %v4210
    %v4252 = vpop.permute.xlu0 %4251
    %4253 = vset.pattern.permute.xlu0 0
    %4254 = vperm.xlu0 %4253, %v4211
    %v4255 = vpop.permute.xlu0 %4254
    %4256 = vset.pattern.permute.xlu0 0
    %4257 = vperm.xlu0 %4256, %v4212
    %v4258 = vpop.permute.xlu0 %4257
    %4259 = vset.pattern.permute.xlu0 0
    %4260 = vperm.xlu0 %4259, %v4213
    %v4261 = vpop.permute.xlu0 %4260
    %4262 = vset.pattern.permute.xlu0 0
    %4263 = vperm.xlu0 %4262, %v4214
    %v4264 = vpop.permute.xlu0 %4263
    %4265 = vset.pattern.permute.xlu0 0
    %4266 = vperm.xlu0 %4265, %v4215
    %v4267 = vpop.permute.xlu0 %4266
    %4268 = vset.pattern.permute.xlu0 0
    %4269 = vperm.xlu0 %4268, %v4216
    %v4270 = vpop.permute.xlu0 %4269
    %4271 = vset.pattern.permute.xlu0 0
    %4272 = vperm.xlu0 %4271, %v4217
    %v4273 = vpop.permute.xlu0 %4272
    %4274 = vset.pattern.permute.xlu0 0
    %4275 = vperm.xlu0 %4274, %v4218
    %v4276 = vpop.permute.xlu0 %4275
    %4277 = vset.pattern.permute.xlu0 0
    %4278 = vperm.xlu0 %4277, %v4219
    %v4279 = vpop.permute.xlu0 %4278
    %4280 = vset.pattern.permute.xlu0 0
    %4281 = vperm.xlu0 %4280, %v4220
    %v4282 = vpop.permute.xlu0 %4281
    %4283 = vset.pattern.permute.xlu0 0
    %4284 = vperm.xlu0 %4283, %v4221
    %v4285 = vpop.permute.xlu0 %4284
    %4286 = vset.pattern.permute.xlu0 0
    %4287 = vperm.xlu0 %4286, %v4222
    %v4288 = vpop.permute.xlu0 %4287
    %4289 = vset.pattern.permute.xlu0 0
    %4290 = vperm.xlu0 %4289, %v4223
    %v4291 = vpop.permute.xlu0 %4290
    %4292 = vset.pattern.permute.xlu0 0
    %4293 = vperm.xlu0 %4292, %v4224
    %v4294 = vpop.permute.xlu0 %4293
    %4295 = vset.pattern.permute.xlu0 0
    %4296 = vperm.xlu0 %4295, %v4225
    %v4297 = vpop.permute.xlu0 %4296
    %4298 = vset.pattern.permute.xlu0 0
    %4299 = vperm.xlu0 %4298, %v4226
    %v4300 = vpop.permute.xlu0 %4299
    %4301 = vset.pattern.permute.xlu0 0
    %4302 = vperm.xlu0 %4301, %v4227
    %v4303 = vpop.permute.xlu0 %4302
    %4304 = vset.pattern.permute.xlu0 0
    %4305 = vperm.xlu0 %4304, %v4228
    %v4306 = vpop.permute.xlu0 %4305
    %4307 = vset.pattern.permute.xlu0 0
    %4308 = vperm.xlu0 %4307, %v4229
    %v4309 = vpop.permute.xlu0 %4308
    %4310 = vset.pattern.permute.xlu0 0
    %4311 = vperm.xlu0 %4310, %v4230
    %v4312 = vpop.permute.xlu0 %4311
    %4313 = vset.pattern.permute.xlu0 0
    %4314 = vperm.xlu0 %4313, %v4231
    %v4315 = vpop.permute.xlu0 %4314
    %4316 = vset.pattern.permute.xlu0 0
    %4317 = vperm.xlu0 %4316, %v4232
    %v4318 = vpop.permute.xlu0 %4317
    %4319 = vset.pattern.permute.xlu0 0
    %4320 = vperm.xlu0 %4319, %v4233
    %v4321 = vpop.permute.xlu0 %4320
    %4322 = vset.pattern.permute.xlu0 0
    %4323 = vperm.xlu0 %4322, %v4234
    %v4324 = vpop.permute.xlu0 %4323
    %4325 = vset.pattern.permute.xlu0 0
    %4326 = vperm.xlu0 %4325, %v4235
    %v4327 = vpop.permute.xlu0 %4326
    %4328 = vset.pattern.permute.xlu0 0
    %4329 = vperm.xlu0 %4328, %v4236
    %v4330 = vpop.permute.xlu0 %4329
    %4331 = vset.pattern.permute.xlu0 0
    %4332 = vperm.xlu0 %4331, %v4237
    %v4333 = vpop.permute.xlu0 %4332
    %v4334 = vlaneseq
    %v4335 = vshrl.u32 %v4334, 7
    %v4336 = vsub.s32 %v97, %v4335
    %v4337 = vrot.slane %v4240, %v4336
    %v4338 = vlaneseq
    %v4339 = vshrl.u32 %v4338, 7
    %v4340 = vsub.s32 %v97, %v4339
    %v4341 = vrot.slane %v4243, %v4340
    %v4342 = vlaneseq
    %v4343 = vshrl.u32 %v4342, 7
    %v4344 = vsub.s32 %v97, %v4343
    %v4345 = vrot.slane %v4246, %v4344
    %v4346 = vlaneseq
    %v4347 = vshrl.u32 %v4346, 7
    %v4348 = vsub.s32 %v97, %v4347
    %v4349 = vrot.slane %v4249, %v4348
    %v4350 = vlaneseq
    %v4351 = vshrl.u32 %v4350, 7
    %v4352 = vsub.s32 %v97, %v4351
    %v4353 = vrot.slane %v4252, %v4352
    %v4354 = vlaneseq
    %v4355 = vshrl.u32 %v4354, 7
    %v4356 = vsub.s32 %v97, %v4355
    %v4357 = vrot.slane %v4255, %v4356
    %v4358 = vlaneseq
    %v4359 = vshrl.u32 %v4358, 7
    %v4360 = vsub.s32 %v97, %v4359
    %v4361 = vrot.slane %v4258, %v4360
    %v4362 = vlaneseq
    %v4363 = vshrl.u32 %v4362, 7
    %v4364 = vsub.s32 %v97, %v4363
    %v4365 = vrot.slane %v4261, %v4364
    %v4366 = vlaneseq
    %v4367 = vshrl.u32 %v4366, 7
    %v4368 = vsub.s32 %v97, %v4367
    %v4369 = vrot.slane %v4264, %v4368
    %v4370 = vlaneseq
    %v4371 = vshrl.u32 %v4370, 7
    %v4372 = vsub.s32 %v97, %v4371
    %v4373 = vrot.slane %v4267, %v4372
    %v4374 = vlaneseq
    %v4375 = vshrl.u32 %v4374, 7
    %v4376 = vsub.s32 %v97, %v4375
    %v4377 = vrot.slane %v4270, %v4376
    %v4378 = vlaneseq
    %v4379 = vshrl.u32 %v4378, 7
    %v4380 = vsub.s32 %v97, %v4379
    %v4381 = vrot.slane %v4273, %v4380
    %v4382 = vlaneseq
    %v4383 = vshrl.u32 %v4382, 7
    %v4384 = vsub.s32 %v97, %v4383
    %v4385 = vrot.slane %v4276, %v4384
    %v4386 = vlaneseq
    %v4387 = vshrl.u32 %v4386, 7
    %v4388 = vsub.s32 %v97, %v4387
    %v4389 = vrot.slane %v4279, %v4388
    %v4390 = vlaneseq
    %v4391 = vshrl.u32 %v4390, 7
    %v4392 = vsub.s32 %v97, %v4391
    %v4393 = vrot.slane %v4282, %v4392
    %v4394 = vlaneseq
    %v4395 = vshrl.u32 %v4394, 7
    %v4396 = vsub.s32 %v97, %v4395
    %v4397 = vrot.slane %v4285, %v4396
    %v4398 = vlaneseq
    %v4399 = vshrl.u32 %v4398, 7
    %v4400 = vsub.s32 %v97, %v4399
    %v4401 = vrot.slane %v4288, %v4400
    %v4402 = vlaneseq
    %v4403 = vshrl.u32 %v4402, 7
    %v4404 = vsub.s32 %v97, %v4403
    %v4405 = vrot.slane %v4291, %v4404
    %v4406 = vlaneseq
    %v4407 = vshrl.u32 %v4406, 7
    %v4408 = vsub.s32 %v97, %v4407
    %v4409 = vrot.slane %v4294, %v4408
    %v4410 = vlaneseq
    %v4411 = vshrl.u32 %v4410, 7
    %v4412 = vsub.s32 %v97, %v4411
    %v4413 = vrot.slane %v4297, %v4412
    %v4414 = vlaneseq
    %v4415 = vshrl.u32 %v4414, 7
    %v4416 = vsub.s32 %v97, %v4415
    %v4417 = vrot.slane %v4300, %v4416
    %v4418 = vlaneseq
    %v4419 = vshrl.u32 %v4418, 7
    %v4420 = vsub.s32 %v97, %v4419
    %v4421 = vrot.slane %v4303, %v4420
    %v4422 = vlaneseq
    %v4423 = vshrl.u32 %v4422, 7
    %v4424 = vsub.s32 %v97, %v4423
    %v4425 = vrot.slane %v4306, %v4424
    %v4426 = vlaneseq
    %v4427 = vshrl.u32 %v4426, 7
    %v4428 = vsub.s32 %v97, %v4427
    %v4429 = vrot.slane %v4309, %v4428
    %v4430 = vlaneseq
    %v4431 = vshrl.u32 %v4430, 7
    %v4432 = vsub.s32 %v97, %v4431
    %v4433 = vrot.slane %v4312, %v4432
    %v4434 = vlaneseq
    %v4435 = vshrl.u32 %v4434, 7
    %v4436 = vsub.s32 %v97, %v4435
    %v4437 = vrot.slane %v4315, %v4436
    %v4438 = vlaneseq
    %v4439 = vshrl.u32 %v4438, 7
    %v4440 = vsub.s32 %v97, %v4439
    %v4441 = vrot.slane %v4318, %v4440
    %v4442 = vlaneseq
    %v4443 = vshrl.u32 %v4442, 7
    %v4444 = vsub.s32 %v97, %v4443
    %v4445 = vrot.slane %v4321, %v4444
    %v4446 = vlaneseq
    %v4447 = vshrl.u32 %v4446, 7
    %v4448 = vsub.s32 %v97, %v4447
    %v4449 = vrot.slane %v4324, %v4448
    %v4450 = vlaneseq
    %v4451 = vshrl.u32 %v4450, 7
    %v4452 = vsub.s32 %v97, %v4451
    %v4453 = vrot.slane %v4327, %v4452
    %v4454 = vlaneseq
    %v4455 = vshrl.u32 %v4454, 7
    %v4456 = vsub.s32 %v97, %v4455
    %v4457 = vrot.slane %v4330, %v4456
    %v4458 = vlaneseq
    %v4459 = vshrl.u32 %v4458, 7
    %v4460 = vsub.s32 %v97, %v4459
    %v4461 = vrot.slane %v4333, %v4460
    %v4462 = vsel %vm1505, %v4341, %v4337
    %v4463 = vsel %vm1507, %v4345, %v4462
    %v4464 = vsel %vm1509, %v4349, %v4463
    %v4465 = vsel %vm2102, %v4353, %v4464
    %v4466 = vsel %vm2104, %v4357, %v4465
    %v4467 = vsel %vm2106, %v4361, %v4466
    %v4468 = vsel %vm2108, %v4365, %v4467
    %v4469 = vsel %vm1505, %v4373, %v4369
    %v4470 = vsel %vm1507, %v4377, %v4469
    %v4471 = vsel %vm1509, %v4381, %v4470
    %v4472 = vsel %vm2102, %v4385, %v4471
    %v4473 = vsel %vm2104, %v4389, %v4472
    %v4474 = vsel %vm2106, %v4393, %v4473
    %v4475 = vsel %vm2108, %v4397, %v4474
    %v4476 = vsel %vm1505, %v4405, %v4401
    %v4477 = vsel %vm1507, %v4409, %v4476
    %v4478 = vsel %vm1509, %v4413, %v4477
    %v4479 = vsel %vm2102, %v4417, %v4478
    %v4480 = vsel %vm2104, %v4421, %v4479
    %v4481 = vsel %vm2106, %v4425, %v4480
    %v4482 = vsel %vm2108, %v4429, %v4481
    %v4483 = vsel %vm1505, %v4437, %v4433
    %v4484 = vsel %vm1507, %v4441, %v4483
    %v4485 = vsel %vm1509, %v4445, %v4484
    %v4486 = vsel %vm2102, %v4449, %v4485
    %v4487 = vsel %vm2104, %v4453, %v4486
    %v4488 = vsel %vm2106, %v4457, %v4487
    %v4489 = vsel %vm2108, %v4461, %v4488
    %v4490 = vsel %vm1408, %v4468, 2147483647
    %v4491 = vand.u32 %v4490, 65535
    %v4492 = vshra.s32 %v4490, 16
    %v4493 = vcvt.s32.f32 %v4491
    %v4494 = vcvt.s32.f32 %v4492
    %4495 = vmin.xlane.f32.xlu0 %v4494
    %v4496 = vpop.xlane.xlu0 %4495
    %vm4497 = vcmp.eq.f32.partialorder %v4494, %v4496
    %v4498 = vsel %vm4497, %v4493, inf
    %4499 = vmin.xlane.f32.xlu0 %v4498
    %v4500 = vpop.xlane.xlu0 %4499
    %v4501 = vcvt.f32.s32 %v4500
    %v4502 = vcvt.f32.s32 %v4496
    %v4503 = vshll.u32 %v4502, 16
    %v4504 = vadd.s32 %v4503, %v4501
    %v4505 = vsel %vm1408, %v4475, 2147483647
    %v4506 = vand.u32 %v4505, 65535
    %v4507 = vshra.s32 %v4505, 16
    %v4508 = vcvt.s32.f32 %v4506
    %v4509 = vcvt.s32.f32 %v4507
    %4510 = vmin.xlane.f32.xlu0 %v4509
    %v4511 = vpop.xlane.xlu0 %4510
    %vm4512 = vcmp.eq.f32.partialorder %v4509, %v4511
    %v4513 = vsel %vm4512, %v4508, inf
    %4514 = vmin.xlane.f32.xlu0 %v4513
    %v4515 = vpop.xlane.xlu0 %4514
    %v4516 = vcvt.f32.s32 %v4515
    %v4517 = vcvt.f32.s32 %v4511
    %v4518 = vshll.u32 %v4517, 16
    %v4519 = vadd.s32 %v4518, %v4516
    %v4520 = vsel %vm1408, %v4482, 2147483647
    %v4521 = vand.u32 %v4520, 65535
    %v4522 = vshra.s32 %v4520, 16
    %v4523 = vcvt.s32.f32 %v4521
    %v4524 = vcvt.s32.f32 %v4522
    %4525 = vmin.xlane.f32.xlu0 %v4524
    %v4526 = vpop.xlane.xlu0 %4525
    %vm4527 = vcmp.eq.f32.partialorder %v4524, %v4526
    %v4528 = vsel %vm4527, %v4523, inf
    %4529 = vmin.xlane.f32.xlu0 %v4528
    %v4530 = vpop.xlane.xlu0 %4529
    %v4531 = vcvt.f32.s32 %v4530
    %v4532 = vcvt.f32.s32 %v4526
    %v4533 = vshll.u32 %v4532, 16
    %v4534 = vadd.s32 %v4533, %v4531
    %v4535 = vsel %vm1408, %v4489, 2147483647
    %v4536 = vand.u32 %v4535, 65535
    %v4537 = vshra.s32 %v4535, 16
    %v4538 = vcvt.s32.f32 %v4536
    %v4539 = vcvt.s32.f32 %v4537
    %4540 = vmin.xlane.f32.xlu0 %v4539
    %v4541 = vpop.xlane.xlu0 %4540
    %vm4542 = vcmp.eq.f32.partialorder %v4539, %v4541
    %v4543 = vsel %vm4542, %v4538, inf
    %4544 = vmin.xlane.f32.xlu0 %v4543
    %v4545 = vpop.xlane.xlu0 %4544
    %v4546 = vcvt.f32.s32 %v4545
    %v4547 = vcvt.f32.s32 %v4541
    %v4548 = vshll.u32 %v4547, 16
    %v4549 = vadd.s32 %v4548, %v4546
    %v4550 = vlaneseq
    %v4551 = vshrl.u32 %v4550, 7
    %v4552 = vsub.s32 %v97, %v4551
    %v4553 = vrot.slane %v4504, %v4552
    %v4554 = vlaneseq
    %v4555 = vshrl.u32 %v4554, 7
    %v4556 = vsub.s32 %v97, %v4555
    %v4557 = vrot.slane %v4519, %v4556
    %v4558 = vlaneseq
    %v4559 = vshrl.u32 %v4558, 7
    %v4560 = vsub.s32 %v97, %v4559
    %v4561 = vrot.slane %v4534, %v4560
    %v4562 = vlaneseq
    %v4563 = vshrl.u32 %v4562, 7
    %v4564 = vsub.s32 %v97, %v4563
    %v4565 = vrot.slane %v4549, %v4564
    %v4566 = vsel %vm1505, %v4557, %v4553
    %v4567 = vsel %vm1507, %v4561, %v4566
    %v4568 = vsel %vm1509, %v4565, %v4567
    %4569 = vst.msk [vmem:[#allocation5 + $0x10] sm:$0xf] %vm1511, %v4568
    %v4570 = vld [vmem:[#allocation4 + $0x10] sm:$0xf]
    %v4572 = vlaneseq
    %v4573 = vshrl.u32 %v4572, 7
    %v4574 = vsub.s32 0, %v4573
    %v4575 = vrot.slane %v4570, %v4574
    %4577 = vbcast.lane.b32.xlu0 %v4575, 256
    %v4578 = vpop.permute.xlu0 %4577
    %v4579 = vlaneseq
    %v4580 = vshrl.u32 %v4579, 7
    %v4581 = vsub.s32 1, %v4580
    %v4582 = vrot.slane %v4570, %v4581
    %4584 = vbcast.lane.b32.xlu0 %v4582, 256
    %v4585 = vpop.permute.xlu0 %4584
    %v4586 = vlaneseq
    %v4587 = vshrl.u32 %v4586, 7
    %v4588 = vsub.s32 2, %v4587
    %v4589 = vrot.slane %v4570, %v4588
    %4591 = vbcast.lane.b32.xlu0 %v4589, 256
    %v4592 = vpop.permute.xlu0 %4591
    %v4593 = vlaneseq
    %v4594 = vshrl.u32 %v4593, 7
    %v4595 = vsub.s32 3, %v4594
    %v4596 = vrot.slane %v4570, %v4595
    %4598 = vbcast.lane.b32.xlu0 %v4596, 256
    %v4599 = vpop.permute.xlu0 %4598
    %v4604 = vadd.f32 %v4000, %v4578
    %v4605 = vadd.f32 %v4003, %v4585
    %v4606 = vadd.f32 %v4006, %v4592
    %v4607 = vadd.f32 %v4009, %v4599
    %v4608 = vadd.f32 %v4604, %v1561
    %v4609 = vadd.f32 %v4604, %v1568
    %v4610 = vadd.f32 %v4604, %v1575
    %v4611 = vadd.f32 %v4604, %v1582
    %v4612 = vadd.f32 %v4604, %v1589
    %v4613 = vadd.f32 %v4604, %v1596
    %v4614 = vadd.f32 %v4604, %v1603
    %v4615 = vadd.f32 %v4604, %v1610
    %v4616 = vadd.f32 %v4605, %v1617
    %v4617 = vadd.f32 %v4605, %v1624
    %v4618 = vadd.f32 %v4605, %v1631
    %v4619 = vadd.f32 %v4605, %v1638
    %v4620 = vadd.f32 %v4605, %v1645
    %v4621 = vadd.f32 %v4605, %v1652
    %v4622 = vadd.f32 %v4605, %v1659
    %v4623 = vadd.f32 %v4605, %v1666
    %v4624 = vadd.f32 %v4606, %v1673
    %v4625 = vadd.f32 %v4606, %v1680
    %v4626 = vadd.f32 %v4606, %v1687
    %v4627 = vadd.f32 %v4606, %v1694
    %v4628 = vadd.f32 %v4606, %v1701
    %v4629 = vadd.f32 %v4606, %v1708
    %v4630 = vadd.f32 %v4606, %v1715
    %v4631 = vadd.f32 %v4606, %v1722
    %v4632 = vadd.f32 %v4607, %v1729
    %v4633 = vadd.f32 %v4607, %v1736
    %v4634 = vadd.f32 %v4607, %v1743
    %v4635 = vadd.f32 %v4607, %v1750
    %v4636 = vadd.f32 %v4607, %v1757
    %v4637 = vadd.f32 %v4607, %v1764
    %v4638 = vadd.f32 %v4607, %v1771
    %v4639 = vadd.f32 %v4607, %v1778
    %4672 = vset.pattern.permute.xlu0 0
    %4673 = vperm.xlu0 %4672, %v4608
    %v4674 = vpop.permute.xlu0 %4673
    %4675 = vset.pattern.permute.xlu0 0
    %4676 = vperm.xlu0 %4675, %v4609
    %v4677 = vpop.permute.xlu0 %4676
    %4678 = vset.pattern.permute.xlu0 0
    %4679 = vperm.xlu0 %4678, %v4610
    %v4680 = vpop.permute.xlu0 %4679
    %4681 = vset.pattern.permute.xlu0 0
    %4682 = vperm.xlu0 %4681, %v4611
    %v4683 = vpop.permute.xlu0 %4682
    %4684 = vset.pattern.permute.xlu0 0
    %4685 = vperm.xlu0 %4684, %v4612
    %v4686 = vpop.permute.xlu0 %4685
    %4687 = vset.pattern.permute.xlu0 0
    %4688 = vperm.xlu0 %4687, %v4613
    %v4689 = vpop.permute.xlu0 %4688
    %4690 = vset.pattern.permute.xlu0 0
    %4691 = vperm.xlu0 %4690, %v4614
    %v4692 = vpop.permute.xlu0 %4691
    %4693 = vset.pattern.permute.xlu0 0
    %4694 = vperm.xlu0 %4693, %v4615
    %v4695 = vpop.permute.xlu0 %4694
    %4696 = vset.pattern.permute.xlu0 0
    %4697 = vperm.xlu0 %4696, %v4616
    %v4698 = vpop.permute.xlu0 %4697
    %4699 = vset.pattern.permute.xlu0 0
    %4700 = vperm.xlu0 %4699, %v4617
    %v4701 = vpop.permute.xlu0 %4700
    %4702 = vset.pattern.permute.xlu0 0
    %4703 = vperm.xlu0 %4702, %v4618
    %v4704 = vpop.permute.xlu0 %4703
    %4705 = vset.pattern.permute.xlu0 0
    %4706 = vperm.xlu0 %4705, %v4619
    %v4707 = vpop.permute.xlu0 %4706
    %4708 = vset.pattern.permute.xlu0 0
    %4709 = vperm.xlu0 %4708, %v4620
    %v4710 = vpop.permute.xlu0 %4709
    %4711 = vset.pattern.permute.xlu0 0
    %4712 = vperm.xlu0 %4711, %v4621
    %v4713 = vpop.permute.xlu0 %4712
    %4714 = vset.pattern.permute.xlu0 0
    %4715 = vperm.xlu0 %4714, %v4622
    %v4716 = vpop.permute.xlu0 %4715
    %4717 = vset.pattern.permute.xlu0 0
    %4718 = vperm.xlu0 %4717, %v4623
    %v4719 = vpop.permute.xlu0 %4718
    %4720 = vset.pattern.permute.xlu0 0
    %4721 = vperm.xlu0 %4720, %v4624
    %v4722 = vpop.permute.xlu0 %4721
    %4723 = vset.pattern.permute.xlu0 0
    %4724 = vperm.xlu0 %4723, %v4625
    %v4725 = vpop.permute.xlu0 %4724
    %4726 = vset.pattern.permute.xlu0 0
    %4727 = vperm.xlu0 %4726, %v4626
    %v4728 = vpop.permute.xlu0 %4727
    %4729 = vset.pattern.permute.xlu0 0
    %4730 = vperm.xlu0 %4729, %v4627
    %v4731 = vpop.permute.xlu0 %4730
    %4732 = vset.pattern.permute.xlu0 0
    %4733 = vperm.xlu0 %4732, %v4628
    %v4734 = vpop.permute.xlu0 %4733
    %4735 = vset.pattern.permute.xlu0 0
    %4736 = vperm.xlu0 %4735, %v4629
    %v4737 = vpop.permute.xlu0 %4736
    %4738 = vset.pattern.permute.xlu0 0
    %4739 = vperm.xlu0 %4738, %v4630
    %v4740 = vpop.permute.xlu0 %4739
    %4741 = vset.pattern.permute.xlu0 0
    %4742 = vperm.xlu0 %4741, %v4631
    %v4743 = vpop.permute.xlu0 %4742
    %4744 = vset.pattern.permute.xlu0 0
    %4745 = vperm.xlu0 %4744, %v4632
    %v4746 = vpop.permute.xlu0 %4745
    %4747 = vset.pattern.permute.xlu0 0
    %4748 = vperm.xlu0 %4747, %v4633
    %v4749 = vpop.permute.xlu0 %4748
    %4750 = vset.pattern.permute.xlu0 0
    %4751 = vperm.xlu0 %4750, %v4634
    %v4752 = vpop.permute.xlu0 %4751
    %4753 = vset.pattern.permute.xlu0 0
    %4754 = vperm.xlu0 %4753, %v4635
    %v4755 = vpop.permute.xlu0 %4754
    %4756 = vset.pattern.permute.xlu0 0
    %4757 = vperm.xlu0 %4756, %v4636
    %v4758 = vpop.permute.xlu0 %4757
    %4759 = vset.pattern.permute.xlu0 0
    %4760 = vperm.xlu0 %4759, %v4637
    %v4761 = vpop.permute.xlu0 %4760
    %4762 = vset.pattern.permute.xlu0 0
    %4763 = vperm.xlu0 %4762, %v4638
    %v4764 = vpop.permute.xlu0 %4763
    %4765 = vset.pattern.permute.xlu0 0
    %4766 = vperm.xlu0 %4765, %v4639
    %v4767 = vpop.permute.xlu0 %4766
    %v4768 = vlaneseq
    %v4769 = vshrl.u32 %v4768, 7
    %v4770 = vsub.s32 %v97, %v4769
    %v4771 = vrot.slane %v4674, %v4770
    %v4772 = vlaneseq
    %v4773 = vshrl.u32 %v4772, 7
    %v4774 = vsub.s32 %v97, %v4773
    %v4775 = vrot.slane %v4677, %v4774
    %v4776 = vlaneseq
    %v4777 = vshrl.u32 %v4776, 7
    %v4778 = vsub.s32 %v97, %v4777
    %v4779 = vrot.slane %v4680, %v4778
    %v4780 = vlaneseq
    %v4781 = vshrl.u32 %v4780, 7
    %v4782 = vsub.s32 %v97, %v4781
    %v4783 = vrot.slane %v4683, %v4782
    %v4784 = vlaneseq
    %v4785 = vshrl.u32 %v4784, 7
    %v4786 = vsub.s32 %v97, %v4785
    %v4787 = vrot.slane %v4686, %v4786
    %v4788 = vlaneseq
    %v4789 = vshrl.u32 %v4788, 7
    %v4790 = vsub.s32 %v97, %v4789
    %v4791 = vrot.slane %v4689, %v4790
    %v4792 = vlaneseq
    %v4793 = vshrl.u32 %v4792, 7
    %v4794 = vsub.s32 %v97, %v4793
    %v4795 = vrot.slane %v4692, %v4794
    %v4796 = vlaneseq
    %v4797 = vshrl.u32 %v4796, 7
    %v4798 = vsub.s32 %v97, %v4797
    %v4799 = vrot.slane %v4695, %v4798
    %v4800 = vlaneseq
    %v4801 = vshrl.u32 %v4800, 7
    %v4802 = vsub.s32 %v97, %v4801
    %v4803 = vrot.slane %v4698, %v4802
    %v4804 = vlaneseq
    %v4805 = vshrl.u32 %v4804, 7
    %v4806 = vsub.s32 %v97, %v4805
    %v4807 = vrot.slane %v4701, %v4806
    %v4808 = vlaneseq
    %v4809 = vshrl.u32 %v4808, 7
    %v4810 = vsub.s32 %v97, %v4809
    %v4811 = vrot.slane %v4704, %v4810
    %v4812 = vlaneseq
    %v4813 = vshrl.u32 %v4812, 7
    %v4814 = vsub.s32 %v97, %v4813
    %v4815 = vrot.slane %v4707, %v4814
    %v4816 = vlaneseq
    %v4817 = vshrl.u32 %v4816, 7
    %v4818 = vsub.s32 %v97, %v4817
    %v4819 = vrot.slane %v4710, %v4818
    %v4820 = vlaneseq
    %v4821 = vshrl.u32 %v4820, 7
    %v4822 = vsub.s32 %v97, %v4821
    %v4823 = vrot.slane %v4713, %v4822
    %v4824 = vlaneseq
    %v4825 = vshrl.u32 %v4824, 7
    %v4826 = vsub.s32 %v97, %v4825
    %v4827 = vrot.slane %v4716, %v4826
    %v4828 = vlaneseq
    %v4829 = vshrl.u32 %v4828, 7
    %v4830 = vsub.s32 %v97, %v4829
    %v4831 = vrot.slane %v4719, %v4830
    %v4832 = vlaneseq
    %v4833 = vshrl.u32 %v4832, 7
    %v4834 = vsub.s32 %v97, %v4833
    %v4835 = vrot.slane %v4722, %v4834
    %v4836 = vlaneseq
    %v4837 = vshrl.u32 %v4836, 7
    %v4838 = vsub.s32 %v97, %v4837
    %v4839 = vrot.slane %v4725, %v4838
    %v4840 = vlaneseq
    %v4841 = vshrl.u32 %v4840, 7
    %v4842 = vsub.s32 %v97, %v4841
    %v4843 = vrot.slane %v4728, %v4842
    %v4844 = vlaneseq
    %v4845 = vshrl.u32 %v4844, 7
    %v4846 = vsub.s32 %v97, %v4845
    %v4847 = vrot.slane %v4731, %v4846
    %v4848 = vlaneseq
    %v4849 = vshrl.u32 %v4848, 7
    %v4850 = vsub.s32 %v97, %v4849
    %v4851 = vrot.slane %v4734, %v4850
    %v4852 = vlaneseq
    %v4853 = vshrl.u32 %v4852, 7
    %v4854 = vsub.s32 %v97, %v4853
    %v4855 = vrot.slane %v4737, %v4854
    %v4856 = vlaneseq
    %v4857 = vshrl.u32 %v4856, 7
    %v4858 = vsub.s32 %v97, %v4857
    %v4859 = vrot.slane %v4740, %v4858
    %v4860 = vlaneseq
    %v4861 = vshrl.u32 %v4860, 7
    %v4862 = vsub.s32 %v97, %v4861
    %v4863 = vrot.slane %v4743, %v4862
    %v4864 = vlaneseq
    %v4865 = vshrl.u32 %v4864, 7
    %v4866 = vsub.s32 %v97, %v4865
    %v4867 = vrot.slane %v4746, %v4866
    %v4868 = vlaneseq
    %v4869 = vshrl.u32 %v4868, 7
    %v4870 = vsub.s32 %v97, %v4869
    %v4871 = vrot.slane %v4749, %v4870
    %v4872 = vlaneseq
    %v4873 = vshrl.u32 %v4872, 7
    %v4874 = vsub.s32 %v97, %v4873
    %v4875 = vrot.slane %v4752, %v4874
    %v4876 = vlaneseq
    %v4877 = vshrl.u32 %v4876, 7
    %v4878 = vsub.s32 %v97, %v4877
    %v4879 = vrot.slane %v4755, %v4878
    %v4880 = vlaneseq
    %v4881 = vshrl.u32 %v4880, 7
    %v4882 = vsub.s32 %v97, %v4881
    %v4883 = vrot.slane %v4758, %v4882
    %v4884 = vlaneseq
    %v4885 = vshrl.u32 %v4884, 7
    %v4886 = vsub.s32 %v97, %v4885
    %v4887 = vrot.slane %v4761, %v4886
    %v4888 = vlaneseq
    %v4889 = vshrl.u32 %v4888, 7
    %v4890 = vsub.s32 %v97, %v4889
    %v4891 = vrot.slane %v4764, %v4890
    %v4892 = vlaneseq
    %v4893 = vshrl.u32 %v4892, 7
    %v4894 = vsub.s32 %v97, %v4893
    %v4895 = vrot.slane %v4767, %v4894
    %v4896 = vsel %vm1505, %v4775, %v4771
    %v4897 = vsel %vm1507, %v4779, %v4896
    %v4898 = vsel %vm1509, %v4783, %v4897
    %v4899 = vsel %vm2102, %v4787, %v4898
    %v4900 = vsel %vm2104, %v4791, %v4899
    %v4901 = vsel %vm2106, %v4795, %v4900
    %v4902 = vsel %vm2108, %v4799, %v4901
    %v4903 = vsel %vm1505, %v4807, %v4803
    %v4904 = vsel %vm1507, %v4811, %v4903
    %v4905 = vsel %vm1509, %v4815, %v4904
    %v4906 = vsel %vm2102, %v4819, %v4905
    %v4907 = vsel %vm2104, %v4823, %v4906
    %v4908 = vsel %vm2106, %v4827, %v4907
    %v4909 = vsel %vm2108, %v4831, %v4908
    %v4910 = vsel %vm1505, %v4839, %v4835
    %v4911 = vsel %vm1507, %v4843, %v4910
    %v4912 = vsel %vm1509, %v4847, %v4911
    %v4913 = vsel %vm2102, %v4851, %v4912
    %v4914 = vsel %vm2104, %v4855, %v4913
    %v4915 = vsel %vm2106, %v4859, %v4914
    %v4916 = vsel %vm2108, %v4863, %v4915
    %v4917 = vsel %vm1505, %v4871, %v4867
    %v4918 = vsel %vm1507, %v4875, %v4917
    %v4919 = vsel %vm1509, %v4879, %v4918
    %v4920 = vsel %vm2102, %v4883, %v4919
    %v4921 = vsel %vm2104, %v4887, %v4920
    %v4922 = vsel %vm2106, %v4891, %v4921
    %v4923 = vsel %vm2108, %v4895, %v4922
    %v4928 = vsel %vm1408, %v4902, -inf
    %4929 = vmax.xlane.f32.xlu0 %v4928
    %v4930 = vpop.xlane.xlu0 %4929
    %v4931 = vsel %vm1408, %v4909, -inf
    %4932 = vmax.xlane.f32.xlu0 %v4931
    %v4933 = vpop.xlane.xlu0 %4932
    %v4934 = vsel %vm1408, %v4916, -inf
    %4935 = vmax.xlane.f32.xlu0 %v4934
    %v4936 = vpop.xlane.xlu0 %4935
    %v4937 = vsel %vm1408, %v4923, -inf
    %4938 = vmax.xlane.f32.xlu0 %v4937
    %v4939 = vpop.xlane.xlu0 %4938
    %v4944 = vlaneseq
    %v4945 = vshrl.u32 %v4944, 7
    %v4946 = vsub.s32 0, %v4945
    %v4947 = vrot.slane %v4930, %v4946
    %v4948 = vlaneseq
    %v4949 = vshrl.u32 %v4948, 7
    %v4950 = vsub.s32 1, %v4949
    %v4951 = vrot.slane %v4930, %v4950
    %v4952 = vlaneseq
    %v4953 = vshrl.u32 %v4952, 7
    %v4954 = vsub.s32 2, %v4953
    %v4955 = vrot.slane %v4930, %v4954
    %v4956 = vlaneseq
    %v4957 = vshrl.u32 %v4956, 7
    %v4958 = vsub.s32 3, %v4957
    %v4959 = vrot.slane %v4930, %v4958
    %v4960 = vlaneseq
    %v4961 = vshrl.u32 %v4960, 7
    %v4962 = vsub.s32 4, %v4961
    %v4963 = vrot.slane %v4930, %v4962
    %v4964 = vlaneseq
    %v4965 = vshrl.u32 %v4964, 7
    %v4966 = vsub.s32 5, %v4965
    %v4967 = vrot.slane %v4930, %v4966
    %v4968 = vlaneseq
    %v4969 = vshrl.u32 %v4968, 7
    %v4970 = vsub.s32 6, %v4969
    %v4971 = vrot.slane %v4930, %v4970
    %v4972 = vlaneseq
    %v4973 = vshrl.u32 %v4972, 7
    %v4974 = vsub.s32 7, %v4973
    %v4975 = vrot.slane %v4930, %v4974
    %v4976 = vlaneseq
    %v4977 = vshrl.u32 %v4976, 7
    %v4978 = vsub.s32 0, %v4977
    %v4979 = vrot.slane %v4933, %v4978
    %v4980 = vlaneseq
    %v4981 = vshrl.u32 %v4980, 7
    %v4982 = vsub.s32 1, %v4981
    %v4983 = vrot.slane %v4933, %v4982
    %v4984 = vlaneseq
    %v4985 = vshrl.u32 %v4984, 7
    %v4986 = vsub.s32 2, %v4985
    %v4987 = vrot.slane %v4933, %v4986
    %v4988 = vlaneseq
    %v4989 = vshrl.u32 %v4988, 7
    %v4990 = vsub.s32 3, %v4989
    %v4991 = vrot.slane %v4933, %v4990
    %v4992 = vlaneseq
    %v4993 = vshrl.u32 %v4992, 7
    %v4994 = vsub.s32 4, %v4993
    %v4995 = vrot.slane %v4933, %v4994
    %v4996 = vlaneseq
    %v4997 = vshrl.u32 %v4996, 7
    %v4998 = vsub.s32 5, %v4997
    %v4999 = vrot.slane %v4933, %v4998
    %v5000 = vlaneseq
    %v5001 = vshrl.u32 %v5000, 7
    %v5002 = vsub.s32 6, %v5001
    %v5003 = vrot.slane %v4933, %v5002
    %v5004 = vlaneseq
    %v5005 = vshrl.u32 %v5004, 7
    %v5006 = vsub.s32 7, %v5005
    %v5007 = vrot.slane %v4933, %v5006
    %v5008 = vlaneseq
    %v5009 = vshrl.u32 %v5008, 7
    %v5010 = vsub.s32 0, %v5009
    %v5011 = vrot.slane %v4936, %v5010
    %v5012 = vlaneseq
    %v5013 = vshrl.u32 %v5012, 7
    %v5014 = vsub.s32 1, %v5013
    %v5015 = vrot.slane %v4936, %v5014
    %v5016 = vlaneseq
    %v5017 = vshrl.u32 %v5016, 7
    %v5018 = vsub.s32 2, %v5017
    %v5019 = vrot.slane %v4936, %v5018
    %v5020 = vlaneseq
    %v5021 = vshrl.u32 %v5020, 7
    %v5022 = vsub.s32 3, %v5021
    %v5023 = vrot.slane %v4936, %v5022
    %v5024 = vlaneseq
    %v5025 = vshrl.u32 %v5024, 7
    %v5026 = vsub.s32 4, %v5025
    %v5027 = vrot.slane %v4936, %v5026
    %v5028 = vlaneseq
    %v5029 = vshrl.u32 %v5028, 7
    %v5030 = vsub.s32 5, %v5029
    %v5031 = vrot.slane %v4936, %v5030
    %v5032 = vlaneseq
    %v5033 = vshrl.u32 %v5032, 7
    %v5034 = vsub.s32 6, %v5033
    %v5035 = vrot.slane %v4936, %v5034
    %v5036 = vlaneseq
    %v5037 = vshrl.u32 %v5036, 7
    %v5038 = vsub.s32 7, %v5037
    %v5039 = vrot.slane %v4936, %v5038
    %v5040 = vlaneseq
    %v5041 = vshrl.u32 %v5040, 7
    %v5042 = vsub.s32 0, %v5041
    %v5043 = vrot.slane %v4939, %v5042
    %v5044 = vlaneseq
    %v5045 = vshrl.u32 %v5044, 7
    %v5046 = vsub.s32 1, %v5045
    %v5047 = vrot.slane %v4939, %v5046
    %v5048 = vlaneseq
    %v5049 = vshrl.u32 %v5048, 7
    %v5050 = vsub.s32 2, %v5049
    %v5051 = vrot.slane %v4939, %v5050
    %v5052 = vlaneseq
    %v5053 = vshrl.u32 %v5052, 7
    %v5054 = vsub.s32 3, %v5053
    %v5055 = vrot.slane %v4939, %v5054
    %v5056 = vlaneseq
    %v5057 = vshrl.u32 %v5056, 7
    %v5058 = vsub.s32 4, %v5057
    %v5059 = vrot.slane %v4939, %v5058
    %v5060 = vlaneseq
    %v5061 = vshrl.u32 %v5060, 7
    %v5062 = vsub.s32 5, %v5061
    %v5063 = vrot.slane %v4939, %v5062
    %v5064 = vlaneseq
    %v5065 = vshrl.u32 %v5064, 7
    %v5066 = vsub.s32 6, %v5065
    %v5067 = vrot.slane %v4939, %v5066
    %v5068 = vlaneseq
    %v5069 = vshrl.u32 %v5068, 7
    %v5070 = vsub.s32 7, %v5069
    %v5071 = vrot.slane %v4939, %v5070
    %vm5104 = vcmp.eq.f32.partialorder %v4608, %v4947
    %vm5105 = vcmp.eq.f32.partialorder %v4609, %v4951
    %vm5106 = vcmp.eq.f32.partialorder %v4610, %v4955
    %vm5107 = vcmp.eq.f32.partialorder %v4611, %v4959
    %vm5108 = vcmp.eq.f32.partialorder %v4612, %v4963
    %vm5109 = vcmp.eq.f32.partialorder %v4613, %v4967
    %vm5110 = vcmp.eq.f32.partialorder %v4614, %v4971
    %vm5111 = vcmp.eq.f32.partialorder %v4615, %v4975
    %vm5112 = vcmp.eq.f32.partialorder %v4616, %v4979
    %vm5113 = vcmp.eq.f32.partialorder %v4617, %v4983
    %vm5114 = vcmp.eq.f32.partialorder %v4618, %v4987
    %vm5115 = vcmp.eq.f32.partialorder %v4619, %v4991
    %vm5116 = vcmp.eq.f32.partialorder %v4620, %v4995
    %vm5117 = vcmp.eq.f32.partialorder %v4621, %v4999
    %vm5118 = vcmp.eq.f32.partialorder %v4622, %v5003
    %vm5119 = vcmp.eq.f32.partialorder %v4623, %v5007
    %vm5120 = vcmp.eq.f32.partialorder %v4624, %v5011
    %vm5121 = vcmp.eq.f32.partialorder %v4625, %v5015
    %vm5122 = vcmp.eq.f32.partialorder %v4626, %v5019
    %vm5123 = vcmp.eq.f32.partialorder %v4627, %v5023
    %vm5124 = vcmp.eq.f32.partialorder %v4628, %v5027
    %vm5125 = vcmp.eq.f32.partialorder %v4629, %v5031
    %vm5126 = vcmp.eq.f32.partialorder %v4630, %v5035
    %vm5127 = vcmp.eq.f32.partialorder %v4631, %v5039
    %vm5128 = vcmp.eq.f32.partialorder %v4632, %v5043
    %vm5129 = vcmp.eq.f32.partialorder %v4633, %v5047
    %vm5130 = vcmp.eq.f32.partialorder %v4634, %v5051
    %vm5131 = vcmp.eq.f32.partialorder %v4635, %v5055
    %vm5132 = vcmp.eq.f32.partialorder %v4636, %v5059
    %vm5133 = vcmp.eq.f32.partialorder %v4637, %v5063
    %vm5134 = vcmp.eq.f32.partialorder %v4638, %v5067
    %vm5135 = vcmp.eq.f32.partialorder %v4639, %v5071
    %v5136 = vsel %vm5104, %v2345, 8
    %v5137 = vsel %vm5105, %v2345, 8
    %v5138 = vsel %vm5106, %v2345, 8
    %v5139 = vsel %vm5107, %v2345, 8
    %v5140 = vsel %vm5108, %v2345, 8
    %v5141 = vsel %vm5109, %v2345, 8
    %v5142 = vsel %vm5110, %v2345, 8
    %v5143 = vsel %vm5111, %v2345, 8
    %v5144 = vsel %vm5112, %v2345, 8
    %v5145 = vsel %vm5113, %v2345, 8
    %v5146 = vsel %vm5114, %v2345, 8
    %v5147 = vsel %vm5115, %v2345, 8
    %v5148 = vsel %vm5116, %v2345, 8
    %v5149 = vsel %vm5117, %v2345, 8
    %v5150 = vsel %vm5118, %v2345, 8
    %v5151 = vsel %vm5119, %v2345, 8
    %v5152 = vsel %vm5120, %v2345, 8
    %v5153 = vsel %vm5121, %v2345, 8
    %v5154 = vsel %vm5122, %v2345, 8
    %v5155 = vsel %vm5123, %v2345, 8
    %v5156 = vsel %vm5124, %v2345, 8
    %v5157 = vsel %vm5125, %v2345, 8
    %v5158 = vsel %vm5126, %v2345, 8
    %v5159 = vsel %vm5127, %v2345, 8
    %v5160 = vsel %vm5128, %v2345, 8
    %v5161 = vsel %vm5129, %v2345, 8
    %v5162 = vsel %vm5130, %v2345, 8
    %v5163 = vsel %vm5131, %v2345, 8
    %v5164 = vsel %vm5132, %v2345, 8
    %v5165 = vsel %vm5133, %v2345, 8
    %v5166 = vsel %vm5134, %v2345, 8
    %v5167 = vsel %vm5135, %v2345, 8
    %5168 = vset.pattern.permute.xlu0 0
    %5169 = vperm.xlu0 %5168, %v5136
    %v5170 = vpop.permute.xlu0 %5169
    %5171 = vset.pattern.permute.xlu0 0
    %5172 = vperm.xlu0 %5171, %v5137
    %v5173 = vpop.permute.xlu0 %5172
    %5174 = vset.pattern.permute.xlu0 0
    %5175 = vperm.xlu0 %5174, %v5138
    %v5176 = vpop.permute.xlu0 %5175
    %5177 = vset.pattern.permute.xlu0 0
    %5178 = vperm.xlu0 %5177, %v5139
    %v5179 = vpop.permute.xlu0 %5178
    %5180 = vset.pattern.permute.xlu0 0
    %5181 = vperm.xlu0 %5180, %v5140
    %v5182 = vpop.permute.xlu0 %5181
    %5183 = vset.pattern.permute.xlu0 0
    %5184 = vperm.xlu0 %5183, %v5141
    %v5185 = vpop.permute.xlu0 %5184
    %5186 = vset.pattern.permute.xlu0 0
    %5187 = vperm.xlu0 %5186, %v5142
    %v5188 = vpop.permute.xlu0 %5187
    %5189 = vset.pattern.permute.xlu0 0
    %5190 = vperm.xlu0 %5189, %v5143
    %v5191 = vpop.permute.xlu0 %5190
    %5192 = vset.pattern.permute.xlu0 0
    %5193 = vperm.xlu0 %5192, %v5144
    %v5194 = vpop.permute.xlu0 %5193
    %5195 = vset.pattern.permute.xlu0 0
    %5196 = vperm.xlu0 %5195, %v5145
    %v5197 = vpop.permute.xlu0 %5196
    %5198 = vset.pattern.permute.xlu0 0
    %5199 = vperm.xlu0 %5198, %v5146
    %v5200 = vpop.permute.xlu0 %5199
    %5201 = vset.pattern.permute.xlu0 0
    %5202 = vperm.xlu0 %5201, %v5147
    %v5203 = vpop.permute.xlu0 %5202
    %5204 = vset.pattern.permute.xlu0 0
    %5205 = vperm.xlu0 %5204, %v5148
    %v5206 = vpop.permute.xlu0 %5205
    %5207 = vset.pattern.permute.xlu0 0
    %5208 = vperm.xlu0 %5207, %v5149
    %v5209 = vpop.permute.xlu0 %5208
    %5210 = vset.pattern.permute.xlu0 0
    %5211 = vperm.xlu0 %5210, %v5150
    %v5212 = vpop.permute.xlu0 %5211
    %5213 = vset.pattern.permute.xlu0 0
    %5214 = vperm.xlu0 %5213, %v5151
    %v5215 = vpop.permute.xlu0 %5214
    %5216 = vset.pattern.permute.xlu0 0
    %5217 = vperm.xlu0 %5216, %v5152
    %v5218 = vpop.permute.xlu0 %5217
    %5219 = vset.pattern.permute.xlu0 0
    %5220 = vperm.xlu0 %5219, %v5153
    %v5221 = vpop.permute.xlu0 %5220
    %5222 = vset.pattern.permute.xlu0 0
    %5223 = vperm.xlu0 %5222, %v5154
    %v5224 = vpop.permute.xlu0 %5223
    %5225 = vset.pattern.permute.xlu0 0
    %5226 = vperm.xlu0 %5225, %v5155
    %v5227 = vpop.permute.xlu0 %5226
    %5228 = vset.pattern.permute.xlu0 0
    %5229 = vperm.xlu0 %5228, %v5156
    %v5230 = vpop.permute.xlu0 %5229
    %5231 = vset.pattern.permute.xlu0 0
    %5232 = vperm.xlu0 %5231, %v5157
    %v5233 = vpop.permute.xlu0 %5232
    %5234 = vset.pattern.permute.xlu0 0
    %5235 = vperm.xlu0 %5234, %v5158
    %v5236 = vpop.permute.xlu0 %5235
    %5237 = vset.pattern.permute.xlu0 0
    %5238 = vperm.xlu0 %5237, %v5159
    %v5239 = vpop.permute.xlu0 %5238
    %5240 = vset.pattern.permute.xlu0 0
    %5241 = vperm.xlu0 %5240, %v5160
    %v5242 = vpop.permute.xlu0 %5241
    %5243 = vset.pattern.permute.xlu0 0
    %5244 = vperm.xlu0 %5243, %v5161
    %v5245 = vpop.permute.xlu0 %5244
    %5246 = vset.pattern.permute.xlu0 0
    %5247 = vperm.xlu0 %5246, %v5162
    %v5248 = vpop.permute.xlu0 %5247
    %5249 = vset.pattern.permute.xlu0 0
    %5250 = vperm.xlu0 %5249, %v5163
    %v5251 = vpop.permute.xlu0 %5250
    %5252 = vset.pattern.permute.xlu0 0
    %5253 = vperm.xlu0 %5252, %v5164
    %v5254 = vpop.permute.xlu0 %5253
    %5255 = vset.pattern.permute.xlu0 0
    %5256 = vperm.xlu0 %5255, %v5165
    %v5257 = vpop.permute.xlu0 %5256
    %5258 = vset.pattern.permute.xlu0 0
    %5259 = vperm.xlu0 %5258, %v5166
    %v5260 = vpop.permute.xlu0 %5259
    %5261 = vset.pattern.permute.xlu0 0
    %5262 = vperm.xlu0 %5261, %v5167
    %v5263 = vpop.permute.xlu0 %5262
    %v5264 = vlaneseq
    %v5265 = vshrl.u32 %v5264, 7
    %v5266 = vsub.s32 %v97, %v5265
    %v5267 = vrot.slane %v5170, %v5266
    %v5268 = vlaneseq
    %v5269 = vshrl.u32 %v5268, 7
    %v5270 = vsub.s32 %v97, %v5269
    %v5271 = vrot.slane %v5173, %v5270
    %v5272 = vlaneseq
    %v5273 = vshrl.u32 %v5272, 7
    %v5274 = vsub.s32 %v97, %v5273
    %v5275 = vrot.slane %v5176, %v5274
    %v5276 = vlaneseq
    %v5277 = vshrl.u32 %v5276, 7
    %v5278 = vsub.s32 %v97, %v5277
    %v5279 = vrot.slane %v5179, %v5278
    %v5280 = vlaneseq
    %v5281 = vshrl.u32 %v5280, 7
    %v5282 = vsub.s32 %v97, %v5281
    %v5283 = vrot.slane %v5182, %v5282
    %v5284 = vlaneseq
    %v5285 = vshrl.u32 %v5284, 7
    %v5286 = vsub.s32 %v97, %v5285
    %v5287 = vrot.slane %v5185, %v5286
    %v5288 = vlaneseq
    %v5289 = vshrl.u32 %v5288, 7
    %v5290 = vsub.s32 %v97, %v5289
    %v5291 = vrot.slane %v5188, %v5290
    %v5292 = vlaneseq
    %v5293 = vshrl.u32 %v5292, 7
    %v5294 = vsub.s32 %v97, %v5293
    %v5295 = vrot.slane %v5191, %v5294
    %v5296 = vlaneseq
    %v5297 = vshrl.u32 %v5296, 7
    %v5298 = vsub.s32 %v97, %v5297
    %v5299 = vrot.slane %v5194, %v5298
    %v5300 = vlaneseq
    %v5301 = vshrl.u32 %v5300, 7
    %v5302 = vsub.s32 %v97, %v5301
    %v5303 = vrot.slane %v5197, %v5302
    %v5304 = vlaneseq
    %v5305 = vshrl.u32 %v5304, 7
    %v5306 = vsub.s32 %v97, %v5305
    %v5307 = vrot.slane %v5200, %v5306
    %v5308 = vlaneseq
    %v5309 = vshrl.u32 %v5308, 7
    %v5310 = vsub.s32 %v97, %v5309
    %v5311 = vrot.slane %v5203, %v5310
    %v5312 = vlaneseq
    %v5313 = vshrl.u32 %v5312, 7
    %v5314 = vsub.s32 %v97, %v5313
    %v5315 = vrot.slane %v5206, %v5314
    %v5316 = vlaneseq
    %v5317 = vshrl.u32 %v5316, 7
    %v5318 = vsub.s32 %v97, %v5317
    %v5319 = vrot.slane %v5209, %v5318
    %v5320 = vlaneseq
    %v5321 = vshrl.u32 %v5320, 7
    %v5322 = vsub.s32 %v97, %v5321
    %v5323 = vrot.slane %v5212, %v5322
    %v5324 = vlaneseq
    %v5325 = vshrl.u32 %v5324, 7
    %v5326 = vsub.s32 %v97, %v5325
    %v5327 = vrot.slane %v5215, %v5326
    %v5328 = vlaneseq
    %v5329 = vshrl.u32 %v5328, 7
    %v5330 = vsub.s32 %v97, %v5329
    %v5331 = vrot.slane %v5218, %v5330
    %v5332 = vlaneseq
    %v5333 = vshrl.u32 %v5332, 7
    %v5334 = vsub.s32 %v97, %v5333
    %v5335 = vrot.slane %v5221, %v5334
    %v5336 = vlaneseq
    %v5337 = vshrl.u32 %v5336, 7
    %v5338 = vsub.s32 %v97, %v5337
    %v5339 = vrot.slane %v5224, %v5338
    %v5340 = vlaneseq
    %v5341 = vshrl.u32 %v5340, 7
    %v5342 = vsub.s32 %v97, %v5341
    %v5343 = vrot.slane %v5227, %v5342
    %v5344 = vlaneseq
    %v5345 = vshrl.u32 %v5344, 7
    %v5346 = vsub.s32 %v97, %v5345
    %v5347 = vrot.slane %v5230, %v5346
    %v5348 = vlaneseq
    %v5349 = vshrl.u32 %v5348, 7
    %v5350 = vsub.s32 %v97, %v5349
    %v5351 = vrot.slane %v5233, %v5350
    %v5352 = vlaneseq
    %v5353 = vshrl.u32 %v5352, 7
    %v5354 = vsub.s32 %v97, %v5353
    %v5355 = vrot.slane %v5236, %v5354
    %v5356 = vlaneseq
    %v5357 = vshrl.u32 %v5356, 7
    %v5358 = vsub.s32 %v97, %v5357
    %v5359 = vrot.slane %v5239, %v5358
    %v5360 = vlaneseq
    %v5361 = vshrl.u32 %v5360, 7
    %v5362 = vsub.s32 %v97, %v5361
    %v5363 = vrot.slane %v5242, %v5362
    %v5364 = vlaneseq
    %v5365 = vshrl.u32 %v5364, 7
    %v5366 = vsub.s32 %v97, %v5365
    %v5367 = vrot.slane %v5245, %v5366
    %v5368 = vlaneseq
    %v5369 = vshrl.u32 %v5368, 7
    %v5370 = vsub.s32 %v97, %v5369
    %v5371 = vrot.slane %v5248, %v5370
    %v5372 = vlaneseq
    %v5373 = vshrl.u32 %v5372, 7
    %v5374 = vsub.s32 %v97, %v5373
    %v5375 = vrot.slane %v5251, %v5374
    %v5376 = vlaneseq
    %v5377 = vshrl.u32 %v5376, 7
    %v5378 = vsub.s32 %v97, %v5377
    %v5379 = vrot.slane %v5254, %v5378
    %v5380 = vlaneseq
    %v5381 = vshrl.u32 %v5380, 7
    %v5382 = vsub.s32 %v97, %v5381
    %v5383 = vrot.slane %v5257, %v5382
    %v5384 = vlaneseq
    %v5385 = vshrl.u32 %v5384, 7
    %v5386 = vsub.s32 %v97, %v5385
    %v5387 = vrot.slane %v5260, %v5386
    %v5388 = vlaneseq
    %v5389 = vshrl.u32 %v5388, 7
    %v5390 = vsub.s32 %v97, %v5389
    %v5391 = vrot.slane %v5263, %v5390
    %v5392 = vsel %vm1505, %v5271, %v5267
    %v5393 = vsel %vm1507, %v5275, %v5392
    %v5394 = vsel %vm1509, %v5279, %v5393
    %v5395 = vsel %vm2102, %v5283, %v5394
    %v5396 = vsel %vm2104, %v5287, %v5395
    %v5397 = vsel %vm2106, %v5291, %v5396
    %v5398 = vsel %vm2108, %v5295, %v5397
    %v5399 = vsel %vm1505, %v5303, %v5299
    %v5400 = vsel %vm1507, %v5307, %v5399
    %v5401 = vsel %vm1509, %v5311, %v5400
    %v5402 = vsel %vm2102, %v5315, %v5401
    %v5403 = vsel %vm2104, %v5319, %v5402
    %v5404 = vsel %vm2106, %v5323, %v5403
    %v5405 = vsel %vm2108, %v5327, %v5404
    %v5406 = vsel %vm1505, %v5335, %v5331
    %v5407 = vsel %vm1507, %v5339, %v5406
    %v5408 = vsel %vm1509, %v5343, %v5407
    %v5409 = vsel %vm2102, %v5347, %v5408
    %v5410 = vsel %vm2104, %v5351, %v5409
    %v5411 = vsel %vm2106, %v5355, %v5410
    %v5412 = vsel %vm2108, %v5359, %v5411
    %v5413 = vsel %vm1505, %v5367, %v5363
    %v5414 = vsel %vm1507, %v5371, %v5413
    %v5415 = vsel %vm1509, %v5375, %v5414
    %v5416 = vsel %vm2102, %v5379, %v5415
    %v5417 = vsel %vm2104, %v5383, %v5416
    %v5418 = vsel %vm2106, %v5387, %v5417
    %v5419 = vsel %vm2108, %v5391, %v5418
    %v5420 = vsel %vm1408, %v5398, 2147483647
    %v5421 = vand.u32 %v5420, 65535
    %v5422 = vshra.s32 %v5420, 16
    %v5423 = vcvt.s32.f32 %v5421
    %v5424 = vcvt.s32.f32 %v5422
    %5425 = vmin.xlane.f32.xlu0 %v5424
    %v5426 = vpop.xlane.xlu0 %5425
    %vm5427 = vcmp.eq.f32.partialorder %v5424, %v5426
    %v5428 = vsel %vm5427, %v5423, inf
    %5429 = vmin.xlane.f32.xlu0 %v5428
    %v5430 = vpop.xlane.xlu0 %5429
    %v5431 = vcvt.f32.s32 %v5430
    %v5432 = vcvt.f32.s32 %v5426
    %v5433 = vshll.u32 %v5432, 16
    %v5434 = vadd.s32 %v5433, %v5431
    %v5435 = vsel %vm1408, %v5405, 2147483647
    %v5436 = vand.u32 %v5435, 65535
    %v5437 = vshra.s32 %v5435, 16
    %v5438 = vcvt.s32.f32 %v5436
    %v5439 = vcvt.s32.f32 %v5437
    %5440 = vmin.xlane.f32.xlu0 %v5439
    %v5441 = vpop.xlane.xlu0 %5440
    %vm5442 = vcmp.eq.f32.partialorder %v5439, %v5441
    %v5443 = vsel %vm5442, %v5438, inf
    %5444 = vmin.xlane.f32.xlu0 %v5443
    %v5445 = vpop.xlane.xlu0 %5444
    %v5446 = vcvt.f32.s32 %v5445
    %v5447 = vcvt.f32.s32 %v5441
    %v5448 = vshll.u32 %v5447, 16
    %v5449 = vadd.s32 %v5448, %v5446
    %v5450 = vsel %vm1408, %v5412, 2147483647
    %v5451 = vand.u32 %v5450, 65535
    %v5452 = vshra.s32 %v5450, 16
    %v5453 = vcvt.s32.f32 %v5451
    %v5454 = vcvt.s32.f32 %v5452
    %5455 = vmin.xlane.f32.xlu0 %v5454
    %v5456 = vpop.xlane.xlu0 %5455
    %vm5457 = vcmp.eq.f32.partialorder %v5454, %v5456
    %v5458 = vsel %vm5457, %v5453, inf
    %5459 = vmin.xlane.f32.xlu0 %v5458
    %v5460 = vpop.xlane.xlu0 %5459
    %v5461 = vcvt.f32.s32 %v5460
    %v5462 = vcvt.f32.s32 %v5456
    %v5463 = vshll.u32 %v5462, 16
    %v5464 = vadd.s32 %v5463, %v5461
    %v5465 = vsel %vm1408, %v5419, 2147483647
    %v5466 = vand.u32 %v5465, 65535
    %v5467 = vshra.s32 %v5465, 16
    %v5468 = vcvt.s32.f32 %v5466
    %v5469 = vcvt.s32.f32 %v5467
    %5470 = vmin.xlane.f32.xlu0 %v5469
    %v5471 = vpop.xlane.xlu0 %5470
    %vm5472 = vcmp.eq.f32.partialorder %v5469, %v5471
    %v5473 = vsel %vm5472, %v5468, inf
    %5474 = vmin.xlane.f32.xlu0 %v5473
    %v5475 = vpop.xlane.xlu0 %5474
    %v5476 = vcvt.f32.s32 %v5475
    %v5477 = vcvt.f32.s32 %v5471
    %v5478 = vshll.u32 %v5477, 16
    %v5479 = vadd.s32 %v5478, %v5476
    %v5480 = vlaneseq
    %v5481 = vshrl.u32 %v5480, 7
    %v5482 = vsub.s32 %v97, %v5481
    %v5483 = vrot.slane %v5434, %v5482
    %v5484 = vlaneseq
    %v5485 = vshrl.u32 %v5484, 7
    %v5486 = vsub.s32 %v97, %v5485
    %v5487 = vrot.slane %v5449, %v5486
    %v5488 = vlaneseq
    %v5489 = vshrl.u32 %v5488, 7
    %v5490 = vsub.s32 %v97, %v5489
    %v5491 = vrot.slane %v5464, %v5490
    %v5492 = vlaneseq
    %v5493 = vshrl.u32 %v5492, 7
    %v5494 = vsub.s32 %v97, %v5493
    %v5495 = vrot.slane %v5479, %v5494
    %v5496 = vsel %vm1505, %v5487, %v5483
    %v5497 = vsel %vm1507, %v5491, %v5496
    %v5498 = vsel %vm1509, %v5495, %v5497
    %5499 = vst.msk [vmem:[#allocation5 + $0x14] sm:$0xf] %vm1511, %v5498
    %v5500 = vld [vmem:[#allocation4 + $0x14] sm:$0xf]
    %v5502 = vlaneseq
    %v5503 = vshrl.u32 %v5502, 7
    %v5504 = vsub.s32 0, %v5503
    %v5505 = vrot.slane %v5500, %v5504
    %5507 = vbcast.lane.b32.xlu0 %v5505, 256
    %v5508 = vpop.permute.xlu0 %5507
    %v5509 = vlaneseq
    %v5510 = vshrl.u32 %v5509, 7
    %v5511 = vsub.s32 1, %v5510
    %v5512 = vrot.slane %v5500, %v5511
    %5514 = vbcast.lane.b32.xlu0 %v5512, 256
    %v5515 = vpop.permute.xlu0 %5514
    %v5516 = vlaneseq
    %v5517 = vshrl.u32 %v5516, 7
    %v5518 = vsub.s32 2, %v5517
    %v5519 = vrot.slane %v5500, %v5518
    %5521 = vbcast.lane.b32.xlu0 %v5519, 256
    %v5522 = vpop.permute.xlu0 %5521
    %v5523 = vlaneseq
    %v5524 = vshrl.u32 %v5523, 7
    %v5525 = vsub.s32 3, %v5524
    %v5526 = vrot.slane %v5500, %v5525
    %5528 = vbcast.lane.b32.xlu0 %v5526, 256
    %v5529 = vpop.permute.xlu0 %5528
    %v5534 = vadd.f32 %v4930, %v5508
    %v5535 = vadd.f32 %v4933, %v5515
    %v5536 = vadd.f32 %v4936, %v5522
    %v5537 = vadd.f32 %v4939, %v5529
    %v5538 = vadd.f32 %v5534, %v1561
    %v5539 = vadd.f32 %v5534, %v1568
    %v5540 = vadd.f32 %v5534, %v1575
    %v5541 = vadd.f32 %v5534, %v1582
    %v5542 = vadd.f32 %v5534, %v1589
    %v5543 = vadd.f32 %v5534, %v1596
    %v5544 = vadd.f32 %v5534, %v1603
    %v5545 = vadd.f32 %v5534, %v1610
    %v5546 = vadd.f32 %v5535, %v1617
    %v5547 = vadd.f32 %v5535, %v1624
    %v5548 = vadd.f32 %v5535, %v1631
    %v5549 = vadd.f32 %v5535, %v1638
    %v5550 = vadd.f32 %v5535, %v1645
    %v5551 = vadd.f32 %v5535, %v1652
    %v5552 = vadd.f32 %v5535, %v1659
    %v5553 = vadd.f32 %v5535, %v1666
    %v5554 = vadd.f32 %v5536, %v1673
    %v5555 = vadd.f32 %v5536, %v1680
    %v5556 = vadd.f32 %v5536, %v1687
    %v5557 = vadd.f32 %v5536, %v1694
    %v5558 = vadd.f32 %v5536, %v1701
    %v5559 = vadd.f32 %v5536, %v1708
    %v5560 = vadd.f32 %v5536, %v1715
    %v5561 = vadd.f32 %v5536, %v1722
    %v5562 = vadd.f32 %v5537, %v1729
    %v5563 = vadd.f32 %v5537, %v1736
    %v5564 = vadd.f32 %v5537, %v1743
    %v5565 = vadd.f32 %v5537, %v1750
    %v5566 = vadd.f32 %v5537, %v1757
    %v5567 = vadd.f32 %v5537, %v1764
    %v5568 = vadd.f32 %v5537, %v1771
    %v5569 = vadd.f32 %v5537, %v1778
    %5602 = vset.pattern.permute.xlu0 0
    %5603 = vperm.xlu0 %5602, %v5538
    %v5604 = vpop.permute.xlu0 %5603
    %5605 = vset.pattern.permute.xlu0 0
    %5606 = vperm.xlu0 %5605, %v5539
    %v5607 = vpop.permute.xlu0 %5606
    %5608 = vset.pattern.permute.xlu0 0
    %5609 = vperm.xlu0 %5608, %v5540
    %v5610 = vpop.permute.xlu0 %5609
    %5611 = vset.pattern.permute.xlu0 0
    %5612 = vperm.xlu0 %5611, %v5541
    %v5613 = vpop.permute.xlu0 %5612
    %5614 = vset.pattern.permute.xlu0 0
    %5615 = vperm.xlu0 %5614, %v5542
    %v5616 = vpop.permute.xlu0 %5615
    %5617 = vset.pattern.permute.xlu0 0
    %5618 = vperm.xlu0 %5617, %v5543
    %v5619 = vpop.permute.xlu0 %5618
    %5620 = vset.pattern.permute.xlu0 0
    %5621 = vperm.xlu0 %5620, %v5544
    %v5622 = vpop.permute.xlu0 %5621
    %5623 = vset.pattern.permute.xlu0 0
    %5624 = vperm.xlu0 %5623, %v5545
    %v5625 = vpop.permute.xlu0 %5624
    %5626 = vset.pattern.permute.xlu0 0
    %5627 = vperm.xlu0 %5626, %v5546
    %v5628 = vpop.permute.xlu0 %5627
    %5629 = vset.pattern.permute.xlu0 0
    %5630 = vperm.xlu0 %5629, %v5547
    %v5631 = vpop.permute.xlu0 %5630
    %5632 = vset.pattern.permute.xlu0 0
    %5633 = vperm.xlu0 %5632, %v5548
    %v5634 = vpop.permute.xlu0 %5633
    %5635 = vset.pattern.permute.xlu0 0
    %5636 = vperm.xlu0 %5635, %v5549
    %v5637 = vpop.permute.xlu0 %5636
    %5638 = vset.pattern.permute.xlu0 0
    %5639 = vperm.xlu0 %5638, %v5550
    %v5640 = vpop.permute.xlu0 %5639
    %5641 = vset.pattern.permute.xlu0 0
    %5642 = vperm.xlu0 %5641, %v5551
    %v5643 = vpop.permute.xlu0 %5642
    %5644 = vset.pattern.permute.xlu0 0
    %5645 = vperm.xlu0 %5644, %v5552
    %v5646 = vpop.permute.xlu0 %5645
    %5647 = vset.pattern.permute.xlu0 0
    %5648 = vperm.xlu0 %5647, %v5553
    %v5649 = vpop.permute.xlu0 %5648
    %5650 = vset.pattern.permute.xlu0 0
    %5651 = vperm.xlu0 %5650, %v5554
    %v5652 = vpop.permute.xlu0 %5651
    %5653 = vset.pattern.permute.xlu0 0
    %5654 = vperm.xlu0 %5653, %v5555
    %v5655 = vpop.permute.xlu0 %5654
    %5656 = vset.pattern.permute.xlu0 0
    %5657 = vperm.xlu0 %5656, %v5556
    %v5658 = vpop.permute.xlu0 %5657
    %5659 = vset.pattern.permute.xlu0 0
    %5660 = vperm.xlu0 %5659, %v5557
    %v5661 = vpop.permute.xlu0 %5660
    %5662 = vset.pattern.permute.xlu0 0
    %5663 = vperm.xlu0 %5662, %v5558
    %v5664 = vpop.permute.xlu0 %5663
    %5665 = vset.pattern.permute.xlu0 0
    %5666 = vperm.xlu0 %5665, %v5559
    %v5667 = vpop.permute.xlu0 %5666
    %5668 = vset.pattern.permute.xlu0 0
    %5669 = vperm.xlu0 %5668, %v5560
    %v5670 = vpop.permute.xlu0 %5669
    %5671 = vset.pattern.permute.xlu0 0
    %5672 = vperm.xlu0 %5671, %v5561
    %v5673 = vpop.permute.xlu0 %5672
    %5674 = vset.pattern.permute.xlu0 0
    %5675 = vperm.xlu0 %5674, %v5562
    %v5676 = vpop.permute.xlu0 %5675
    %5677 = vset.pattern.permute.xlu0 0
    %5678 = vperm.xlu0 %5677, %v5563
    %v5679 = vpop.permute.xlu0 %5678
    %5680 = vset.pattern.permute.xlu0 0
    %5681 = vperm.xlu0 %5680, %v5564
    %v5682 = vpop.permute.xlu0 %5681
    %5683 = vset.pattern.permute.xlu0 0
    %5684 = vperm.xlu0 %5683, %v5565
    %v5685 = vpop.permute.xlu0 %5684
    %5686 = vset.pattern.permute.xlu0 0
    %5687 = vperm.xlu0 %5686, %v5566
    %v5688 = vpop.permute.xlu0 %5687
    %5689 = vset.pattern.permute.xlu0 0
    %5690 = vperm.xlu0 %5689, %v5567
    %v5691 = vpop.permute.xlu0 %5690
    %5692 = vset.pattern.permute.xlu0 0
    %5693 = vperm.xlu0 %5692, %v5568
    %v5694 = vpop.permute.xlu0 %5693
    %5695 = vset.pattern.permute.xlu0 0
    %5696 = vperm.xlu0 %5695, %v5569
    %v5697 = vpop.permute.xlu0 %5696
    %v5698 = vlaneseq
    %v5699 = vshrl.u32 %v5698, 7
    %v5700 = vsub.s32 %v97, %v5699
    %v5701 = vrot.slane %v5604, %v5700
    %v5702 = vlaneseq
    %v5703 = vshrl.u32 %v5702, 7
    %v5704 = vsub.s32 %v97, %v5703
    %v5705 = vrot.slane %v5607, %v5704
    %v5706 = vlaneseq
    %v5707 = vshrl.u32 %v5706, 7
    %v5708 = vsub.s32 %v97, %v5707
    %v5709 = vrot.slane %v5610, %v5708
    %v5710 = vlaneseq
    %v5711 = vshrl.u32 %v5710, 7
    %v5712 = vsub.s32 %v97, %v5711
    %v5713 = vrot.slane %v5613, %v5712
    %v5714 = vlaneseq
    %v5715 = vshrl.u32 %v5714, 7
    %v5716 = vsub.s32 %v97, %v5715
    %v5717 = vrot.slane %v5616, %v5716
    %v5718 = vlaneseq
    %v5719 = vshrl.u32 %v5718, 7
    %v5720 = vsub.s32 %v97, %v5719
    %v5721 = vrot.slane %v5619, %v5720
    %v5722 = vlaneseq
    %v5723 = vshrl.u32 %v5722, 7
    %v5724 = vsub.s32 %v97, %v5723
    %v5725 = vrot.slane %v5622, %v5724
    %v5726 = vlaneseq
    %v5727 = vshrl.u32 %v5726, 7
    %v5728 = vsub.s32 %v97, %v5727
    %v5729 = vrot.slane %v5625, %v5728
    %v5730 = vlaneseq
    %v5731 = vshrl.u32 %v5730, 7
    %v5732 = vsub.s32 %v97, %v5731
    %v5733 = vrot.slane %v5628, %v5732
    %v5734 = vlaneseq
    %v5735 = vshrl.u32 %v5734, 7
    %v5736 = vsub.s32 %v97, %v5735
    %v5737 = vrot.slane %v5631, %v5736
    %v5738 = vlaneseq
    %v5739 = vshrl.u32 %v5738, 7
    %v5740 = vsub.s32 %v97, %v5739
    %v5741 = vrot.slane %v5634, %v5740
    %v5742 = vlaneseq
    %v5743 = vshrl.u32 %v5742, 7
    %v5744 = vsub.s32 %v97, %v5743
    %v5745 = vrot.slane %v5637, %v5744
    %v5746 = vlaneseq
    %v5747 = vshrl.u32 %v5746, 7
    %v5748 = vsub.s32 %v97, %v5747
    %v5749 = vrot.slane %v5640, %v5748
    %v5750 = vlaneseq
    %v5751 = vshrl.u32 %v5750, 7
    %v5752 = vsub.s32 %v97, %v5751
    %v5753 = vrot.slane %v5643, %v5752
    %v5754 = vlaneseq
    %v5755 = vshrl.u32 %v5754, 7
    %v5756 = vsub.s32 %v97, %v5755
    %v5757 = vrot.slane %v5646, %v5756
    %v5758 = vlaneseq
    %v5759 = vshrl.u32 %v5758, 7
    %v5760 = vsub.s32 %v97, %v5759
    %v5761 = vrot.slane %v5649, %v5760
    %v5762 = vlaneseq
    %v5763 = vshrl.u32 %v5762, 7
    %v5764 = vsub.s32 %v97, %v5763
    %v5765 = vrot.slane %v5652, %v5764
    %v5766 = vlaneseq
    %v5767 = vshrl.u32 %v5766, 7
    %v5768 = vsub.s32 %v97, %v5767
    %v5769 = vrot.slane %v5655, %v5768
    %v5770 = vlaneseq
    %v5771 = vshrl.u32 %v5770, 7
    %v5772 = vsub.s32 %v97, %v5771
    %v5773 = vrot.slane %v5658, %v5772
    %v5774 = vlaneseq
    %v5775 = vshrl.u32 %v5774, 7
    %v5776 = vsub.s32 %v97, %v5775
    %v5777 = vrot.slane %v5661, %v5776
    %v5778 = vlaneseq
    %v5779 = vshrl.u32 %v5778, 7
    %v5780 = vsub.s32 %v97, %v5779
    %v5781 = vrot.slane %v5664, %v5780
    %v5782 = vlaneseq
    %v5783 = vshrl.u32 %v5782, 7
    %v5784 = vsub.s32 %v97, %v5783
    %v5785 = vrot.slane %v5667, %v5784
    %v5786 = vlaneseq
    %v5787 = vshrl.u32 %v5786, 7
    %v5788 = vsub.s32 %v97, %v5787
    %v5789 = vrot.slane %v5670, %v5788
    %v5790 = vlaneseq
    %v5791 = vshrl.u32 %v5790, 7
    %v5792 = vsub.s32 %v97, %v5791
    %v5793 = vrot.slane %v5673, %v5792
    %v5794 = vlaneseq
    %v5795 = vshrl.u32 %v5794, 7
    %v5796 = vsub.s32 %v97, %v5795
    %v5797 = vrot.slane %v5676, %v5796
    %v5798 = vlaneseq
    %v5799 = vshrl.u32 %v5798, 7
    %v5800 = vsub.s32 %v97, %v5799
    %v5801 = vrot.slane %v5679, %v5800
    %v5802 = vlaneseq
    %v5803 = vshrl.u32 %v5802, 7
    %v5804 = vsub.s32 %v97, %v5803
    %v5805 = vrot.slane %v5682, %v5804
    %v5806 = vlaneseq
    %v5807 = vshrl.u32 %v5806, 7
    %v5808 = vsub.s32 %v97, %v5807
    %v5809 = vrot.slane %v5685, %v5808
    %v5810 = vlaneseq
    %v5811 = vshrl.u32 %v5810, 7
    %v5812 = vsub.s32 %v97, %v5811
    %v5813 = vrot.slane %v5688, %v5812
    %v5814 = vlaneseq
    %v5815 = vshrl.u32 %v5814, 7
    %v5816 = vsub.s32 %v97, %v5815
    %v5817 = vrot.slane %v5691, %v5816
    %v5818 = vlaneseq
    %v5819 = vshrl.u32 %v5818, 7
    %v5820 = vsub.s32 %v97, %v5819
    %v5821 = vrot.slane %v5694, %v5820
    %v5822 = vlaneseq
    %v5823 = vshrl.u32 %v5822, 7
    %v5824 = vsub.s32 %v97, %v5823
    %v5825 = vrot.slane %v5697, %v5824
    %v5826 = vsel %vm1505, %v5705, %v5701
    %v5827 = vsel %vm1507, %v5709, %v5826
    %v5828 = vsel %vm1509, %v5713, %v5827
    %v5829 = vsel %vm2102, %v5717, %v5828
    %v5830 = vsel %vm2104, %v5721, %v5829
    %v5831 = vsel %vm2106, %v5725, %v5830
    %v5832 = vsel %vm2108, %v5729, %v5831
    %v5833 = vsel %vm1505, %v5737, %v5733
    %v5834 = vsel %vm1507, %v5741, %v5833
    %v5835 = vsel %vm1509, %v5745, %v5834
    %v5836 = vsel %vm2102, %v5749, %v5835
    %v5837 = vsel %vm2104, %v5753, %v5836
    %v5838 = vsel %vm2106, %v5757, %v5837
    %v5839 = vsel %vm2108, %v5761, %v5838
    %v5840 = vsel %vm1505, %v5769, %v5765
    %v5841 = vsel %vm1507, %v5773, %v5840
    %v5842 = vsel %vm1509, %v5777, %v5841
    %v5843 = vsel %vm2102, %v5781, %v5842
    %v5844 = vsel %vm2104, %v5785, %v5843
    %v5845 = vsel %vm2106, %v5789, %v5844
    %v5846 = vsel %vm2108, %v5793, %v5845
    %v5847 = vsel %vm1505, %v5801, %v5797
    %v5848 = vsel %vm1507, %v5805, %v5847
    %v5849 = vsel %vm1509, %v5809, %v5848
    %v5850 = vsel %vm2102, %v5813, %v5849
    %v5851 = vsel %vm2104, %v5817, %v5850
    %v5852 = vsel %vm2106, %v5821, %v5851
    %v5853 = vsel %vm2108, %v5825, %v5852
    %v5858 = vsel %vm1408, %v5832, -inf
    %5859 = vmax.xlane.f32.xlu0 %v5858
    %v5860 = vpop.xlane.xlu0 %5859
    %v5861 = vsel %vm1408, %v5839, -inf
    %5862 = vmax.xlane.f32.xlu0 %v5861
    %v5863 = vpop.xlane.xlu0 %5862
    %v5864 = vsel %vm1408, %v5846, -inf
    %5865 = vmax.xlane.f32.xlu0 %v5864
    %v5866 = vpop.xlane.xlu0 %5865
    %v5867 = vsel %vm1408, %v5853, -inf
    %5868 = vmax.xlane.f32.xlu0 %v5867
    %v5869 = vpop.xlane.xlu0 %5868
    %v5874 = vlaneseq
    %v5875 = vshrl.u32 %v5874, 7
    %v5876 = vsub.s32 0, %v5875
    %v5877 = vrot.slane %v5860, %v5876
    %v5878 = vlaneseq
    %v5879 = vshrl.u32 %v5878, 7
    %v5880 = vsub.s32 1, %v5879
    %v5881 = vrot.slane %v5860, %v5880
    %v5882 = vlaneseq
    %v5883 = vshrl.u32 %v5882, 7
    %v5884 = vsub.s32 2, %v5883
    %v5885 = vrot.slane %v5860, %v5884
    %v5886 = vlaneseq
    %v5887 = vshrl.u32 %v5886, 7
    %v5888 = vsub.s32 3, %v5887
    %v5889 = vrot.slane %v5860, %v5888
    %v5890 = vlaneseq
    %v5891 = vshrl.u32 %v5890, 7
    %v5892 = vsub.s32 4, %v5891
    %v5893 = vrot.slane %v5860, %v5892
    %v5894 = vlaneseq
    %v5895 = vshrl.u32 %v5894, 7
    %v5896 = vsub.s32 5, %v5895
    %v5897 = vrot.slane %v5860, %v5896
    %v5898 = vlaneseq
    %v5899 = vshrl.u32 %v5898, 7
    %v5900 = vsub.s32 6, %v5899
    %v5901 = vrot.slane %v5860, %v5900
    %v5902 = vlaneseq
    %v5903 = vshrl.u32 %v5902, 7
    %v5904 = vsub.s32 7, %v5903
    %v5905 = vrot.slane %v5860, %v5904
    %v5906 = vlaneseq
    %v5907 = vshrl.u32 %v5906, 7
    %v5908 = vsub.s32 0, %v5907
    %v5909 = vrot.slane %v5863, %v5908
    %v5910 = vlaneseq
    %v5911 = vshrl.u32 %v5910, 7
    %v5912 = vsub.s32 1, %v5911
    %v5913 = vrot.slane %v5863, %v5912
    %v5914 = vlaneseq
    %v5915 = vshrl.u32 %v5914, 7
    %v5916 = vsub.s32 2, %v5915
    %v5917 = vrot.slane %v5863, %v5916
    %v5918 = vlaneseq
    %v5919 = vshrl.u32 %v5918, 7
    %v5920 = vsub.s32 3, %v5919
    %v5921 = vrot.slane %v5863, %v5920
    %v5922 = vlaneseq
    %v5923 = vshrl.u32 %v5922, 7
    %v5924 = vsub.s32 4, %v5923
    %v5925 = vrot.slane %v5863, %v5924
    %v5926 = vlaneseq
    %v5927 = vshrl.u32 %v5926, 7
    %v5928 = vsub.s32 5, %v5927
    %v5929 = vrot.slane %v5863, %v5928
    %v5930 = vlaneseq
    %v5931 = vshrl.u32 %v5930, 7
    %v5932 = vsub.s32 6, %v5931
    %v5933 = vrot.slane %v5863, %v5932
    %v5934 = vlaneseq
    %v5935 = vshrl.u32 %v5934, 7
    %v5936 = vsub.s32 7, %v5935
    %v5937 = vrot.slane %v5863, %v5936
    %v5938 = vlaneseq
    %v5939 = vshrl.u32 %v5938, 7
    %v5940 = vsub.s32 0, %v5939
    %v5941 = vrot.slane %v5866, %v5940
    %v5942 = vlaneseq
    %v5943 = vshrl.u32 %v5942, 7
    %v5944 = vsub.s32 1, %v5943
    %v5945 = vrot.slane %v5866, %v5944
    %v5946 = vlaneseq
    %v5947 = vshrl.u32 %v5946, 7
    %v5948 = vsub.s32 2, %v5947
    %v5949 = vrot.slane %v5866, %v5948
    %v5950 = vlaneseq
    %v5951 = vshrl.u32 %v5950, 7
    %v5952 = vsub.s32 3, %v5951
    %v5953 = vrot.slane %v5866, %v5952
    %v5954 = vlaneseq
    %v5955 = vshrl.u32 %v5954, 7
    %v5956 = vsub.s32 4, %v5955
    %v5957 = vrot.slane %v5866, %v5956
    %v5958 = vlaneseq
    %v5959 = vshrl.u32 %v5958, 7
    %v5960 = vsub.s32 5, %v5959
    %v5961 = vrot.slane %v5866, %v5960
    %v5962 = vlaneseq
    %v5963 = vshrl.u32 %v5962, 7
    %v5964 = vsub.s32 6, %v5963
    %v5965 = vrot.slane %v5866, %v5964
    %v5966 = vlaneseq
    %v5967 = vshrl.u32 %v5966, 7
    %v5968 = vsub.s32 7, %v5967
    %v5969 = vrot.slane %v5866, %v5968
    %v5970 = vlaneseq
    %v5971 = vshrl.u32 %v5970, 7
    %v5972 = vsub.s32 0, %v5971
    %v5973 = vrot.slane %v5869, %v5972
    %v5974 = vlaneseq
    %v5975 = vshrl.u32 %v5974, 7
    %v5976 = vsub.s32 1, %v5975
    %v5977 = vrot.slane %v5869, %v5976
    %v5978 = vlaneseq
    %v5979 = vshrl.u32 %v5978, 7
    %v5980 = vsub.s32 2, %v5979
    %v5981 = vrot.slane %v5869, %v5980
    %v5982 = vlaneseq
    %v5983 = vshrl.u32 %v5982, 7
    %v5984 = vsub.s32 3, %v5983
    %v5985 = vrot.slane %v5869, %v5984
    %v5986 = vlaneseq
    %v5987 = vshrl.u32 %v5986, 7
    %v5988 = vsub.s32 4, %v5987
    %v5989 = vrot.slane %v5869, %v5988
    %v5990 = vlaneseq
    %v5991 = vshrl.u32 %v5990, 7
    %v5992 = vsub.s32 5, %v5991
    %v5993 = vrot.slane %v5869, %v5992
    %v5994 = vlaneseq
    %v5995 = vshrl.u32 %v5994, 7
    %v5996 = vsub.s32 6, %v5995
    %v5997 = vrot.slane %v5869, %v5996
    %v5998 = vlaneseq
    %v5999 = vshrl.u32 %v5998, 7
    %v6000 = vsub.s32 7, %v5999
    %v6001 = vrot.slane %v5869, %v6000
    %vm6034 = vcmp.eq.f32.partialorder %v5538, %v5877
    %vm6035 = vcmp.eq.f32.partialorder %v5539, %v5881
    %vm6036 = vcmp.eq.f32.partialorder %v5540, %v5885
    %vm6037 = vcmp.eq.f32.partialorder %v5541, %v5889
    %vm6038 = vcmp.eq.f32.partialorder %v5542, %v5893
    %vm6039 = vcmp.eq.f32.partialorder %v5543, %v5897
    %vm6040 = vcmp.eq.f32.partialorder %v5544, %v5901
    %vm6041 = vcmp.eq.f32.partialorder %v5545, %v5905
    %vm6042 = vcmp.eq.f32.partialorder %v5546, %v5909
    %vm6043 = vcmp.eq.f32.partialorder %v5547, %v5913
    %vm6044 = vcmp.eq.f32.partialorder %v5548, %v5917
    %vm6045 = vcmp.eq.f32.partialorder %v5549, %v5921
    %vm6046 = vcmp.eq.f32.partialorder %v5550, %v5925
    %vm6047 = vcmp.eq.f32.partialorder %v5551, %v5929
    %vm6048 = vcmp.eq.f32.partialorder %v5552, %v5933
    %vm6049 = vcmp.eq.f32.partialorder %v5553, %v5937
    %vm6050 = vcmp.eq.f32.partialorder %v5554, %v5941
    %vm6051 = vcmp.eq.f32.partialorder %v5555, %v5945
    %vm6052 = vcmp.eq.f32.partialorder %v5556, %v5949
    %vm6053 = vcmp.eq.f32.partialorder %v5557, %v5953
    %vm6054 = vcmp.eq.f32.partialorder %v5558, %v5957
    %vm6055 = vcmp.eq.f32.partialorder %v5559, %v5961
    %vm6056 = vcmp.eq.f32.partialorder %v5560, %v5965
    %vm6057 = vcmp.eq.f32.partialorder %v5561, %v5969
    %vm6058 = vcmp.eq.f32.partialorder %v5562, %v5973
    %vm6059 = vcmp.eq.f32.partialorder %v5563, %v5977
    %vm6060 = vcmp.eq.f32.partialorder %v5564, %v5981
    %vm6061 = vcmp.eq.f32.partialorder %v5565, %v5985
    %vm6062 = vcmp.eq.f32.partialorder %v5566, %v5989
    %vm6063 = vcmp.eq.f32.partialorder %v5567, %v5993
    %vm6064 = vcmp.eq.f32.partialorder %v5568, %v5997
    %vm6065 = vcmp.eq.f32.partialorder %v5569, %v6001
    %v6066 = vsel %vm6034, %v2345, 8
    %v6067 = vsel %vm6035, %v2345, 8
    %v6068 = vsel %vm6036, %v2345, 8
    %v6069 = vsel %vm6037, %v2345, 8
    %v6070 = vsel %vm6038, %v2345, 8
    %v6071 = vsel %vm6039, %v2345, 8
    %v6072 = vsel %vm6040, %v2345, 8
    %v6073 = vsel %vm6041, %v2345, 8
    %v6074 = vsel %vm6042, %v2345, 8
    %v6075 = vsel %vm6043, %v2345, 8
    %v6076 = vsel %vm6044, %v2345, 8
    %v6077 = vsel %vm6045, %v2345, 8
    %v6078 = vsel %vm6046, %v2345, 8
    %v6079 = vsel %vm6047, %v2345, 8
    %v6080 = vsel %vm6048, %v2345, 8
    %v6081 = vsel %vm6049, %v2345, 8
    %v6082 = vsel %vm6050, %v2345, 8
    %v6083 = vsel %vm6051, %v2345, 8
    %v6084 = vsel %vm6052, %v2345, 8
    %v6085 = vsel %vm6053, %v2345, 8
    %v6086 = vsel %vm6054, %v2345, 8
    %v6087 = vsel %vm6055, %v2345, 8
    %v6088 = vsel %vm6056, %v2345, 8
    %v6089 = vsel %vm6057, %v2345, 8
    %v6090 = vsel %vm6058, %v2345, 8
    %v6091 = vsel %vm6059, %v2345, 8
    %v6092 = vsel %vm6060, %v2345, 8
    %v6093 = vsel %vm6061, %v2345, 8
    %v6094 = vsel %vm6062, %v2345, 8
    %v6095 = vsel %vm6063, %v2345, 8
    %v6096 = vsel %vm6064, %v2345, 8
    %v6097 = vsel %vm6065, %v2345, 8
    %6098 = vset.pattern.permute.xlu0 0
    %6099 = vperm.xlu0 %6098, %v6066
    %v6100 = vpop.permute.xlu0 %6099
    %6101 = vset.pattern.permute.xlu0 0
    %6102 = vperm.xlu0 %6101, %v6067
    %v6103 = vpop.permute.xlu0 %6102
    %6104 = vset.pattern.permute.xlu0 0
    %6105 = vperm.xlu0 %6104, %v6068
    %v6106 = vpop.permute.xlu0 %6105
    %6107 = vset.pattern.permute.xlu0 0
    %6108 = vperm.xlu0 %6107, %v6069
    %v6109 = vpop.permute.xlu0 %6108
    %6110 = vset.pattern.permute.xlu0 0
    %6111 = vperm.xlu0 %6110, %v6070
    %v6112 = vpop.permute.xlu0 %6111
    %6113 = vset.pattern.permute.xlu0 0
    %6114 = vperm.xlu0 %6113, %v6071
    %v6115 = vpop.permute.xlu0 %6114
    %6116 = vset.pattern.permute.xlu0 0
    %6117 = vperm.xlu0 %6116, %v6072
    %v6118 = vpop.permute.xlu0 %6117
    %6119 = vset.pattern.permute.xlu0 0
    %6120 = vperm.xlu0 %6119, %v6073
    %v6121 = vpop.permute.xlu0 %6120
    %6122 = vset.pattern.permute.xlu0 0
    %6123 = vperm.xlu0 %6122, %v6074
    %v6124 = vpop.permute.xlu0 %6123
    %6125 = vset.pattern.permute.xlu0 0
    %6126 = vperm.xlu0 %6125, %v6075
    %v6127 = vpop.permute.xlu0 %6126
    %6128 = vset.pattern.permute.xlu0 0
    %6129 = vperm.xlu0 %6128, %v6076
    %v6130 = vpop.permute.xlu0 %6129
    %6131 = vset.pattern.permute.xlu0 0
    %6132 = vperm.xlu0 %6131, %v6077
    %v6133 = vpop.permute.xlu0 %6132
    %6134 = vset.pattern.permute.xlu0 0
    %6135 = vperm.xlu0 %6134, %v6078
    %v6136 = vpop.permute.xlu0 %6135
    %6137 = vset.pattern.permute.xlu0 0
    %6138 = vperm.xlu0 %6137, %v6079
    %v6139 = vpop.permute.xlu0 %6138
    %6140 = vset.pattern.permute.xlu0 0
    %6141 = vperm.xlu0 %6140, %v6080
    %v6142 = vpop.permute.xlu0 %6141
    %6143 = vset.pattern.permute.xlu0 0
    %6144 = vperm.xlu0 %6143, %v6081
    %v6145 = vpop.permute.xlu0 %6144
    %6146 = vset.pattern.permute.xlu0 0
    %6147 = vperm.xlu0 %6146, %v6082
    %v6148 = vpop.permute.xlu0 %6147
    %6149 = vset.pattern.permute.xlu0 0
    %6150 = vperm.xlu0 %6149, %v6083
    %v6151 = vpop.permute.xlu0 %6150
    %6152 = vset.pattern.permute.xlu0 0
    %6153 = vperm.xlu0 %6152, %v6084
    %v6154 = vpop.permute.xlu0 %6153
    %6155 = vset.pattern.permute.xlu0 0
    %6156 = vperm.xlu0 %6155, %v6085
    %v6157 = vpop.permute.xlu0 %6156
    %6158 = vset.pattern.permute.xlu0 0
    %6159 = vperm.xlu0 %6158, %v6086
    %v6160 = vpop.permute.xlu0 %6159
    %6161 = vset.pattern.permute.xlu0 0
    %6162 = vperm.xlu0 %6161, %v6087
    %v6163 = vpop.permute.xlu0 %6162
    %6164 = vset.pattern.permute.xlu0 0
    %6165 = vperm.xlu0 %6164, %v6088
    %v6166 = vpop.permute.xlu0 %6165
    %6167 = vset.pattern.permute.xlu0 0
    %6168 = vperm.xlu0 %6167, %v6089
    %v6169 = vpop.permute.xlu0 %6168
    %6170 = vset.pattern.permute.xlu0 0
    %6171 = vperm.xlu0 %6170, %v6090
    %v6172 = vpop.permute.xlu0 %6171
    %6173 = vset.pattern.permute.xlu0 0
    %6174 = vperm.xlu0 %6173, %v6091
    %v6175 = vpop.permute.xlu0 %6174
    %6176 = vset.pattern.permute.xlu0 0
    %6177 = vperm.xlu0 %6176, %v6092
    %v6178 = vpop.permute.xlu0 %6177
    %6179 = vset.pattern.permute.xlu0 0
    %6180 = vperm.xlu0 %6179, %v6093
    %v6181 = vpop.permute.xlu0 %6180
    %6182 = vset.pattern.permute.xlu0 0
    %6183 = vperm.xlu0 %6182, %v6094
    %v6184 = vpop.permute.xlu0 %6183
    %6185 = vset.pattern.permute.xlu0 0
    %6186 = vperm.xlu0 %6185, %v6095
    %v6187 = vpop.permute.xlu0 %6186
    %6188 = vset.pattern.permute.xlu0 0
    %6189 = vperm.xlu0 %6188, %v6096
    %v6190 = vpop.permute.xlu0 %6189
    %6191 = vset.pattern.permute.xlu0 0
    %6192 = vperm.xlu0 %6191, %v6097
    %v6193 = vpop.permute.xlu0 %6192
    %v6194 = vlaneseq
    %v6195 = vshrl.u32 %v6194, 7
    %v6196 = vsub.s32 %v97, %v6195
    %v6197 = vrot.slane %v6100, %v6196
    %v6198 = vlaneseq
    %v6199 = vshrl.u32 %v6198, 7
    %v6200 = vsub.s32 %v97, %v6199
    %v6201 = vrot.slane %v6103, %v6200
    %v6202 = vlaneseq
    %v6203 = vshrl.u32 %v6202, 7
    %v6204 = vsub.s32 %v97, %v6203
    %v6205 = vrot.slane %v6106, %v6204
    %v6206 = vlaneseq
    %v6207 = vshrl.u32 %v6206, 7
    %v6208 = vsub.s32 %v97, %v6207
    %v6209 = vrot.slane %v6109, %v6208
    %v6210 = vlaneseq
    %v6211 = vshrl.u32 %v6210, 7
    %v6212 = vsub.s32 %v97, %v6211
    %v6213 = vrot.slane %v6112, %v6212
    %v6214 = vlaneseq
    %v6215 = vshrl.u32 %v6214, 7
    %v6216 = vsub.s32 %v97, %v6215
    %v6217 = vrot.slane %v6115, %v6216
    %v6218 = vlaneseq
    %v6219 = vshrl.u32 %v6218, 7
    %v6220 = vsub.s32 %v97, %v6219
    %v6221 = vrot.slane %v6118, %v6220
    %v6222 = vlaneseq
    %v6223 = vshrl.u32 %v6222, 7
    %v6224 = vsub.s32 %v97, %v6223
    %v6225 = vrot.slane %v6121, %v6224
    %v6226 = vlaneseq
    %v6227 = vshrl.u32 %v6226, 7
    %v6228 = vsub.s32 %v97, %v6227
    %v6229 = vrot.slane %v6124, %v6228
    %v6230 = vlaneseq
    %v6231 = vshrl.u32 %v6230, 7
    %v6232 = vsub.s32 %v97, %v6231
    %v6233 = vrot.slane %v6127, %v6232
    %v6234 = vlaneseq
    %v6235 = vshrl.u32 %v6234, 7
    %v6236 = vsub.s32 %v97, %v6235
    %v6237 = vrot.slane %v6130, %v6236
    %v6238 = vlaneseq
    %v6239 = vshrl.u32 %v6238, 7
    %v6240 = vsub.s32 %v97, %v6239
    %v6241 = vrot.slane %v6133, %v6240
    %v6242 = vlaneseq
    %v6243 = vshrl.u32 %v6242, 7
    %v6244 = vsub.s32 %v97, %v6243
    %v6245 = vrot.slane %v6136, %v6244
    %v6246 = vlaneseq
    %v6247 = vshrl.u32 %v6246, 7
    %v6248 = vsub.s32 %v97, %v6247
    %v6249 = vrot.slane %v6139, %v6248
    %v6250 = vlaneseq
    %v6251 = vshrl.u32 %v6250, 7
    %v6252 = vsub.s32 %v97, %v6251
    %v6253 = vrot.slane %v6142, %v6252
    %v6254 = vlaneseq
    %v6255 = vshrl.u32 %v6254, 7
    %v6256 = vsub.s32 %v97, %v6255
    %v6257 = vrot.slane %v6145, %v6256
    %v6258 = vlaneseq
    %v6259 = vshrl.u32 %v6258, 7
    %v6260 = vsub.s32 %v97, %v6259
    %v6261 = vrot.slane %v6148, %v6260
    %v6262 = vlaneseq
    %v6263 = vshrl.u32 %v6262, 7
    %v6264 = vsub.s32 %v97, %v6263
    %v6265 = vrot.slane %v6151, %v6264
    %v6266 = vlaneseq
    %v6267 = vshrl.u32 %v6266, 7
    %v6268 = vsub.s32 %v97, %v6267
    %v6269 = vrot.slane %v6154, %v6268
    %v6270 = vlaneseq
    %v6271 = vshrl.u32 %v6270, 7
    %v6272 = vsub.s32 %v97, %v6271
    %v6273 = vrot.slane %v6157, %v6272
    %v6274 = vlaneseq
    %v6275 = vshrl.u32 %v6274, 7
    %v6276 = vsub.s32 %v97, %v6275
    %v6277 = vrot.slane %v6160, %v6276
    %v6278 = vlaneseq
    %v6279 = vshrl.u32 %v6278, 7
    %v6280 = vsub.s32 %v97, %v6279
    %v6281 = vrot.slane %v6163, %v6280
    %v6282 = vlaneseq
    %v6283 = vshrl.u32 %v6282, 7
    %v6284 = vsub.s32 %v97, %v6283
    %v6285 = vrot.slane %v6166, %v6284
    %v6286 = vlaneseq
    %v6287 = vshrl.u32 %v6286, 7
    %v6288 = vsub.s32 %v97, %v6287
    %v6289 = vrot.slane %v6169, %v6288
    %v6290 = vlaneseq
    %v6291 = vshrl.u32 %v6290, 7
    %v6292 = vsub.s32 %v97, %v6291
    %v6293 = vrot.slane %v6172, %v6292
    %v6294 = vlaneseq
    %v6295 = vshrl.u32 %v6294, 7
    %v6296 = vsub.s32 %v97, %v6295
    %v6297 = vrot.slane %v6175, %v6296
    %v6298 = vlaneseq
    %v6299 = vshrl.u32 %v6298, 7
    %v6300 = vsub.s32 %v97, %v6299
    %v6301 = vrot.slane %v6178, %v6300
    %v6302 = vlaneseq
    %v6303 = vshrl.u32 %v6302, 7
    %v6304 = vsub.s32 %v97, %v6303
    %v6305 = vrot.slane %v6181, %v6304
    %v6306 = vlaneseq
    %v6307 = vshrl.u32 %v6306, 7
    %v6308 = vsub.s32 %v97, %v6307
    %v6309 = vrot.slane %v6184, %v6308
    %v6310 = vlaneseq
    %v6311 = vshrl.u32 %v6310, 7
    %v6312 = vsub.s32 %v97, %v6311
    %v6313 = vrot.slane %v6187, %v6312
    %v6314 = vlaneseq
    %v6315 = vshrl.u32 %v6314, 7
    %v6316 = vsub.s32 %v97, %v6315
    %v6317 = vrot.slane %v6190, %v6316
    %v6318 = vlaneseq
    %v6319 = vshrl.u32 %v6318, 7
    %v6320 = vsub.s32 %v97, %v6319
    %v6321 = vrot.slane %v6193, %v6320
    %v6322 = vsel %vm1505, %v6201, %v6197
    %v6323 = vsel %vm1507, %v6205, %v6322
    %v6324 = vsel %vm1509, %v6209, %v6323
    %v6325 = vsel %vm2102, %v6213, %v6324
    %v6326 = vsel %vm2104, %v6217, %v6325
    %v6327 = vsel %vm2106, %v6221, %v6326
    %v6328 = vsel %vm2108, %v6225, %v6327
    %v6329 = vsel %vm1505, %v6233, %v6229
    %v6330 = vsel %vm1507, %v6237, %v6329
    %v6331 = vsel %vm1509, %v6241, %v6330
    %v6332 = vsel %vm2102, %v6245, %v6331
    %v6333 = vsel %vm2104, %v6249, %v6332
    %v6334 = vsel %vm2106, %v6253, %v6333
    %v6335 = vsel %vm2108, %v6257, %v6334
    %v6336 = vsel %vm1505, %v6265, %v6261
    %v6337 = vsel %vm1507, %v6269, %v6336
    %v6338 = vsel %vm1509, %v6273, %v6337
    %v6339 = vsel %vm2102, %v6277, %v6338
    %v6340 = vsel %vm2104, %v6281, %v6339
    %v6341 = vsel %vm2106, %v6285, %v6340
    %v6342 = vsel %vm2108, %v6289, %v6341
    %v6343 = vsel %vm1505, %v6297, %v6293
    %v6344 = vsel %vm1507, %v6301, %v6343
    %v6345 = vsel %vm1509, %v6305, %v6344
    %v6346 = vsel %vm2102, %v6309, %v6345
    %v6347 = vsel %vm2104, %v6313, %v6346
    %v6348 = vsel %vm2106, %v6317, %v6347
    %v6349 = vsel %vm2108, %v6321, %v6348
    %v6350 = vsel %vm1408, %v6328, 2147483647
    %v6351 = vand.u32 %v6350, 65535
    %v6352 = vshra.s32 %v6350, 16
    %v6353 = vcvt.s32.f32 %v6351
    %v6354 = vcvt.s32.f32 %v6352
    %6355 = vmin.xlane.f32.xlu0 %v6354
    %v6356 = vpop.xlane.xlu0 %6355
    %vm6357 = vcmp.eq.f32.partialorder %v6354, %v6356
    %v6358 = vsel %vm6357, %v6353, inf
    %6359 = vmin.xlane.f32.xlu0 %v6358
    %v6360 = vpop.xlane.xlu0 %6359
    %v6361 = vcvt.f32.s32 %v6360
    %v6362 = vcvt.f32.s32 %v6356
    %v6363 = vshll.u32 %v6362, 16
    %v6364 = vadd.s32 %v6363, %v6361
    %v6365 = vsel %vm1408, %v6335, 2147483647
    %v6366 = vand.u32 %v6365, 65535
    %v6367 = vshra.s32 %v6365, 16
    %v6368 = vcvt.s32.f32 %v6366
    %v6369 = vcvt.s32.f32 %v6367
    %6370 = vmin.xlane.f32.xlu0 %v6369
    %v6371 = vpop.xlane.xlu0 %6370
    %vm6372 = vcmp.eq.f32.partialorder %v6369, %v6371
    %v6373 = vsel %vm6372, %v6368, inf
    %6374 = vmin.xlane.f32.xlu0 %v6373
    %v6375 = vpop.xlane.xlu0 %6374
    %v6376 = vcvt.f32.s32 %v6375
    %v6377 = vcvt.f32.s32 %v6371
    %v6378 = vshll.u32 %v6377, 16
    %v6379 = vadd.s32 %v6378, %v6376
    %v6380 = vsel %vm1408, %v6342, 2147483647
    %v6381 = vand.u32 %v6380, 65535
    %v6382 = vshra.s32 %v6380, 16
    %v6383 = vcvt.s32.f32 %v6381
    %v6384 = vcvt.s32.f32 %v6382
    %6385 = vmin.xlane.f32.xlu0 %v6384
    %v6386 = vpop.xlane.xlu0 %6385
    %vm6387 = vcmp.eq.f32.partialorder %v6384, %v6386
    %v6388 = vsel %vm6387, %v6383, inf
    %6389 = vmin.xlane.f32.xlu0 %v6388
    %v6390 = vpop.xlane.xlu0 %6389
    %v6391 = vcvt.f32.s32 %v6390
    %v6392 = vcvt.f32.s32 %v6386
    %v6393 = vshll.u32 %v6392, 16
    %v6394 = vadd.s32 %v6393, %v6391
    %v6395 = vsel %vm1408, %v6349, 2147483647
    %v6396 = vand.u32 %v6395, 65535
    %v6397 = vshra.s32 %v6395, 16
    %v6398 = vcvt.s32.f32 %v6396
    %v6399 = vcvt.s32.f32 %v6397
    %6400 = vmin.xlane.f32.xlu0 %v6399
    %v6401 = vpop.xlane.xlu0 %6400
    %vm6402 = vcmp.eq.f32.partialorder %v6399, %v6401
    %v6403 = vsel %vm6402, %v6398, inf
    %6404 = vmin.xlane.f32.xlu0 %v6403
    %v6405 = vpop.xlane.xlu0 %6404
    %v6406 = vcvt.f32.s32 %v6405
    %v6407 = vcvt.f32.s32 %v6401
    %v6408 = vshll.u32 %v6407, 16
    %v6409 = vadd.s32 %v6408, %v6406
    %v6410 = vlaneseq
    %v6411 = vshrl.u32 %v6410, 7
    %v6412 = vsub.s32 %v97, %v6411
    %v6413 = vrot.slane %v6364, %v6412
    %v6414 = vlaneseq
    %v6415 = vshrl.u32 %v6414, 7
    %v6416 = vsub.s32 %v97, %v6415
    %v6417 = vrot.slane %v6379, %v6416
    %v6418 = vlaneseq
    %v6419 = vshrl.u32 %v6418, 7
    %v6420 = vsub.s32 %v97, %v6419
    %v6421 = vrot.slane %v6394, %v6420
    %v6422 = vlaneseq
    %v6423 = vshrl.u32 %v6422, 7
    %v6424 = vsub.s32 %v97, %v6423
    %v6425 = vrot.slane %v6409, %v6424
    %v6426 = vsel %vm1505, %v6417, %v6413
    %v6427 = vsel %vm1507, %v6421, %v6426
    %v6428 = vsel %vm1509, %v6425, %v6427
    %6429 = vst.msk [vmem:[#allocation5 + $0x18] sm:$0xf] %vm1511, %v6428
    %v6430 = vld [vmem:[#allocation4 + $0x18] sm:$0xf]
    %v6432 = vlaneseq
    %v6433 = vshrl.u32 %v6432, 7
    %v6434 = vsub.s32 0, %v6433
    %v6435 = vrot.slane %v6430, %v6434
    %6437 = vbcast.lane.b32.xlu0 %v6435, 256
    %v6438 = vpop.permute.xlu0 %6437
    %v6439 = vlaneseq
    %v6440 = vshrl.u32 %v6439, 7
    %v6441 = vsub.s32 1, %v6440
    %v6442 = vrot.slane %v6430, %v6441
    %6444 = vbcast.lane.b32.xlu0 %v6442, 256
    %v6445 = vpop.permute.xlu0 %6444
    %v6446 = vlaneseq
    %v6447 = vshrl.u32 %v6446, 7
    %v6448 = vsub.s32 2, %v6447
    %v6449 = vrot.slane %v6430, %v6448
    %6451 = vbcast.lane.b32.xlu0 %v6449, 256
    %v6452 = vpop.permute.xlu0 %6451
    %v6453 = vlaneseq
    %v6454 = vshrl.u32 %v6453, 7
    %v6455 = vsub.s32 3, %v6454
    %v6456 = vrot.slane %v6430, %v6455
    %6458 = vbcast.lane.b32.xlu0 %v6456, 256
    %v6459 = vpop.permute.xlu0 %6458
    %v6464 = vadd.f32 %v5860, %v6438
    %v6465 = vadd.f32 %v5863, %v6445
    %v6466 = vadd.f32 %v5866, %v6452
    %v6467 = vadd.f32 %v5869, %v6459
    %v6468 = vadd.f32 %v6464, %v1561
    %v6469 = vadd.f32 %v6464, %v1568
    %v6470 = vadd.f32 %v6464, %v1575
    %v6471 = vadd.f32 %v6464, %v1582
    %v6472 = vadd.f32 %v6464, %v1589
    %v6473 = vadd.f32 %v6464, %v1596
    %v6474 = vadd.f32 %v6464, %v1603
    %v6475 = vadd.f32 %v6464, %v1610
    %v6476 = vadd.f32 %v6465, %v1617
    %v6477 = vadd.f32 %v6465, %v1624
    %v6478 = vadd.f32 %v6465, %v1631
    %v6479 = vadd.f32 %v6465, %v1638
    %v6480 = vadd.f32 %v6465, %v1645
    %v6481 = vadd.f32 %v6465, %v1652
    %v6482 = vadd.f32 %v6465, %v1659
    %v6483 = vadd.f32 %v6465, %v1666
    %v6484 = vadd.f32 %v6466, %v1673
    %v6485 = vadd.f32 %v6466, %v1680
    %v6486 = vadd.f32 %v6466, %v1687
    %v6487 = vadd.f32 %v6466, %v1694
    %v6488 = vadd.f32 %v6466, %v1701
    %v6489 = vadd.f32 %v6466, %v1708
    %v6490 = vadd.f32 %v6466, %v1715
    %v6491 = vadd.f32 %v6466, %v1722
    %v6492 = vadd.f32 %v6467, %v1729
    %v6493 = vadd.f32 %v6467, %v1736
    %v6494 = vadd.f32 %v6467, %v1743
    %v6495 = vadd.f32 %v6467, %v1750
    %v6496 = vadd.f32 %v6467, %v1757
    %v6497 = vadd.f32 %v6467, %v1764
    %v6498 = vadd.f32 %v6467, %v1771
    %v6499 = vadd.f32 %v6467, %v1778
    %6532 = vset.pattern.permute.xlu0 0
    %6533 = vperm.xlu0 %6532, %v6468
    %v6534 = vpop.permute.xlu0 %6533
    %6535 = vset.pattern.permute.xlu0 0
    %6536 = vperm.xlu0 %6535, %v6469
    %v6537 = vpop.permute.xlu0 %6536
    %6538 = vset.pattern.permute.xlu0 0
    %6539 = vperm.xlu0 %6538, %v6470
    %v6540 = vpop.permute.xlu0 %6539
    %6541 = vset.pattern.permute.xlu0 0
    %6542 = vperm.xlu0 %6541, %v6471
    %v6543 = vpop.permute.xlu0 %6542
    %6544 = vset.pattern.permute.xlu0 0
    %6545 = vperm.xlu0 %6544, %v6472
    %v6546 = vpop.permute.xlu0 %6545
    %6547 = vset.pattern.permute.xlu0 0
    %6548 = vperm.xlu0 %6547, %v6473
    %v6549 = vpop.permute.xlu0 %6548
    %6550 = vset.pattern.permute.xlu0 0
    %6551 = vperm.xlu0 %6550, %v6474
    %v6552 = vpop.permute.xlu0 %6551
    %6553 = vset.pattern.permute.xlu0 0
    %6554 = vperm.xlu0 %6553, %v6475
    %v6555 = vpop.permute.xlu0 %6554
    %6556 = vset.pattern.permute.xlu0 0
    %6557 = vperm.xlu0 %6556, %v6476
    %v6558 = vpop.permute.xlu0 %6557
    %6559 = vset.pattern.permute.xlu0 0
    %6560 = vperm.xlu0 %6559, %v6477
    %v6561 = vpop.permute.xlu0 %6560
    %6562 = vset.pattern.permute.xlu0 0
    %6563 = vperm.xlu0 %6562, %v6478
    %v6564 = vpop.permute.xlu0 %6563
    %6565 = vset.pattern.permute.xlu0 0
    %6566 = vperm.xlu0 %6565, %v6479
    %v6567 = vpop.permute.xlu0 %6566
    %6568 = vset.pattern.permute.xlu0 0
    %6569 = vperm.xlu0 %6568, %v6480
    %v6570 = vpop.permute.xlu0 %6569
    %6571 = vset.pattern.permute.xlu0 0
    %6572 = vperm.xlu0 %6571, %v6481
    %v6573 = vpop.permute.xlu0 %6572
    %6574 = vset.pattern.permute.xlu0 0
    %6575 = vperm.xlu0 %6574, %v6482
    %v6576 = vpop.permute.xlu0 %6575
    %6577 = vset.pattern.permute.xlu0 0
    %6578 = vperm.xlu0 %6577, %v6483
    %v6579 = vpop.permute.xlu0 %6578
    %6580 = vset.pattern.permute.xlu0 0
    %6581 = vperm.xlu0 %6580, %v6484
    %v6582 = vpop.permute.xlu0 %6581
    %6583 = vset.pattern.permute.xlu0 0
    %6584 = vperm.xlu0 %6583, %v6485
    %v6585 = vpop.permute.xlu0 %6584
    %6586 = vset.pattern.permute.xlu0 0
    %6587 = vperm.xlu0 %6586, %v6486
    %v6588 = vpop.permute.xlu0 %6587
    %6589 = vset.pattern.permute.xlu0 0
    %6590 = vperm.xlu0 %6589, %v6487
    %v6591 = vpop.permute.xlu0 %6590
    %6592 = vset.pattern.permute.xlu0 0
    %6593 = vperm.xlu0 %6592, %v6488
    %v6594 = vpop.permute.xlu0 %6593
    %6595 = vset.pattern.permute.xlu0 0
    %6596 = vperm.xlu0 %6595, %v6489
    %v6597 = vpop.permute.xlu0 %6596
    %6598 = vset.pattern.permute.xlu0 0
    %6599 = vperm.xlu0 %6598, %v6490
    %v6600 = vpop.permute.xlu0 %6599
    %6601 = vset.pattern.permute.xlu0 0
    %6602 = vperm.xlu0 %6601, %v6491
    %v6603 = vpop.permute.xlu0 %6602
    %6604 = vset.pattern.permute.xlu0 0
    %6605 = vperm.xlu0 %6604, %v6492
    %v6606 = vpop.permute.xlu0 %6605
    %6607 = vset.pattern.permute.xlu0 0
    %6608 = vperm.xlu0 %6607, %v6493
    %v6609 = vpop.permute.xlu0 %6608
    %6610 = vset.pattern.permute.xlu0 0
    %6611 = vperm.xlu0 %6610, %v6494
    %v6612 = vpop.permute.xlu0 %6611
    %6613 = vset.pattern.permute.xlu0 0
    %6614 = vperm.xlu0 %6613, %v6495
    %v6615 = vpop.permute.xlu0 %6614
    %6616 = vset.pattern.permute.xlu0 0
    %6617 = vperm.xlu0 %6616, %v6496
    %v6618 = vpop.permute.xlu0 %6617
    %6619 = vset.pattern.permute.xlu0 0
    %6620 = vperm.xlu0 %6619, %v6497
    %v6621 = vpop.permute.xlu0 %6620
    %6622 = vset.pattern.permute.xlu0 0
    %6623 = vperm.xlu0 %6622, %v6498
    %v6624 = vpop.permute.xlu0 %6623
    %6625 = vset.pattern.permute.xlu0 0
    %6626 = vperm.xlu0 %6625, %v6499
    %v6627 = vpop.permute.xlu0 %6626
    %v6628 = vlaneseq
    %v6629 = vshrl.u32 %v6628, 7
    %v6630 = vsub.s32 %v97, %v6629
    %v6631 = vrot.slane %v6534, %v6630
    %v6632 = vlaneseq
    %v6633 = vshrl.u32 %v6632, 7
    %v6634 = vsub.s32 %v97, %v6633
    %v6635 = vrot.slane %v6537, %v6634
    %v6636 = vlaneseq
    %v6637 = vshrl.u32 %v6636, 7
    %v6638 = vsub.s32 %v97, %v6637
    %v6639 = vrot.slane %v6540, %v6638
    %v6640 = vlaneseq
    %v6641 = vshrl.u32 %v6640, 7
    %v6642 = vsub.s32 %v97, %v6641
    %v6643 = vrot.slane %v6543, %v6642
    %v6644 = vlaneseq
    %v6645 = vshrl.u32 %v6644, 7
    %v6646 = vsub.s32 %v97, %v6645
    %v6647 = vrot.slane %v6546, %v6646
    %v6648 = vlaneseq
    %v6649 = vshrl.u32 %v6648, 7
    %v6650 = vsub.s32 %v97, %v6649
    %v6651 = vrot.slane %v6549, %v6650
    %v6652 = vlaneseq
    %v6653 = vshrl.u32 %v6652, 7
    %v6654 = vsub.s32 %v97, %v6653
    %v6655 = vrot.slane %v6552, %v6654
    %v6656 = vlaneseq
    %v6657 = vshrl.u32 %v6656, 7
    %v6658 = vsub.s32 %v97, %v6657
    %v6659 = vrot.slane %v6555, %v6658
    %v6660 = vlaneseq
    %v6661 = vshrl.u32 %v6660, 7
    %v6662 = vsub.s32 %v97, %v6661
    %v6663 = vrot.slane %v6558, %v6662
    %v6664 = vlaneseq
    %v6665 = vshrl.u32 %v6664, 7
    %v6666 = vsub.s32 %v97, %v6665
    %v6667 = vrot.slane %v6561, %v6666
    %v6668 = vlaneseq
    %v6669 = vshrl.u32 %v6668, 7
    %v6670 = vsub.s32 %v97, %v6669
    %v6671 = vrot.slane %v6564, %v6670
    %v6672 = vlaneseq
    %v6673 = vshrl.u32 %v6672, 7
    %v6674 = vsub.s32 %v97, %v6673
    %v6675 = vrot.slane %v6567, %v6674
    %v6676 = vlaneseq
    %v6677 = vshrl.u32 %v6676, 7
    %v6678 = vsub.s32 %v97, %v6677
    %v6679 = vrot.slane %v6570, %v6678
    %v6680 = vlaneseq
    %v6681 = vshrl.u32 %v6680, 7
    %v6682 = vsub.s32 %v97, %v6681
    %v6683 = vrot.slane %v6573, %v6682
    %v6684 = vlaneseq
    %v6685 = vshrl.u32 %v6684, 7
    %v6686 = vsub.s32 %v97, %v6685
    %v6687 = vrot.slane %v6576, %v6686
    %v6688 = vlaneseq
    %v6689 = vshrl.u32 %v6688, 7
    %v6690 = vsub.s32 %v97, %v6689
    %v6691 = vrot.slane %v6579, %v6690
    %v6692 = vlaneseq
    %v6693 = vshrl.u32 %v6692, 7
    %v6694 = vsub.s32 %v97, %v6693
    %v6695 = vrot.slane %v6582, %v6694
    %v6696 = vlaneseq
    %v6697 = vshrl.u32 %v6696, 7
    %v6698 = vsub.s32 %v97, %v6697
    %v6699 = vrot.slane %v6585, %v6698
    %v6700 = vlaneseq
    %v6701 = vshrl.u32 %v6700, 7
    %v6702 = vsub.s32 %v97, %v6701
    %v6703 = vrot.slane %v6588, %v6702
    %v6704 = vlaneseq
    %v6705 = vshrl.u32 %v6704, 7
    %v6706 = vsub.s32 %v97, %v6705
    %v6707 = vrot.slane %v6591, %v6706
    %v6708 = vlaneseq
    %v6709 = vshrl.u32 %v6708, 7
    %v6710 = vsub.s32 %v97, %v6709
    %v6711 = vrot.slane %v6594, %v6710
    %v6712 = vlaneseq
    %v6713 = vshrl.u32 %v6712, 7
    %v6714 = vsub.s32 %v97, %v6713
    %v6715 = vrot.slane %v6597, %v6714
    %v6716 = vlaneseq
    %v6717 = vshrl.u32 %v6716, 7
    %v6718 = vsub.s32 %v97, %v6717
    %v6719 = vrot.slane %v6600, %v6718
    %v6720 = vlaneseq
    %v6721 = vshrl.u32 %v6720, 7
    %v6722 = vsub.s32 %v97, %v6721
    %v6723 = vrot.slane %v6603, %v6722
    %v6724 = vlaneseq
    %v6725 = vshrl.u32 %v6724, 7
    %v6726 = vsub.s32 %v97, %v6725
    %v6727 = vrot.slane %v6606, %v6726
    %v6728 = vlaneseq
    %v6729 = vshrl.u32 %v6728, 7
    %v6730 = vsub.s32 %v97, %v6729
    %v6731 = vrot.slane %v6609, %v6730
    %v6732 = vlaneseq
    %v6733 = vshrl.u32 %v6732, 7
    %v6734 = vsub.s32 %v97, %v6733
    %v6735 = vrot.slane %v6612, %v6734
    %v6736 = vlaneseq
    %v6737 = vshrl.u32 %v6736, 7
    %v6738 = vsub.s32 %v97, %v6737
    %v6739 = vrot.slane %v6615, %v6738
    %v6740 = vlaneseq
    %v6741 = vshrl.u32 %v6740, 7
    %v6742 = vsub.s32 %v97, %v6741
    %v6743 = vrot.slane %v6618, %v6742
    %v6744 = vlaneseq
    %v6745 = vshrl.u32 %v6744, 7
    %v6746 = vsub.s32 %v97, %v6745
    %v6747 = vrot.slane %v6621, %v6746
    %v6748 = vlaneseq
    %v6749 = vshrl.u32 %v6748, 7
    %v6750 = vsub.s32 %v97, %v6749
    %v6751 = vrot.slane %v6624, %v6750
    %v6752 = vlaneseq
    %v6753 = vshrl.u32 %v6752, 7
    %v6754 = vsub.s32 %v97, %v6753
    %v6755 = vrot.slane %v6627, %v6754
    %v6756 = vsel %vm1505, %v6635, %v6631
    %v6757 = vsel %vm1507, %v6639, %v6756
    %v6758 = vsel %vm1509, %v6643, %v6757
    %v6759 = vsel %vm2102, %v6647, %v6758
    %v6760 = vsel %vm2104, %v6651, %v6759
    %v6761 = vsel %vm2106, %v6655, %v6760
    %v6762 = vsel %vm2108, %v6659, %v6761
    %v6763 = vsel %vm1505, %v6667, %v6663
    %v6764 = vsel %vm1507, %v6671, %v6763
    %v6765 = vsel %vm1509, %v6675, %v6764
    %v6766 = vsel %vm2102, %v6679, %v6765
    %v6767 = vsel %vm2104, %v6683, %v6766
    %v6768 = vsel %vm2106, %v6687, %v6767
    %v6769 = vsel %vm2108, %v6691, %v6768
    %v6770 = vsel %vm1505, %v6699, %v6695
    %v6771 = vsel %vm1507, %v6703, %v6770
    %v6772 = vsel %vm1509, %v6707, %v6771
    %v6773 = vsel %vm2102, %v6711, %v6772
    %v6774 = vsel %vm2104, %v6715, %v6773
    %v6775 = vsel %vm2106, %v6719, %v6774
    %v6776 = vsel %vm2108, %v6723, %v6775
    %v6777 = vsel %vm1505, %v6731, %v6727
    %v6778 = vsel %vm1507, %v6735, %v6777
    %v6779 = vsel %vm1509, %v6739, %v6778
    %v6780 = vsel %vm2102, %v6743, %v6779
    %v6781 = vsel %vm2104, %v6747, %v6780
    %v6782 = vsel %vm2106, %v6751, %v6781
    %v6783 = vsel %vm2108, %v6755, %v6782
    %v6788 = vsel %vm1408, %v6762, -inf
    %6789 = vmax.xlane.f32.xlu0 %v6788
    %v6790 = vpop.xlane.xlu0 %6789
    %v6791 = vsel %vm1408, %v6769, -inf
    %6792 = vmax.xlane.f32.xlu0 %v6791
    %v6793 = vpop.xlane.xlu0 %6792
    %v6794 = vsel %vm1408, %v6776, -inf
    %6795 = vmax.xlane.f32.xlu0 %v6794
    %v6796 = vpop.xlane.xlu0 %6795
    %v6797 = vsel %vm1408, %v6783, -inf
    %6798 = vmax.xlane.f32.xlu0 %v6797
    %v6799 = vpop.xlane.xlu0 %6798
    %v6804 = vlaneseq
    %v6805 = vshrl.u32 %v6804, 7
    %v6806 = vsub.s32 0, %v6805
    %v6807 = vrot.slane %v6790, %v6806
    %v6808 = vlaneseq
    %v6809 = vshrl.u32 %v6808, 7
    %v6810 = vsub.s32 1, %v6809
    %v6811 = vrot.slane %v6790, %v6810
    %v6812 = vlaneseq
    %v6813 = vshrl.u32 %v6812, 7
    %v6814 = vsub.s32 2, %v6813
    %v6815 = vrot.slane %v6790, %v6814
    %v6816 = vlaneseq
    %v6817 = vshrl.u32 %v6816, 7
    %v6818 = vsub.s32 3, %v6817
    %v6819 = vrot.slane %v6790, %v6818
    %v6820 = vlaneseq
    %v6821 = vshrl.u32 %v6820, 7
    %v6822 = vsub.s32 4, %v6821
    %v6823 = vrot.slane %v6790, %v6822
    %v6824 = vlaneseq
    %v6825 = vshrl.u32 %v6824, 7
    %v6826 = vsub.s32 5, %v6825
    %v6827 = vrot.slane %v6790, %v6826
    %v6828 = vlaneseq
    %v6829 = vshrl.u32 %v6828, 7
    %v6830 = vsub.s32 6, %v6829
    %v6831 = vrot.slane %v6790, %v6830
    %v6832 = vlaneseq
    %v6833 = vshrl.u32 %v6832, 7
    %v6834 = vsub.s32 7, %v6833
    %v6835 = vrot.slane %v6790, %v6834
    %v6836 = vlaneseq
    %v6837 = vshrl.u32 %v6836, 7
    %v6838 = vsub.s32 0, %v6837
    %v6839 = vrot.slane %v6793, %v6838
    %v6840 = vlaneseq
    %v6841 = vshrl.u32 %v6840, 7
    %v6842 = vsub.s32 1, %v6841
    %v6843 = vrot.slane %v6793, %v6842
    %v6844 = vlaneseq
    %v6845 = vshrl.u32 %v6844, 7
    %v6846 = vsub.s32 2, %v6845
    %v6847 = vrot.slane %v6793, %v6846
    %v6848 = vlaneseq
    %v6849 = vshrl.u32 %v6848, 7
    %v6850 = vsub.s32 3, %v6849
    %v6851 = vrot.slane %v6793, %v6850
    %v6852 = vlaneseq
    %v6853 = vshrl.u32 %v6852, 7
    %v6854 = vsub.s32 4, %v6853
    %v6855 = vrot.slane %v6793, %v6854
    %v6856 = vlaneseq
    %v6857 = vshrl.u32 %v6856, 7
    %v6858 = vsub.s32 5, %v6857
    %v6859 = vrot.slane %v6793, %v6858
    %v6860 = vlaneseq
    %v6861 = vshrl.u32 %v6860, 7
    %v6862 = vsub.s32 6, %v6861
    %v6863 = vrot.slane %v6793, %v6862
    %v6864 = vlaneseq
    %v6865 = vshrl.u32 %v6864, 7
    %v6866 = vsub.s32 7, %v6865
    %v6867 = vrot.slane %v6793, %v6866
    %v6868 = vlaneseq
    %v6869 = vshrl.u32 %v6868, 7
    %v6870 = vsub.s32 0, %v6869
    %v6871 = vrot.slane %v6796, %v6870
    %v6872 = vlaneseq
    %v6873 = vshrl.u32 %v6872, 7
    %v6874 = vsub.s32 1, %v6873
    %v6875 = vrot.slane %v6796, %v6874
    %v6876 = vlaneseq
    %v6877 = vshrl.u32 %v6876, 7
    %v6878 = vsub.s32 2, %v6877
    %v6879 = vrot.slane %v6796, %v6878
    %v6880 = vlaneseq
    %v6881 = vshrl.u32 %v6880, 7
    %v6882 = vsub.s32 3, %v6881
    %v6883 = vrot.slane %v6796, %v6882
    %v6884 = vlaneseq
    %v6885 = vshrl.u32 %v6884, 7
    %v6886 = vsub.s32 4, %v6885
    %v6887 = vrot.slane %v6796, %v6886
    %v6888 = vlaneseq
    %v6889 = vshrl.u32 %v6888, 7
    %v6890 = vsub.s32 5, %v6889
    %v6891 = vrot.slane %v6796, %v6890
    %v6892 = vlaneseq
    %v6893 = vshrl.u32 %v6892, 7
    %v6894 = vsub.s32 6, %v6893
    %v6895 = vrot.slane %v6796, %v6894
    %v6896 = vlaneseq
    %v6897 = vshrl.u32 %v6896, 7
    %v6898 = vsub.s32 7, %v6897
    %v6899 = vrot.slane %v6796, %v6898
    %v6900 = vlaneseq
    %v6901 = vshrl.u32 %v6900, 7
    %v6902 = vsub.s32 0, %v6901
    %v6903 = vrot.slane %v6799, %v6902
    %v6904 = vlaneseq
    %v6905 = vshrl.u32 %v6904, 7
    %v6906 = vsub.s32 1, %v6905
    %v6907 = vrot.slane %v6799, %v6906
    %v6908 = vlaneseq
    %v6909 = vshrl.u32 %v6908, 7
    %v6910 = vsub.s32 2, %v6909
    %v6911 = vrot.slane %v6799, %v6910
    %v6912 = vlaneseq
    %v6913 = vshrl.u32 %v6912, 7
    %v6914 = vsub.s32 3, %v6913
    %v6915 = vrot.slane %v6799, %v6914
    %v6916 = vlaneseq
    %v6917 = vshrl.u32 %v6916, 7
    %v6918 = vsub.s32 4, %v6917
    %v6919 = vrot.slane %v6799, %v6918
    %v6920 = vlaneseq
    %v6921 = vshrl.u32 %v6920, 7
    %v6922 = vsub.s32 5, %v6921
    %v6923 = vrot.slane %v6799, %v6922
    %v6924 = vlaneseq
    %v6925 = vshrl.u32 %v6924, 7
    %v6926 = vsub.s32 6, %v6925
    %v6927 = vrot.slane %v6799, %v6926
    %v6928 = vlaneseq
    %v6929 = vshrl.u32 %v6928, 7
    %v6930 = vsub.s32 7, %v6929
    %v6931 = vrot.slane %v6799, %v6930
    %vm6964 = vcmp.eq.f32.partialorder %v6468, %v6807
    %vm6965 = vcmp.eq.f32.partialorder %v6469, %v6811
    %vm6966 = vcmp.eq.f32.partialorder %v6470, %v6815
    %vm6967 = vcmp.eq.f32.partialorder %v6471, %v6819
    %vm6968 = vcmp.eq.f32.partialorder %v6472, %v6823
    %vm6969 = vcmp.eq.f32.partialorder %v6473, %v6827
    %vm6970 = vcmp.eq.f32.partialorder %v6474, %v6831
    %vm6971 = vcmp.eq.f32.partialorder %v6475, %v6835
    %vm6972 = vcmp.eq.f32.partialorder %v6476, %v6839
    %vm6973 = vcmp.eq.f32.partialorder %v6477, %v6843
    %vm6974 = vcmp.eq.f32.partialorder %v6478, %v6847
    %vm6975 = vcmp.eq.f32.partialorder %v6479, %v6851
    %vm6976 = vcmp.eq.f32.partialorder %v6480, %v6855
    %vm6977 = vcmp.eq.f32.partialorder %v6481, %v6859
    %vm6978 = vcmp.eq.f32.partialorder %v6482, %v6863
    %vm6979 = vcmp.eq.f32.partialorder %v6483, %v6867
    %vm6980 = vcmp.eq.f32.partialorder %v6484, %v6871
    %vm6981 = vcmp.eq.f32.partialorder %v6485, %v6875
    %vm6982 = vcmp.eq.f32.partialorder %v6486, %v6879
    %vm6983 = vcmp.eq.f32.partialorder %v6487, %v6883
    %vm6984 = vcmp.eq.f32.partialorder %v6488, %v6887
    %vm6985 = vcmp.eq.f32.partialorder %v6489, %v6891
    %vm6986 = vcmp.eq.f32.partialorder %v6490, %v6895
    %vm6987 = vcmp.eq.f32.partialorder %v6491, %v6899
    %vm6988 = vcmp.eq.f32.partialorder %v6492, %v6903
    %vm6989 = vcmp.eq.f32.partialorder %v6493, %v6907
    %vm6990 = vcmp.eq.f32.partialorder %v6494, %v6911
    %vm6991 = vcmp.eq.f32.partialorder %v6495, %v6915
    %vm6992 = vcmp.eq.f32.partialorder %v6496, %v6919
    %vm6993 = vcmp.eq.f32.partialorder %v6497, %v6923
    %vm6994 = vcmp.eq.f32.partialorder %v6498, %v6927
    %vm6995 = vcmp.eq.f32.partialorder %v6499, %v6931
    %v6996 = vsel %vm6964, %v2345, 8
    %v6997 = vsel %vm6965, %v2345, 8
    %v6998 = vsel %vm6966, %v2345, 8
    %v6999 = vsel %vm6967, %v2345, 8
    %v7000 = vsel %vm6968, %v2345, 8
    %v7001 = vsel %vm6969, %v2345, 8
    %v7002 = vsel %vm6970, %v2345, 8
    %v7003 = vsel %vm6971, %v2345, 8
    %v7004 = vsel %vm6972, %v2345, 8
    %v7005 = vsel %vm6973, %v2345, 8
    %v7006 = vsel %vm6974, %v2345, 8
    %v7007 = vsel %vm6975, %v2345, 8
    %v7008 = vsel %vm6976, %v2345, 8
    %v7009 = vsel %vm6977, %v2345, 8
    %v7010 = vsel %vm6978, %v2345, 8
    %v7011 = vsel %vm6979, %v2345, 8
    %v7012 = vsel %vm6980, %v2345, 8
    %v7013 = vsel %vm6981, %v2345, 8
    %v7014 = vsel %vm6982, %v2345, 8
    %v7015 = vsel %vm6983, %v2345, 8
    %v7016 = vsel %vm6984, %v2345, 8
    %v7017 = vsel %vm6985, %v2345, 8
    %v7018 = vsel %vm6986, %v2345, 8
    %v7019 = vsel %vm6987, %v2345, 8
    %v7020 = vsel %vm6988, %v2345, 8
    %v7021 = vsel %vm6989, %v2345, 8
    %v7022 = vsel %vm6990, %v2345, 8
    %v7023 = vsel %vm6991, %v2345, 8
    %v7024 = vsel %vm6992, %v2345, 8
    %v7025 = vsel %vm6993, %v2345, 8
    %v7026 = vsel %vm6994, %v2345, 8
    %v7027 = vsel %vm6995, %v2345, 8
    %7028 = vset.pattern.permute.xlu0 0
    %7029 = vperm.xlu0 %7028, %v6996
    %v7030 = vpop.permute.xlu0 %7029
    %7031 = vset.pattern.permute.xlu0 0
    %7032 = vperm.xlu0 %7031, %v6997
    %v7033 = vpop.permute.xlu0 %7032
    %7034 = vset.pattern.permute.xlu0 0
    %7035 = vperm.xlu0 %7034, %v6998
    %v7036 = vpop.permute.xlu0 %7035
    %7037 = vset.pattern.permute.xlu0 0
    %7038 = vperm.xlu0 %7037, %v6999
    %v7039 = vpop.permute.xlu0 %7038
    %7040 = vset.pattern.permute.xlu0 0
    %7041 = vperm.xlu0 %7040, %v7000
    %v7042 = vpop.permute.xlu0 %7041
    %7043 = vset.pattern.permute.xlu0 0
    %7044 = vperm.xlu0 %7043, %v7001
    %v7045 = vpop.permute.xlu0 %7044
    %7046 = vset.pattern.permute.xlu0 0
    %7047 = vperm.xlu0 %7046, %v7002
    %v7048 = vpop.permute.xlu0 %7047
    %7049 = vset.pattern.permute.xlu0 0
    %7050 = vperm.xlu0 %7049, %v7003
    %v7051 = vpop.permute.xlu0 %7050
    %7052 = vset.pattern.permute.xlu0 0
    %7053 = vperm.xlu0 %7052, %v7004
    %v7054 = vpop.permute.xlu0 %7053
    %7055 = vset.pattern.permute.xlu0 0
    %7056 = vperm.xlu0 %7055, %v7005
    %v7057 = vpop.permute.xlu0 %7056
    %7058 = vset.pattern.permute.xlu0 0
    %7059 = vperm.xlu0 %7058, %v7006
    %v7060 = vpop.permute.xlu0 %7059
    %7061 = vset.pattern.permute.xlu0 0
    %7062 = vperm.xlu0 %7061, %v7007
    %v7063 = vpop.permute.xlu0 %7062
    %7064 = vset.pattern.permute.xlu0 0
    %7065 = vperm.xlu0 %7064, %v7008
    %v7066 = vpop.permute.xlu0 %7065
    %7067 = vset.pattern.permute.xlu0 0
    %7068 = vperm.xlu0 %7067, %v7009
    %v7069 = vpop.permute.xlu0 %7068
    %7070 = vset.pattern.permute.xlu0 0
    %7071 = vperm.xlu0 %7070, %v7010
    %v7072 = vpop.permute.xlu0 %7071
    %7073 = vset.pattern.permute.xlu0 0
    %7074 = vperm.xlu0 %7073, %v7011
    %v7075 = vpop.permute.xlu0 %7074
    %7076 = vset.pattern.permute.xlu0 0
    %7077 = vperm.xlu0 %7076, %v7012
    %v7078 = vpop.permute.xlu0 %7077
    %7079 = vset.pattern.permute.xlu0 0
    %7080 = vperm.xlu0 %7079, %v7013
    %v7081 = vpop.permute.xlu0 %7080
    %7082 = vset.pattern.permute.xlu0 0
    %7083 = vperm.xlu0 %7082, %v7014
    %v7084 = vpop.permute.xlu0 %7083
    %7085 = vset.pattern.permute.xlu0 0
    %7086 = vperm.xlu0 %7085, %v7015
    %v7087 = vpop.permute.xlu0 %7086
    %7088 = vset.pattern.permute.xlu0 0
    %7089 = vperm.xlu0 %7088, %v7016
    %v7090 = vpop.permute.xlu0 %7089
    %7091 = vset.pattern.permute.xlu0 0
    %7092 = vperm.xlu0 %7091, %v7017
    %v7093 = vpop.permute.xlu0 %7092
    %7094 = vset.pattern.permute.xlu0 0
    %7095 = vperm.xlu0 %7094, %v7018
    %v7096 = vpop.permute.xlu0 %7095
    %7097 = vset.pattern.permute.xlu0 0
    %7098 = vperm.xlu0 %7097, %v7019
    %v7099 = vpop.permute.xlu0 %7098
    %7100 = vset.pattern.permute.xlu0 0
    %7101 = vperm.xlu0 %7100, %v7020
    %v7102 = vpop.permute.xlu0 %7101
    %7103 = vset.pattern.permute.xlu0 0
    %7104 = vperm.xlu0 %7103, %v7021
    %v7105 = vpop.permute.xlu0 %7104
    %7106 = vset.pattern.permute.xlu0 0
    %7107 = vperm.xlu0 %7106, %v7022
    %v7108 = vpop.permute.xlu0 %7107
    %7109 = vset.pattern.permute.xlu0 0
    %7110 = vperm.xlu0 %7109, %v7023
    %v7111 = vpop.permute.xlu0 %7110
    %7112 = vset.pattern.permute.xlu0 0
    %7113 = vperm.xlu0 %7112, %v7024
    %v7114 = vpop.permute.xlu0 %7113
    %7115 = vset.pattern.permute.xlu0 0
    %7116 = vperm.xlu0 %7115, %v7025
    %v7117 = vpop.permute.xlu0 %7116
    %7118 = vset.pattern.permute.xlu0 0
    %7119 = vperm.xlu0 %7118, %v7026
    %v7120 = vpop.permute.xlu0 %7119
    %7121 = vset.pattern.permute.xlu0 0
    %7122 = vperm.xlu0 %7121, %v7027
    %v7123 = vpop.permute.xlu0 %7122
    %v7124 = vlaneseq
    %v7125 = vshrl.u32 %v7124, 7
    %v7126 = vsub.s32 %v97, %v7125
    %v7127 = vrot.slane %v7030, %v7126
    %v7128 = vlaneseq
    %v7129 = vshrl.u32 %v7128, 7
    %v7130 = vsub.s32 %v97, %v7129
    %v7131 = vrot.slane %v7033, %v7130
    %v7132 = vlaneseq
    %v7133 = vshrl.u32 %v7132, 7
    %v7134 = vsub.s32 %v97, %v7133
    %v7135 = vrot.slane %v7036, %v7134
    %v7136 = vlaneseq
    %v7137 = vshrl.u32 %v7136, 7
    %v7138 = vsub.s32 %v97, %v7137
    %v7139 = vrot.slane %v7039, %v7138
    %v7140 = vlaneseq
    %v7141 = vshrl.u32 %v7140, 7
    %v7142 = vsub.s32 %v97, %v7141
    %v7143 = vrot.slane %v7042, %v7142
    %v7144 = vlaneseq
    %v7145 = vshrl.u32 %v7144, 7
    %v7146 = vsub.s32 %v97, %v7145
    %v7147 = vrot.slane %v7045, %v7146
    %v7148 = vlaneseq
    %v7149 = vshrl.u32 %v7148, 7
    %v7150 = vsub.s32 %v97, %v7149
    %v7151 = vrot.slane %v7048, %v7150
    %v7152 = vlaneseq
    %v7153 = vshrl.u32 %v7152, 7
    %v7154 = vsub.s32 %v97, %v7153
    %v7155 = vrot.slane %v7051, %v7154
    %v7156 = vlaneseq
    %v7157 = vshrl.u32 %v7156, 7
    %v7158 = vsub.s32 %v97, %v7157
    %v7159 = vrot.slane %v7054, %v7158
    %v7160 = vlaneseq
    %v7161 = vshrl.u32 %v7160, 7
    %v7162 = vsub.s32 %v97, %v7161
    %v7163 = vrot.slane %v7057, %v7162
    %v7164 = vlaneseq
    %v7165 = vshrl.u32 %v7164, 7
    %v7166 = vsub.s32 %v97, %v7165
    %v7167 = vrot.slane %v7060, %v7166
    %v7168 = vlaneseq
    %v7169 = vshrl.u32 %v7168, 7
    %v7170 = vsub.s32 %v97, %v7169
    %v7171 = vrot.slane %v7063, %v7170
    %v7172 = vlaneseq
    %v7173 = vshrl.u32 %v7172, 7
    %v7174 = vsub.s32 %v97, %v7173
    %v7175 = vrot.slane %v7066, %v7174
    %v7176 = vlaneseq
    %v7177 = vshrl.u32 %v7176, 7
    %v7178 = vsub.s32 %v97, %v7177
    %v7179 = vrot.slane %v7069, %v7178
    %v7180 = vlaneseq
    %v7181 = vshrl.u32 %v7180, 7
    %v7182 = vsub.s32 %v97, %v7181
    %v7183 = vrot.slane %v7072, %v7182
    %v7184 = vlaneseq
    %v7185 = vshrl.u32 %v7184, 7
    %v7186 = vsub.s32 %v97, %v7185
    %v7187 = vrot.slane %v7075, %v7186
    %v7188 = vlaneseq
    %v7189 = vshrl.u32 %v7188, 7
    %v7190 = vsub.s32 %v97, %v7189
    %v7191 = vrot.slane %v7078, %v7190
    %v7192 = vlaneseq
    %v7193 = vshrl.u32 %v7192, 7
    %v7194 = vsub.s32 %v97, %v7193
    %v7195 = vrot.slane %v7081, %v7194
    %v7196 = vlaneseq
    %v7197 = vshrl.u32 %v7196, 7
    %v7198 = vsub.s32 %v97, %v7197
    %v7199 = vrot.slane %v7084, %v7198
    %v7200 = vlaneseq
    %v7201 = vshrl.u32 %v7200, 7
    %v7202 = vsub.s32 %v97, %v7201
    %v7203 = vrot.slane %v7087, %v7202
    %v7204 = vlaneseq
    %v7205 = vshrl.u32 %v7204, 7
    %v7206 = vsub.s32 %v97, %v7205
    %v7207 = vrot.slane %v7090, %v7206
    %v7208 = vlaneseq
    %v7209 = vshrl.u32 %v7208, 7
    %v7210 = vsub.s32 %v97, %v7209
    %v7211 = vrot.slane %v7093, %v7210
    %v7212 = vlaneseq
    %v7213 = vshrl.u32 %v7212, 7
    %v7214 = vsub.s32 %v97, %v7213
    %v7215 = vrot.slane %v7096, %v7214
    %v7216 = vlaneseq
    %v7217 = vshrl.u32 %v7216, 7
    %v7218 = vsub.s32 %v97, %v7217
    %v7219 = vrot.slane %v7099, %v7218
    %v7220 = vlaneseq
    %v7221 = vshrl.u32 %v7220, 7
    %v7222 = vsub.s32 %v97, %v7221
    %v7223 = vrot.slane %v7102, %v7222
    %v7224 = vlaneseq
    %v7225 = vshrl.u32 %v7224, 7
    %v7226 = vsub.s32 %v97, %v7225
    %v7227 = vrot.slane %v7105, %v7226
    %v7228 = vlaneseq
    %v7229 = vshrl.u32 %v7228, 7
    %v7230 = vsub.s32 %v97, %v7229
    %v7231 = vrot.slane %v7108, %v7230
    %v7232 = vlaneseq
    %v7233 = vshrl.u32 %v7232, 7
    %v7234 = vsub.s32 %v97, %v7233
    %v7235 = vrot.slane %v7111, %v7234
    %v7236 = vlaneseq
    %v7237 = vshrl.u32 %v7236, 7
    %v7238 = vsub.s32 %v97, %v7237
    %v7239 = vrot.slane %v7114, %v7238
    %v7240 = vlaneseq
    %v7241 = vshrl.u32 %v7240, 7
    %v7242 = vsub.s32 %v97, %v7241
    %v7243 = vrot.slane %v7117, %v7242
    %v7244 = vlaneseq
    %v7245 = vshrl.u32 %v7244, 7
    %v7246 = vsub.s32 %v97, %v7245
    %v7247 = vrot.slane %v7120, %v7246
    %v7248 = vlaneseq
    %v7249 = vshrl.u32 %v7248, 7
    %v7250 = vsub.s32 %v97, %v7249
    %v7251 = vrot.slane %v7123, %v7250
    %v7252 = vsel %vm1505, %v7131, %v7127
    %v7253 = vsel %vm1507, %v7135, %v7252
    %v7254 = vsel %vm1509, %v7139, %v7253
    %v7255 = vsel %vm2102, %v7143, %v7254
    %v7256 = vsel %vm2104, %v7147, %v7255
    %v7257 = vsel %vm2106, %v7151, %v7256
    %v7258 = vsel %vm2108, %v7155, %v7257
    %v7259 = vsel %vm1505, %v7163, %v7159
    %v7260 = vsel %vm1507, %v7167, %v7259
    %v7261 = vsel %vm1509, %v7171, %v7260
    %v7262 = vsel %vm2102, %v7175, %v7261
    %v7263 = vsel %vm2104, %v7179, %v7262
    %v7264 = vsel %vm2106, %v7183, %v7263
    %v7265 = vsel %vm2108, %v7187, %v7264
    %v7266 = vsel %vm1505, %v7195, %v7191
    %v7267 = vsel %vm1507, %v7199, %v7266
    %v7268 = vsel %vm1509, %v7203, %v7267
    %v7269 = vsel %vm2102, %v7207, %v7268
    %v7270 = vsel %vm2104, %v7211, %v7269
    %v7271 = vsel %vm2106, %v7215, %v7270
    %v7272 = vsel %vm2108, %v7219, %v7271
    %v7273 = vsel %vm1505, %v7227, %v7223
    %v7274 = vsel %vm1507, %v7231, %v7273
    %v7275 = vsel %vm1509, %v7235, %v7274
    %v7276 = vsel %vm2102, %v7239, %v7275
    %v7277 = vsel %vm2104, %v7243, %v7276
    %v7278 = vsel %vm2106, %v7247, %v7277
    %v7279 = vsel %vm2108, %v7251, %v7278
    %v7280 = vsel %vm1408, %v7258, 2147483647
    %v7281 = vand.u32 %v7280, 65535
    %v7282 = vshra.s32 %v7280, 16
    %v7283 = vcvt.s32.f32 %v7281
    %v7284 = vcvt.s32.f32 %v7282
    %7285 = vmin.xlane.f32.xlu0 %v7284
    %v7286 = vpop.xlane.xlu0 %7285
    %vm7287 = vcmp.eq.f32.partialorder %v7284, %v7286
    %v7288 = vsel %vm7287, %v7283, inf
    %7289 = vmin.xlane.f32.xlu0 %v7288
    %v7290 = vpop.xlane.xlu0 %7289
    %v7291 = vcvt.f32.s32 %v7290
    %v7292 = vcvt.f32.s32 %v7286
    %v7293 = vshll.u32 %v7292, 16
    %v7294 = vadd.s32 %v7293, %v7291
    %v7295 = vsel %vm1408, %v7265, 2147483647
    %v7296 = vand.u32 %v7295, 65535
    %v7297 = vshra.s32 %v7295, 16
    %v7298 = vcvt.s32.f32 %v7296
    %v7299 = vcvt.s32.f32 %v7297
    %7300 = vmin.xlane.f32.xlu0 %v7299
    %v7301 = vpop.xlane.xlu0 %7300
    %vm7302 = vcmp.eq.f32.partialorder %v7299, %v7301
    %v7303 = vsel %vm7302, %v7298, inf
    %7304 = vmin.xlane.f32.xlu0 %v7303
    %v7305 = vpop.xlane.xlu0 %7304
    %v7306 = vcvt.f32.s32 %v7305
    %v7307 = vcvt.f32.s32 %v7301
    %v7308 = vshll.u32 %v7307, 16
    %v7309 = vadd.s32 %v7308, %v7306
    %v7310 = vsel %vm1408, %v7272, 2147483647
    %v7311 = vand.u32 %v7310, 65535
    %v7312 = vshra.s32 %v7310, 16
    %v7313 = vcvt.s32.f32 %v7311
    %v7314 = vcvt.s32.f32 %v7312
    %7315 = vmin.xlane.f32.xlu0 %v7314
    %v7316 = vpop.xlane.xlu0 %7315
    %vm7317 = vcmp.eq.f32.partialorder %v7314, %v7316
    %v7318 = vsel %vm7317, %v7313, inf
    %7319 = vmin.xlane.f32.xlu0 %v7318
    %v7320 = vpop.xlane.xlu0 %7319
    %v7321 = vcvt.f32.s32 %v7320
    %v7322 = vcvt.f32.s32 %v7316
    %v7323 = vshll.u32 %v7322, 16
    %v7324 = vadd.s32 %v7323, %v7321
    %v7325 = vsel %vm1408, %v7279, 2147483647
    %v7326 = vand.u32 %v7325, 65535
    %v7327 = vshra.s32 %v7325, 16
    %v7328 = vcvt.s32.f32 %v7326
    %v7329 = vcvt.s32.f32 %v7327
    %7330 = vmin.xlane.f32.xlu0 %v7329
    %v7331 = vpop.xlane.xlu0 %7330
    %vm7332 = vcmp.eq.f32.partialorder %v7329, %v7331
    %v7333 = vsel %vm7332, %v7328, inf
    %7334 = vmin.xlane.f32.xlu0 %v7333
    %v7335 = vpop.xlane.xlu0 %7334
    %v7336 = vcvt.f32.s32 %v7335
    %v7337 = vcvt.f32.s32 %v7331
    %v7338 = vshll.u32 %v7337, 16
    %v7339 = vadd.s32 %v7338, %v7336
    %v7340 = vlaneseq
    %v7341 = vshrl.u32 %v7340, 7
    %v7342 = vsub.s32 %v97, %v7341
    %v7343 = vrot.slane %v7294, %v7342
    %v7344 = vlaneseq
    %v7345 = vshrl.u32 %v7344, 7
    %v7346 = vsub.s32 %v97, %v7345
    %v7347 = vrot.slane %v7309, %v7346
    %v7348 = vlaneseq
    %v7349 = vshrl.u32 %v7348, 7
    %v7350 = vsub.s32 %v97, %v7349
    %v7351 = vrot.slane %v7324, %v7350
    %v7352 = vlaneseq
    %v7353 = vshrl.u32 %v7352, 7
    %v7354 = vsub.s32 %v97, %v7353
    %v7355 = vrot.slane %v7339, %v7354
    %v7356 = vsel %vm1505, %v7347, %v7343
    %v7357 = vsel %vm1507, %v7351, %v7356
    %v7358 = vsel %vm1509, %v7355, %v7357
    %7359 = vst.msk [vmem:[#allocation5 + $0x1c] sm:$0xf] %vm1511, %v7358
    %v7360 = vld [vmem:[#allocation4 + $0x1c] sm:$0xf]
    %v7362 = vlaneseq
    %v7363 = vshrl.u32 %v7362, 7
    %v7364 = vsub.s32 0, %v7363
    %v7365 = vrot.slane %v7360, %v7364
    %7367 = vbcast.lane.b32.xlu0 %v7365, 256
    %v7368 = vpop.permute.xlu0 %7367
    %v7369 = vlaneseq
    %v7370 = vshrl.u32 %v7369, 7
    %v7371 = vsub.s32 1, %v7370
    %v7372 = vrot.slane %v7360, %v7371
    %7374 = vbcast.lane.b32.xlu0 %v7372, 256
    %v7375 = vpop.permute.xlu0 %7374
    %v7376 = vlaneseq
    %v7377 = vshrl.u32 %v7376, 7
    %v7378 = vsub.s32 2, %v7377
    %v7379 = vrot.slane %v7360, %v7378
    %7381 = vbcast.lane.b32.xlu0 %v7379, 256
    %v7382 = vpop.permute.xlu0 %7381
    %v7383 = vlaneseq
    %v7384 = vshrl.u32 %v7383, 7
    %v7385 = vsub.s32 3, %v7384
    %v7386 = vrot.slane %v7360, %v7385
    %7388 = vbcast.lane.b32.xlu0 %v7386, 256
    %v7389 = vpop.permute.xlu0 %7388
    %v7394 = vadd.f32 %v6790, %v7368
    %v7395 = vadd.f32 %v6793, %v7375
    %v7396 = vadd.f32 %v6796, %v7382
    %v7397 = vadd.f32 %v6799, %v7389
    %v7399 = vlaneseq
    %v7400 = vshrl.u32 %v7399, 7
    %v7401 = vsub.s32 0, %v7400
    %v7402 = vrot.slane %v1356, %v7401
    %7404 = vbcast.lane.b32.xlu0 %v7402, 256
    %v7405 = vpop.permute.xlu0 %7404
    %v7406 = vlaneseq
    %v7407 = vshrl.u32 %v7406, 7
    %v7408 = vsub.s32 1, %v7407
    %v7409 = vrot.slane %v1356, %v7408
    %7411 = vbcast.lane.b32.xlu0 %v7409, 256
    %v7412 = vpop.permute.xlu0 %7411
    %v7413 = vlaneseq
    %v7414 = vshrl.u32 %v7413, 7
    %v7415 = vsub.s32 2, %v7414
    %v7416 = vrot.slane %v1356, %v7415
    %7418 = vbcast.lane.b32.xlu0 %v7416, 256
    %v7419 = vpop.permute.xlu0 %7418
    %v7420 = vlaneseq
    %v7421 = vshrl.u32 %v7420, 7
    %v7422 = vsub.s32 3, %v7421
    %v7423 = vrot.slane %v1356, %v7422
    %7425 = vbcast.lane.b32.xlu0 %v7423, 256
    %v7426 = vpop.permute.xlu0 %7425
    %v7431 = vadd.f32 %v7394, %v7405
    %v7432 = vadd.f32 %v7395, %v7412
    %v7433 = vadd.f32 %v7396, %v7419
    %v7434 = vadd.f32 %v7397, %v7426
    %7439 = vset.pattern.permute.xlu0 0
    %7440 = vperm.xlu0 %7439, %v7431
    %v7441 = vpop.permute.xlu0 %7440
    %7442 = vset.pattern.permute.xlu0 0
    %7443 = vperm.xlu0 %7442, %v7432
    %v7444 = vpop.permute.xlu0 %7443
    %7445 = vset.pattern.permute.xlu0 0
    %7446 = vperm.xlu0 %7445, %v7433
    %v7447 = vpop.permute.xlu0 %7446
    %7448 = vset.pattern.permute.xlu0 0
    %7449 = vperm.xlu0 %7448, %v7434
    %v7450 = vpop.permute.xlu0 %7449
    %v7451 = vlaneseq
    %v7452 = vshrl.u32 %v7451, 7
    %v7453 = vsub.s32 %v97, %v7452
    %v7454 = vrot.slane %v7441, %v7453
    %v7455 = vlaneseq
    %v7456 = vshrl.u32 %v7455, 7
    %v7457 = vsub.s32 %v97, %v7456
    %v7458 = vrot.slane %v7444, %v7457
    %v7459 = vlaneseq
    %v7460 = vshrl.u32 %v7459, 7
    %v7461 = vsub.s32 %v97, %v7460
    %v7462 = vrot.slane %v7447, %v7461
    %v7463 = vlaneseq
    %v7464 = vshrl.u32 %v7463, 7
    %v7465 = vsub.s32 %v97, %v7464
    %v7466 = vrot.slane %v7450, %v7465
    %v7467 = vsel %vm1505, %v7458, %v7454
    %v7468 = vsel %vm1507, %v7462, %v7467
    %v7469 = vsel %vm1509, %v7466, %v7468
    %v7471 = vsel %vm1511, %v7469, -inf
    %7472 = vmax.xlane.f32.xlu0 %v7471
    %v7473 = vpop.xlane.xlu0 %7472
    %v7475 = vlaneseq
    %v7476 = vshrl.u32 %v7475, 7
    %v7477 = vsub.s32 0, %v7476
    %v7478 = vrot.slane %v7473, %v7477
    %v7479 = vlaneseq
    %v7480 = vshrl.u32 %v7479, 7
    %v7481 = vsub.s32 1, %v7480
    %v7482 = vrot.slane %v7473, %v7481
    %v7483 = vlaneseq
    %v7484 = vshrl.u32 %v7483, 7
    %v7485 = vsub.s32 2, %v7484
    %v7486 = vrot.slane %v7473, %v7485
    %v7487 = vlaneseq
    %v7488 = vshrl.u32 %v7487, 7
    %v7489 = vsub.s32 3, %v7488
    %v7490 = vrot.slane %v7473, %v7489
    %vm7495 = vcmp.eq.f32.partialorder %v7431, %v7478
    %vm7496 = vcmp.eq.f32.partialorder %v7432, %v7482
    %vm7497 = vcmp.eq.f32.partialorder %v7433, %v7486
    %vm7498 = vcmp.eq.f32.partialorder %v7434, %v7490
    %v7499 = vsel %vm7495, %v2345, 8
    %v7500 = vsel %vm7496, %v2345, 8
    %v7501 = vsel %vm7497, %v2345, 8
    %v7502 = vsel %vm7498, %v2345, 8
    %7503 = vset.pattern.permute.xlu0 0
    %7504 = vperm.xlu0 %7503, %v7499
    %v7505 = vpop.permute.xlu0 %7504
    %7506 = vset.pattern.permute.xlu0 0
    %7507 = vperm.xlu0 %7506, %v7500
    %v7508 = vpop.permute.xlu0 %7507
    %7509 = vset.pattern.permute.xlu0 0
    %7510 = vperm.xlu0 %7509, %v7501
    %v7511 = vpop.permute.xlu0 %7510
    %7512 = vset.pattern.permute.xlu0 0
    %7513 = vperm.xlu0 %7512, %v7502
    %v7514 = vpop.permute.xlu0 %7513
    %v7515 = vlaneseq
    %v7516 = vshrl.u32 %v7515, 7
    %v7517 = vsub.s32 %v97, %v7516
    %v7518 = vrot.slane %v7505, %v7517
    %v7519 = vlaneseq
    %v7520 = vshrl.u32 %v7519, 7
    %v7521 = vsub.s32 %v97, %v7520
    %v7522 = vrot.slane %v7508, %v7521
    %v7523 = vlaneseq
    %v7524 = vshrl.u32 %v7523, 7
    %v7525 = vsub.s32 %v97, %v7524
    %v7526 = vrot.slane %v7511, %v7525
    %v7527 = vlaneseq
    %v7528 = vshrl.u32 %v7527, 7
    %v7529 = vsub.s32 %v97, %v7528
    %v7530 = vrot.slane %v7514, %v7529
    %v7531 = vsel %vm1505, %v7522, %v7518
    %v7532 = vsel %vm1507, %v7526, %v7531
    %v7533 = vsel %vm1509, %v7530, %v7532
    %v7534 = vsel %vm1511, %v7533, 2147483647
    %v7535 = vand.u32 %v7534, 65535
    %v7536 = vshra.s32 %v7534, 16
    %v7537 = vcvt.s32.f32 %v7535
    %v7538 = vcvt.s32.f32 %v7536
    %7539 = vmin.xlane.f32.xlu0 %v7538
    %v7540 = vpop.xlane.xlu0 %7539
    %vm7541 = vcmp.eq.f32.partialorder %v7538, %v7540
    %v7542 = vsel %vm7541, %v7537, inf
    %7543 = vmin.xlane.f32.xlu0 %v7542
    %v7544 = vpop.xlane.xlu0 %7543
    %v7545 = vcvt.f32.s32 %v7544
    %v7546 = vcvt.f32.s32 %v7540
    %v7547 = vshll.u32 %v7546, 16
    %v7548 = vadd.s32 %v7547, %v7545
    %v7549 = vld [vmem:[#allocation5 + $0x1c] sm:$0xf]
    %vm7550 = vcmp.eq.s32.totalorder %v97, %v7548
    %v7551 = vsel %vm7550, %v7549, 0
    %v7552 = vsel %vm1511, %v7551, 2147483648
    %v7553 = vand.u32 %v7552, 65535
    %v7554 = vshra.s32 %v7552, 16
    %v7555 = vcvt.s32.f32 %v7553
    %v7556 = vcvt.s32.f32 %v7554
    %7557 = vmax.xlane.f32.xlu0 %v7556
    %v7558 = vpop.xlane.xlu0 %7557
    %vm7559 = vcmp.eq.f32.partialorder %v7556, %v7558
    %v7560 = vsel %vm7559, %v7555, -inf
    %7561 = vmax.xlane.f32.xlu0 %v7560
    %v7562 = vpop.xlane.xlu0 %7561
    %v7563 = vcvt.f32.s32 %v7562
    %v7564 = vcvt.f32.s32 %v7558
    %v7565 = vshll.u32 %v7564, 16
    %v7566 = vadd.s32 %v7565, %v7563
    %v7567 = vld [vmem:[#allocation5 + $0x18] sm:$0xf]
    %vm7568 = vcmp.eq.s32.totalorder %v97, %v7566
    %v7569 = vsel %vm7568, %v7567, 0
    %v7570 = vsel %vm1511, %v7569, 2147483648
    %v7571 = vand.u32 %v7570, 65535
    %v7572 = vshra.s32 %v7570, 16
    %v7573 = vcvt.s32.f32 %v7571
    %v7574 = vcvt.s32.f32 %v7572
    %7575 = vmax.xlane.f32.xlu0 %v7574
    %v7576 = vpop.xlane.xlu0 %7575
    %vm7577 = vcmp.eq.f32.partialorder %v7574, %v7576
    %v7578 = vsel %vm7577, %v7573, -inf
    %7579 = vmax.xlane.f32.xlu0 %v7578
    %v7580 = vpop.xlane.xlu0 %7579
    %v7581 = vcvt.f32.s32 %v7580
    %v7582 = vcvt.f32.s32 %v7576
    %v7583 = vshll.u32 %v7582, 16
    %v7584 = vadd.s32 %v7583, %v7581
    %v7585 = vld [vmem:[#allocation5 + $0x14] sm:$0xf]
    %vm7586 = vcmp.eq.s32.totalorder %v97, %v7584
    %v7587 = vsel %vm7586, %v7585, 0
    %v7588 = vsel %vm1511, %v7587, 2147483648
    %v7589 = vand.u32 %v7588, 65535
    %v7590 = vshra.s32 %v7588, 16
    %v7591 = vcvt.s32.f32 %v7589
    %v7592 = vcvt.s32.f32 %v7590
    %7593 = vmax.xlane.f32.xlu0 %v7592
    %v7594 = vpop.xlane.xlu0 %7593
    %vm7595 = vcmp.eq.f32.partialorder %v7592, %v7594
    %v7596 = vsel %vm7595, %v7591, -inf
    %7597 = vmax.xlane.f32.xlu0 %v7596
    %v7598 = vpop.xlane.xlu0 %7597
    %v7599 = vcvt.f32.s32 %v7598
    %v7600 = vcvt.f32.s32 %v7594
    %v7601 = vshll.u32 %v7600, 16
    %v7602 = vadd.s32 %v7601, %v7599
    %v7603 = vld [vmem:[#allocation5 + $0x10] sm:$0xf]
    %vm7604 = vcmp.eq.s32.totalorder %v97, %v7602
    %v7605 = vsel %vm7604, %v7603, 0
    %v7606 = vsel %vm1511, %v7605, 2147483648
    %v7607 = vand.u32 %v7606, 65535
    %v7608 = vshra.s32 %v7606, 16
    %v7609 = vcvt.s32.f32 %v7607
    %v7610 = vcvt.s32.f32 %v7608
    %7611 = vmax.xlane.f32.xlu0 %v7610
    %v7612 = vpop.xlane.xlu0 %7611
    %vm7613 = vcmp.eq.f32.partialorder %v7610, %v7612
    %v7614 = vsel %vm7613, %v7609, -inf
    %7615 = vmax.xlane.f32.xlu0 %v7614
    %v7616 = vpop.xlane.xlu0 %7615
    %v7617 = vcvt.f32.s32 %v7616
    %v7618 = vcvt.f32.s32 %v7612
    %v7619 = vshll.u32 %v7618, 16
    %v7620 = vadd.s32 %v7619, %v7617
    %v7621 = vld [vmem:[#allocation5 + $0xc] sm:$0xf]
    %vm7622 = vcmp.eq.s32.totalorder %v97, %v7620
    %v7623 = vsel %vm7622, %v7621, 0
    %v7624 = vsel %vm1511, %v7623, 2147483648
    %v7625 = vand.u32 %v7624, 65535
    %v7626 = vshra.s32 %v7624, 16
    %v7627 = vcvt.s32.f32 %v7625
    %v7628 = vcvt.s32.f32 %v7626
    %7629 = vmax.xlane.f32.xlu0 %v7628
    %v7630 = vpop.xlane.xlu0 %7629
    %vm7631 = vcmp.eq.f32.partialorder %v7628, %v7630
    %v7632 = vsel %vm7631, %v7627, -inf
    %7633 = vmax.xlane.f32.xlu0 %v7632
    %v7634 = vpop.xlane.xlu0 %7633
    %v7635 = vcvt.f32.s32 %v7634
    %v7636 = vcvt.f32.s32 %v7630
    %v7637 = vshll.u32 %v7636, 16
    %v7638 = vadd.s32 %v7637, %v7635
    %v7639 = vld [vmem:[#allocation5 + $0x8] sm:$0xf]
    %vm7640 = vcmp.eq.s32.totalorder %v97, %v7638
    %v7641 = vsel %vm7640, %v7639, 0
    %v7642 = vsel %vm1511, %v7641, 2147483648
    %v7643 = vand.u32 %v7642, 65535
    %v7644 = vshra.s32 %v7642, 16
    %v7645 = vcvt.s32.f32 %v7643
    %v7646 = vcvt.s32.f32 %v7644
    %7647 = vmax.xlane.f32.xlu0 %v7646
    %v7648 = vpop.xlane.xlu0 %7647
    %vm7649 = vcmp.eq.f32.partialorder %v7646, %v7648
    %v7650 = vsel %vm7649, %v7645, -inf
    %7651 = vmax.xlane.f32.xlu0 %v7650
    %v7652 = vpop.xlane.xlu0 %7651
    %v7653 = vcvt.f32.s32 %v7652
    %v7654 = vcvt.f32.s32 %v7648
    %v7655 = vshll.u32 %v7654, 16
    %v7656 = vadd.s32 %v7655, %v7653
    %v7657 = vld [vmem:[#allocation5 + $0x4] sm:$0xf]
    %vm7658 = vcmp.eq.s32.totalorder %v97, %v7656
    %v7659 = vsel %vm7658, %v7657, 0
    %v7660 = vsel %vm1511, %v7659, 2147483648
    %v7661 = vand.u32 %v7660, 65535
    %v7662 = vshra.s32 %v7660, 16
    %v7663 = vcvt.s32.f32 %v7661
    %v7664 = vcvt.s32.f32 %v7662
    %7665 = vmax.xlane.f32.xlu0 %v7664
    %v7666 = vpop.xlane.xlu0 %7665
    %vm7667 = vcmp.eq.f32.partialorder %v7664, %v7666
    %v7668 = vsel %vm7667, %v7663, -inf
    %7669 = vmax.xlane.f32.xlu0 %v7668
    %v7670 = vpop.xlane.xlu0 %7669
    %v7671 = vcvt.f32.s32 %v7670
    %v7672 = vcvt.f32.s32 %v7666
    %v7673 = vshll.u32 %v7672, 16
    %v7674 = vadd.s32 %v7673, %v7671
    %vm7675 = vcmask 7168
    %v7676 = vsel %vm7675, %v7674, %v7656
    %vm7677 = vcmask 15360
    %v7678 = vsel %vm7677, %v7676, %v7638
    %vm7679 = vcmask 23552
    %v7680 = vsel %vm7679, %v7678, %v7620
    %vm7681 = vcmask 31744
    %v7682 = vsel %vm7681, %v7680, %v7602
    %vm7683 = vcmask 39936
    %v7684 = vsel %vm7683, %v7682, %v7584
    %vm7685 = vcmask 48128
    %v7686 = vsel %vm7685, %v7684, %v7566
    %vm7687 = vcmask 56320
    %v7688 = vsel %vm7687, %v7686, %v7548
    %7689 = vst.msk [vmem:[#allocation14] sm:$0x3] %vm1323, %v7688
    %7690 = vst.msk [vmem:[#allocation15 - $0x2] sm:$0xc] %vm1330, %v7688
    // Predicated region
    $region58: #{em_bilstm_crf_forward.1} parent=1 // pred_check
      _
    $region59: #{em_bilstm_crf_forward.1} parent=1 // pred_check_branch
      %7692 = sbr.rel (0) target = $region61
    $region60: #{em_bilstm_crf_forward.1} parent=1 // pred_region
      %s7694 = ssub.s32 32, 32
      %7695 = vsyncadd [#allocation8], %s7694
      %s7697 = sshll.u32 [#allocation14], 4
      %s7698 = int_to_ptr.vmem [resolvable:$true] %s7697
      %7700 = dma.vmem_to_hbm [thread:$0]  %s7698, 32, %s10, [#allocation8]
    $region61: #{em_bilstm_crf_forward.1} parent=1 // pred_fallthru
      _
    // Predicated region
    $region62: #{em_bilstm_crf_forward.1} parent=1 // pred_check
      _
    $region63: #{em_bilstm_crf_forward.1} parent=1 // pred_check_branch
      %7702 = sbr.rel (0) target = $region65
    $region64: #{em_bilstm_crf_forward.1} parent=1 // pred_region
      %s7704 = ssub.s32 32, 32
      %7705 = vsyncadd [#allocation16], %s7704
      %s7707 = sshll.u32 [#allocation15], 4
      %s7708 = int_to_ptr.vmem [resolvable:$true] %s7707
      %7710 = dma.vmem_to_hbm [thread:$0]  %s7708, 32, %s11, [#allocation16]
    $region65: #{em_bilstm_crf_forward.1} parent=1 // pred_fallthru
      _
    // Predicated region
    $region66: #{em_bilstm_crf_forward.1} parent=1 // pred_check
      _
    $region67: #{em_bilstm_crf_forward.1} parent=1 // pred_check_branch
      %7712 = sbr.rel (0) target = $region69
    $region68: #{em_bilstm_crf_forward.1} parent=1 // pred_region
      %7713 = dma.done [#allocation8], 32
    $region69: #{em_bilstm_crf_forward.1} parent=1 // pred_fallthru
      _
    // Predicated region
    $region70: #{em_bilstm_crf_forward.1} parent=1 // pred_check
      _
    $region71: #{em_bilstm_crf_forward.1} parent=1 // pred_check_branch
      %7715 = sbr.rel (0) target = $region73
    $region72: #{em_bilstm_crf_forward.1} parent=1 // pred_region
      %7716 = dma.done [#allocation16], 32
    $region73: #{em_bilstm_crf_forward.1} parent=1 // pred_fallthru
      _
    %7717 = vsyncpa [#allocation7], 1
    %7718 = vsyncpa [#allocation10], 1
    %7719 = vsyncpa [#allocation13], 1
    %7720 = vsyncpa [#allocation8], 1
    %7721 = vsyncpa [#allocation16], 1

</llo_original>
